<compile_context>
chip_gen: v7x
topology: tpu7x:2x2x1
jax: 0.10.0
libtpu: 0.0.40
codegen_flags: <defaults>
</compile_context>

<pallas_src>
import functools
import numpy as np

import jax
import jax.numpy as jnp
from jax import lax
from jax.experimental import pallas as pl
from jax.experimental.pallas import tpu as pltpu

_INV_SQRT2 = 0.7071067811865476   # 1/sqrt(2) for exact (erf) GELU
_GN_EPS = 1e-5                    # torch GroupNorm default


# ---------------------------------------------------------------------------
# helpers
# ---------------------------------------------------------------------------
def _pick_seq_tile(s, row_bytes, budget=12 * 1024 * 1024, max_tile=4096):
    """Tile along the token axis.

    The tile is used both as the lane dim of channel-major (C, ts) blocks and as
    the sublane dim of token-major (ts, ec) blocks, so it must be a multiple of
    128 and divide S (falls back to full S otherwise)."""
    if s % 128 != 0:
        return s
    best = 128
    t = 128
    while t <= min(s, max_tile):
        if s % t == 0 and 2 * row_bytes * t <= budget:
            best = t
        t += 128
    return best


def _fold_pool_constants(Wf, Hf, D, f3, pw, ph, pd):
    """Pooling matrix + region mask for one (f1, f2) spatial slab (Wf, Hf, D).

    The fold over depth (f3) is baked in: tokens keep their natural (wf, hf, d)
    order; row (k*M + m) of P pools fold-region k's tokens into its m-th
    AdaptiveAvgPool3d center (exactly, for the divisible case); R[row, n] = 1
    iff token n belongs to row's fold region (used to mask similarities)."""
    Df = D // f3
    M = pw * ph * pd
    assert Wf % pw == 0 and Hf % ph == 0 and Df % pd == 0, (
        "pooling matrix only matches AdaptiveAvgPool3d when the folded region "
        f"dims are divisible by the proposal sizes: {(Wf, Hf, Df)} vs {(pw, ph, pd)}")
    bw, bh, bd = Wf // pw, Hf // ph, Df // pd
    Ns = Wf * Hf * D
    n = np.arange(Ns)
    wf = n // (Hf * D)
    hf = (n // D) % Hf
    d = n % D
    k = d // Df
    df = d % Df
    m = (wf // bw) * (ph * pd) + (hf // bh) * pd + (df // bd)
    P = np.zeros((f3 * M, Ns), np.float32)
    P[k * M + m, n] = 1.0 / float(bw * bh * bd)
    row_region = np.arange(f3 * M) // M
    R = (row_region[:, None] == k[None, :]).astype(np.float32)
    return jnp.asarray(P), jnp.asarray(R)


def _head_indicator(heads, head_dim):
    ec = heads * head_dim
    c = np.arange(ec)
    return jnp.asarray((c[None, :] // head_dim == np.arange(heads)[:, None])
                       .astype(np.float32))                     # (E, ec)


# ---------------------------------------------------------------------------
# Kernel 1: GroupNorm(1, C) statistics on the native [B, C, S] layout.
# Per-tile work is pure VPU adds into VMEM scratch; reductions only at the end.
# ---------------------------------------------------------------------------
def _gn_stats_kernel(x_ref, mean_ref, rstd_ref, s_acc, ss_acc, *, eps, inv_count):
    j = pl.program_id(1)

    @pl.when(j == 0)
    def _():
        s_acc[...] = jnp.zeros_like(s_acc)
        ss_acc[...] = jnp.zeros_like(ss_acc)

    x = x_ref[0].astype(jnp.float32)                 # (C, ts)
    s_acc[...] += x
    ss_acc[...] += x * x

    @pl.when(j == pl.num_programs(1) - 1)
    def _():
        tot = jnp.sum(jnp.sum(s_acc[...], axis=1, keepdims=True), axis=0, keepdims=True)
        tot2 = jnp.sum(jnp.sum(ss_acc[...], axis=1, keepdims=True), axis=0, keepdims=True)
        mean = tot * inv_count
        # TODO(synk): E[x^2]-(E[x])^2 can cancel for large-mean activations; a
        # shifted two-pass form would be bitwise-closer to torch if that matters.
        var = tot2 * inv_count - mean * mean
        mean_ref[...] = mean.reshape(1, 1, 1)
        rstd_ref[...] = lax.rsqrt(var + eps).reshape(1, 1, 1)


def gn_stats(x_nat, eps=_GN_EPS):
    B, C, S = x_nat.shape
    ts = _pick_seq_tile(S, row_bytes=4 * C)
    kernel = functools.partial(_gn_stats_kernel, eps=eps, inv_count=1.0 / float(S * C))
    return pl.pallas_call(
        kernel,
        out_shape=(jax.ShapeDtypeStruct((B, 1, 1), jnp.float32),
                   jax.ShapeDtypeStruct((B, 1, 1), jnp.float32)),
        grid=(B, S // ts),
        in_specs=[pl.BlockSpec((1, C, ts), lambda b, j: (b, 0, j))],
        out_specs=(pl.BlockSpec((1, 1, 1), lambda b, j: (b, 0, 0)),
                   pl.BlockSpec((1, 1, 1), lambda b, j: (b, 0, 0))),
        scratch_shapes=[pltpu.VMEM((C, ts), jnp.float32),
                        pltpu.VMEM((C, ts), jnp.float32)],
        compiler_params=pltpu.CompilerParams(
            dimension_semantics=("parallel", "arbitrary")),
    )(x_nat)


# ---------------------------------------------------------------------------
# Kernel 2: fused GroupNorm1 + f/v 1x1x1 convs.
# Reads native (C, ts) blocks (no host transpose), writes token-major
# fv[B, 2, S, ec] (index 0 = similarity features f, index 1 = values v).
# ---------------------------------------------------------------------------
def _gn_fv_kernel(x_ref, mean_ref, rstd_ref, gw_ref, gb_ref,
                  wf_ref, bf_ref, wv_ref, bv_ref, o_ref):
    x = x_ref[0].astype(jnp.float32)                               # (C, ts)
    xn = (x - mean_ref[0]) * rstd_ref[0] * gw_ref[...] + gb_ref[...]
    # token-major outputs: y = xn^T @ W  (contract the channel dim of both)
    yf = lax.dot_general(xn, wf_ref[...], (((0,), (0,)), ((), ())),
                         preferred_element_type=jnp.float32) + bf_ref[...]
    yv = lax.dot_general(xn, wv_ref[...], (((0,), (0,)), ((), ())),
                         preferred_element_type=jnp.float32) + bv_ref[...]
    o_ref[0, 0] = yf.astype(o_ref.dtype)
    o_ref[0, 1] = yv.astype(o_ref.dtype)


def gn_fv_proj(x_nat, mean, rstd, gw, gb, w_f, b_f, w_v, b_v):
    B, C, S = x_nat.shape
    ec = w_f.shape[1]
    ts = _pick_seq_tile(S, row_bytes=4 * (C + 2 * ec))
    ce = pl.CostEstimate(
        flops=int(4 * B * S * C * ec),
        transcendentals=0,
        bytes_accessed=int(4 * (B * S * C + 2 * B * S * ec + 2 * C * ec)))
    return pl.pallas_call(
        _gn_fv_kernel,
        out_shape=jax.ShapeDtypeStruct((B, 2, S, ec), x_nat.dtype),
        grid=(B, S // ts),
        in_specs=[
            pl.BlockSpec((1, C, ts), lambda b, j: (b, 0, j)),
            pl.BlockSpec((1, 1, 1), lambda b, j: (b, 0, 0)),
            pl.BlockSpec((1, 1, 1), lambda b, j: (b, 0, 0)),
            pl.BlockSpec((C, 1), lambda b, j: (0, 0)),
            pl.BlockSpec((C, 1), lambda b, j: (0, 0)),
            pl.BlockSpec((C, ec), lambda b, j: (0, 0)),
            pl.BlockSpec((1, ec), lambda b, j: (0, 0)),
            pl.BlockSpec((C, ec), lambda b, j: (0, 0)),
            pl.BlockSpec((1, ec), lambda b, j: (0, 0)),
        ],
        out_specs=pl.BlockSpec((1, 2, ts, ec), lambda b, j: (b, 0, j, 0)),
        compiler_params=pltpu.CompilerParams(
            dimension_semantics=("parallel", "parallel")),
        cost_estimate=ce,
    )(x_nat, mean, rstd, gw.reshape(C, 1), gb.reshape(C, 1),
      w_f, b_f.reshape(1, ec), w_v, b_v.reshape(1, ec))


# ---------------------------------------------------------------------------
# Kernel 3: cluster core.  One (b, f1, f2) spatial slab per grid step; the f3
# fold is baked into the pooling matrix + region mask, the head split is done
# with 0/1 head-indicator matmuls/masks (no lane reshapes, exact semantics).
# ---------------------------------------------------------------------------
def _cluster_kernel(alpha_ref, beta_ref, xv_ref, p_ref, r_ref, h_ref, o_ref, *, heads):
    xf4 = xv_ref[0, 0]                        # (Wf, Hf, D, ec) similarity features
    xv4 = xv_ref[0, 1]                        # (Wf, Hf, D, ec) values
    Wf, Hf, Dd, ec = xf4.shape
    Ns = Wf * Hf * Dd
    xf = xf4.reshape(Ns, ec).astype(jnp.float32)
    xv = xv4.reshape(Ns, ec).astype(jnp.float32)

    P = p_ref[...]                            # (K*M, Ns) fold-region pooling matrix
    R = r_ref[...]                            # (K*M, Ns) 0/1 region membership
    Hm = h_ref[...]                           # (E, ec)   0/1 head-channel indicator
    KM = P.shape[0]
    alpha = alpha_ref[0]
    beta = beta_ref[0]

    # center proposals (== AdaptiveAvgPool3d per fold region), one shared matmul each
    cf = jnp.dot(P, xf, preferred_element_type=jnp.float32)        # (KM, ec)
    cv = jnp.dot(P, xv, preferred_element_type=jnp.float32)        # (KM, ec) value centers

    # per-head L2 normalization (F.normalize(dim=-1), eps=1e-12) without lane reshapes
    eps = 1e-12

    def head_unit(t):
        sq = lax.dot_general(t * t, Hm, (((1,), (1,)), ((), ())),
                             preferred_element_type=jnp.float32)   # (rows, E)
        inv = lax.rsqrt(jnp.maximum(sq, eps * eps))
        return t * jnp.dot(inv, Hm, preferred_element_type=jnp.float32)

    cn = head_unit(cf)
    xn = head_unit(xf)

    rows = lax.broadcasted_iota(jnp.int32, (KM, Ns), 0)
    out = jnp.zeros((Ns, ec), jnp.float32)
    for e in range(heads):
        he = Hm[e:e + 1, :]                                        # (1, ec)
        # cosine similarity restricted to head e's channels (lane-dense contraction)
        cos = lax.dot_general(cn * he, xn, (((1,), (1,)), ((), ())),
                              preferred_element_type=jnp.float32)  # (KM, Ns)
        sim = jax.nn.sigmoid(beta + alpha * cos) * R               # zero outside own region
        # hard assignment: each token keeps only its (first-occurrence) max center
        smax = jnp.max(sim, axis=0, keepdims=True)
        cand = jnp.where(sim == smax, rows, KM)
        first = jnp.min(cand, axis=0, keepdims=True)
        sim = jnp.where(rows == first, sim, 0.0)

        agg = jnp.dot(sim, xv, preferred_element_type=jnp.float32)          # (KM, ec)
        denom = jnp.sum(sim, axis=1, keepdims=True) + 1.0                   # (KM, 1)
        outc = ((agg + cv) / denom) * he          # exact divide; keep head-e channels only
        out = out + lax.dot_general(sim, outc, (((0,), (0,)), ((), ())),
                                    preferred_element_type=jnp.float32)     # dispatch (Ns, ec)

    o_ref[0] = out.reshape(Wf, Hf, Dd, ec).astype(o_ref.dtype)


def cluster_core(fv5, alpha, beta, *, fold, proposal, heads, head_dim):
    # TODO(synk): return_center=True branch of Cluster (deprecated) not implemented.
    B, _, W, H, D, ec = fv5.shape
    f1, f2, f3 = fold
    pw, ph, pd = proposal
    assert W % f1 == 0 and H % f2 == 0 and D % f3 == 0, "fold must divide spatial dims"
    Wf, Hf = W // f1, H // f2
    P, R = _fold_pool_constants(Wf, Hf, D, f3, pw, ph, pd)
    Hm = _head_indicator(heads, head_dim)
    KM, Ns = P.shape
    steps = B * f1 * f2
    ce = pl.CostEstimate(
        flops=int(steps * 2 * KM * Ns * ec * (2 + 3 * heads)),
        transcendentals=int(steps * heads * KM * Ns),
        bytes_accessed=int(4 * (3 * B * W * H * D * ec + 2 * KM * Ns)))
    kernel = functools.partial(_cluster_kernel, heads=heads)
    return pl.pallas_call(
        kernel,
        out_shape=jax.ShapeDtypeStruct((B, W, H, D, ec), fv5.dtype),
        grid=(B, f1, f2),
        in_specs=[
            pl.BlockSpec(memory_space=pltpu.MemorySpace.SMEM),     # sim_alpha
            pl.BlockSpec(memory_space=pltpu.MemorySpace.SMEM),     # sim_beta
            pl.BlockSpec((1, 2, Wf, Hf, D, ec), lambda b, i, j: (b, 0, i, j, 0, 0)),
            pl.BlockSpec((KM, Ns), lambda b, i, j: (0, 0)),
            pl.BlockSpec((KM, Ns), lambda b, i, j: (0, 0)),
            pl.BlockSpec((heads, ec), lambda b, i, j: (0, 0)),
        ],
        out_specs=pl.BlockSpec((1, Wf, Hf, D, ec), lambda b, i, j: (b, i, j, 0, 0)),
        compiler_params=pltpu.CompilerParams(
            dimension_semantics=("parallel", "parallel", "parallel")),
        cost_estimate=ce,
    )(alpha, beta, fv5, P, R, Hm)


# ---------------------------------------------------------------------------
# Kernel 4: fused proj 1x1x1 conv + layer-scale-1 + residual add, writing the
# native [B, C, S] layout, with GroupNorm2 statistics fused in (x1 never
# re-read from HBM for stats).
# ---------------------------------------------------------------------------
def _proj_residual_kernel(mix_ref, res_ref, w_ref, b_ref, ls_ref,
                          o_ref, mean_ref, rstd_ref, s_acc, ss_acc, *, eps, inv_count):
    j = pl.program_id(1)

    @pl.when(j == 0)
    def _():
        s_acc[...] = jnp.zeros_like(s_acc)
        ss_acc[...] = jnp.zeros_like(ss_acc)

    mix = mix_ref[0].astype(jnp.float32)         # (ts, ec) token-major mixer output
    res = res_ref[0].astype(jnp.float32)         # (C, ts)  channel-major residual (x)
    y = lax.dot_general(w_ref[...], mix, (((1,), (1,)), ((), ())),
                        preferred_element_type=jnp.float32)        # (C, ts)
    out = res + ls_ref[...] * (y + b_ref[...])
    o_ref[0] = out.astype(o_ref.dtype)

    s_acc[...] += out
    ss_acc[...] += out * out

    @pl.when(j == pl.num_programs(1) - 1)
    def _():
        tot = jnp.sum(jnp.sum(s_acc[...], axis=1, keepdims=True), axis=0, keepdims=True)
        tot2 = jnp.sum(jnp.sum(ss_acc[...], axis=1, keepdims=True), axis=0, keepdims=True)
        mean = tot * inv_count
        var = tot2 * inv_count - mean * mean
        mean_ref[...] = mean.reshape(1, 1, 1)
        rstd_ref[...] = lax.rsqrt(var + eps).reshape(1, 1, 1)


def proj_residual(mix, x_nat, w_proj, b_proj, ls1, eps=_GN_EPS):
    B, S, ec = mix.shape
    _, C, _ = x_nat.shape
    ts = _pick_seq_tile(S, row_bytes=4 * (ec + 2 * C))
    kernel = functools.partial(_proj_residual_kernel, eps=eps, inv_count=1.0 / float(S * C))
    ce = pl.CostEstimate(
        flops=int(2 * B * S * ec * C),
        transcendentals=0,
        bytes_accessed=int(4 * (B * S * ec + 2 * B * S * C + ec * C)))
    return pl.pallas_call(
        kernel,
        out_shape=(jax.ShapeDtypeStruct((B, C, S), x_nat.dtype),
                   jax.ShapeDtypeStruct((B, 1, 1), jnp.float32),
                   jax.ShapeDtypeStruct((B, 1, 1), jnp.float32)),
        grid=(B, S // ts),
        in_specs=[
            pl.BlockSpec((1, ts, ec), lambda b, j: (b, j, 0)),
            pl.BlockSpec((1, C, ts), lambda b, j: (b, 0, j)),
            pl.BlockSpec((C, ec), lambda b, j: (0, 0)),
            pl.BlockSpec((C, 1), lambda b, j: (0, 0)),
            pl.BlockSpec((C, 1), lambda b, j: (0, 0)),
        ],
        out_specs=(pl.BlockSpec((1, C, ts), lambda b, j: (b, 0, j)),
                   pl.BlockSpec((1, 1, 1), lambda b, j: (b, 0, 0)),
                   pl.BlockSpec((1, 1, 1), lambda b, j: (b, 0, 0))),
        scratch_shapes=[pltpu.VMEM((C, ts), jnp.float32),
                        pltpu.VMEM((C, ts), jnp.float32)],
        compiler_params=pltpu.CompilerParams(
            dimension_semantics=("parallel", "arbitrary")),
        cost_estimate=ce,
    )(mix, x_nat, w_proj, b_proj.reshape(C, 1), ls1.reshape(C, 1))


# ---------------------------------------------------------------------------
# Kernel 5: fused GroupNorm2 + MLP (fc1 + GELU + fc2) + layer-scale-2 + residual,
# entirely in the native [B, C, S] layout (the hidden never leaves VMEM).
# ---------------------------------------------------------------------------
def _gn_mlp_residual_kernel(x_ref, mean_ref, rstd_ref, gw_ref, gb_ref,
                            w1_ref, b1_ref, w2_ref, b2_ref, ls_ref, o_ref):
    x = x_ref[0].astype(jnp.float32)                               # (C, ts)
    xn = (x - mean_ref[0]) * rstd_ref[0] * gw_ref[...] + gb_ref[...]
    h = jnp.dot(w1_ref[...], xn, preferred_element_type=jnp.float32) + b1_ref[...]  # (Hd, ts)
    # exact erf GELU to match torch nn.GELU default numerics.
    # TODO(synk): tanh-approx GELU would move this to the EUP slot (changes numerics).
    h = 0.5 * h * (1.0 + lax.erf(h * _INV_SQRT2))
    y = jnp.dot(w2_ref[...], h, preferred_element_type=jnp.float32) + b2_ref[...]    # (C, ts)
    # TODO(synk): nn.Dropout(p=0.1) is identity at inference; not applied here.
    o_ref[0] = (x + ls_ref[...] * y).astype(o_ref.dtype)


def gn_mlp_residual(x1, mean, rstd, gw, gb, w1, b1, w2, b2, ls2):
    B, C, S = x1.shape
    Hd = w1.shape[0]
    ts = _pick_seq_tile(S, row_bytes=4 * (2 * C + Hd))
    ce = pl.CostEstimate(
        flops=int(4 * B * S * C * Hd),
        transcendentals=int(B * S * Hd),
        bytes_accessed=int(4 * (2 * B * S * C + 2 * C * Hd)))
    return pl.pallas_call(
        _gn_mlp_residual_kernel,
        out_shape=jax.ShapeDtypeStruct((B, C, S), x1.dtype),
        grid=(B, S // ts),
        in_specs=[
            pl.BlockSpec((1, C, ts), lambda b, j: (b, 0, j)),
            pl.BlockSpec((1, 1, 1), lambda b, j: (b, 0, 0)),
            pl.BlockSpec((1, 1, 1), lambda b, j: (b, 0, 0)),
            pl.BlockSpec((C, 1), lambda b, j: (0, 0)),
            pl.BlockSpec((C, 1), lambda b, j: (0, 0)),
            pl.BlockSpec((Hd, C), lambda b, j: (0, 0)),
            pl.BlockSpec((Hd, 1), lambda b, j: (0, 0)),
            pl.BlockSpec((C, Hd), lambda b, j: (0, 0)),
            pl.BlockSpec((C, 1), lambda b, j: (0, 0)),
            pl.BlockSpec((C, 1), lambda b, j: (0, 0)),
        ],
        out_specs=pl.BlockSpec((1, C, ts), lambda b, j: (b, 0, j)),
        compiler_params=pltpu.CompilerParams(
            dimension_semantics=("parallel", "parallel")),
        cost_estimate=ce,
    )(x1, mean, rstd, gw.reshape(C, 1), gb.reshape(C, 1),
      w1, b1.reshape(Hd, 1), w2, b2.reshape(C, 1), ls2.reshape(C, 1))


# ---------------------------------------------------------------------------
# block forward (no host-side transposes; only free reshapes)
# ---------------------------------------------------------------------------
def cluster_block_forward(x, params, *, heads, head_dim, fold, proposal):
    B, C, W, H, D = x.shape
    S = W * H * D
    ec = heads * head_dim
    x_nat = x.reshape(B, C, S)                       # channel-major tokens (free view)

    # --- x = x + ls1 * token_mixer(norm1(x)) ---
    mean1, rstd1 = gn_stats(x_nat)
    fv = gn_fv_proj(x_nat, mean1, rstd1, params["gn1_w"], params["gn1_b"],
                    params["w_f"], params["b_f"], params["w_v"], params["b_v"])
    f1, f2, f3 = fold
    if not (f1 > 1 and f2 > 1):                      # mirror the torch fold condition
        f1, f2, f3 = 1, 1, 1
    mix = cluster_core(fv.reshape(B, 2, W, H, D, ec),
                       params["sim_alpha"], params["sim_beta"],
                       fold=(f1, f2, f3), proposal=proposal,
                       heads=heads, head_dim=head_dim)           # [B, W, H, D, ec]
    x1, mean2, rstd2 = proj_residual(mix.reshape(B, S, ec), x_nat,
                                     params["w_proj"], params["b_proj"], params["ls1"])

    # --- x = x + ls2 * mlp(norm2(x)) ---
    out = gn_mlp_residual(x1, mean2, rstd2, params["gn2_w"], params["gn2_b"],
                          params["w_fc1"], params["b_fc1"],
                          params["w_fc2"], params["b_fc2"], params["ls2"])
    return out.reshape(B, C, W, H, D)


def init_params(key, dim, heads, head_dim, mlp_ratio):
    ec = heads * head_dim
    hidden = int(dim * mlp_ratio)
    ks = jax.random.split(key, 8)

    def w(k, shape):
        return (0.02 * jax.random.normal(k, shape)).astype(jnp.float32)

    return dict(
        gn1_w=jnp.ones((dim,), jnp.float32), gn1_b=jnp.zeros((dim,), jnp.float32),
        gn2_w=jnp.ones((dim,), jnp.float32), gn2_b=jnp.zeros((dim,), jnp.float32),
        # f / v 1x1x1 convs stored as (in, out) matmul weights
        w_f=w(ks[0], (dim, ec)), b_f=w(ks[1], (ec,)),
        w_v=w(ks[2], (dim, ec)), b_v=w(ks[3], (ec,)),
        # proj 1x1x1 conv kept in torch (out, in) layout
        w_proj=w(ks[4], (dim, ec)), b_proj=w(ks[5], (dim,)),
        sim_alpha=jnp.ones((1,), jnp.float32),       # torch init: ones(1)
        sim_beta=jnp.zeros((1,), jnp.float32),       # torch init: zeros(1)
        # MLP linears kept in torch (out, in) layout
        w_fc1=w(ks[6], (hidden, dim)), b_fc1=jnp.zeros((hidden,), jnp.float32),
        w_fc2=w(ks[7], (dim, hidden)), b_fc2=jnp.zeros((dim,), jnp.float32),
        ls1=1e-5 * jnp.ones((dim,), jnp.float32),
        ls2=1e-5 * jnp.ones((dim,), jnp.float32),
    )


if __name__ == "__main__":
    B, dim, W, H, D = 2, 16, 8, 8, 8
    heads, head_dim = 4, 24
    fold = (2, 2, 2)
    proposal = (2, 2, 2)

    key = jax.random.PRNGKey(0)
    kx, kp = jax.random.split(key)
    params = init_params(kp, dim, heads, head_dim, mlp_ratio=4.0)
    x = jax.random.normal(kx, (B, dim, W, H, D), jnp.float32)

    fwd = jax.jit(functools.partial(
        cluster_block_forward, heads=heads, head_dim=head_dim,
        fold=fold, proposal=proposal))

    out = fwd(x, params)
    jax.block_until_ready(out)
    assert out.shape == (B, dim, W, H, D)
    assert out.dtype == jnp.float32
    assert bool(jnp.all(jnp.isfinite(out)))
    print("KERNEL_OK")
</pallas_src>

<mosaic_0001>
module attributes {stable_mosaic.version = 11 : i64} {
  func.func @_gn_fv_kernel(%arg0: i32, %arg1: i32, %arg2: memref<1x16x512xf32, #tpu.memory_space<vmem>>, %arg3: memref<1x1x1xf32, #tpu.memory_space<vmem>>, %arg4: memref<1x1x1xf32, #tpu.memory_space<vmem>>, %arg5: memref<16x1xf32, #tpu.memory_space<vmem>>, %arg6: memref<16x1xf32, #tpu.memory_space<vmem>>, %arg7: memref<16x96xf32, #tpu.memory_space<vmem>>, %arg8: memref<1x96xf32, #tpu.memory_space<vmem>>, %arg9: memref<16x96xf32, #tpu.memory_space<vmem>>, %arg10: memref<1x96xf32, #tpu.memory_space<vmem>>, %arg11: memref<1x2x512x96xf32, #tpu.memory_space<vmem>>) attributes {dimension_semantics = [#tpu.dimension_semantics<parallel>, #tpu.dimension_semantics<parallel>], iteration_bounds = array<i64: 2, 1>, scalar_prefetch = 0 : i64, scratch_operands = 0 : i64, tpu.core_type = #tpu.core_type<tc>, window_params = [{transform_indices = @transform_0, window_bounds = array<i64: 1, 16, 512>}, {transform_indices = @transform_1, window_bounds = array<i64: 1, 1, 1>}, {transform_indices = @transform_2, window_bounds = array<i64: 1, 1, 1>}, {pipeline_mode = #tpu.pipeline_mode<synchronous>, transform_indices = @transform_3, window_bounds = array<i64: 16, 1>}, {pipeline_mode = #tpu.pipeline_mode<synchronous>, transform_indices = @transform_4, window_bounds = array<i64: 16, 1>}, {pipeline_mode = #tpu.pipeline_mode<synchronous>, transform_indices = @transform_5, window_bounds = array<i64: 16, 96>}, {pipeline_mode = #tpu.pipeline_mode<synchronous>, transform_indices = @transform_6, window_bounds = array<i64: 1, 96>}, {pipeline_mode = #tpu.pipeline_mode<synchronous>, transform_indices = @transform_7, window_bounds = array<i64: 16, 96>}, {pipeline_mode = #tpu.pipeline_mode<synchronous>, transform_indices = @transform_8, window_bounds = array<i64: 1, 96>}, {transform_indices = @transform_9, window_bounds = array<i64: 1, 2, 512, 96>}]} {
    %c0 = arith.constant 0 : index
    %c0_0 = arith.constant 0 : index
    %c0_1 = arith.constant 0 : index
    %0 = vector.load %arg2[%c0, %c0_0, %c0_1] : memref<1x16x512xf32, #tpu.memory_space<vmem>>, vector<1x16x512xf32>
    %1 = vector.shape_cast %0 : vector<1x16x512xf32> to vector<16x512xf32>
    %c0_2 = arith.constant 0 : index
    %c0_3 = arith.constant 0 : index
    %c0_4 = arith.constant 0 : index
    %2 = vector.load %arg3[%c0_2, %c0_3, %c0_4] : memref<1x1x1xf32, #tpu.memory_space<vmem>>, vector<1x1x1xf32>
    %3 = vector.shape_cast %2 : vector<1x1x1xf32> to vector<1x1xf32>
    %4 = vector.broadcast %3 : vector<1x1xf32> to vector<16x512xf32>
    %5 = arith.subf %1, %4 : vector<16x512xf32>
    %c0_5 = arith.constant 0 : index
    %c0_6 = arith.constant 0 : index
    %c0_7 = arith.constant 0 : index
    %6 = vector.load %arg4[%c0_5, %c0_6, %c0_7] : memref<1x1x1xf32, #tpu.memory_space<vmem>>, vector<1x1x1xf32>
    %7 = vector.shape_cast %6 : vector<1x1x1xf32> to vector<1x1xf32>
    %8 = vector.broadcast %7 : vector<1x1xf32> to vector<16x512xf32>
    %9 = arith.mulf %5, %8 : vector<16x512xf32>
    %c0_8 = arith.constant 0 : index
    %c0_9 = arith.constant 0 : index
    %10 = vector.load %arg5[%c0_8, %c0_9] : memref<16x1xf32, #tpu.memory_space<vmem>>, vector<16x1xf32>
    %11 = vector.broadcast %10 : vector<16x1xf32> to vector<16x512xf32>
    %12 = arith.mulf %9, %11 : vector<16x512xf32>
    %c0_10 = arith.constant 0 : index
    %c0_11 = arith.constant 0 : index
    %13 = vector.load %arg6[%c0_10, %c0_11] : memref<16x1xf32, #tpu.memory_space<vmem>>, vector<16x1xf32>
    %14 = vector.broadcast %13 : vector<16x1xf32> to vector<16x512xf32>
    %15 = arith.addf %12, %14 : vector<16x512xf32>
    %c0_12 = arith.constant 0 : index
    %c0_13 = arith.constant 0 : index
    %16 = vector.load %arg7[%c0_12, %c0_13] : memref<16x96xf32, #tpu.memory_space<vmem>>, vector<16x96xf32>
    %cst = arith.constant dense<0.000000e+00> : vector<512x96xf32>
    %17 = tpu.matmul %15, %16, %cst {dimension_numbers = #tpu.dot_dimension_numbers<[0], [0], [1], [1], [0, 1, 1, 1], [], []>} : vector<16x512xf32>, vector<16x96xf32>, vector<512x96xf32> -> vector<512x96xf32>
    %c0_14 = arith.constant 0 : index
    %c0_15 = arith.constant 0 : index
    %18 = vector.load %arg8[%c0_14, %c0_15] : memref<1x96xf32, #tpu.memory_space<vmem>>, vector<1x96xf32>
    %19 = vector.broadcast %18 : vector<1x96xf32> to vector<512x96xf32>
    %20 = arith.addf %17, %19 : vector<512x96xf32>
    %c0_16 = arith.constant 0 : index
    %c0_17 = arith.constant 0 : index
    %21 = vector.load %arg9[%c0_16, %c0_17] : memref<16x96xf32, #tpu.memory_space<vmem>>, vector<16x96xf32>
    %cst_18 = arith.constant dense<0.000000e+00> : vector<512x96xf32>
    %22 = tpu.matmul %15, %21, %cst_18 {dimension_numbers = #tpu.dot_dimension_numbers<[0], [0], [1], [1], [0, 1, 1, 1], [], []>} : vector<16x512xf32>, vector<16x96xf32>, vector<512x96xf32> -> vector<512x96xf32>
    %c0_19 = arith.constant 0 : index
    %c0_20 = arith.constant 0 : index
    %23 = vector.load %arg10[%c0_19, %c0_20] : memref<1x96xf32, #tpu.memory_space<vmem>>, vector<1x96xf32>
    %24 = vector.broadcast %23 : vector<1x96xf32> to vector<512x96xf32>
    %25 = arith.addf %22, %24 : vector<512x96xf32>
    %c0_21 = arith.constant 0 : index
    %c0_22 = arith.constant 0 : index
    %c0_23 = arith.constant 0 : index
    %c0_24 = arith.constant 0 : index
    %26 = vector.load %arg11[%c0_21, %c0_22, %c0_23, %c0_24] : memref<1x2x512x96xf32, #tpu.memory_space<vmem>>, vector<1x1x512x96xf32>
    %27 = vector.shape_cast %26 : vector<1x1x512x96xf32> to vector<512x96xf32>
    %28 = vector.shape_cast %20 : vector<512x96xf32> to vector<1x1x512x96xf32>
    tpu.vector_store %arg11[%c0_21, %c0_22, %c0_23, %c0_24], %28 {strides = array<i32>} : memref<1x2x512x96xf32, #tpu.memory_space<vmem>>, vector<1x1x512x96xf32>,
    %c0_25 = arith.constant 0 : index
    %c1 = arith.constant 1 : index
    %c0_26 = arith.constant 0 : index
    %c0_27 = arith.constant 0 : index
    %29 = vector.load %arg11[%c0_25, %c1, %c0_26, %c0_27] : memref<1x2x512x96xf32, #tpu.memory_space<vmem>>, vector<1x1x512x96xf32>
    %30 = vector.shape_cast %29 : vector<1x1x512x96xf32> to vector<512x96xf32>
    %31 = vector.shape_cast %25 : vector<512x96xf32> to vector<1x1x512x96xf32>
    tpu.vector_store %arg11[%c0_25, %c1, %c0_26, %c0_27], %31 {strides = array<i32>} : memref<1x2x512x96xf32, #tpu.memory_space<vmem>>, vector<1x1x512x96xf32>,
    return
  }
  func.func @transform_0(%arg0: i32, %arg1: i32) -> (i32, i32, i32) {
    %c0_i32 = arith.constant 0 : i32
    %c0_i32_0 = arith.constant 0 : i32
    return %arg0, %c0_i32, %arg1 : i32, i32, i32
  }
  func.func @transform_1(%arg0: i32, %arg1: i32) -> (i32, i32, i32) {
    %c0_i32 = arith.constant 0 : i32
    %c0_i32_0 = arith.constant 0 : i32
    %c0_i32_1 = arith.constant 0 : i32
    return %arg0, %c0_i32, %c0_i32_0 : i32, i32, i32
  }
  func.func @transform_2(%arg0: i32, %arg1: i32) -> (i32, i32, i32) {
    %c0_i32 = arith.constant 0 : i32
    %c0_i32_0 = arith.constant 0 : i32
    %c0_i32_1 = arith.constant 0 : i32
    return %arg0, %c0_i32, %c0_i32_0 : i32, i32, i32
  }
  func.func @transform_3(%arg0: i32, %arg1: i32) -> (i32, i32) {
    %c0_i32 = arith.constant 0 : i32
    %c0_i32_0 = arith.constant 0 : i32
    %c0_i32_1 = arith.constant 0 : i32
    return %c0_i32, %c0_i32_0 : i32, i32
  }
  func.func @transform_4(%arg0: i32, %arg1: i32) -> (i32, i32) {
    %c0_i32 = arith.constant 0 : i32
    %c0_i32_0 = arith.constant 0 : i32
    %c0_i32_1 = arith.constant 0 : i32
    return %c0_i32, %c0_i32_0 : i32, i32
  }
  func.func @transform_5(%arg0: i32, %arg1: i32) -> (i32, i32) {
    %c0_i32 = arith.constant 0 : i32
    %c0_i32_0 = arith.constant 0 : i32
    %c0_i32_1 = arith.constant 0 : i32
    return %c0_i32, %c0_i32_0 : i32, i32
  }
  func.func @transform_6(%arg0: i32, %arg1: i32) -> (i32, i32) {
    %c0_i32 = arith.constant 0 : i32
    %c0_i32_0 = arith.constant 0 : i32
    %c0_i32_1 = arith.constant 0 : i32
    return %c0_i32, %c0_i32_0 : i32, i32
  }
  func.func @transform_7(%arg0: i32, %arg1: i32) -> (i32, i32) {
    %c0_i32 = arith.constant 0 : i32
    %c0_i32_0 = arith.constant 0 : i32
    %c0_i32_1 = arith.constant 0 : i32
    return %c0_i32, %c0_i32_0 : i32, i32
  }
  func.func @transform_8(%arg0: i32, %arg1: i32) -> (i32, i32) {
    %c0_i32 = arith.constant 0 : i32
    %c0_i32_0 = arith.constant 0 : i32
    %c0_i32_1 = arith.constant 0 : i32
    return %c0_i32, %c0_i32_0 : i32, i32
  }
  func.func @transform_9(%arg0: i32, %arg1: i32) -> (i32, i32, i32, i32) {
    %c0_i32 = arith.constant 0 : i32
    %c0_i32_0 = arith.constant 0 : i32
    %c0_i32_1 = arith.constant 0 : i32
    return %arg0, %c0_i32, %arg1, %c0_i32_0 : i32, i32, i32, i32
  }
}

module attributes {stable_mosaic.version = 11 : i64} {
  func.func @_gn_stats_kernel(%arg0: i32, %arg1: i32, %arg2: memref<1x16x512xf32, #tpu.memory_space<vmem>>, %arg3: memref<1x1x1xf32, #tpu.memory_space<vmem>>, %arg4: memref<1x1x1xf32, #tpu.memory_space<vmem>>, %arg5: memref<16x512xf32, #tpu.memory_space<vmem>>, %arg6: memref<16x512xf32, #tpu.memory_space<vmem>>) attributes {dimension_semantics = [#tpu.dimension_semantics<parallel>, #tpu.dimension_semantics<arbitrary>], iteration_bounds = array<i64: 2, 1>, scalar_prefetch = 0 : i64, scratch_operands = 2 : i64, tpu.core_type = #tpu.core_type<tc>, window_params = [{transform_indices = @transform_0, window_bounds = array<i64: 1, 16, 512>}, {transform_indices = @transform_1, window_bounds = array<i64: 1, 1, 1>}, {transform_indices = @transform_2, window_bounds = array<i64: 1, 1, 1>}]} {
    %c0_i32 = arith.constant 0 : i32
    %0 = arith.cmpi eq, %arg1, %c0_i32 : i32
    %1 = arith.extui %0 : i1 to i32
    %c0_i32_0 = arith.constant 0 : i32
    %2 = arith.cmpi ne, %1, %c0_i32_0 : i32
    scf.if %2 {
      %cst = arith.constant 0.000000e+00 : f32
      %15 = vector.broadcast %cst : f32 to vector<16x512xf32>
      %c0_13 = arith.constant 0 : index
      %c0_14 = arith.constant 0 : index
      %16 = vector.load %arg5[%c0_13, %c0_14] : memref<16x512xf32, #tpu.memory_space<vmem>>, vector<16x512xf32>
      tpu.vector_store %arg5[%c0_13, %c0_14], %15 {strides = array<i32>} : memref<16x512xf32, #tpu.memory_space<vmem>>, vector<16x512xf32>,
      %cst_15 = arith.constant 0.000000e+00 : f32
      %17 = vector.broadcast %cst_15 : f32 to vector<16x512xf32>
      %c0_16 = arith.constant 0 : index
      %c0_17 = arith.constant 0 : index
      %18 = vector.load %arg6[%c0_16, %c0_17] : memref<16x512xf32, #tpu.memory_space<vmem>>, vector<16x512xf32>
      tpu.vector_store %arg6[%c0_16, %c0_17], %17 {strides = array<i32>} : memref<16x512xf32, #tpu.memory_space<vmem>>, vector<16x512xf32>,
    } else {
    }
    %c0 = arith.constant 0 : index
    %c0_1 = arith.constant 0 : index
    %c0_2 = arith.constant 0 : index
    %3 = vector.load %arg2[%c0, %c0_1, %c0_2] : memref<1x16x512xf32, #tpu.memory_space<vmem>>, vector<1x16x512xf32>
    %4 = vector.shape_cast %3 : vector<1x16x512xf32> to vector<16x512xf32>
    %c0_3 = arith.constant 0 : index
    %c0_4 = arith.constant 0 : index
    %5 = vector.load %arg5[%c0_3, %c0_4] : memref<16x512xf32, #tpu.memory_space<vmem>>, vector<16x512xf32>
    %6 = arith.addf %5, %4 : vector<16x512xf32>
    %c0_5 = arith.constant 0 : index
    %c0_6 = arith.constant 0 : index
    %7 = vector.load %arg5[%c0_5, %c0_6] : memref<16x512xf32, #tpu.memory_space<vmem>>, vector<16x512xf32>
    tpu.vector_store %arg5[%c0_5, %c0_6], %6 {strides = array<i32>} : memref<16x512xf32, #tpu.memory_space<vmem>>, vector<16x512xf32>,
    %c0_7 = arith.constant 0 : index
    %c0_8 = arith.constant 0 : index
    %8 = vector.load %arg6[%c0_7, %c0_8] : memref<16x512xf32, #tpu.memory_space<vmem>>, vector<16x512xf32>
    %9 = arith.mulf %4, %4 : vector<16x512xf32>
    %10 = arith.addf %8, %9 : vector<16x512xf32>
    %c0_9 = arith.constant 0 : index
    %c0_10 = arith.constant 0 : index
    %11 = vector.load %arg6[%c0_9, %c0_10] : memref<16x512xf32, #tpu.memory_space<vmem>>, vector<16x512xf32>
    tpu.vector_store %arg6[%c0_9, %c0_10], %10 {strides = array<i32>} : memref<16x512xf32, #tpu.memory_space<vmem>>, vector<16x512xf32>,
    %c0_i32_11 = arith.constant 0 : i32
    %12 = arith.cmpi eq, %arg1, %c0_i32_11 : i32
    %13 = arith.extui %12 : i1 to i32
    %c0_i32_12 = arith.constant 0 : i32
    %14 = arith.cmpi ne, %13, %c0_i32_12 : i32
    scf.if %14 {
      %c0_13 = arith.constant 0 : index
      %c0_14 = arith.constant 0 : index
      %15 = vector.load %arg5[%c0_13, %c0_14] : memref<16x512xf32, #tpu.memory_space<vmem>>, vector<16x512xf32>
      %cst = arith.constant dense<0.000000e+00> : vector<16xf32>
      %16 = vector.multi_reduction <add>, %15, %cst [1] : vector<16x512xf32> to vector<16xf32>
      %17 = vector.shape_cast %16 : vector<16xf32> to vector<16x1xf32>
      %cst_15 = arith.constant dense<0.000000e+00> : vector<1xf32>
      %18 = vector.multi_reduction <add>, %17, %cst_15 [0] : vector<16x1xf32> to vector<1xf32>
      %19 = vector.shape_cast %18 : vector<1xf32> to vector<1x1xf32>
      %c0_16 = arith.constant 0 : index
      %c0_17 = arith.constant 0 : index
      %20 = vector.load %arg6[%c0_16, %c0_17] : memref<16x512xf32, #tpu.memory_space<vmem>>, vector<16x512xf32>
      %cst_18 = arith.constant dense<0.000000e+00> : vector<16xf32>
      %21 = vector.multi_reduction <add>, %20, %cst_18 [1] : vector<16x512xf32> to vector<16xf32>
      %22 = vector.shape_cast %21 : vector<16xf32> to vector<16x1xf32>
      %cst_19 = arith.constant dense<0.000000e+00> : vector<1xf32>
      %23 = vector.multi_reduction <add>, %22, %cst_19 [0] : vector<16x1xf32> to vector<1xf32>
      %24 = vector.shape_cast %23 : vector<1xf32> to vector<1x1xf32>
      %cst_20 = arith.constant 1.22070313E-4 : f32
      %25 = vector.broadcast %cst_20 : f32 to vector<1x1xf32>
      %26 = arith.mulf %19, %25 : vector<1x1xf32>
      %cst_21 = arith.constant 1.22070313E-4 : f32
      %27 = vector.broadcast %cst_21 : f32 to vector<1x1xf32>
      %28 = arith.mulf %24, %27 : vector<1x1xf32>
      %29 = arith.mulf %26, %26 : vector<1x1xf32>
      %30 = arith.subf %28, %29 : vector<1x1xf32>
      %31 = vector.shape_cast %26 : vector<1x1xf32> to vector<1x1x1xf32>
      %c0_22 = arith.constant 0 : index
      %c0_23 = arith.constant 0 : index
      %c0_24 = arith.constant 0 : index
      %32 = vector.load %arg3[%c0_22, %c0_23, %c0_24] : memref<1x1x1xf32, #tpu.memory_space<vmem>>, vector<1x1x1xf32>
      tpu.vector_store %arg3[%c0_22, %c0_23, %c0_24], %31 {strides = array<i32>} : memref<1x1x1xf32, #tpu.memory_space<vmem>>, vector<1x1x1xf32>,
      %cst_25 = arith.constant 9.99999974E-6 : f32
      %33 = vector.broadcast %cst_25 : f32 to vector<1x1xf32>
      %34 = arith.addf %30, %33 : vector<1x1xf32>
      %35 = math.rsqrt %34 : vector<1x1xf32>
      %36 = vector.shape_cast %35 : vector<1x1xf32> to vector<1x1x1xf32>
      %c0_26 = arith.constant 0 : index
      %c0_27 = arith.constant 0 : index
      %c0_28 = arith.constant 0 : index
      %37 = vector.load %arg4[%c0_26, %c0_27, %c0_28] : memref<1x1x1xf32, #tpu.memory_space<vmem>>, vector<1x1x1xf32>
      tpu.vector_store %arg4[%c0_26, %c0_27, %c0_28], %36 {strides = array<i32>} : memref<1x1x1xf32, #tpu.memory_space<vmem>>, vector<1x1x1xf32>,
    } else {
    }
    return
  }
  func.func @transform_0(%arg0: i32, %arg1: i32) -> (i32, i32, i32) {
    %c0_i32 = arith.constant 0 : i32
    %c0_i32_0 = arith.constant 0 : i32
    return %arg0, %c0_i32, %arg1 : i32, i32, i32
  }
  func.func @transform_1(%arg0: i32, %arg1: i32) -> (i32, i32, i32) {
    %c0_i32 = arith.constant 0 : i32
    %c0_i32_0 = arith.constant 0 : i32
    %c0_i32_1 = arith.constant 0 : i32
    return %arg0, %c0_i32, %c0_i32_0 : i32, i32, i32
  }
  func.func @transform_2(%arg0: i32, %arg1: i32) -> (i32, i32, i32) {
    %c0_i32 = arith.constant 0 : i32
    %c0_i32_0 = arith.constant 0 : i32
    %c0_i32_1 = arith.constant 0 : i32
    return %arg0, %c0_i32, %c0_i32_0 : i32, i32, i32
  }
}

module attributes {stable_mosaic.version = 11 : i64} {
  func.func @_proj_residual_kernel(%arg0: i32, %arg1: i32, %arg2: memref<1x512x96xf32, #tpu.memory_space<vmem>>, %arg3: memref<1x16x512xf32, #tpu.memory_space<vmem>>, %arg4: memref<16x96xf32, #tpu.memory_space<vmem>>, %arg5: memref<16x1xf32, #tpu.memory_space<vmem>>, %arg6: memref<16x1xf32, #tpu.memory_space<vmem>>, %arg7: memref<1x16x512xf32, #tpu.memory_space<vmem>>, %arg8: memref<1x1x1xf32, #tpu.memory_space<vmem>>, %arg9: memref<1x1x1xf32, #tpu.memory_space<vmem>>, %arg10: memref<16x512xf32, #tpu.memory_space<vmem>>, %arg11: memref<16x512xf32, #tpu.memory_space<vmem>>) attributes {dimension_semantics = [#tpu.dimension_semantics<parallel>, #tpu.dimension_semantics<arbitrary>], iteration_bounds = array<i64: 2, 1>, scalar_prefetch = 0 : i64, scratch_operands = 2 : i64, tpu.core_type = #tpu.core_type<tc>, window_params = [{transform_indices = @transform_0, window_bounds = array<i64: 1, 512, 96>}, {transform_indices = @transform_1, window_bounds = array<i64: 1, 16, 512>}, {pipeline_mode = #tpu.pipeline_mode<synchronous>, transform_indices = @transform_2, window_bounds = array<i64: 16, 96>}, {pipeline_mode = #tpu.pipeline_mode<synchronous>, transform_indices = @transform_3, window_bounds = array<i64: 16, 1>}, {pipeline_mode = #tpu.pipeline_mode<synchronous>, transform_indices = @transform_4, window_bounds = array<i64: 16, 1>}, {transform_indices = @transform_5, window_bounds = array<i64: 1, 16, 512>}, {transform_indices = @transform_6, window_bounds = array<i64: 1, 1, 1>}, {transform_indices = @transform_7, window_bounds = array<i64: 1, 1, 1>}]} {
    %c0_i32 = arith.constant 0 : i32
    %0 = arith.cmpi eq, %arg1, %c0_i32 : i32
    %1 = arith.extui %0 : i1 to i32
    %c0_i32_0 = arith.constant 0 : i32
    %2 = arith.cmpi ne, %1, %c0_i32_0 : i32
    scf.if %2 {
      %cst_25 = arith.constant 0.000000e+00 : f32
      %29 = vector.broadcast %cst_25 : f32 to vector<16x512xf32>
      %c0_26 = arith.constant 0 : index
      %c0_27 = arith.constant 0 : index
      %30 = vector.load %arg10[%c0_26, %c0_27] : memref<16x512xf32, #tpu.memory_space<vmem>>, vector<16x512xf32>
      tpu.vector_store %arg10[%c0_26, %c0_27], %29 {strides = array<i32>} : memref<16x512xf32, #tpu.memory_space<vmem>>, vector<16x512xf32>,
      %cst_28 = arith.constant 0.000000e+00 : f32
      %31 = vector.broadcast %cst_28 : f32 to vector<16x512xf32>
      %c0_29 = arith.constant 0 : index
      %c0_30 = arith.constant 0 : index
      %32 = vector.load %arg11[%c0_29, %c0_30] : memref<16x512xf32, #tpu.memory_space<vmem>>, vector<16x512xf32>
      tpu.vector_store %arg11[%c0_29, %c0_30], %31 {strides = array<i32>} : memref<16x512xf32, #tpu.memory_space<vmem>>, vector<16x512xf32>,
    } else {
    }
    %c0 = arith.constant 0 : index
    %c0_1 = arith.constant 0 : index
    %c0_2 = arith.constant 0 : index
    %3 = vector.load %arg2[%c0, %c0_1, %c0_2] : memref<1x512x96xf32, #tpu.memory_space<vmem>>, vector<1x512x96xf32>
    %4 = vector.shape_cast %3 : vector<1x512x96xf32> to vector<512x96xf32>
    %c0_3 = arith.constant 0 : index
    %c0_4 = arith.constant 0 : index
    %c0_5 = arith.constant 0 : index
    %5 = vector.load %arg3[%c0_3, %c0_4, %c0_5] : memref<1x16x512xf32, #tpu.memory_space<vmem>>, vector<1x16x512xf32>
    %6 = vector.shape_cast %5 : vector<1x16x512xf32> to vector<16x512xf32>
    %c0_6 = arith.constant 0 : index
    %c0_7 = arith.constant 0 : index
    %7 = vector.load %arg4[%c0_6, %c0_7] : memref<16x96xf32, #tpu.memory_space<vmem>>, vector<16x96xf32>
    %cst = arith.constant dense<0.000000e+00> : vector<16x512xf32>
    %8 = tpu.matmul %7, %4, %cst {dimension_numbers = #tpu.dot_dimension_numbers<[1], [1], [0], [0], [0, 0, 1, 0], [], []>} : vector<16x96xf32>, vector<512x96xf32>, vector<16x512xf32> -> vector<16x512xf32>
    %c0_8 = arith.constant 0 : index
    %c0_9 = arith.constant 0 : index
    %9 = vector.load %arg6[%c0_8, %c0_9] : memref<16x1xf32, #tpu.memory_space<vmem>>, vector<16x1xf32>
    %c0_10 = arith.constant 0 : index
    %c0_11 = arith.constant 0 : index
    %10 = vector.load %arg5[%c0_10, %c0_11] : memref<16x1xf32, #tpu.memory_space<vmem>>, vector<16x1xf32>
    %11 = vector.broadcast %10 : vector<16x1xf32> to vector<16x512xf32>
    %12 = arith.addf %8, %11 : vector<16x512xf32>
    %13 = vector.broadcast %9 : vector<16x1xf32> to vector<16x512xf32>
    %14 = arith.mulf %13, %12 : vector<16x512xf32>
    %15 = arith.addf %6, %14 : vector<16x512xf32>
    %c0_12 = arith.constant 0 : index
    %c0_13 = arith.constant 0 : index
    %c0_14 = arith.constant 0 : index
    %16 = vector.load %arg7[%c0_12, %c0_13, %c0_14] : memref<1x16x512xf32, #tpu.memory_space<vmem>>, vector<1x16x512xf32>
    %17 = vector.shape_cast %16 : vector<1x16x512xf32> to vector<16x512xf32>
    %18 = vector.shape_cast %15 : vector<16x512xf32> to vector<1x16x512xf32>
    tpu.vector_store %arg7[%c0_12, %c0_13, %c0_14], %18 {strides = array<i32>} : memref<1x16x512xf32, #tpu.memory_space<vmem>>, vector<1x16x512xf32>,
    %c0_15 = arith.constant 0 : index
    %c0_16 = arith.constant 0 : index
    %19 = vector.load %arg10[%c0_15, %c0_16] : memref<16x512xf32, #tpu.memory_space<vmem>>, vector<16x512xf32>
    %20 = arith.addf %19, %15 : vector<16x512xf32>
    %c0_17 = arith.constant 0 : index
    %c0_18 = arith.constant 0 : index
    %21 = vector.load %arg10[%c0_17, %c0_18] : memref<16x512xf32, #tpu.memory_space<vmem>>, vector<16x512xf32>
    tpu.vector_store %arg10[%c0_17, %c0_18], %20 {strides = array<i32>} : memref<16x512xf32, #tpu.memory_space<vmem>>, vector<16x512xf32>,
    %c0_19 = arith.constant 0 : index
    %c0_20 = arith.constant 0 : index
    %22 = vector.load %arg11[%c0_19, %c0_20] : memref<16x512xf32, #tpu.memory_space<vmem>>, vector<16x512xf32>
    %23 = arith.mulf %15, %15 : vector<16x512xf32>
    %24 = arith.addf %22, %23 : vector<16x512xf32>
    %c0_21 = arith.constant 0 : index
    %c0_22 = arith.constant 0 : index
    %25 = vector.load %arg11[%c0_21, %c0_22] : memref<16x512xf32, #tpu.memory_space<vmem>>, vector<16x512xf32>
    tpu.vector_store %arg11[%c0_21, %c0_22], %24 {strides = array<i32>} : memref<16x512xf32, #tpu.memory_space<vmem>>, vector<16x512xf32>,
    %c0_i32_23 = arith.constant 0 : i32
    %26 = arith.cmpi eq, %arg1, %c0_i32_23 : i32
    %27 = arith.extui %26 : i1 to i32
    %c0_i32_24 = arith.constant 0 : i32
    %28 = arith.cmpi ne, %27, %c0_i32_24 : i32
    scf.if %28 {
      %c0_25 = arith.constant 0 : index
      %c0_26 = arith.constant 0 : index
      %29 = vector.load %arg10[%c0_25, %c0_26] : memref<16x512xf32, #tpu.memory_space<vmem>>, vector<16x512xf32>
      %cst_27 = arith.constant dense<0.000000e+00> : vector<16xf32>
      %30 = vector.multi_reduction <add>, %29, %cst_27 [1] : vector<16x512xf32> to vector<16xf32>
      %31 = vector.shape_cast %30 : vector<16xf32> to vector<16x1xf32>
      %cst_28 = arith.constant dense<0.000000e+00> : vector<1xf32>
      %32 = vector.multi_reduction <add>, %31, %cst_28 [0] : vector<16x1xf32> to vector<1xf32>
      %33 = vector.shape_cast %32 : vector<1xf32> to vector<1x1xf32>
      %c0_29 = arith.constant 0 : index
      %c0_30 = arith.constant 0 : index
      %34 = vector.load %arg11[%c0_29, %c0_30] : memref<16x512xf32, #tpu.memory_space<vmem>>, vector<16x512xf32>
      %cst_31 = arith.constant dense<0.000000e+00> : vector<16xf32>
      %35 = vector.multi_reduction <add>, %34, %cst_31 [1] : vector<16x512xf32> to vector<16xf32>
      %36 = vector.shape_cast %35 : vector<16xf32> to vector<16x1xf32>
      %cst_32 = arith.constant dense<0.000000e+00> : vector<1xf32>
      %37 = vector.multi_reduction <add>, %36, %cst_32 [0] : vector<16x1xf32> to vector<1xf32>
      %38 = vector.shape_cast %37 : vector<1xf32> to vector<1x1xf32>
      %cst_33 = arith.constant 1.22070313E-4 : f32
      %39 = vector.broadcast %cst_33 : f32 to vector<1x1xf32>
      %40 = arith.mulf %33, %39 : vector<1x1xf32>
      %cst_34 = arith.constant 1.22070313E-4 : f32
      %41 = vector.broadcast %cst_34 : f32 to vector<1x1xf32>
      %42 = arith.mulf %38, %41 : vector<1x1xf32>
      %43 = arith.mulf %40, %40 : vector<1x1xf32>
      %44 = arith.subf %42, %43 : vector<1x1xf32>
      %45 = vector.shape_cast %40 : vector<1x1xf32> to vector<1x1x1xf32>
      %c0_35 = arith.constant 0 : index
      %c0_36 = arith.constant 0 : index
      %c0_37 = arith.constant 0 : index
      %46 = vector.load %arg8[%c0_35, %c0_36, %c0_37] : memref<1x1x1xf32, #tpu.memory_space<vmem>>, vector<1x1x1xf32>
      tpu.vector_store %arg8[%c0_35, %c0_36, %c0_37], %45 {strides = array<i32>} : memref<1x1x1xf32, #tpu.memory_space<vmem>>, vector<1x1x1xf32>,
      %cst_38 = arith.constant 9.99999974E-6 : f32
      %47 = vector.broadcast %cst_38 : f32 to vector<1x1xf32>
      %48 = arith.addf %44, %47 : vector<1x1xf32>
      %49 = math.rsqrt %48 : vector<1x1xf32>
      %50 = vector.shape_cast %49 : vector<1x1xf32> to vector<1x1x1xf32>
      %c0_39 = arith.constant 0 : index
      %c0_40 = arith.constant 0 : index
      %c0_41 = arith.constant 0 : index
      %51 = vector.load %arg9[%c0_39, %c0_40, %c0_41] : memref<1x1x1xf32, #tpu.memory_space<vmem>>, vector<1x1x1xf32>
      tpu.vector_store %arg9[%c0_39, %c0_40, %c0_41], %50 {strides = array<i32>} : memref<1x1x1xf32, #tpu.memory_space<vmem>>, vector<1x1x1xf32>,
    } else {
    }
    return
  }
  func.func @transform_0(%arg0: i32, %arg1: i32) -> (i32, i32, i32) {
    %c0_i32 = arith.constant 0 : i32
    %c0_i32_0 = arith.constant 0 : i32
    return %arg0, %arg1, %c0_i32 : i32, i32, i32
  }
  func.func @transform_1(%arg0: i32, %arg1: i32) -> (i32, i32, i32) {
    %c0_i32 = arith.constant 0 : i32
    %c0_i32_0 = arith.constant 0 : i32
    return %arg0, %c0_i32, %arg1 : i32, i32, i32
  }
  func.func @transform_2(%arg0: i32, %arg1: i32) -> (i32, i32) {
    %c0_i32 = arith.constant 0 : i32
    %c0_i32_0 = arith.constant 0 : i32
    %c0_i32_1 = arith.constant 0 : i32
    return %c0_i32, %c0_i32_0 : i32, i32
  }
  func.func @transform_3(%arg0: i32, %arg1: i32) -> (i32, i32) {
    %c0_i32 = arith.constant 0 : i32
    %c0_i32_0 = arith.constant 0 : i32
    %c0_i32_1 = arith.constant 0 : i32
    return %c0_i32, %c0_i32_0 : i32, i32
  }
  func.func @transform_4(%arg0: i32, %arg1: i32) -> (i32, i32) {
    %c0_i32 = arith.constant 0 : i32
    %c0_i32_0 = arith.constant 0 : i32
    %c0_i32_1 = arith.constant 0 : i32
    return %c0_i32, %c0_i32_0 : i32, i32
  }
  func.func @transform_5(%arg0: i32, %arg1: i32) -> (i32, i32, i32) {
    %c0_i32 = arith.constant 0 : i32
    %c0_i32_0 = arith.constant 0 : i32
    return %arg0, %c0_i32, %arg1 : i32, i32, i32
  }
  func.func @transform_6(%arg0: i32, %arg1: i32) -> (i32, i32, i32) {
    %c0_i32 = arith.constant 0 : i32
    %c0_i32_0 = arith.constant 0 : i32
    %c0_i32_1 = arith.constant 0 : i32
    return %arg0, %c0_i32, %c0_i32_0 : i32, i32, i32
  }
  func.func @transform_7(%arg0: i32, %arg1: i32) -> (i32, i32, i32) {
    %c0_i32 = arith.constant 0 : i32
    %c0_i32_0 = arith.constant 0 : i32
    %c0_i32_1 = arith.constant 0 : i32
    return %arg0, %c0_i32, %c0_i32_0 : i32, i32, i32
  }
}

module attributes {stable_mosaic.version = 11 : i64} {
  func.func @_cluster_kernel(%arg0: i32, %arg1: i32, %arg2: i32, %arg3: memref<1xf32, #tpu.memory_space<smem>>, %arg4: memref<1xf32, #tpu.memory_space<smem>>, %arg5: memref<1x2x4x4x8x96xf32, #tpu.memory_space<vmem>>, %arg6: memref<16x128xf32, #tpu.memory_space<vmem>>, %arg7: memref<16x128xf32, #tpu.memory_space<vmem>>, %arg8: memref<4x96xf32, #tpu.memory_space<vmem>>, %arg9: memref<1x4x4x8x96xf32, #tpu.memory_space<vmem>>) attributes {dimension_semantics = [#tpu.dimension_semantics<parallel>, #tpu.dimension_semantics<parallel>, #tpu.dimension_semantics<parallel>], iteration_bounds = array<i64: 2, 2, 2>, scalar_prefetch = 0 : i64, scratch_operands = 0 : i64, tpu.core_type = #tpu.core_type<tc>, window_params = [{transform_indices = @transform_0, window_bounds = array<i64: 1>}, {transform_indices = @transform_1, window_bounds = array<i64: 1>}, {transform_indices = @transform_2, window_bounds = array<i64: 1, 2, 4, 4, 8, 96>}, {pipeline_mode = #tpu.pipeline_mode<synchronous>, transform_indices = @transform_3, window_bounds = array<i64: 16, 128>}, {pipeline_mode = #tpu.pipeline_mode<synchronous>, transform_indices = @transform_4, window_bounds = array<i64: 16, 128>}, {pipeline_mode = #tpu.pipeline_mode<synchronous>, transform_indices = @transform_5, window_bounds = array<i64: 4, 96>}, {transform_indices = @transform_6, window_bounds = array<i64: 1, 4, 4, 8, 96>}]} {
    %c0 = arith.constant 0 : index
    %c0_0 = arith.constant 0 : index
    %c0_1 = arith.constant 0 : index
    %c0_2 = arith.constant 0 : index
    %c0_3 = arith.constant 0 : index
    %c0_4 = arith.constant 0 : index
    %0 = vector.load %arg5[%c0, %c0_0, %c0_1, %c0_2, %c0_3, %c0_4] : memref<1x2x4x4x8x96xf32, #tpu.memory_space<vmem>>, vector<1x1x4x4x8x96xf32>
    %1 = vector.shape_cast %0 : vector<1x1x4x4x8x96xf32> to vector<4x4x8x96xf32>
    %c0_5 = arith.constant 0 : index
    %c1 = arith.constant 1 : index
    %c0_6 = arith.constant 0 : index
    %c0_7 = arith.constant 0 : index
    %c0_8 = arith.constant 0 : index
    %c0_9 = arith.constant 0 : index
    %2 = vector.load %arg5[%c0_5, %c1, %c0_6, %c0_7, %c0_8, %c0_9] : memref<1x2x4x4x8x96xf32, #tpu.memory_space<vmem>>, vector<1x1x4x4x8x96xf32>
    %3 = vector.shape_cast %2 : vector<1x1x4x4x8x96xf32> to vector<4x4x8x96xf32>
    %4 = vector.shape_cast %1 : vector<4x4x8x96xf32> to vector<128x96xf32>
    %5 = vector.shape_cast %3 : vector<4x4x8x96xf32> to vector<128x96xf32>
    %c0_10 = arith.constant 0 : index
    %c0_11 = arith.constant 0 : index
    %6 = vector.load %arg6[%c0_10, %c0_11] : memref<16x128xf32, #tpu.memory_space<vmem>>, vector<16x128xf32>
    %c0_12 = arith.constant 0 : index
    %c0_13 = arith.constant 0 : index
    %7 = vector.load %arg7[%c0_12, %c0_13] : memref<16x128xf32, #tpu.memory_space<vmem>>, vector<16x128xf32>
    %c0_14 = arith.constant 0 : index
    %c0_15 = arith.constant 0 : index
    %8 = vector.load %arg8[%c0_14, %c0_15] : memref<4x96xf32, #tpu.memory_space<vmem>>, vector<4x96xf32>
    %c0_16 = arith.constant 0 : index
    %9 = memref.load %arg3[%c0_16] : memref<1xf32, #tpu.memory_space<smem>>
    %c0_17 = arith.constant 0 : index
    %10 = memref.load %arg4[%c0_17] : memref<1xf32, #tpu.memory_space<smem>>
    %cst = arith.constant dense<0.000000e+00> : vector<16x96xf32>
    %11 = tpu.matmul %6, %4, %cst {dimension_numbers = #tpu.dot_dimension_numbers<[1], [0], [0], [1], [0, 0, 1, 1], [], []>} : vector<16x128xf32>, vector<128x96xf32>, vector<16x96xf32> -> vector<16x96xf32>
    %cst_18 = arith.constant dense<0.000000e+00> : vector<16x96xf32>
    %12 = tpu.matmul %6, %5, %cst_18 {dimension_numbers = #tpu.dot_dimension_numbers<[1], [0], [0], [1], [0, 0, 1, 1], [], []>} : vector<16x128xf32>, vector<128x96xf32>, vector<16x96xf32> -> vector<16x96xf32>
    %13 = arith.mulf %11, %11 : vector<16x96xf32>
    %cst_19 = arith.constant dense<0.000000e+00> : vector<16x4xf32>
    %14 = tpu.matmul %13, %8, %cst_19 {dimension_numbers = #tpu.dot_dimension_numbers<[1], [1], [0], [0], [0, 0, 1, 0], [], []>} : vector<16x96xf32>, vector<4x96xf32>, vector<16x4xf32> -> vector<16x4xf32>
    %cst_20 = arith.constant 1.000000e-24 : f32
    %15 = vector.broadcast %cst_20 : f32 to vector<16x4xf32>
    %16 = arith.maximumf %14, %15 : vector<16x4xf32>
    %17 = math.rsqrt %16 : vector<16x4xf32>
    %cst_21 = arith.constant dense<0.000000e+00> : vector<16x96xf32>
    %18 = tpu.matmul %17, %8, %cst_21 {dimension_numbers = #tpu.dot_dimension_numbers<[1], [0], [0], [1], [0, 0, 1, 1], [], []>} : vector<16x4xf32>, vector<4x96xf32>, vector<16x96xf32> -> vector<16x96xf32>
    %19 = arith.mulf %11, %18 : vector<16x96xf32>
    %20 = arith.mulf %4, %4 : vector<128x96xf32>
    %cst_22 = arith.constant dense<0.000000e+00> : vector<128x4xf32>
    %21 = tpu.matmul %20, %8, %cst_22 {dimension_numbers = #tpu.dot_dimension_numbers<[1], [1], [0], [0], [0, 0, 1, 0], [], []>} : vector<128x96xf32>, vector<4x96xf32>, vector<128x4xf32> -> vector<128x4xf32>
    %cst_23 = arith.constant 1.000000e-24 : f32
    %22 = vector.broadcast %cst_23 : f32 to vector<128x4xf32>
    %23 = arith.maximumf %21, %22 : vector<128x4xf32>
    %24 = math.rsqrt %23 : vector<128x4xf32>
    %cst_24 = arith.constant dense<0.000000e+00> : vector<128x96xf32>
    %25 = tpu.matmul %24, %8, %cst_24 {dimension_numbers = #tpu.dot_dimension_numbers<[1], [0], [0], [1], [0, 0, 1, 1], [], []>} : vector<128x4xf32>, vector<4x96xf32>, vector<128x96xf32> -> vector<128x96xf32>
    %26 = arith.mulf %4, %25 : vector<128x96xf32>
    %27 = tpu.iota {dimensions = array<i32: 0>} : vector<16x128xi32>
    %cst_25 = arith.constant 0.000000e+00 : f32
    %28 = vector.broadcast %cst_25 : f32 to vector<128x96xf32>
    %29 = vector.extract_strided_slice %8 {offsets = [0, 0], sizes = [1, 96], strides = [1, 1]} : vector<4x96xf32> to vector<1x96xf32>
    %30 = vector.broadcast %29 : vector<1x96xf32> to vector<16x96xf32>
    %31 = arith.mulf %19, %30 : vector<16x96xf32>
    %cst_26 = arith.constant dense<0.000000e+00> : vector<16x128xf32>
    %32 = tpu.matmul %31, %26, %cst_26 {dimension_numbers = #tpu.dot_dimension_numbers<[1], [1], [0], [0], [0, 0, 1, 0], [], []>} : vector<16x96xf32>, vector<128x96xf32>, vector<16x128xf32> -> vector<16x128xf32>
    %33 = vector.broadcast %9 : f32 to vector<16x128xf32>
    %34 = arith.mulf %33, %32 : vector<16x128xf32>
    %35 = vector.broadcast %10 : f32 to vector<16x128xf32>
    %36 = arith.addf %35, %34 : vector<16x128xf32>
    %37 = arith.negf %36 : vector<16x128xf32>
    %38 = math.exp %37 : vector<16x128xf32>
    %cst_27 = arith.constant 1.000000e+00 : f32
    %39 = vector.broadcast %cst_27 : f32 to vector<16x128xf32>
    %40 = arith.addf %39, %38 : vector<16x128xf32>
    %41 = arith.divf %39, %40 : vector<16x128xf32>
    %42 = arith.mulf %41, %7 : vector<16x128xf32>
    %cst_28 = arith.constant dense<0xFF800000> : vector<128xf32>
    %43 = vector.multi_reduction <maximumf>, %42, %cst_28 [0] : vector<16x128xf32> to vector<128xf32>
    %44 = vector.shape_cast %43 : vector<128xf32> to vector<1x128xf32>
    %45 = vector.broadcast %44 : vector<1x128xf32> to vector<16x128xf32>
    %46 = arith.cmpf oeq, %42, %45 : vector<16x128xf32>
    %c16_i32 = arith.constant 16 : i32
    %47 = vector.broadcast %c16_i32 : i32 to vector<16x128xi32>
    %48 = arith.select %46, %27, %47 : vector<16x128xi1>, vector<16x128xi32>
    %cst_29 = arith.constant dense<2147483647> : vector<128xi32>
    %49 = vector.multi_reduction <minsi>, %48, %cst_29 [0] : vector<16x128xi32> to vector<128xi32>
    %50 = vector.shape_cast %49 : vector<128xi32> to vector<1x128xi32>
    %51 = vector.broadcast %50 : vector<1x128xi32> to vector<16x128xi32>
    %52 = arith.cmpi eq, %27, %51 : vector<16x128xi32>
    %cst_30 = arith.constant 0.000000e+00 : f32
    %53 = vector.broadcast %cst_30 : f32 to vector<16x128xf32>
    %54 = arith.select %52, %42, %53 : vector<16x128xi1>, vector<16x128xf32>
    %cst_31 = arith.constant dense<0.000000e+00> : vector<16x96xf32>
    %55 = tpu.matmul %54, %5, %cst_31 {dimension_numbers = #tpu.dot_dimension_numbers<[1], [0], [0], [1], [0, 0, 1, 1], [], []>} : vector<16x128xf32>, vector<128x96xf32>, vector<16x96xf32> -> vector<16x96xf32>
    %cst_32 = arith.constant dense<0.000000e+00> : vector<16xf32>
    %56 = vector.multi_reduction <add>, %54, %cst_32 [1] : vector<16x128xf32> to vector<16xf32>
    %57 = vector.shape_cast %56 : vector<16xf32> to vector<16x1xf32>
    %cst_33 = arith.constant 1.000000e+00 : f32
    %58 = vector.broadcast %cst_33 : f32 to vector<16x1xf32>
    %59 = arith.addf %57, %58 : vector<16x1xf32>
    %60 = arith.addf %55, %12 : vector<16x96xf32>
    %61 = vector.broadcast %59 : vector<16x1xf32> to vector<16x96xf32>
    %62 = arith.divf %60, %61 : vector<16x96xf32>
    %63 = vector.broadcast %29 : vector<1x96xf32> to vector<16x96xf32>
    %64 = arith.mulf %62, %63 : vector<16x96xf32>
    %cst_34 = arith.constant dense<0.000000e+00> : vector<128x96xf32>
    %65 = tpu.matmul %54, %64, %cst_34 {dimension_numbers = #tpu.dot_dimension_numbers<[0], [0], [1], [1], [0, 1, 1, 1], [], []>} : vector<16x128xf32>, vector<16x96xf32>, vector<128x96xf32> -> vector<128x96xf32>
    %66 = arith.addf %28, %65 : vector<128x96xf32>
    %67 = vector.extract_strided_slice %8 {offsets = [1, 0], sizes = [1, 96], strides = [1, 1]} : vector<4x96xf32> to vector<1x96xf32>
    %68 = vector.broadcast %67 : vector<1x96xf32> to vector<16x96xf32>
    %69 = arith.mulf %19, %68 : vector<16x96xf32>
    %cst_35 = arith.constant dense<0.000000e+00> : vector<16x128xf32>
    %70 = tpu.matmul %69, %26, %cst_35 {dimension_numbers = #tpu.dot_dimension_numbers<[1], [1], [0], [0], [0, 0, 1, 0], [], []>} : vector<16x96xf32>, vector<128x96xf32>, vector<16x128xf32> -> vector<16x128xf32>
    %71 = vector.broadcast %9 : f32 to vector<16x128xf32>
    %72 = arith.mulf %71, %70 : vector<16x128xf32>
    %73 = vector.broadcast %10 : f32 to vector<16x128xf32>
    %74 = arith.addf %73, %72 : vector<16x128xf32>
    %75 = arith.negf %74 : vector<16x128xf32>
    %76 = math.exp %75 : vector<16x128xf32>
    %cst_36 = arith.constant 1.000000e+00 : f32
    %77 = vector.broadcast %cst_36 : f32 to vector<16x128xf32>
    %78 = arith.addf %77, %76 : vector<16x128xf32>
    %79 = arith.divf %77, %78 : vector<16x128xf32>
    %80 = arith.mulf %79, %7 : vector<16x128xf32>
    %cst_37 = arith.constant dense<0xFF800000> : vector<128xf32>
    %81 = vector.multi_reduction <maximumf>, %80, %cst_37 [0] : vector<16x128xf32> to vector<128xf32>
    %82 = vector.shape_cast %81 : vector<128xf32> to vector<1x128xf32>
    %83 = vector.broadcast %82 : vector<1x128xf32> to vector<16x128xf32>
    %84 = arith.cmpf oeq, %80, %83 : vector<16x128xf32>
    %c16_i32_38 = arith.constant 16 : i32
    %85 = vector.broadcast %c16_i32_38 : i32 to vector<16x128xi32>
    %86 = arith.select %84, %27, %85 : vector<16x128xi1>, vector<16x128xi32>
    %cst_39 = arith.constant dense<2147483647> : vector<128xi32>
    %87 = vector.multi_reduction <minsi>, %86, %cst_39 [0] : vector<16x128xi32> to vector<128xi32>
    %88 = vector.shape_cast %87 : vector<128xi32> to vector<1x128xi32>
    %89 = vector.broadcast %88 : vector<1x128xi32> to vector<16x128xi32>
    %90 = arith.cmpi eq, %27, %89 : vector<16x128xi32>
    %cst_40 = arith.constant 0.000000e+00 : f32
    %91 = vector.broadcast %cst_40 : f32 to vector<16x128xf32>
    %92 = arith.select %90, %80, %91 : vector<16x128xi1>, vector<16x128xf32>
    %cst_41 = arith.constant dense<0.000000e+00> : vector<16x96xf32>
    %93 = tpu.matmul %92, %5, %cst_41 {dimension_numbers = #tpu.dot_dimension_numbers<[1], [0], [0], [1], [0, 0, 1, 1], [], []>} : vector<16x128xf32>, vector<128x96xf32>, vector<16x96xf32> -> vector<16x96xf32>
    %cst_42 = arith.constant dense<0.000000e+00> : vector<16xf32>
    %94 = vector.multi_reduction <add>, %92, %cst_42 [1] : vector<16x128xf32> to vector<16xf32>
    %95 = vector.shape_cast %94 : vector<16xf32> to vector<16x1xf32>
    %cst_43 = arith.constant 1.000000e+00 : f32
    %96 = vector.broadcast %cst_43 : f32 to vector<16x1xf32>
    %97 = arith.addf %95, %96 : vector<16x1xf32>
    %98 = arith.addf %93, %12 : vector<16x96xf32>
    %99 = vector.broadcast %97 : vector<16x1xf32> to vector<16x96xf32>
    %100 = arith.divf %98, %99 : vector<16x96xf32>
    %101 = vector.broadcast %67 : vector<1x96xf32> to vector<16x96xf32>
    %102 = arith.mulf %100, %101 : vector<16x96xf32>
    %cst_44 = arith.constant dense<0.000000e+00> : vector<128x96xf32>
    %103 = tpu.matmul %92, %102, %cst_44 {dimension_numbers = #tpu.dot_dimension_numbers<[0], [0], [1], [1], [0, 1, 1, 1], [], []>} : vector<16x128xf32>, vector<16x96xf32>, vector<128x96xf32> -> vector<128x96xf32>
    %104 = arith.addf %66, %103 : vector<128x96xf32>
    %105 = vector.extract_strided_slice %8 {offsets = [2, 0], sizes = [1, 96], strides = [1, 1]} : vector<4x96xf32> to vector<1x96xf32>
    %106 = vector.broadcast %105 : vector<1x96xf32> to vector<16x96xf32>
    %107 = arith.mulf %19, %106 : vector<16x96xf32>
    %cst_45 = arith.constant dense<0.000000e+00> : vector<16x128xf32>
    %108 = tpu.matmul %107, %26, %cst_45 {dimension_numbers = #tpu.dot_dimension_numbers<[1], [1], [0], [0], [0, 0, 1, 0], [], []>} : vector<16x96xf32>, vector<128x96xf32>, vector<16x128xf32> -> vector<16x128xf32>
    %109 = vector.broadcast %9 : f32 to vector<16x128xf32>
    %110 = arith.mulf %109, %108 : vector<16x128xf32>
    %111 = vector.broadcast %10 : f32 to vector<16x128xf32>
    %112 = arith.addf %111, %110 : vector<16x128xf32>
    %113 = arith.negf %112 : vector<16x128xf32>
    %114 = math.exp %113 : vector<16x128xf32>
    %cst_46 = arith.constant 1.000000e+00 : f32
    %115 = vector.broadcast %cst_46 : f32 to vector<16x128xf32>
    %116 = arith.addf %115, %114 : vector<16x128xf32>
    %117 = arith.divf %115, %116 : vector<16x128xf32>
    %118 = arith.mulf %117, %7 : vector<16x128xf32>
    %cst_47 = arith.constant dense<0xFF800000> : vector<128xf32>
    %119 = vector.multi_reduction <maximumf>, %118, %cst_47 [0] : vector<16x128xf32> to vector<128xf32>
    %120 = vector.shape_cast %119 : vector<128xf32> to vector<1x128xf32>
    %121 = vector.broadcast %120 : vector<1x128xf32> to vector<16x128xf32>
    %122 = arith.cmpf oeq, %118, %121 : vector<16x128xf32>
    %c16_i32_48 = arith.constant 16 : i32
    %123 = vector.broadcast %c16_i32_48 : i32 to vector<16x128xi32>
    %124 = arith.select %122, %27, %123 : vector<16x128xi1>, vector<16x128xi32>
    %cst_49 = arith.constant dense<2147483647> : vector<128xi32>
    %125 = vector.multi_reduction <minsi>, %124, %cst_49 [0] : vector<16x128xi32> to vector<128xi32>
    %126 = vector.shape_cast %125 : vector<128xi32> to vector<1x128xi32>
    %127 = vector.broadcast %126 : vector<1x128xi32> to vector<16x128xi32>
    %128 = arith.cmpi eq, %27, %127 : vector<16x128xi32>
    %cst_50 = arith.constant 0.000000e+00 : f32
    %129 = vector.broadcast %cst_50 : f32 to vector<16x128xf32>
    %130 = arith.select %128, %118, %129 : vector<16x128xi1>, vector<16x128xf32>
    %cst_51 = arith.constant dense<0.000000e+00> : vector<16x96xf32>
    %131 = tpu.matmul %130, %5, %cst_51 {dimension_numbers = #tpu.dot_dimension_numbers<[1], [0], [0], [1], [0, 0, 1, 1], [], []>} : vector<16x128xf32>, vector<128x96xf32>, vector<16x96xf32> -> vector<16x96xf32>
    %cst_52 = arith.constant dense<0.000000e+00> : vector<16xf32>
    %132 = vector.multi_reduction <add>, %130, %cst_52 [1] : vector<16x128xf32> to vector<16xf32>
    %133 = vector.shape_cast %132 : vector<16xf32> to vector<16x1xf32>
    %cst_53 = arith.constant 1.000000e+00 : f32
    %134 = vector.broadcast %cst_53 : f32 to vector<16x1xf32>
    %135 = arith.addf %133, %134 : vector<16x1xf32>
    %136 = arith.addf %131, %12 : vector<16x96xf32>
    %137 = vector.broadcast %135 : vector<16x1xf32> to vector<16x96xf32>
    %138 = arith.divf %136, %137 : vector<16x96xf32>
    %139 = vector.broadcast %105 : vector<1x96xf32> to vector<16x96xf32>
    %140 = arith.mulf %138, %139 : vector<16x96xf32>
    %cst_54 = arith.constant dense<0.000000e+00> : vector<128x96xf32>
    %141 = tpu.matmul %130, %140, %cst_54 {dimension_numbers = #tpu.dot_dimension_numbers<[0], [0], [1], [1], [0, 1, 1, 1], [], []>} : vector<16x128xf32>, vector<16x96xf32>, vector<128x96xf32> -> vector<128x96xf32>
    %142 = arith.addf %104, %141 : vector<128x96xf32>
    %143 = vector.extract_strided_slice %8 {offsets = [3, 0], sizes = [1, 96], strides = [1, 1]} : vector<4x96xf32> to vector<1x96xf32>
    %144 = vector.broadcast %143 : vector<1x96xf32> to vector<16x96xf32>
    %145 = arith.mulf %19, %144 : vector<16x96xf32>
    %cst_55 = arith.constant dense<0.000000e+00> : vector<16x128xf32>
    %146 = tpu.matmul %145, %26, %cst_55 {dimension_numbers = #tpu.dot_dimension_numbers<[1], [1], [0], [0], [0, 0, 1, 0], [], []>} : vector<16x96xf32>, vector<128x96xf32>, vector<16x128xf32> -> vector<16x128xf32>
    %147 = vector.broadcast %9 : f32 to vector<16x128xf32>
    %148 = arith.mulf %147, %146 : vector<16x128xf32>
    %149 = vector.broadcast %10 : f32 to vector<16x128xf32>
    %150 = arith.addf %149, %148 : vector<16x128xf32>
    %151 = arith.negf %150 : vector<16x128xf32>
    %152 = math.exp %151 : vector<16x128xf32>
    %cst_56 = arith.constant 1.000000e+00 : f32
    %153 = vector.broadcast %cst_56 : f32 to vector<16x128xf32>
    %154 = arith.addf %153, %152 : vector<16x128xf32>
    %155 = arith.divf %153, %154 : vector<16x128xf32>
    %156 = arith.mulf %155, %7 : vector<16x128xf32>
    %cst_57 = arith.constant dense<0xFF800000> : vector<128xf32>
    %157 = vector.multi_reduction <maximumf>, %156, %cst_57 [0] : vector<16x128xf32> to vector<128xf32>
    %158 = vector.shape_cast %157 : vector<128xf32> to vector<1x128xf32>
    %159 = vector.broadcast %158 : vector<1x128xf32> to vector<16x128xf32>
    %160 = arith.cmpf oeq, %156, %159 : vector<16x128xf32>
    %c16_i32_58 = arith.constant 16 : i32
    %161 = vector.broadcast %c16_i32_58 : i32 to vector<16x128xi32>
    %162 = arith.select %160, %27, %161 : vector<16x128xi1>, vector<16x128xi32>
    %cst_59 = arith.constant dense<2147483647> : vector<128xi32>
    %163 = vector.multi_reduction <minsi>, %162, %cst_59 [0] : vector<16x128xi32> to vector<128xi32>
    %164 = vector.shape_cast %163 : vector<128xi32> to vector<1x128xi32>
    %165 = vector.broadcast %164 : vector<1x128xi32> to vector<16x128xi32>
    %166 = arith.cmpi eq, %27, %165 : vector<16x128xi32>
    %cst_60 = arith.constant 0.000000e+00 : f32
    %167 = vector.broadcast %cst_60 : f32 to vector<16x128xf32>
    %168 = arith.select %166, %156, %167 : vector<16x128xi1>, vector<16x128xf32>
    %cst_61 = arith.constant dense<0.000000e+00> : vector<16x96xf32>
    %169 = tpu.matmul %168, %5, %cst_61 {dimension_numbers = #tpu.dot_dimension_numbers<[1], [0], [0], [1], [0, 0, 1, 1], [], []>} : vector<16x128xf32>, vector<128x96xf32>, vector<16x96xf32> -> vector<16x96xf32>
    %cst_62 = arith.constant dense<0.000000e+00> : vector<16xf32>
    %170 = vector.multi_reduction <add>, %168, %cst_62 [1] : vector<16x128xf32> to vector<16xf32>
    %171 = vector.shape_cast %170 : vector<16xf32> to vector<16x1xf32>
    %cst_63 = arith.constant 1.000000e+00 : f32
    %172 = vector.broadcast %cst_63 : f32 to vector<16x1xf32>
    %173 = arith.addf %171, %172 : vector<16x1xf32>
    %174 = arith.addf %169, %12 : vector<16x96xf32>
    %175 = vector.broadcast %173 : vector<16x1xf32> to vector<16x96xf32>
    %176 = arith.divf %174, %175 : vector<16x96xf32>
    %177 = vector.broadcast %143 : vector<1x96xf32> to vector<16x96xf32>
    %178 = arith.mulf %176, %177 : vector<16x96xf32>
    %cst_64 = arith.constant dense<0.000000e+00> : vector<128x96xf32>
    %179 = tpu.matmul %168, %178, %cst_64 {dimension_numbers = #tpu.dot_dimension_numbers<[0], [0], [1], [1], [0, 1, 1, 1], [], []>} : vector<16x128xf32>, vector<16x96xf32>, vector<128x96xf32> -> vector<128x96xf32>
    %180 = arith.addf %142, %179 : vector<128x96xf32>
    %181 = vector.shape_cast %180 : vector<128x96xf32> to vector<4x4x8x96xf32>
    %c0_65 = arith.constant 0 : index
    %c0_66 = arith.constant 0 : index
    %c0_67 = arith.constant 0 : index
    %c0_68 = arith.constant 0 : index
    %c0_69 = arith.constant 0 : index
    %182 = vector.load %arg9[%c0_65, %c0_66, %c0_67, %c0_68, %c0_69] : memref<1x4x4x8x96xf32, #tpu.memory_space<vmem>>, vector<1x4x4x8x96xf32>
    %183 = vector.shape_cast %182 : vector<1x4x4x8x96xf32> to vector<4x4x8x96xf32>
    %184 = vector.shape_cast %181 : vector<4x4x8x96xf32> to vector<1x4x4x8x96xf32>
    tpu.vector_store %arg9[%c0_65, %c0_66, %c0_67, %c0_68, %c0_69], %184 {strides = array<i32>} : memref<1x4x4x8x96xf32, #tpu.memory_space<vmem>>, vector<1x4x4x8x96xf32>,
    return
  }
  func.func @transform_0(%arg0: i32, %arg1: i32, %arg2: i32) -> i32 {
    %c0_i32 = arith.constant 0 : i32
    %c0_i32_0 = arith.constant 0 : i32
    return %c0_i32 : i32
  }
  func.func @transform_1(%arg0: i32, %arg1: i32, %arg2: i32) -> i32 {
    %c0_i32 = arith.constant 0 : i32
    %c0_i32_0 = arith.constant 0 : i32
    return %c0_i32 : i32
  }
  func.func @transform_2(%arg0: i32, %arg1: i32, %arg2: i32) -> (i32, i32, i32, i32, i32, i32) {
    %c0_i32 = arith.constant 0 : i32
    %c0_i32_0 = arith.constant 0 : i32
    %c0_i32_1 = arith.constant 0 : i32
    %c0_i32_2 = arith.constant 0 : i32
    return %arg0, %c0_i32, %arg1, %arg2, %c0_i32_0, %c0_i32_1 : i32, i32, i32, i32, i32, i32
  }
  func.func @transform_3(%arg0: i32, %arg1: i32, %arg2: i32) -> (i32, i32) {
    %c0_i32 = arith.constant 0 : i32
    %c0_i32_0 = arith.constant 0 : i32
    %c0_i32_1 = arith.constant 0 : i32
    return %c0_i32, %c0_i32_0 : i32, i32
  }
  func.func @transform_4(%arg0: i32, %arg1: i32, %arg2: i32) -> (i32, i32) {
    %c0_i32 = arith.constant 0 : i32
    %c0_i32_0 = arith.constant 0 : i32
    %c0_i32_1 = arith.constant 0 : i32
    return %c0_i32, %c0_i32_0 : i32, i32
  }
  func.func @transform_5(%arg0: i32, %arg1: i32, %arg2: i32) -> (i32, i32) {
    %c0_i32 = arith.constant 0 : i32
    %c0_i32_0 = arith.constant 0 : i32
    %c0_i32_1 = arith.constant 0 : i32
    return %c0_i32, %c0_i32_0 : i32, i32
  }
  func.func @transform_6(%arg0: i32, %arg1: i32, %arg2: i32) -> (i32, i32, i32, i32, i32) {
    %c0_i32 = arith.constant 0 : i32
    %c0_i32_0 = arith.constant 0 : i32
    %c0_i32_1 = arith.constant 0 : i32
    return %arg0, %arg1, %arg2, %c0_i32, %c0_i32_0 : i32, i32, i32, i32, i32
  }
}

module attributes {stable_mosaic.version = 11 : i64} {
  func.func @_gn_mlp_residual_kernel(%arg0: i32, %arg1: i32, %arg2: memref<1x16x512xf32, #tpu.memory_space<vmem>>, %arg3: memref<1x1x1xf32, #tpu.memory_space<vmem>>, %arg4: memref<1x1x1xf32, #tpu.memory_space<vmem>>, %arg5: memref<16x1xf32, #tpu.memory_space<vmem>>, %arg6: memref<16x1xf32, #tpu.memory_space<vmem>>, %arg7: memref<64x16xf32, #tpu.memory_space<vmem>>, %arg8: memref<64x1xf32, #tpu.memory_space<vmem>>, %arg9: memref<16x64xf32, #tpu.memory_space<vmem>>, %arg10: memref<16x1xf32, #tpu.memory_space<vmem>>, %arg11: memref<16x1xf32, #tpu.memory_space<vmem>>, %arg12: memref<1x16x512xf32, #tpu.memory_space<vmem>>) attributes {dimension_semantics = [#tpu.dimension_semantics<parallel>, #tpu.dimension_semantics<parallel>], iteration_bounds = array<i64: 2, 1>, scalar_prefetch = 0 : i64, scratch_operands = 0 : i64, tpu.core_type = #tpu.core_type<tc>, window_params = [{transform_indices = @transform_0, window_bounds = array<i64: 1, 16, 512>}, {transform_indices = @transform_1, window_bounds = array<i64: 1, 1, 1>}, {transform_indices = @transform_2, window_bounds = array<i64: 1, 1, 1>}, {pipeline_mode = #tpu.pipeline_mode<synchronous>, transform_indices = @transform_3, window_bounds = array<i64: 16, 1>}, {pipeline_mode = #tpu.pipeline_mode<synchronous>, transform_indices = @transform_4, window_bounds = array<i64: 16, 1>}, {pipeline_mode = #tpu.pipeline_mode<synchronous>, transform_indices = @transform_5, window_bounds = array<i64: 64, 16>}, {pipeline_mode = #tpu.pipeline_mode<synchronous>, transform_indices = @transform_6, window_bounds = array<i64: 64, 1>}, {pipeline_mode = #tpu.pipeline_mode<synchronous>, transform_indices = @transform_7, window_bounds = array<i64: 16, 64>}, {pipeline_mode = #tpu.pipeline_mode<synchronous>, transform_indices = @transform_8, window_bounds = array<i64: 16, 1>}, {pipeline_mode = #tpu.pipeline_mode<synchronous>, transform_indices = @transform_9, window_bounds = array<i64: 16, 1>}, {transform_indices = @transform_10, window_bounds = array<i64: 1, 16, 512>}]} {
    %c0 = arith.constant 0 : index
    %c0_0 = arith.constant 0 : index
    %c0_1 = arith.constant 0 : index
    %0 = vector.load %arg2[%c0, %c0_0, %c0_1] : memref<1x16x512xf32, #tpu.memory_space<vmem>>, vector<1x16x512xf32>
    %1 = vector.shape_cast %0 : vector<1x16x512xf32> to vector<16x512xf32>
    %c0_2 = arith.constant 0 : index
    %c0_3 = arith.constant 0 : index
    %c0_4 = arith.constant 0 : index
    %2 = vector.load %arg3[%c0_2, %c0_3, %c0_4] : memref<1x1x1xf32, #tpu.memory_space<vmem>>, vector<1x1x1xf32>
    %3 = vector.shape_cast %2 : vector<1x1x1xf32> to vector<1x1xf32>
    %4 = vector.broadcast %3 : vector<1x1xf32> to vector<16x512xf32>
    %5 = arith.subf %1, %4 : vector<16x512xf32>
    %c0_5 = arith.constant 0 : index
    %c0_6 = arith.constant 0 : index
    %c0_7 = arith.constant 0 : index
    %6 = vector.load %arg4[%c0_5, %c0_6, %c0_7] : memref<1x1x1xf32, #tpu.memory_space<vmem>>, vector<1x1x1xf32>
    %7 = vector.shape_cast %6 : vector<1x1x1xf32> to vector<1x1xf32>
    %8 = vector.broadcast %7 : vector<1x1xf32> to vector<16x512xf32>
    %9 = arith.mulf %5, %8 : vector<16x512xf32>
    %c0_8 = arith.constant 0 : index
    %c0_9 = arith.constant 0 : index
    %10 = vector.load %arg5[%c0_8, %c0_9] : memref<16x1xf32, #tpu.memory_space<vmem>>, vector<16x1xf32>
    %11 = vector.broadcast %10 : vector<16x1xf32> to vector<16x512xf32>
    %12 = arith.mulf %9, %11 : vector<16x512xf32>
    %c0_10 = arith.constant 0 : index
    %c0_11 = arith.constant 0 : index
    %13 = vector.load %arg6[%c0_10, %c0_11] : memref<16x1xf32, #tpu.memory_space<vmem>>, vector<16x1xf32>
    %14 = vector.broadcast %13 : vector<16x1xf32> to vector<16x512xf32>
    %15 = arith.addf %12, %14 : vector<16x512xf32>
    %c0_12 = arith.constant 0 : index
    %c0_13 = arith.constant 0 : index
    %16 = vector.load %arg7[%c0_12, %c0_13] : memref<64x16xf32, #tpu.memory_space<vmem>>, vector<64x16xf32>
    %cst = arith.constant dense<0.000000e+00> : vector<64x512xf32>
    %17 = tpu.matmul %16, %15, %cst {dimension_numbers = #tpu.dot_dimension_numbers<[1], [0], [0], [1], [0, 0, 1, 1], [], []>} : vector<64x16xf32>, vector<16x512xf32>, vector<64x512xf32> -> vector<64x512xf32>
    %c0_14 = arith.constant 0 : index
    %c0_15 = arith.constant 0 : index
    %18 = vector.load %arg8[%c0_14, %c0_15] : memref<64x1xf32, #tpu.memory_space<vmem>>, vector<64x1xf32>
    %19 = vector.broadcast %18 : vector<64x1xf32> to vector<64x512xf32>
    %20 = arith.addf %17, %19 : vector<64x512xf32>
    %cst_16 = arith.constant 5.000000e-01 : f32
    %21 = vector.broadcast %cst_16 : f32 to vector<64x512xf32>
    %22 = arith.mulf %21, %20 : vector<64x512xf32>
    %cst_17 = arith.constant 0.707106769 : f32
    %23 = vector.broadcast %cst_17 : f32 to vector<64x512xf32>
    %24 = arith.mulf %20, %23 : vector<64x512xf32>
    %25 = math.erf %24 : vector<64x512xf32>
    %cst_18 = arith.constant 1.000000e+00 : f32
    %26 = vector.broadcast %cst_18 : f32 to vector<64x512xf32>
    %27 = arith.addf %26, %25 : vector<64x512xf32>
    %28 = arith.mulf %22, %27 : vector<64x512xf32>
    %c0_19 = arith.constant 0 : index
    %c0_20 = arith.constant 0 : index
    %29 = vector.load %arg9[%c0_19, %c0_20] : memref<16x64xf32, #tpu.memory_space<vmem>>, vector<16x64xf32>
    %cst_21 = arith.constant dense<0.000000e+00> : vector<16x512xf32>
    %30 = tpu.matmul %29, %28, %cst_21 {dimension_numbers = #tpu.dot_dimension_numbers<[1], [0], [0], [1], [0, 0, 1, 1], [], []>} : vector<16x64xf32>, vector<64x512xf32>, vector<16x512xf32> -> vector<16x512xf32>
    %c0_22 = arith.constant 0 : index
    %c0_23 = arith.constant 0 : index
    %31 = vector.load %arg10[%c0_22, %c0_23] : memref<16x1xf32, #tpu.memory_space<vmem>>, vector<16x1xf32>
    %32 = vector.broadcast %31 : vector<16x1xf32> to vector<16x512xf32>
    %33 = arith.addf %30, %32 : vector<16x512xf32>
    %c0_24 = arith.constant 0 : index
    %c0_25 = arith.constant 0 : index
    %34 = vector.load %arg11[%c0_24, %c0_25] : memref<16x1xf32, #tpu.memory_space<vmem>>, vector<16x1xf32>
    %35 = vector.broadcast %34 : vector<16x1xf32> to vector<16x512xf32>
    %36 = arith.mulf %35, %33 : vector<16x512xf32>
    %37 = arith.addf %1, %36 : vector<16x512xf32>
    %c0_26 = arith.constant 0 : index
    %c0_27 = arith.constant 0 : index
    %c0_28 = arith.constant 0 : index
    %38 = vector.load %arg12[%c0_26, %c0_27, %c0_28] : memref<1x16x512xf32, #tpu.memory_space<vmem>>, vector<1x16x512xf32>
    %39 = vector.shape_cast %38 : vector<1x16x512xf32> to vector<16x512xf32>
    %40 = vector.shape_cast %37 : vector<16x512xf32> to vector<1x16x512xf32>
    tpu.vector_store %arg12[%c0_26, %c0_27, %c0_28], %40 {strides = array<i32>} : memref<1x16x512xf32, #tpu.memory_space<vmem>>, vector<1x16x512xf32>,
    return
  }
  func.func @transform_0(%arg0: i32, %arg1: i32) -> (i32, i32, i32) {
    %c0_i32 = arith.constant 0 : i32
    %c0_i32_0 = arith.constant 0 : i32
    return %arg0, %c0_i32, %arg1 : i32, i32, i32
  }
  func.func @transform_1(%arg0: i32, %arg1: i32) -> (i32, i32, i32) {
    %c0_i32 = arith.constant 0 : i32
    %c0_i32_0 = arith.constant 0 : i32
    %c0_i32_1 = arith.constant 0 : i32
    return %arg0, %c0_i32, %c0_i32_0 : i32, i32, i32
  }
  func.func @transform_2(%arg0: i32, %arg1: i32) -> (i32, i32, i32) {
    %c0_i32 = arith.constant 0 : i32
    %c0_i32_0 = arith.constant 0 : i32
    %c0_i32_1 = arith.constant 0 : i32
    return %arg0, %c0_i32, %c0_i32_0 : i32, i32, i32
  }
  func.func @transform_3(%arg0: i32, %arg1: i32) -> (i32, i32) {
    %c0_i32 = arith.constant 0 : i32
    %c0_i32_0 = arith.constant 0 : i32
    %c0_i32_1 = arith.constant 0 : i32
    return %c0_i32, %c0_i32_0 : i32, i32
  }
  func.func @transform_4(%arg0: i32, %arg1: i32) -> (i32, i32) {
    %c0_i32 = arith.constant 0 : i32
    %c0_i32_0 = arith.constant 0 : i32
    %c0_i32_1 = arith.constant 0 : i32
    return %c0_i32, %c0_i32_0 : i32, i32
  }
  func.func @transform_5(%arg0: i32, %arg1: i32) -> (i32, i32) {
    %c0_i32 = arith.constant 0 : i32
    %c0_i32_0 = arith.constant 0 : i32
    %c0_i32_1 = arith.constant 0 : i32
    return %c0_i32, %c0_i32_0 : i32, i32
  }
  func.func @transform_6(%arg0: i32, %arg1: i32) -> (i32, i32) {
    %c0_i32 = arith.constant 0 : i32
    %c0_i32_0 = arith.constant 0 : i32
    %c0_i32_1 = arith.constant 0 : i32
    return %c0_i32, %c0_i32_0 : i32, i32
  }
  func.func @transform_7(%arg0: i32, %arg1: i32) -> (i32, i32) {
    %c0_i32 = arith.constant 0 : i32
    %c0_i32_0 = arith.constant 0 : i32
    %c0_i32_1 = arith.constant 0 : i32
    return %c0_i32, %c0_i32_0 : i32, i32
  }
  func.func @transform_8(%arg0: i32, %arg1: i32) -> (i32, i32) {
    %c0_i32 = arith.constant 0 : i32
    %c0_i32_0 = arith.constant 0 : i32
    %c0_i32_1 = arith.constant 0 : i32
    return %c0_i32, %c0_i32_0 : i32, i32
  }
  func.func @transform_9(%arg0: i32, %arg1: i32) -> (i32, i32) {
    %c0_i32 = arith.constant 0 : i32
    %c0_i32_0 = arith.constant 0 : i32
    %c0_i32_1 = arith.constant 0 : i32
    return %c0_i32, %c0_i32_0 : i32, i32
  }
  func.func @transform_10(%arg0: i32, %arg1: i32) -> (i32, i32, i32) {
    %c0_i32 = arith.constant 0 : i32
    %c0_i32_0 = arith.constant 0 : i32
    return %arg0, %c0_i32, %arg1 : i32, i32, i32
  }
}

</mosaic_0001>

<llo_original>
// kernel: cluster_block_forward.5
$region0: #{cluster_block_forward.5}
  #allocation0 [shape = 'u32[]', space=smem, size = 0x4, offset = 0x4, fixed_abs, tag = 'smem constant byte address 0x4 - core index']
  #allocation1 [shape = 'u32[144,128]{1,0:T(1,128)}', space=vmem, size = 0x12000, scoped, tag = 'internal scratch']
  #allocation2 [shape = 'f32[16,512]{1,0:T(8,128)}', space=vmem, size = 0x8000, scoped, tag = 'scratch operand']
  #allocation3 [shape = 'f32[16,512]{1,0:T(8,128)}', space=vmem, size = 0x8000, scoped, tag = 'scratch operand']
  %s0 = inlined_call_operand.vmem [shape: f32[2,16,512], index: 0, kind: input, shape index: {}]
  %s1 = inlined_call_operand.vmem [shape: f32[2,1,1], index: 1, kind: output, shape index: {0}]
  %s2 = inlined_call_operand.vmem [shape: f32[2,1,1], index: 2, kind: output, shape index: {1}]
  %3 = xla_tuple %s1, %s2
  %s4 = sld [smem:[#allocation0]]
  $region53: #{cluster_block_forward.5} parent=0
    _
  %s6 = ssub.s32 1, %s4
  %s7 = scalar_select 0, %s6, %s4
  loop: start=0, step=1, limit=4
  $region2: #{cluster_block_forward.5} parent=0 // loop_pre_header
    _
  $region3: #{cluster_block_forward.5} parent=0 // loop_header
    %s9 = sphi 0, %s13
    %p10 = scmp.ge.s32.totalorder %s9, 4
    %s16 = sphi 0, %s28
    %s17 = sphi 0, %s24
    %s18 = sphi 0, %s16
    %s19 = sphi 0, %s17
    %s20 = sphi 0, %s18
    %s21 = sphi 0, %s19
    %s33 = sphi 0, %s35
    %s36 = sphi 0, %s33
    %s37 = sphi 0, %s36
    %s53 = sphi 0, %s37
    %s59 = sphi 0, %s61
    %s62 = sphi 0, %s59
    %s63 = sphi 0, %s62
    %s79 = sphi 0, %s63
    %s85 = sphi 0, %s87
    %s88 = sphi 0, %s85
    %s89 = sphi 0, %s88
    %s105 = sphi 0, %s89
  $region4: #{cluster_block_forward.5} parent=0 // loop_header_branch
    %12 = sbr.rel (%p10) target = $region8
  $region5: #{cluster_block_forward.5} parent=0 // loop_body
    %s14 = ssub.s32 %s9, 1
    %s15 = ssub.s32 %s9, 2
    %s22 = sadd.s32 1, %s17
    %p23 = scmp.ge.s32.totalorder %s22, 1
    %s24 = scalar_select %p23, 0, %s22
    %s25 = sadd.s32 1, %s16
    %s26 = scalar_select %p23, %s25, %s16
    %p27 = scmp.ge.s32.totalorder %s26, 2
    %s28 = scalar_select %p27, 0, %s26
    %s29 = ssub.s32 %s16, %s28
    %s30 = ssub.s32 %s17, %s24
    %s31 = sor.u32 %s29, %s30
    %p32 = scmp.eq.s32.totalorder %s31, 0
    %s34 = sadd.s32 %s33, 1
    %s35 = scalar_select %p32, %s33, %s34
    %p38 = pneg %p32
    %p39 = scmp.eq.s32.totalorder %s9, 1
    %p40 = por %p38, %p39
    %p41 = scmp.ne.s32.totalorder %s33, %s36
    %p42 = scmp.eq.s32.totalorder %s9, 0
    %p43 = por %p41, %p42
    %p44 = scmp.ne.s32.totalorder %s33, %s36
    %p45 = scmp.eq.s32.totalorder %s14, 1
    %p46 = por %p44, %p45
    %p47 = scmp.ne.s32.totalorder %s36, %s37
    %p48 = scmp.eq.s32.totalorder %s14, 0
    %p49 = por %p47, %p48
    %p50 = scmp.ne.s32.totalorder %s36, %s37
    %p51 = scmp.eq.s32.totalorder %s15, 1
    %p52 = por %p50, %p51
    %p54 = scmp.ne.s32.totalorder %s37, %s53
    %p55 = scmp.eq.s32.totalorder %s15, 0
    %p56 = por %p54, %p55
    %s57 = ssub.s32 %s16, %s28
    %p58 = scmp.eq.s32.totalorder %s57, 0
    %s60 = sadd.s32 %s59, 1
    %s61 = scalar_select %p58, %s59, %s60
    %p64 = pneg %p58
    %p65 = scmp.eq.s32.totalorder %s9, 1
    %p66 = por %p64, %p65
    %p67 = scmp.ne.s32.totalorder %s59, %s62
    %p68 = scmp.eq.s32.totalorder %s9, 0
    %p69 = por %p67, %p68
    %p70 = scmp.ne.s32.totalorder %s59, %s62
    %p71 = scmp.eq.s32.totalorder %s14, 1
    %p72 = por %p70, %p71
    %p73 = scmp.ne.s32.totalorder %s62, %s63
    %p74 = scmp.eq.s32.totalorder %s14, 0
    %p75 = por %p73, %p74
    %p76 = scmp.ne.s32.totalorder %s62, %s63
    %p77 = scmp.eq.s32.totalorder %s15, 1
    %p78 = por %p76, %p77
    %p80 = scmp.ne.s32.totalorder %s63, %s79
    %p81 = scmp.eq.s32.totalorder %s15, 0
    %p82 = por %p80, %p81
    %s83 = ssub.s32 %s16, %s28
    %p84 = scmp.eq.s32.totalorder %s83, 0
    %s86 = sadd.s32 %s85, 1
    %s87 = scalar_select %p84, %s85, %s86
    %p90 = pneg %p84
    %p91 = scmp.eq.s32.totalorder %s9, 1
    %p92 = por %p90, %p91
    %p93 = scmp.ne.s32.totalorder %s85, %s88
    %p94 = scmp.eq.s32.totalorder %s9, 0
    %p95 = por %p93, %p94
    %p96 = scmp.ne.s32.totalorder %s85, %s88
    %p97 = scmp.eq.s32.totalorder %s14, 1
    %p98 = por %p96, %p97
    %p99 = scmp.ne.s32.totalorder %s88, %s89
    %p100 = scmp.eq.s32.totalorder %s14, 0
    %p101 = por %p99, %p100
    %p102 = scmp.ne.s32.totalorder %s88, %s89
    %p103 = scmp.eq.s32.totalorder %s15, 1
    %p104 = por %p102, %p103
    %p106 = scmp.ne.s32.totalorder %s89, %s105
    %p107 = scmp.eq.s32.totalorder %s15, 0
    %p108 = por %p106, %p107
    %p109 = scmp.le.s32.totalorder 1, %s9
    %p110 = scmp.lt.s32.totalorder %s9, 3
    %p111 = pnand %p109, %p110
    %p112 = pneg %p111
    // Predicated region
    $region9: #{cluster_block_forward.5} parent=5 // pred_check
      _
    $region10: #{cluster_block_forward.5} parent=5 // pred_check_branch
      %114 = sbr.rel (%p111) target = $region12
    $region11: #{cluster_block_forward.5} parent=5 // pred_region
      %s115 = ssub.s32 %s9, 1
    $region12: #{cluster_block_forward.5} parent=5 // pred_fallthru
      _
    %p116 = scmp.lt.s32.totalorder %s9, 2
    // Predicated region
    $region13: #{cluster_block_forward.5} parent=5 // pred_check
      %p117 = pneg %p116
    $region14: #{cluster_block_forward.5} parent=5 // pred_check_branch
      %119 = sbr.rel (%p117) target = $region16
    $region15: #{cluster_block_forward.5} parent=5 // pred_region
      // Predicated region
      $region17: #{cluster_block_forward.5} parent=15 // pred_check
        %p120 = pneg %p43
      $region18: #{cluster_block_forward.5} parent=15 // pred_check_branch
        %122 = sbr.rel (%p120) target = $region20
      $region19: #{cluster_block_forward.5} parent=15 // pred_region
        %s123 = smul.u32 4, %s17
        %p124 = scmp.lt.s32.totalorder %s16, 1
        %s125 = scalar_select %p124, %s16, 1
        %p126 = scmp.lt.s32.totalorder %s123, 3
        %s127 = scalar_select %p126, %s123, 3
        %s128 = smul.addr %s125, 8
        %s129 = sadd.s32 %s127, %s128
        %s130 = smul.addr %s129, 8
        %s131 = scalar_lea.vmem %s0, %s130
        %s132 = smul.u32 4, %s17
      $region20: #{cluster_block_forward.5} parent=15 // pred_fallthru
        _
    $region16: #{cluster_block_forward.5} parent=5 // pred_fallthru
      _
    %p133 = scmp.le.s32.totalorder 1, %s9
    %p134 = scmp.lt.s32.totalorder %s9, 3
    %p135 = pnand %p133, %p134
    %p136 = pneg %p135
    // Predicated region
    $region21: #{cluster_block_forward.5} parent=5 // pred_check
      _
    $region22: #{cluster_block_forward.5} parent=5 // pred_check_branch
      %138 = sbr.rel (%p135) target = $region24
    $region23: #{cluster_block_forward.5} parent=5 // pred_region
      %s139 = ssub.s32 %s9, 1
      %s140 = smul.u32 4, %s19
      %p141 = scmp.lt.s32.totalorder %s18, 1
      %s142 = scalar_select %p141, %s18, 1
      %p143 = scmp.lt.s32.totalorder %s140, 3
      %s144 = scalar_select %p143, %s140, 3
      %s145 = smul.addr %s142, 8
      %s146 = sadd.s32 %s144, %s145
      %s147 = smul.addr %s146, 8
      %s148 = scalar_lea.vmem %s0, %s147
      %p149 = pneg %p49
      %p150 = pneg %p46
      %p151 = pneg %p75
      %p152 = pneg %p72
      %p153 = scmp.lt.s32.totalorder %s18, 1
      %s154 = scalar_select %p153, %s18, 1
      %s155 = scalar_lea.vmem %s1, %s154
      %p156 = pneg %p101
      %p157 = pneg %p98
      %p158 = scmp.lt.s32.totalorder %s18, 1
      %s159 = scalar_select %p158, %s18, 1
      %s160 = scalar_lea.vmem %s2, %s159
      %s161 = smul.u32 4, %s19
      %p162 = scmp.lt.s32.totalorder %s18, 1
      %s163 = scalar_select %p162, %s18, 1
      %p164 = scmp.lt.s32.totalorder %s161, 3
      %s165 = scalar_select %p164, %s161, 3
      %s166 = smul.addr %s163, 8
      %s167 = sadd.s32 %s165, %s166
      %s168 = smul.addr %s167, 8
      %s169 = scalar_lea.vmem %s0, %s168
      %s170 = smul.u32 4, %s19
      %p171 = scmp.lt.s32.totalorder %s18, 1
      %s172 = scalar_select %p171, %s18, 1
      %s173 = scalar_lea.vmem %s1, %s172
      %p174 = scmp.lt.s32.totalorder %s18, 1
      %s175 = scalar_select %p174, %s18, 1
      %s176 = scalar_lea.vmem %s2, %s175
      %p177 = scmp.eq.s32.totalorder %s19, 0
      // Predicated region
      $region25: #{cluster_block_forward.5} parent=23 // pred_check
        %p178 = pneg %p177
      $region26: #{cluster_block_forward.5} parent=23 // pred_check_branch
        %180 = sbr.rel (%p178) target = $region28
      $region27: #{cluster_block_forward.5} parent=23 // pred_region
        %181 = vst [vmem:[#allocation2] sm:$0xff] 0.0
        %182 = vst [vmem:[#allocation2 + $0x8] sm:$0xff] 0.0
        %183 = vst [vmem:[#allocation2 + $0x10] sm:$0xff] 0.0
        %184 = vst [vmem:[#allocation2 + $0x18] sm:$0xff] 0.0
        %185 = vst [vmem:[#allocation2 + $0x20] sm:$0xff] 0.0
        %186 = vst [vmem:[#allocation2 + $0x28] sm:$0xff] 0.0
        %187 = vst [vmem:[#allocation2 + $0x30] sm:$0xff] 0.0
        %188 = vst [vmem:[#allocation2 + $0x38] sm:$0xff] 0.0
        %189 = vst [vmem:[#allocation3] sm:$0xff] 0.0
        %190 = vst [vmem:[#allocation3 + $0x8] sm:$0xff] 0.0
        %191 = vst [vmem:[#allocation3 + $0x10] sm:$0xff] 0.0
        %192 = vst [vmem:[#allocation3 + $0x18] sm:$0xff] 0.0
        %193 = vst [vmem:[#allocation3 + $0x20] sm:$0xff] 0.0
        %194 = vst [vmem:[#allocation3 + $0x28] sm:$0xff] 0.0
        %195 = vst [vmem:[#allocation3 + $0x30] sm:$0xff] 0.0
        %196 = vst [vmem:[#allocation3 + $0x38] sm:$0xff] 0.0
      $region28: #{cluster_block_forward.5} parent=23 // pred_fallthru
        _
      %v197 = vld [vmem:[%s169] sm:$0xff]
      %v198 = vld [vmem:[%s169 + $0x8] sm:$0xff]
      %v199 = vld [vmem:[%s169 + $0x10] sm:$0xff]
      %v200 = vld [vmem:[%s169 + $0x18] sm:$0xff]
      %v201 = vld [vmem:[%s169 + $0x20] sm:$0xff]
      %v202 = vld [vmem:[%s169 + $0x28] sm:$0xff]
      %v203 = vld [vmem:[%s169 + $0x30] sm:$0xff]
      %v204 = vld [vmem:[%s169 + $0x38] sm:$0xff]
      %v205 = vld [vmem:[#allocation2] sm:$0xff]
      %v206 = vld [vmem:[#allocation2 + $0x8] sm:$0xff]
      %v207 = vld [vmem:[#allocation2 + $0x10] sm:$0xff]
      %v208 = vld [vmem:[#allocation2 + $0x18] sm:$0xff]
      %v209 = vld [vmem:[#allocation2 + $0x20] sm:$0xff]
      %v210 = vld [vmem:[#allocation2 + $0x28] sm:$0xff]
      %v211 = vld [vmem:[#allocation2 + $0x30] sm:$0xff]
      %v212 = vld [vmem:[#allocation2 + $0x38] sm:$0xff]
      %v213 = vadd.f32 %v205, %v197
      %v214 = vadd.f32 %v206, %v198
      %v215 = vadd.f32 %v207, %v199
      %v216 = vadd.f32 %v208, %v200
      %v217 = vadd.f32 %v209, %v201
      %v218 = vadd.f32 %v210, %v202
      %v219 = vadd.f32 %v211, %v203
      %v220 = vadd.f32 %v212, %v204
      %221 = vst [vmem:[#allocation2] sm:$0xff] %v213
      %222 = vst [vmem:[#allocation2 + $0x8] sm:$0xff] %v214
      %223 = vst [vmem:[#allocation2 + $0x10] sm:$0xff] %v215
      %224 = vst [vmem:[#allocation2 + $0x18] sm:$0xff] %v216
      %225 = vst [vmem:[#allocation2 + $0x20] sm:$0xff] %v217
      %226 = vst [vmem:[#allocation2 + $0x28] sm:$0xff] %v218
      %227 = vst [vmem:[#allocation2 + $0x30] sm:$0xff] %v219
      %228 = vst [vmem:[#allocation2 + $0x38] sm:$0xff] %v220
      %v229 = vld [vmem:[#allocation3] sm:$0xff]
      %v230 = vld [vmem:[#allocation3 + $0x8] sm:$0xff]
      %v231 = vld [vmem:[#allocation3 + $0x10] sm:$0xff]
      %v232 = vld [vmem:[#allocation3 + $0x18] sm:$0xff]
      %v233 = vld [vmem:[#allocation3 + $0x20] sm:$0xff]
      %v234 = vld [vmem:[#allocation3 + $0x28] sm:$0xff]
      %v235 = vld [vmem:[#allocation3 + $0x30] sm:$0xff]
      %v236 = vld [vmem:[#allocation3 + $0x38] sm:$0xff]
      %v237 = vmul.f32 %v197, %v197
      %v238 = vmul.f32 %v198, %v198
      %v239 = vmul.f32 %v199, %v199
      %v240 = vmul.f32 %v200, %v200
      %v241 = vmul.f32 %v201, %v201
      %v242 = vmul.f32 %v202, %v202
      %v243 = vmul.f32 %v203, %v203
      %v244 = vmul.f32 %v204, %v204
      %v245 = vadd.f32 %v229, %v237
      %v246 = vadd.f32 %v230, %v238
      %v247 = vadd.f32 %v231, %v239
      %v248 = vadd.f32 %v232, %v240
      %v249 = vadd.f32 %v233, %v241
      %v250 = vadd.f32 %v234, %v242
      %v251 = vadd.f32 %v235, %v243
      %v252 = vadd.f32 %v236, %v244
      %253 = vst [vmem:[#allocation3] sm:$0xff] %v245
      %254 = vst [vmem:[#allocation3 + $0x8] sm:$0xff] %v246
      %255 = vst [vmem:[#allocation3 + $0x10] sm:$0xff] %v247
      %256 = vst [vmem:[#allocation3 + $0x18] sm:$0xff] %v248
      %257 = vst [vmem:[#allocation3 + $0x20] sm:$0xff] %v249
      %258 = vst [vmem:[#allocation3 + $0x28] sm:$0xff] %v250
      %259 = vst [vmem:[#allocation3 + $0x30] sm:$0xff] %v251
      %260 = vst [vmem:[#allocation3 + $0x38] sm:$0xff] %v252
      // Predicated region
      $region29: #{cluster_block_forward.5} parent=23 // pred_check
        %p261 = pneg %p177
      $region30: #{cluster_block_forward.5} parent=23 // pred_check_branch
        %263 = sbr.rel (%p261) target = $region32
      $region31: #{cluster_block_forward.5} parent=23 // pred_region
        %v264 = vld [vmem:[#allocation2] sm:$0xff]
        %v265 = vld [vmem:[#allocation2 + $0x8] sm:$0xff]
        %v266 = vld [vmem:[#allocation2 + $0x10] sm:$0xff]
        %v267 = vld [vmem:[#allocation2 + $0x18] sm:$0xff]
        %v268 = vld [vmem:[#allocation2 + $0x20] sm:$0xff]
        %v269 = vld [vmem:[#allocation2 + $0x28] sm:$0xff]
        %v270 = vld [vmem:[#allocation2 + $0x30] sm:$0xff]
        %v271 = vld [vmem:[#allocation2 + $0x38] sm:$0xff]
        %v272 = vadd.f32 %v264, %v265
        %v273 = vadd.f32 %v272, %v266
        %v274 = vadd.f32 %v273, %v267
        %275 = vadd.xlane.f32.xlu0 %v274
        %v276 = vpop.xlane.xlu0 %275
        %v277 = vadd.f32 %v268, %v269
        %v278 = vadd.f32 %v277, %v270
        %v279 = vadd.f32 %v278, %v271
        %280 = vadd.xlane.f32.xlu0 %v279
        %v281 = vpop.xlane.xlu0 %280
        %v282 = vadd.f32 %v276, %v281
        %v283 = vrot.slane %v282, 4
        %v284 = vadd.f32 %v282, %v283
        %v285 = vrot.slane %v284, 2
        %v286 = vadd.f32 %v284, %v285
        %v287 = vrot.slane %v286, 1
        %v288 = vadd.f32 %v286, %v287
        %v289 = vld [vmem:[#allocation3] sm:$0xff]
        %v290 = vld [vmem:[#allocation3 + $0x8] sm:$0xff]
        %v291 = vld [vmem:[#allocation3 + $0x10] sm:$0xff]
        %v292 = vld [vmem:[#allocation3 + $0x18] sm:$0xff]
        %v293 = vld [vmem:[#allocation3 + $0x20] sm:$0xff]
        %v294 = vld [vmem:[#allocation3 + $0x28] sm:$0xff]
        %v295 = vld [vmem:[#allocation3 + $0x30] sm:$0xff]
        %v296 = vld [vmem:[#allocation3 + $0x38] sm:$0xff]
        %v297 = vadd.f32 %v289, %v290
        %v298 = vadd.f32 %v297, %v291
        %v299 = vadd.f32 %v298, %v292
        %300 = vadd.xlane.f32.xlu0 %v299
        %v301 = vpop.xlane.xlu0 %300
        %v302 = vadd.f32 %v293, %v294
        %v303 = vadd.f32 %v302, %v295
        %v304 = vadd.f32 %v303, %v296
        %305 = vadd.xlane.f32.xlu0 %v304
        %v306 = vpop.xlane.xlu0 %305
        %v307 = vadd.f32 %v301, %v306
        %v308 = vrot.slane %v307, 4
        %v309 = vadd.f32 %v307, %v308
        %v310 = vrot.slane %v309, 2
        %v311 = vadd.f32 %v309, %v310
        %v312 = vrot.slane %v311, 1
        %v313 = vadd.f32 %v311, %v312
        %v314 = vmul.f32 %v288, 0.00012207031
        %v315 = vmul.f32 %v313, 0.00012207031
        %v316 = vmul.f32 %v314, %v314
        %v317 = vsub.f32 %v315, %v316
        %vm318 = vcmask 0
        %319 = vst.msk [vmem:[%s173] sm:$0x1] %vm318, %v314
        %v320 = vadd.f32 %v317, 1e-05
        %v321 = vrsqrt.pop %v320
        %322 = vst.msk [vmem:[%s176] sm:$0x1] %vm318, %v321
      $region32: #{cluster_block_forward.5} parent=23 // pred_fallthru
        _
      %p323 = scmp.lt.s32.totalorder %s18, 1
      %s324 = scalar_select %p323, %s18, 1
      %s325 = scalar_lea.vmem %s1, %s324
      %p326 = scmp.lt.s32.totalorder %s18, 1
      %s327 = scalar_select %p326, %s18, 1
      %s328 = scalar_lea.vmem %s2, %s327
      // Predicated region
      $region33: #{cluster_block_forward.5} parent=23 // pred_check
        %p329 = pneg %p72
      $region34: #{cluster_block_forward.5} parent=23 // pred_check_branch
        %331 = sbr.rel (%p329) target = $region36
      $region35: #{cluster_block_forward.5} parent=23 // pred_region
        _
      $region36: #{cluster_block_forward.5} parent=23 // pred_fallthru
        _
      // Predicated region
      $region37: #{cluster_block_forward.5} parent=23 // pred_check
        %p332 = pneg %p98
      $region38: #{cluster_block_forward.5} parent=23 // pred_check_branch
        %334 = sbr.rel (%p332) target = $region40
      $region39: #{cluster_block_forward.5} parent=23 // pred_region
        _
      $region40: #{cluster_block_forward.5} parent=23 // pred_fallthru
        _
    $region24: #{cluster_block_forward.5} parent=5 // pred_fallthru
      _
    %p335 = scmp.le.s32.totalorder 2, %s9
    // Predicated region
    $region41: #{cluster_block_forward.5} parent=5 // pred_check
      %p336 = pneg %p335
    $region42: #{cluster_block_forward.5} parent=5 // pred_check_branch
      %338 = sbr.rel (%p336) target = $region44
    $region43: #{cluster_block_forward.5} parent=5 // pred_region
      %s339 = ssub.s32 %s9, 2
      // Predicated region
      $region45: #{cluster_block_forward.5} parent=43 // pred_check
        %p340 = pneg %p78
      $region46: #{cluster_block_forward.5} parent=43 // pred_check_branch
        %342 = sbr.rel (%p340) target = $region48
      $region47: #{cluster_block_forward.5} parent=43 // pred_region
        %p343 = scmp.lt.s32.totalorder %s20, 1
        %s344 = scalar_select %p343, %s20, 1
        %s345 = scalar_lea.vmem %s1, %s344
      $region48: #{cluster_block_forward.5} parent=43 // pred_fallthru
        _
      // Predicated region
      $region49: #{cluster_block_forward.5} parent=43 // pred_check
        %p346 = pneg %p104
      $region50: #{cluster_block_forward.5} parent=43 // pred_check_branch
        %348 = sbr.rel (%p346) target = $region52
      $region51: #{cluster_block_forward.5} parent=43 // pred_region
        %p349 = scmp.lt.s32.totalorder %s20, 1
        %s350 = scalar_select %p349, %s20, 1
        %s351 = scalar_lea.vmem %s2, %s350
      $region52: #{cluster_block_forward.5} parent=43 // pred_fallthru
        _
    $region44: #{cluster_block_forward.5} parent=5 // pred_fallthru
      _
  $region6: #{cluster_block_forward.5} parent=0 // loop_footer
    %s13 = sadd.s32 1, %s9
  $region7: #{cluster_block_forward.5} parent=0 // loop_footer_branch
    %8 = sbr.rel target = $region3
  $region8: #{cluster_block_forward.5} parent=0 // loop_exit
    _

// kernel: cluster_block_forward.6
$region0: #{cluster_block_forward.6}
  #allocation0 [shape = 'u32[]', space=smem, size = 0x4, offset = 0x4, fixed_abs, tag = 'smem constant byte address 0x4 - core index']
  #allocation1 [shape = 'u32[144,128]{1,0:T(1,128)}', space=vmem, size = 0x12000, scoped, tag = 'internal scratch']
  %s0 = inlined_call_operand.vmem [shape: f32[2,16,512], index: 0, kind: input, shape index: {}]
  %s1 = inlined_call_operand.vmem [shape: f32[2,1,1], index: 1, kind: input, shape index: {}]
  %s2 = inlined_call_operand.vmem [shape: f32[2,1,1], index: 2, kind: input, shape index: {}]
  %s3 = inlined_call_operand.vmem [shape: f32[16,1], index: 3, kind: input, shape index: {}]
  %s4 = inlined_call_operand.vmem [shape: f32[16,1], index: 4, kind: input, shape index: {}]
  %s5 = inlined_call_operand.vmem [shape: f32[16,96], index: 5, kind: input, shape index: {}]
  %s6 = inlined_call_operand.vmem [shape: f32[1,96], index: 6, kind: input, shape index: {}]
  %s7 = inlined_call_operand.vmem [shape: f32[16,96], index: 7, kind: input, shape index: {}]
  %s8 = inlined_call_operand.vmem [shape: f32[1,96], index: 8, kind: input, shape index: {}]
  %s9 = inlined_call_operand.vmem [shape: f32[2,2,512,96], index: 9, kind: output, shape index: {}]
  %s10 = sld [smem:[#allocation0]]
  $region69: #{cluster_block_forward.6} parent=0
    _
  %s12 = ssub.s32 1, %s10
  %s13 = scalar_select 0, %s12, %s10
  loop: start=0, step=1, limit=4
  $region2: #{cluster_block_forward.6} parent=0 // loop_pre_header
    _
  $region3: #{cluster_block_forward.6} parent=0 // loop_header
    %s15 = sphi 0, %s19
    %p16 = scmp.ge.s32.totalorder %s15, 4
    %s22 = sphi 0, %s34
    %s23 = sphi 0, %s30
    %s24 = sphi 0, %s22
    %s25 = sphi 0, %s23
    %s26 = sphi 0, %s24
    %s27 = sphi 0, %s25
    %s39 = sphi 0, %s41
    %s42 = sphi 0, %s39
    %s43 = sphi 0, %s42
    %s59 = sphi 0, %s43
    %s65 = sphi 0, %s67
    %s68 = sphi 0, %s65
    %s69 = sphi 0, %s68
    %s85 = sphi 0, %s69
    %s91 = sphi 0, %s93
    %s94 = sphi 0, %s91
    %s95 = sphi 0, %s94
    %s111 = sphi 0, %s95
    %s115 = sphi 0, %s115
    %s117 = sphi 0, %s115
    %s118 = sphi 0, %s117
    %s132 = sphi 0, %s118
    %s136 = sphi 0, %s136
    %s138 = sphi 0, %s136
    %s139 = sphi 0, %s138
    %s153 = sphi 0, %s139
    %s157 = sphi 0, %s157
    %s159 = sphi 0, %s157
    %s160 = sphi 0, %s159
    %s174 = sphi 0, %s160
    %s178 = sphi 0, %s178
    %s180 = sphi 0, %s178
    %s181 = sphi 0, %s180
    %s195 = sphi 0, %s181
    %s199 = sphi 0, %s199
    %s201 = sphi 0, %s199
    %s202 = sphi 0, %s201
    %s216 = sphi 0, %s202
    %s220 = sphi 0, %s220
    %s222 = sphi 0, %s220
    %s223 = sphi 0, %s222
    %s237 = sphi 0, %s223
    %s245 = sphi 0, %s247
    %s248 = sphi 0, %s245
    %s249 = sphi 0, %s248
    %s265 = sphi 0, %s249
  $region4: #{cluster_block_forward.6} parent=0 // loop_header_branch
    %18 = sbr.rel (%p16) target = $region8
  $region5: #{cluster_block_forward.6} parent=0 // loop_body
    %s20 = ssub.s32 %s15, 1
    %s21 = ssub.s32 %s15, 2
    %s28 = sadd.s32 1, %s23
    %p29 = scmp.ge.s32.totalorder %s28, 1
    %s30 = scalar_select %p29, 0, %s28
    %s31 = sadd.s32 1, %s22
    %s32 = scalar_select %p29, %s31, %s22
    %p33 = scmp.ge.s32.totalorder %s32, 2
    %s34 = scalar_select %p33, 0, %s32
    %s35 = ssub.s32 %s22, %s34
    %s36 = ssub.s32 %s23, %s30
    %s37 = sor.u32 %s35, %s36
    %p38 = scmp.eq.s32.totalorder %s37, 0
    %s40 = sadd.s32 %s39, 1
    %s41 = scalar_select %p38, %s39, %s40
    %p44 = pneg %p38
    %p45 = scmp.eq.s32.totalorder %s15, 1
    %p46 = por %p44, %p45
    %p47 = scmp.ne.s32.totalorder %s39, %s42
    %p48 = scmp.eq.s32.totalorder %s15, 0
    %p49 = por %p47, %p48
    %p50 = scmp.ne.s32.totalorder %s39, %s42
    %p51 = scmp.eq.s32.totalorder %s20, 1
    %p52 = por %p50, %p51
    %p53 = scmp.ne.s32.totalorder %s42, %s43
    %p54 = scmp.eq.s32.totalorder %s20, 0
    %p55 = por %p53, %p54
    %p56 = scmp.ne.s32.totalorder %s42, %s43
    %p57 = scmp.eq.s32.totalorder %s21, 1
    %p58 = por %p56, %p57
    %p60 = scmp.ne.s32.totalorder %s43, %s59
    %p61 = scmp.eq.s32.totalorder %s21, 0
    %p62 = por %p60, %p61
    %s63 = ssub.s32 %s22, %s34
    %p64 = scmp.eq.s32.totalorder %s63, 0
    %s66 = sadd.s32 %s65, 1
    %s67 = scalar_select %p64, %s65, %s66
    %p70 = pneg %p64
    %p71 = scmp.eq.s32.totalorder %s15, 1
    %p72 = por %p70, %p71
    %p73 = scmp.ne.s32.totalorder %s65, %s68
    %p74 = scmp.eq.s32.totalorder %s15, 0
    %p75 = por %p73, %p74
    %p76 = scmp.ne.s32.totalorder %s65, %s68
    %p77 = scmp.eq.s32.totalorder %s20, 1
    %p78 = por %p76, %p77
    %p79 = scmp.ne.s32.totalorder %s68, %s69
    %p80 = scmp.eq.s32.totalorder %s20, 0
    %p81 = por %p79, %p80
    %p82 = scmp.ne.s32.totalorder %s68, %s69
    %p83 = scmp.eq.s32.totalorder %s21, 1
    %p84 = por %p82, %p83
    %p86 = scmp.ne.s32.totalorder %s69, %s85
    %p87 = scmp.eq.s32.totalorder %s21, 0
    %p88 = por %p86, %p87
    %s89 = ssub.s32 %s22, %s34
    %p90 = scmp.eq.s32.totalorder %s89, 0
    %s92 = sadd.s32 %s91, 1
    %s93 = scalar_select %p90, %s91, %s92
    %p96 = pneg %p90
    %p97 = scmp.eq.s32.totalorder %s15, 1
    %p98 = por %p96, %p97
    %p99 = scmp.ne.s32.totalorder %s91, %s94
    %p100 = scmp.eq.s32.totalorder %s15, 0
    %p101 = por %p99, %p100
    %p102 = scmp.ne.s32.totalorder %s91, %s94
    %p103 = scmp.eq.s32.totalorder %s20, 1
    %p104 = por %p102, %p103
    %p105 = scmp.ne.s32.totalorder %s94, %s95
    %p106 = scmp.eq.s32.totalorder %s20, 0
    %p107 = por %p105, %p106
    %p108 = scmp.ne.s32.totalorder %s94, %s95
    %p109 = scmp.eq.s32.totalorder %s21, 1
    %p110 = por %p108, %p109
    %p112 = scmp.ne.s32.totalorder %s95, %s111
    %p113 = scmp.eq.s32.totalorder %s21, 0
    %p114 = por %p112, %p113
    %s116 = sadd.s32 %s115, 1
    %p119 = scmp.eq.s32.totalorder %s15, 1
    %p120 = scmp.ne.s32.totalorder %s115, %s117
    %p121 = scmp.eq.s32.totalorder %s15, 0
    %p122 = por %p120, %p121
    %p123 = scmp.ne.s32.totalorder %s115, %s117
    %p124 = scmp.eq.s32.totalorder %s20, 1
    %p125 = por %p123, %p124
    %p126 = scmp.ne.s32.totalorder %s117, %s118
    %p127 = scmp.eq.s32.totalorder %s20, 0
    %p128 = por %p126, %p127
    %p129 = scmp.ne.s32.totalorder %s117, %s118
    %p130 = scmp.eq.s32.totalorder %s21, 1
    %p131 = por %p129, %p130
    %p133 = scmp.ne.s32.totalorder %s118, %s132
    %p134 = scmp.eq.s32.totalorder %s21, 0
    %p135 = por %p133, %p134
    %s137 = sadd.s32 %s136, 1
    %p140 = scmp.eq.s32.totalorder %s15, 1
    %p141 = scmp.ne.s32.totalorder %s136, %s138
    %p142 = scmp.eq.s32.totalorder %s15, 0
    %p143 = por %p141, %p142
    %p144 = scmp.ne.s32.totalorder %s136, %s138
    %p145 = scmp.eq.s32.totalorder %s20, 1
    %p146 = por %p144, %p145
    %p147 = scmp.ne.s32.totalorder %s138, %s139
    %p148 = scmp.eq.s32.totalorder %s20, 0
    %p149 = por %p147, %p148
    %p150 = scmp.ne.s32.totalorder %s138, %s139
    %p151 = scmp.eq.s32.totalorder %s21, 1
    %p152 = por %p150, %p151
    %p154 = scmp.ne.s32.totalorder %s139, %s153
    %p155 = scmp.eq.s32.totalorder %s21, 0
    %p156 = por %p154, %p155
    %s158 = sadd.s32 %s157, 1
    %p161 = scmp.eq.s32.totalorder %s15, 1
    %p162 = scmp.ne.s32.totalorder %s157, %s159
    %p163 = scmp.eq.s32.totalorder %s15, 0
    %p164 = por %p162, %p163
    %p165 = scmp.ne.s32.totalorder %s157, %s159
    %p166 = scmp.eq.s32.totalorder %s20, 1
    %p167 = por %p165, %p166
    %p168 = scmp.ne.s32.totalorder %s159, %s160
    %p169 = scmp.eq.s32.totalorder %s20, 0
    %p170 = por %p168, %p169
    %p171 = scmp.ne.s32.totalorder %s159, %s160
    %p172 = scmp.eq.s32.totalorder %s21, 1
    %p173 = por %p171, %p172
    %p175 = scmp.ne.s32.totalorder %s160, %s174
    %p176 = scmp.eq.s32.totalorder %s21, 0
    %p177 = por %p175, %p176
    %s179 = sadd.s32 %s178, 1
    %p182 = scmp.eq.s32.totalorder %s15, 1
    %p183 = scmp.ne.s32.totalorder %s178, %s180
    %p184 = scmp.eq.s32.totalorder %s15, 0
    %p185 = por %p183, %p184
    %p186 = scmp.ne.s32.totalorder %s178, %s180
    %p187 = scmp.eq.s32.totalorder %s20, 1
    %p188 = por %p186, %p187
    %p189 = scmp.ne.s32.totalorder %s180, %s181
    %p190 = scmp.eq.s32.totalorder %s20, 0
    %p191 = por %p189, %p190
    %p192 = scmp.ne.s32.totalorder %s180, %s181
    %p193 = scmp.eq.s32.totalorder %s21, 1
    %p194 = por %p192, %p193
    %p196 = scmp.ne.s32.totalorder %s181, %s195
    %p197 = scmp.eq.s32.totalorder %s21, 0
    %p198 = por %p196, %p197
    %s200 = sadd.s32 %s199, 1
    %p203 = scmp.eq.s32.totalorder %s15, 1
    %p204 = scmp.ne.s32.totalorder %s199, %s201
    %p205 = scmp.eq.s32.totalorder %s15, 0
    %p206 = por %p204, %p205
    %p207 = scmp.ne.s32.totalorder %s199, %s201
    %p208 = scmp.eq.s32.totalorder %s20, 1
    %p209 = por %p207, %p208
    %p210 = scmp.ne.s32.totalorder %s201, %s202
    %p211 = scmp.eq.s32.totalorder %s20, 0
    %p212 = por %p210, %p211
    %p213 = scmp.ne.s32.totalorder %s201, %s202
    %p214 = scmp.eq.s32.totalorder %s21, 1
    %p215 = por %p213, %p214
    %p217 = scmp.ne.s32.totalorder %s202, %s216
    %p218 = scmp.eq.s32.totalorder %s21, 0
    %p219 = por %p217, %p218
    %s221 = sadd.s32 %s220, 1
    %p224 = scmp.eq.s32.totalorder %s15, 1
    %p225 = scmp.ne.s32.totalorder %s220, %s222
    %p226 = scmp.eq.s32.totalorder %s15, 0
    %p227 = por %p225, %p226
    %p228 = scmp.ne.s32.totalorder %s220, %s222
    %p229 = scmp.eq.s32.totalorder %s20, 1
    %p230 = por %p228, %p229
    %p231 = scmp.ne.s32.totalorder %s222, %s223
    %p232 = scmp.eq.s32.totalorder %s20, 0
    %p233 = por %p231, %p232
    %p234 = scmp.ne.s32.totalorder %s222, %s223
    %p235 = scmp.eq.s32.totalorder %s21, 1
    %p236 = por %p234, %p235
    %p238 = scmp.ne.s32.totalorder %s223, %s237
    %p239 = scmp.eq.s32.totalorder %s21, 0
    %p240 = por %p238, %p239
    %s241 = ssub.s32 %s22, %s34
    %s242 = ssub.s32 %s23, %s30
    %s243 = sor.u32 %s241, %s242
    %p244 = scmp.eq.s32.totalorder %s243, 0
    %s246 = sadd.s32 %s245, 1
    %s247 = scalar_select %p244, %s245, %s246
    %p250 = pneg %p244
    %p251 = scmp.eq.s32.totalorder %s15, 1
    %p252 = por %p250, %p251
    %p253 = scmp.ne.s32.totalorder %s245, %s248
    %p254 = scmp.eq.s32.totalorder %s15, 0
    %p255 = por %p253, %p254
    %p256 = scmp.ne.s32.totalorder %s245, %s248
    %p257 = scmp.eq.s32.totalorder %s20, 1
    %p258 = por %p256, %p257
    %p259 = scmp.ne.s32.totalorder %s248, %s249
    %p260 = scmp.eq.s32.totalorder %s20, 0
    %p261 = por %p259, %p260
    %p262 = scmp.ne.s32.totalorder %s248, %s249
    %p263 = scmp.eq.s32.totalorder %s21, 1
    %p264 = por %p262, %p263
    %p266 = scmp.ne.s32.totalorder %s249, %s265
    %p267 = scmp.eq.s32.totalorder %s21, 0
    %p268 = por %p266, %p267
    %p269 = scmp.le.s32.totalorder 1, %s15
    %p270 = scmp.lt.s32.totalorder %s15, 3
    %p271 = pnand %p269, %p270
    %p272 = pneg %p271
    // Predicated region
    $region9: #{cluster_block_forward.6} parent=5 // pred_check
      _
    $region10: #{cluster_block_forward.6} parent=5 // pred_check_branch
      %274 = sbr.rel (%p271) target = $region12
    $region11: #{cluster_block_forward.6} parent=5 // pred_region
      %s275 = ssub.s32 %s15, 1
      // Predicated region
      $region13: #{cluster_block_forward.6} parent=11 // pred_check
        %p276 = pneg %p128
      $region14: #{cluster_block_forward.6} parent=11 // pred_check_branch
        %278 = sbr.rel (%p276) target = $region16
      $region15: #{cluster_block_forward.6} parent=11 // pred_region
        _
      $region16: #{cluster_block_forward.6} parent=11 // pred_fallthru
        _
      // Predicated region
      $region17: #{cluster_block_forward.6} parent=11 // pred_check
        %p279 = pneg %p149
      $region18: #{cluster_block_forward.6} parent=11 // pred_check_branch
        %281 = sbr.rel (%p279) target = $region20
      $region19: #{cluster_block_forward.6} parent=11 // pred_region
        _
      $region20: #{cluster_block_forward.6} parent=11 // pred_fallthru
        _
      // Predicated region
      $region21: #{cluster_block_forward.6} parent=11 // pred_check
        %p282 = pneg %p170
      $region22: #{cluster_block_forward.6} parent=11 // pred_check_branch
        %284 = sbr.rel (%p282) target = $region24
      $region23: #{cluster_block_forward.6} parent=11 // pred_region
        _
      $region24: #{cluster_block_forward.6} parent=11 // pred_fallthru
        _
      // Predicated region
      $region25: #{cluster_block_forward.6} parent=11 // pred_check
        %p285 = pneg %p191
      $region26: #{cluster_block_forward.6} parent=11 // pred_check_branch
        %287 = sbr.rel (%p285) target = $region28
      $region27: #{cluster_block_forward.6} parent=11 // pred_region
        _
      $region28: #{cluster_block_forward.6} parent=11 // pred_fallthru
        _
      // Predicated region
      $region29: #{cluster_block_forward.6} parent=11 // pred_check
        %p288 = pneg %p212
      $region30: #{cluster_block_forward.6} parent=11 // pred_check_branch
        %290 = sbr.rel (%p288) target = $region32
      $region31: #{cluster_block_forward.6} parent=11 // pred_region
        _
      $region32: #{cluster_block_forward.6} parent=11 // pred_fallthru
        _
      // Predicated region
      $region33: #{cluster_block_forward.6} parent=11 // pred_check
        %p291 = pneg %p233
      $region34: #{cluster_block_forward.6} parent=11 // pred_check_branch
        %293 = sbr.rel (%p291) target = $region36
      $region35: #{cluster_block_forward.6} parent=11 // pred_region
        _
      $region36: #{cluster_block_forward.6} parent=11 // pred_fallthru
        _
    $region12: #{cluster_block_forward.6} parent=5 // pred_fallthru
      _
    %p294 = scmp.lt.s32.totalorder %s15, 2
    // Predicated region
    $region37: #{cluster_block_forward.6} parent=5 // pred_check
      %p295 = pneg %p294
    $region38: #{cluster_block_forward.6} parent=5 // pred_check_branch
      %297 = sbr.rel (%p295) target = $region40
    $region39: #{cluster_block_forward.6} parent=5 // pred_region
      // Predicated region
      $region41: #{cluster_block_forward.6} parent=39 // pred_check
        %p298 = pneg %p49
      $region42: #{cluster_block_forward.6} parent=39 // pred_check_branch
        %300 = sbr.rel (%p298) target = $region44
      $region43: #{cluster_block_forward.6} parent=39 // pred_region
        %s301 = smul.u32 4, %s23
        %p302 = scmp.lt.s32.totalorder %s22, 1
        %s303 = scalar_select %p302, %s22, 1
        %p304 = scmp.lt.s32.totalorder %s301, 3
        %s305 = scalar_select %p304, %s301, 3
        %s306 = smul.addr %s303, 8
        %s307 = sadd.s32 %s305, %s306
        %s308 = smul.addr %s307, 8
        %s309 = scalar_lea.vmem %s0, %s308
        %s310 = smul.u32 4, %s23
      $region44: #{cluster_block_forward.6} parent=39 // pred_fallthru
        _
      // Predicated region
      $region45: #{cluster_block_forward.6} parent=39 // pred_check
        %p311 = pneg %p75
      $region46: #{cluster_block_forward.6} parent=39 // pred_check_branch
        %313 = sbr.rel (%p311) target = $region48
      $region47: #{cluster_block_forward.6} parent=39 // pred_region
        %p314 = scmp.lt.s32.totalorder %s22, 1
        %s315 = scalar_select %p314, %s22, 1
        %s316 = scalar_lea.vmem %s1, %s315
      $region48: #{cluster_block_forward.6} parent=39 // pred_fallthru
        _
      // Predicated region
      $region49: #{cluster_block_forward.6} parent=39 // pred_check
        %p317 = pneg %p101
      $region50: #{cluster_block_forward.6} parent=39 // pred_check_branch
        %319 = sbr.rel (%p317) target = $region52
      $region51: #{cluster_block_forward.6} parent=39 // pred_region
        %p320 = scmp.lt.s32.totalorder %s22, 1
        %s321 = scalar_select %p320, %s22, 1
        %s322 = scalar_lea.vmem %s2, %s321
      $region52: #{cluster_block_forward.6} parent=39 // pred_fallthru
        _
    $region40: #{cluster_block_forward.6} parent=5 // pred_fallthru
      _
    %p323 = scmp.le.s32.totalorder 1, %s15
    %p324 = scmp.lt.s32.totalorder %s15, 3
    %p325 = pnand %p323, %p324
    %p326 = pneg %p325
    // Predicated region
    $region53: #{cluster_block_forward.6} parent=5 // pred_check
      _
    $region54: #{cluster_block_forward.6} parent=5 // pred_check_branch
      %328 = sbr.rel (%p325) target = $region56
    $region55: #{cluster_block_forward.6} parent=5 // pred_region
      %s329 = ssub.s32 %s15, 1
      %s330 = smul.u32 4, %s25
      %p331 = scmp.lt.s32.totalorder %s24, 1
      %s332 = scalar_select %p331, %s24, 1
      %p333 = scmp.lt.s32.totalorder %s330, 3
      %s334 = scalar_select %p333, %s330, 3
      %s335 = smul.addr %s332, 8
      %s336 = sadd.s32 %s334, %s335
      %s337 = smul.addr %s336, 8
      %s338 = scalar_lea.vmem %s0, %s337
      %p339 = pneg %p55
      %p340 = pneg %p52
      %p341 = scmp.lt.s32.totalorder %s24, 1
      %s342 = scalar_select %p341, %s24, 1
      %s343 = scalar_lea.vmem %s1, %s342
      %p344 = pneg %p81
      %p345 = pneg %p78
      %p346 = scmp.lt.s32.totalorder %s24, 1
      %s347 = scalar_select %p346, %s24, 1
      %s348 = scalar_lea.vmem %s2, %s347
      %p349 = pneg %p107
      %p350 = pneg %p104
      %p351 = pneg %p128
      %p352 = pneg %p125
      %p353 = pneg %p149
      %p354 = pneg %p146
      %p355 = pneg %p170
      %p356 = pneg %p167
      %p357 = pneg %p191
      %p358 = pneg %p188
      %p359 = pneg %p212
      %p360 = pneg %p209
      %p361 = pneg %p233
      %p362 = pneg %p230
      %p363 = pneg %p261
      %p364 = pneg %p258
      %s365 = smul.u32 64, %s25
      %p366 = scmp.lt.s32.totalorder %s24, 1
      %s367 = scalar_select %p366, %s24, 1
      %p368 = scmp.lt.s32.totalorder %s365, 63
      %s369 = scalar_select %p368, %s365, 63
      %s370 = smul.addr %s367, 128
      %s371 = sadd.s32 %s369, %s370
      %s372 = smul.addr %s371, 8
      %s373 = scalar_lea.vmem %s9, %s372
      %s374 = smul.u32 4, %s25
      %p375 = scmp.lt.s32.totalorder %s24, 1
      %s376 = scalar_select %p375, %s24, 1
      %p377 = scmp.lt.s32.totalorder %s374, 3
      %s378 = scalar_select %p377, %s374, 3
      %s379 = smul.addr %s376, 8
      %s380 = sadd.s32 %s378, %s379
      %s381 = smul.addr %s380, 8
      %s382 = scalar_lea.vmem %s0, %s381
      %s383 = smul.u32 4, %s25
      %p384 = scmp.lt.s32.totalorder %s24, 1
      %s385 = scalar_select %p384, %s24, 1
      %s386 = scalar_lea.vmem %s1, %s385
      %p387 = scmp.lt.s32.totalorder %s24, 1
      %s388 = scalar_select %p387, %s24, 1
      %s389 = scalar_lea.vmem %s2, %s388
      %s390 = smul.u32 64, %s25
      %p391 = scmp.lt.s32.totalorder %s24, 1
      %s392 = scalar_select %p391, %s24, 1
      %p393 = scmp.lt.s32.totalorder %s390, 63
      %s394 = scalar_select %p393, %s390, 63
      %s395 = smul.addr %s392, 128
      %s396 = sadd.s32 %s394, %s395
      %s397 = smul.addr %s396, 8
      %s398 = scalar_lea.vmem %s9, %s397
      %s399 = smul.u32 64, %s25
      %v400 = vld [vmem:[%s382] sm:$0xff]
      %v401 = vld [vmem:[%s382 + $0x8] sm:$0xff]
      %v402 = vld [vmem:[%s382 + $0x10] sm:$0xff]
      %v403 = vld [vmem:[%s382 + $0x18] sm:$0xff]
      %v404 = vld [vmem:[%s382 + $0x20] sm:$0xff]
      %v405 = vld [vmem:[%s382 + $0x28] sm:$0xff]
      %v406 = vld [vmem:[%s382 + $0x30] sm:$0xff]
      %v407 = vld [vmem:[%s382 + $0x38] sm:$0xff]
      %v408 = vld [vmem:[%s386] sm:$0x1]
      %v410 = vlaneseq
      %v411 = vshrl.u32 %v410, 7
      %v412 = vsub.s32 0, %v411
      %v413 = vrot.slane %v408, %v412
      %414 = vset.pattern.permute.xlu0 0
      %415 = vperm.xlu0 %414, %v413
      %v416 = vpop.permute.xlu0 %415
      %v418 = vsub.f32 %v400, %v416
      %v419 = vsub.f32 %v401, %v416
      %v420 = vsub.f32 %v402, %v416
      %v421 = vsub.f32 %v403, %v416
      %v422 = vsub.f32 %v404, %v416
      %v423 = vsub.f32 %v405, %v416
      %v424 = vsub.f32 %v406, %v416
      %v425 = vsub.f32 %v407, %v416
      %v426 = vld [vmem:[%s389] sm:$0x1]
      %v428 = vlaneseq
      %v429 = vshrl.u32 %v428, 7
      %v430 = vsub.s32 0, %v429
      %v431 = vrot.slane %v426, %v430
      %432 = vset.pattern.permute.xlu0 0
      %433 = vperm.xlu0 %432, %v431
      %v434 = vpop.permute.xlu0 %433
      %v436 = vmul.f32 %v418, %v434
      %v437 = vmul.f32 %v419, %v434
      %v438 = vmul.f32 %v420, %v434
      %v439 = vmul.f32 %v421, %v434
      %v440 = vmul.f32 %v422, %v434
      %v441 = vmul.f32 %v423, %v434
      %v442 = vmul.f32 %v424, %v434
      %v443 = vmul.f32 %v425, %v434
      %v444 = vld [vmem:[%s3] sm:$0xff]
      %v445 = vld [vmem:[%s3 + $0x8] sm:$0xff]
      %447 = vset.pattern.permute.xlu0 0
      %448 = vperm.xlu0 %447, %v444
      %v449 = vpop.permute.xlu0 %448
      %452 = vset.pattern.permute.xlu0 0
      %453 = vperm.xlu0 %452, %v445
      %v454 = vpop.permute.xlu0 %453
      %v456 = vmul.f32 %v436, %v449
      %v457 = vmul.f32 %v437, %v449
      %v458 = vmul.f32 %v438, %v449
      %v459 = vmul.f32 %v439, %v449
      %v460 = vmul.f32 %v440, %v454
      %v461 = vmul.f32 %v441, %v454
      %v462 = vmul.f32 %v442, %v454
      %v463 = vmul.f32 %v443, %v454
      %v464 = vld [vmem:[%s4] sm:$0xff]
      %v465 = vld [vmem:[%s4 + $0x8] sm:$0xff]
      %467 = vset.pattern.permute.xlu0 0
      %468 = vperm.xlu0 %467, %v464
      %v469 = vpop.permute.xlu0 %468
      %472 = vset.pattern.permute.xlu0 0
      %473 = vperm.xlu0 %472, %v465
      %v474 = vpop.permute.xlu0 %473
      %v476 = vadd.f32 %v456, %v469
      %v477 = vadd.f32 %v457, %v469
      %v478 = vadd.f32 %v458, %v469
      %v479 = vadd.f32 %v459, %v469
      %v480 = vadd.f32 %v460, %v474
      %v481 = vadd.f32 %v461, %v474
      %v482 = vadd.f32 %v462, %v474
      %v483 = vadd.f32 %v463, %v474
      %v484 = vld [vmem:[%s5] sm:$0xff]
      %v485 = vld [vmem:[%s5 + $0x8] sm:$0xff]
      %v486 = vld [vmem:[%s6] sm:$0x1]
      %v488 = vlaneseq
      %v489 = vshrl.u32 %v488, 7
      %v490 = vsub.s32 0, %v489
      %v491 = vrot.slane %v486, %v490
      %493 = vxpose.xlu0.b32.start [1/16] %v476, 128
      %494 = vxpose.xlu0.b32.cont [2/16] %v480, 128
      %495 = vxpose.xlu0.b32.cont [3/16] 0.0, 128
      %496 = vxpose.xlu0.b32.cont [4/16] 0.0, 128
      %497 = vxpose.xlu0.b32.cont [5/16] 0.0, 128
      %498 = vxpose.xlu0.b32.cont [6/16] 0.0, 128
      %499 = vxpose.xlu0.b32.cont [7/16] 0.0, 128
      %500 = vxpose.xlu0.b32.cont [8/16] 0.0, 128
      %501 = vxpose.xlu0.b32.cont [9/16] 0.0, 128
      %502 = vxpose.xlu0.b32.cont [10/16] 0.0, 128
      %503 = vxpose.xlu0.b32.cont [11/16] 0.0, 128
      %504 = vxpose.xlu0.b32.cont [12/16] 0.0, 128
      %505 = vxpose.xlu0.b32.cont [13/16] 0.0, 128
      %506 = vxpose.xlu0.b32.cont [14/16] 0.0, 128
      %507 = vxpose.xlu0.b32.cont [15/16] 0.0, 128
      %508 = vxpose.xlu0.b32.end [16/16] 0.0, 128
      %v509 = vpop.trf.xlu0
      %v510 = vpop.trf.xlu0
      %v511 = vpop.trf.xlu0
      %v512 = vpop.trf.xlu0
      %v513 = vpop.trf.xlu0
      %v514 = vpop.trf.xlu0
      %v515 = vpop.trf.xlu0
      %v516 = vpop.trf.xlu0
      %v517 = vpop.trf.xlu0
      %v518 = vpop.trf.xlu0
      %v519 = vpop.trf.xlu0
      %v520 = vpop.trf.xlu0
      %v521 = vpop.trf.xlu0
      %v522 = vpop.trf.xlu0
      %v523 = vpop.trf.xlu0
      %v524 = vpop.trf.xlu0
      %525 = vxpose.xlu0.b32.start [1/16] %v477, 128
      %526 = vxpose.xlu0.b32.cont [2/16] %v481, 128
      %527 = vxpose.xlu0.b32.cont [3/16] 0.0, 128
      %528 = vxpose.xlu0.b32.cont [4/16] 0.0, 128
      %529 = vxpose.xlu0.b32.cont [5/16] 0.0, 128
      %530 = vxpose.xlu0.b32.cont [6/16] 0.0, 128
      %531 = vxpose.xlu0.b32.cont [7/16] 0.0, 128
      %532 = vxpose.xlu0.b32.cont [8/16] 0.0, 128
      %533 = vxpose.xlu0.b32.cont [9/16] 0.0, 128
      %534 = vxpose.xlu0.b32.cont [10/16] 0.0, 128
      %535 = vxpose.xlu0.b32.cont [11/16] 0.0, 128
      %536 = vxpose.xlu0.b32.cont [12/16] 0.0, 128
      %537 = vxpose.xlu0.b32.cont [13/16] 0.0, 128
      %538 = vxpose.xlu0.b32.cont [14/16] 0.0, 128
      %539 = vxpose.xlu0.b32.cont [15/16] 0.0, 128
      %540 = vxpose.xlu0.b32.end [16/16] 0.0, 128
      %v541 = vpop.trf.xlu0
      %v542 = vpop.trf.xlu0
      %v543 = vpop.trf.xlu0
      %v544 = vpop.trf.xlu0
      %v545 = vpop.trf.xlu0
      %v546 = vpop.trf.xlu0
      %v547 = vpop.trf.xlu0
      %v548 = vpop.trf.xlu0
      %v549 = vpop.trf.xlu0
      %v550 = vpop.trf.xlu0
      %v551 = vpop.trf.xlu0
      %v552 = vpop.trf.xlu0
      %v553 = vpop.trf.xlu0
      %v554 = vpop.trf.xlu0
      %v555 = vpop.trf.xlu0
      %v556 = vpop.trf.xlu0
      %557 = vxpose.xlu0.b32.start [1/16] %v478, 128
      %558 = vxpose.xlu0.b32.cont [2/16] %v482, 128
      %559 = vxpose.xlu0.b32.cont [3/16] 0.0, 128
      %560 = vxpose.xlu0.b32.cont [4/16] 0.0, 128
      %561 = vxpose.xlu0.b32.cont [5/16] 0.0, 128
      %562 = vxpose.xlu0.b32.cont [6/16] 0.0, 128
      %563 = vxpose.xlu0.b32.cont [7/16] 0.0, 128
      %564 = vxpose.xlu0.b32.cont [8/16] 0.0, 128
      %565 = vxpose.xlu0.b32.cont [9/16] 0.0, 128
      %566 = vxpose.xlu0.b32.cont [10/16] 0.0, 128
      %567 = vxpose.xlu0.b32.cont [11/16] 0.0, 128
      %568 = vxpose.xlu0.b32.cont [12/16] 0.0, 128
      %569 = vxpose.xlu0.b32.cont [13/16] 0.0, 128
      %570 = vxpose.xlu0.b32.cont [14/16] 0.0, 128
      %571 = vxpose.xlu0.b32.cont [15/16] 0.0, 128
      %572 = vxpose.xlu0.b32.end [16/16] 0.0, 128
      %v573 = vpop.trf.xlu0
      %v574 = vpop.trf.xlu0
      %v575 = vpop.trf.xlu0
      %v576 = vpop.trf.xlu0
      %v577 = vpop.trf.xlu0
      %v578 = vpop.trf.xlu0
      %v579 = vpop.trf.xlu0
      %v580 = vpop.trf.xlu0
      %v581 = vpop.trf.xlu0
      %v582 = vpop.trf.xlu0
      %v583 = vpop.trf.xlu0
      %v584 = vpop.trf.xlu0
      %v585 = vpop.trf.xlu0
      %v586 = vpop.trf.xlu0
      %v587 = vpop.trf.xlu0
      %v588 = vpop.trf.xlu0
      %589 = vxpose.xlu0.b32.start [1/16] %v479, 128
      %590 = vxpose.xlu0.b32.cont [2/16] %v483, 128
      %591 = vxpose.xlu0.b32.cont [3/16] 0.0, 128
      %592 = vxpose.xlu0.b32.cont [4/16] 0.0, 128
      %593 = vxpose.xlu0.b32.cont [5/16] 0.0, 128
      %594 = vxpose.xlu0.b32.cont [6/16] 0.0, 128
      %595 = vxpose.xlu0.b32.cont [7/16] 0.0, 128
      %596 = vxpose.xlu0.b32.cont [8/16] 0.0, 128
      %597 = vxpose.xlu0.b32.cont [9/16] 0.0, 128
      %598 = vxpose.xlu0.b32.cont [10/16] 0.0, 128
      %599 = vxpose.xlu0.b32.cont [11/16] 0.0, 128
      %600 = vxpose.xlu0.b32.cont [12/16] 0.0, 128
      %601 = vxpose.xlu0.b32.cont [13/16] 0.0, 128
      %602 = vxpose.xlu0.b32.cont [14/16] 0.0, 128
      %603 = vxpose.xlu0.b32.cont [15/16] 0.0, 128
      %604 = vxpose.xlu0.b32.end [16/16] 0.0, 128
      %v605 = vpop.trf.xlu0
      %v606 = vpop.trf.xlu0
      %v607 = vpop.trf.xlu0
      %v608 = vpop.trf.xlu0
      %v609 = vpop.trf.xlu0
      %v610 = vpop.trf.xlu0
      %v611 = vpop.trf.xlu0
      %v612 = vpop.trf.xlu0
      %v613 = vpop.trf.xlu0
      %v614 = vpop.trf.xlu0
      %v615 = vpop.trf.xlu0
      %v616 = vpop.trf.xlu0
      %v617 = vpop.trf.xlu0
      %v618 = vpop.trf.xlu0
      %v619 = vpop.trf.xlu0
      %v620 = vpop.trf.xlu0
      %vm621 = vcmask 130048
      %v623 = vsel %vm621, %v509, 0
      %v626 = vsel %vm621, %v510, 0
      %v629 = vsel %vm621, %v511, 0
      %v632 = vsel %vm621, %v512, 0
      %v635 = vsel %vm621, %v513, 0
      %v638 = vsel %vm621, %v514, 0
      %v641 = vsel %vm621, %v515, 0
      %v644 = vsel %vm621, %v516, 0
      %v647 = vsel %vm621, %v517, 0
      %v650 = vsel %vm621, %v518, 0
      %v653 = vsel %vm621, %v519, 0
      %v656 = vsel %vm621, %v520, 0
      %v659 = vsel %vm621, %v521, 0
      %v662 = vsel %vm621, %v522, 0
      %v665 = vsel %vm621, %v523, 0
      %v668 = vsel %vm621, %v524, 0
      %v671 = vsel %vm621, %v541, 0
      %v674 = vsel %vm621, %v542, 0
      %v677 = vsel %vm621, %v543, 0
      %v680 = vsel %vm621, %v544, 0
      %v683 = vsel %vm621, %v545, 0
      %v686 = vsel %vm621, %v546, 0
      %v689 = vsel %vm621, %v547, 0
      %v692 = vsel %vm621, %v548, 0
      %v695 = vsel %vm621, %v549, 0
      %v698 = vsel %vm621, %v550, 0
      %v701 = vsel %vm621, %v551, 0
      %v704 = vsel %vm621, %v552, 0
      %v707 = vsel %vm621, %v553, 0
      %v710 = vsel %vm621, %v554, 0
      %v713 = vsel %vm621, %v555, 0
      %v716 = vsel %vm621, %v556, 0
      %v719 = vsel %vm621, %v573, 0
      %v722 = vsel %vm621, %v574, 0
      %v725 = vsel %vm621, %v575, 0
      %v728 = vsel %vm621, %v576, 0
      %v731 = vsel %vm621, %v577, 0
      %v734 = vsel %vm621, %v578, 0
      %v737 = vsel %vm621, %v579, 0
      %v740 = vsel %vm621, %v580, 0
      %v743 = vsel %vm621, %v581, 0
      %v746 = vsel %vm621, %v582, 0
      %v749 = vsel %vm621, %v583, 0
      %v752 = vsel %vm621, %v584, 0
      %v755 = vsel %vm621, %v585, 0
      %v758 = vsel %vm621, %v586, 0
      %v761 = vsel %vm621, %v587, 0
      %v764 = vsel %vm621, %v588, 0
      %v767 = vsel %vm621, %v605, 0
      %v770 = vsel %vm621, %v606, 0
      %v773 = vsel %vm621, %v607, 0
      %v776 = vsel %vm621, %v608, 0
      %v779 = vsel %vm621, %v609, 0
      %v782 = vsel %vm621, %v610, 0
      %v785 = vsel %vm621, %v611, 0
      %v788 = vsel %vm621, %v612, 0
      %v791 = vsel %vm621, %v613, 0
      %v794 = vsel %vm621, %v614, 0
      %v797 = vsel %vm621, %v615, 0
      %v800 = vsel %vm621, %v616, 0
      %v803 = vsel %vm621, %v617, 0
      %v806 = vsel %vm621, %v618, 0
      %v809 = vsel %vm621, %v619, 0
      %v812 = vsel %vm621, %v620, 0
      %814 = vmatprep.subr.mxu0 0.0
      %815 = vmatpush1.msra.mxu0 %v484
      %816 = vmatprep.subr.mxu0 0.0
      %817 = vmatpush1.msra.mxu0 %v485
      %818 = vmatprep.subr.mxu0 0.0
      %819 = vmatpush1.msra.mxu0 0.0
      %820 = vmatprep.subr.mxu0 0.0
      %821 = vmatpush1.msra.mxu0 0.0
      %822 = vmatprep.subr.mxu0 0.0
      %823 = vmatpush1.msra.mxu0 0.0
      %824 = vmatprep.subr.mxu0 0.0
      %825 = vmatpush1.msra.mxu0 0.0
      %826 = vmatprep.subr.mxu0 0.0
      %827 = vmatpush1.msra.mxu0 0.0
      %828 = vmatprep.subr.mxu0 0.0
      %829 = vmatpush1.msra.mxu0 0.0
      %830 = vmatprep.subr.mxu0 0.0
      %831 = vmatpush1.msra.mxu0 0.0
      %832 = vmatprep.subr.mxu0 0.0
      %833 = vmatpush1.msra.mxu0 0.0
      %834 = vmatprep.subr.mxu0 0.0
      %835 = vmatpush1.msra.mxu0 0.0
      %836 = vmatprep.subr.mxu0 0.0
      %837 = vmatpush1.msra.mxu0 0.0
      %838 = vmatprep.subr.mxu0 0.0
      %839 = vmatpush1.msra.mxu0 0.0
      %840 = vmatprep.subr.mxu0 0.0
      %841 = vmatpush1.msra.mxu0 0.0
      %842 = vmatprep.subr.mxu0 0.0
      %843 = vmatpush1.msra.mxu0 0.0
      %844 = vmatprep.subr.mxu0 0.0
      %845 = vmatpush1.msra.mxu0 0.0
      %846 = vmatprep.subr.mxu0 0.0
      %847 = vmatpush1.msra.mxu0 0.0
      %848 = vmatprep.subr.mxu0 0.0
      %849 = vmatpush1.msra.mxu0 0.0
      %850 = vmatprep.subr.mxu0 0.0
      %851 = vmatpush1.msra.mxu0 0.0
      %852 = vmatprep.subr.mxu0 0.0
      %853 = vmatpush1.msra.mxu0 0.0
      %854 = vmatprep.subr.mxu0 0.0
      %855 = vmatpush1.msra.mxu0 0.0
      %856 = vmatprep.subr.mxu0 0.0
      %857 = vmatpush1.msra.mxu0 0.0
      %858 = vmatprep.subr.mxu0 0.0
      %859 = vmatpush1.msra.mxu0 0.0
      %860 = vmatprep.subr.mxu0 0.0
      %861 = vmatpush1.msra.mxu0 0.0
      %862 = vmatprep.subr.mxu0 0.0
      %863 = vmatpush1.msra.mxu0 0.0
      %864 = vmatprep.subr.mxu0 0.0
      %865 = vmatpush1.msra.mxu0 0.0
      %866 = vmatprep.subr.mxu0 0.0
      %867 = vmatpush1.msra.mxu0 0.0
      %868 = vmatprep.subr.mxu0 0.0
      %869 = vmatpush1.msra.mxu0 0.0
      %870 = vmatprep.subr.mxu0 0.0
      %871 = vmatpush1.msra.mxu0 0.0
      %872 = vmatprep.subr.mxu0 0.0
      %873 = vmatpush1.msra.mxu0 0.0
      %874 = vmatprep.subr.mxu0 0.0
      %875 = vmatpush1.msra.mxu0 0.0
      %876 = vmatprep.subr.mxu0 0.0
      %877 = vmatpush1.msra.mxu0 0.0
      %878 = vmatprep.mubr.f32.mxu0 0.0
      %879 = vmatmul.mubr.f32.gmra.mrb[0].mxu0 %v623
      %v880 = vpop.f32.mrb[0].mxu0
      %v881 = vadd.f32 %v491, %v880
      %v882 = vpop.f32.mrb[0].mxu0
      %883 = vmatprep.mubr.f32.mxu0 0.0
      %884 = vmatmul.mubr.f32.gmra.mrb[0].mxu0 %v626
      %v885 = vpop.f32.mrb[0].mxu0
      %v886 = vadd.f32 %v491, %v885
      %v887 = vpop.f32.mrb[0].mxu0
      %888 = vmatprep.mubr.f32.mxu0 0.0
      %889 = vmatmul.mubr.f32.gmra.mrb[0].mxu0 %v629
      %v890 = vpop.f32.mrb[0].mxu0
      %v891 = vadd.f32 %v491, %v890
      %v892 = vpop.f32.mrb[0].mxu0
      %893 = vmatprep.mubr.f32.mxu0 0.0
      %894 = vmatmul.mubr.f32.gmra.mrb[0].mxu0 %v632
      %v895 = vpop.f32.mrb[0].mxu0
      %v896 = vadd.f32 %v491, %v895
      %v897 = vpop.f32.mrb[0].mxu0
      %898 = vmatprep.mubr.f32.mxu0 0.0
      %899 = vmatmul.mubr.f32.gmra.mrb[0].mxu0 %v635
      %v900 = vpop.f32.mrb[0].mxu0
      %v901 = vadd.f32 %v491, %v900
      %v902 = vpop.f32.mrb[0].mxu0
      %903 = vmatprep.mubr.f32.mxu0 0.0
      %904 = vmatmul.mubr.f32.gmra.mrb[0].mxu0 %v638
      %v905 = vpop.f32.mrb[0].mxu0
      %v906 = vadd.f32 %v491, %v905
      %v907 = vpop.f32.mrb[0].mxu0
      %908 = vmatprep.mubr.f32.mxu0 0.0
      %909 = vmatmul.mubr.f32.gmra.mrb[0].mxu0 %v641
      %v910 = vpop.f32.mrb[0].mxu0
      %v911 = vadd.f32 %v491, %v910
      %v912 = vpop.f32.mrb[0].mxu0
      %913 = vmatprep.mubr.f32.mxu0 0.0
      %914 = vmatmul.mubr.f32.gmra.mrb[0].mxu0 %v644
      %v915 = vpop.f32.mrb[0].mxu0
      %v916 = vadd.f32 %v491, %v915
      %v917 = vpop.f32.mrb[0].mxu0
      %918 = vmatprep.mubr.f32.mxu0 0.0
      %919 = vmatmul.mubr.f32.gmra.mrb[0].mxu0 %v647
      %v920 = vpop.f32.mrb[0].mxu0
      %v921 = vadd.f32 %v491, %v920
      %v922 = vpop.f32.mrb[0].mxu0
      %923 = vmatprep.mubr.f32.mxu0 0.0
      %924 = vmatmul.mubr.f32.gmra.mrb[0].mxu0 %v650
      %v925 = vpop.f32.mrb[0].mxu0
      %v926 = vadd.f32 %v491, %v925
      %v927 = vpop.f32.mrb[0].mxu0
      %928 = vmatprep.mubr.f32.mxu0 0.0
      %929 = vmatmul.mubr.f32.gmra.mrb[0].mxu0 %v653
      %v930 = vpop.f32.mrb[0].mxu0
      %v931 = vadd.f32 %v491, %v930
      %v932 = vpop.f32.mrb[0].mxu0
      %933 = vmatprep.mubr.f32.mxu0 0.0
      %934 = vmatmul.mubr.f32.gmra.mrb[0].mxu0 %v656
      %v935 = vpop.f32.mrb[0].mxu0
      %v936 = vadd.f32 %v491, %v935
      %v937 = vpop.f32.mrb[0].mxu0
      %938 = vmatprep.mubr.f32.mxu0 0.0
      %939 = vmatmul.mubr.f32.gmra.mrb[0].mxu0 %v659
      %v940 = vpop.f32.mrb[0].mxu0
      %v941 = vadd.f32 %v491, %v940
      %v942 = vpop.f32.mrb[0].mxu0
      %943 = vmatprep.mubr.f32.mxu0 0.0
      %944 = vmatmul.mubr.f32.gmra.mrb[0].mxu0 %v662
      %v945 = vpop.f32.mrb[0].mxu0
      %v946 = vadd.f32 %v491, %v945
      %v947 = vpop.f32.mrb[0].mxu0
      %948 = vmatprep.mubr.f32.mxu0 0.0
      %949 = vmatmul.mubr.f32.gmra.mrb[0].mxu0 %v665
      %v950 = vpop.f32.mrb[0].mxu0
      %v951 = vadd.f32 %v491, %v950
      %v952 = vpop.f32.mrb[0].mxu0
      %953 = vmatprep.mubr.f32.mxu0 0.0
      %954 = vmatmul.mubr.f32.gmra.mrb[0].mxu0 %v668
      %v955 = vpop.f32.mrb[0].mxu0
      %v956 = vadd.f32 %v491, %v955
      %v957 = vpop.f32.mrb[0].mxu0
      %958 = vmatprep.mubr.f32.mxu0 0.0
      %959 = vmatmul.mubr.f32.gmra.mrb[0].mxu0 %v671
      %v960 = vpop.f32.mrb[0].mxu0
      %v961 = vadd.f32 %v491, %v960
      %v962 = vpop.f32.mrb[0].mxu0
      %963 = vmatprep.mubr.f32.mxu0 0.0
      %964 = vmatmul.mubr.f32.gmra.mrb[0].mxu0 %v674
      %v965 = vpop.f32.mrb[0].mxu0
      %v966 = vadd.f32 %v491, %v965
      %v967 = vpop.f32.mrb[0].mxu0
      %968 = vmatprep.mubr.f32.mxu0 0.0
      %969 = vmatmul.mubr.f32.gmra.mrb[0].mxu0 %v677
      %v970 = vpop.f32.mrb[0].mxu0
      %v971 = vadd.f32 %v491, %v970
      %v972 = vpop.f32.mrb[0].mxu0
      %973 = vmatprep.mubr.f32.mxu0 0.0
      %974 = vmatmul.mubr.f32.gmra.mrb[0].mxu0 %v680
      %v975 = vpop.f32.mrb[0].mxu0
      %v976 = vadd.f32 %v491, %v975
      %v977 = vpop.f32.mrb[0].mxu0
      %978 = vmatprep.mubr.f32.mxu0 0.0
      %979 = vmatmul.mubr.f32.gmra.mrb[0].mxu0 %v683
      %v980 = vpop.f32.mrb[0].mxu0
      %v981 = vadd.f32 %v491, %v980
      %v982 = vpop.f32.mrb[0].mxu0
      %983 = vmatprep.mubr.f32.mxu0 0.0
      %984 = vmatmul.mubr.f32.gmra.mrb[0].mxu0 %v686
      %v985 = vpop.f32.mrb[0].mxu0
      %v986 = vadd.f32 %v491, %v985
      %v987 = vpop.f32.mrb[0].mxu0
      %988 = vmatprep.mubr.f32.mxu0 0.0
      %989 = vmatmul.mubr.f32.gmra.mrb[0].mxu0 %v689
      %v990 = vpop.f32.mrb[0].mxu0
      %v991 = vadd.f32 %v491, %v990
      %v992 = vpop.f32.mrb[0].mxu0
      %993 = vmatprep.mubr.f32.mxu0 0.0
      %994 = vmatmul.mubr.f32.gmra.mrb[0].mxu0 %v692
      %v995 = vpop.f32.mrb[0].mxu0
      %v996 = vadd.f32 %v491, %v995
      %v997 = vpop.f32.mrb[0].mxu0
      %998 = vmatprep.mubr.f32.mxu0 0.0
      %999 = vmatmul.mubr.f32.gmra.mrb[0].mxu0 %v695
      %v1000 = vpop.f32.mrb[0].mxu0
      %v1001 = vadd.f32 %v491, %v1000
      %v1002 = vpop.f32.mrb[0].mxu0
      %1003 = vmatprep.mubr.f32.mxu0 0.0
      %1004 = vmatmul.mubr.f32.gmra.mrb[0].mxu0 %v698
      %v1005 = vpop.f32.mrb[0].mxu0
      %v1006 = vadd.f32 %v491, %v1005
      %v1007 = vpop.f32.mrb[0].mxu0
      %1008 = vmatprep.mubr.f32.mxu0 0.0
      %1009 = vmatmul.mubr.f32.gmra.mrb[0].mxu0 %v701
      %v1010 = vpop.f32.mrb[0].mxu0
      %v1011 = vadd.f32 %v491, %v1010
      %v1012 = vpop.f32.mrb[0].mxu0
      %1013 = vmatprep.mubr.f32.mxu0 0.0
      %1014 = vmatmul.mubr.f32.gmra.mrb[0].mxu0 %v704
      %v1015 = vpop.f32.mrb[0].mxu0
      %v1016 = vadd.f32 %v491, %v1015
      %v1017 = vpop.f32.mrb[0].mxu0
      %1018 = vmatprep.mubr.f32.mxu0 0.0
      %1019 = vmatmul.mubr.f32.gmra.mrb[0].mxu0 %v707
      %v1020 = vpop.f32.mrb[0].mxu0
      %v1021 = vadd.f32 %v491, %v1020
      %v1022 = vpop.f32.mrb[0].mxu0
      %1023 = vmatprep.mubr.f32.mxu0 0.0
      %1024 = vmatmul.mubr.f32.gmra.mrb[0].mxu0 %v710
      %v1025 = vpop.f32.mrb[0].mxu0
      %v1026 = vadd.f32 %v491, %v1025
      %v1027 = vpop.f32.mrb[0].mxu0
      %1028 = vmatprep.mubr.f32.mxu0 0.0
      %1029 = vmatmul.mubr.f32.gmra.mrb[0].mxu0 %v713
      %v1030 = vpop.f32.mrb[0].mxu0
      %v1031 = vadd.f32 %v491, %v1030
      %v1032 = vpop.f32.mrb[0].mxu0
      %1033 = vmatprep.mubr.f32.mxu0 0.0
      %1034 = vmatmul.mubr.f32.gmra.mrb[0].mxu0 %v716
      %v1035 = vpop.f32.mrb[0].mxu0
      %v1036 = vadd.f32 %v491, %v1035
      %v1037 = vpop.f32.mrb[0].mxu0
      %1038 = vmatprep.mubr.f32.mxu0 0.0
      %1039 = vmatmul.mubr.f32.gmra.mrb[0].mxu0 %v719
      %v1040 = vpop.f32.mrb[0].mxu0
      %v1041 = vadd.f32 %v491, %v1040
      %v1042 = vpop.f32.mrb[0].mxu0
      %1043 = vmatprep.mubr.f32.mxu0 0.0
      %1044 = vmatmul.mubr.f32.gmra.mrb[0].mxu0 %v722
      %v1045 = vpop.f32.mrb[0].mxu0
      %v1046 = vadd.f32 %v491, %v1045
      %v1047 = vpop.f32.mrb[0].mxu0
      %1048 = vmatprep.mubr.f32.mxu0 0.0
      %1049 = vmatmul.mubr.f32.gmra.mrb[0].mxu0 %v725
      %v1050 = vpop.f32.mrb[0].mxu0
      %v1051 = vadd.f32 %v491, %v1050
      %v1052 = vpop.f32.mrb[0].mxu0
      %1053 = vmatprep.mubr.f32.mxu0 0.0
      %1054 = vmatmul.mubr.f32.gmra.mrb[0].mxu0 %v728
      %v1055 = vpop.f32.mrb[0].mxu0
      %v1056 = vadd.f32 %v491, %v1055
      %v1057 = vpop.f32.mrb[0].mxu0
      %1058 = vmatprep.mubr.f32.mxu0 0.0
      %1059 = vmatmul.mubr.f32.gmra.mrb[0].mxu0 %v731
      %v1060 = vpop.f32.mrb[0].mxu0
      %v1061 = vadd.f32 %v491, %v1060
      %v1062 = vpop.f32.mrb[0].mxu0
      %1063 = vmatprep.mubr.f32.mxu0 0.0
      %1064 = vmatmul.mubr.f32.gmra.mrb[0].mxu0 %v734
      %v1065 = vpop.f32.mrb[0].mxu0
      %v1066 = vadd.f32 %v491, %v1065
      %v1067 = vpop.f32.mrb[0].mxu0
      %1068 = vmatprep.mubr.f32.mxu0 0.0
      %1069 = vmatmul.mubr.f32.gmra.mrb[0].mxu0 %v737
      %v1070 = vpop.f32.mrb[0].mxu0
      %v1071 = vadd.f32 %v491, %v1070
      %v1072 = vpop.f32.mrb[0].mxu0
      %1073 = vmatprep.mubr.f32.mxu0 0.0
      %1074 = vmatmul.mubr.f32.gmra.mrb[0].mxu0 %v740
      %v1075 = vpop.f32.mrb[0].mxu0
      %v1076 = vadd.f32 %v491, %v1075
      %v1077 = vpop.f32.mrb[0].mxu0
      %1078 = vmatprep.mubr.f32.mxu0 0.0
      %1079 = vmatmul.mubr.f32.gmra.mrb[0].mxu0 %v743
      %v1080 = vpop.f32.mrb[0].mxu0
      %v1081 = vadd.f32 %v491, %v1080
      %v1082 = vpop.f32.mrb[0].mxu0
      %1083 = vmatprep.mubr.f32.mxu0 0.0
      %1084 = vmatmul.mubr.f32.gmra.mrb[0].mxu0 %v746
      %v1085 = vpop.f32.mrb[0].mxu0
      %v1086 = vadd.f32 %v491, %v1085
      %v1087 = vpop.f32.mrb[0].mxu0
      %1088 = vmatprep.mubr.f32.mxu0 0.0
      %1089 = vmatmul.mubr.f32.gmra.mrb[0].mxu0 %v749
      %v1090 = vpop.f32.mrb[0].mxu0
      %v1091 = vadd.f32 %v491, %v1090
      %v1092 = vpop.f32.mrb[0].mxu0
      %1093 = vmatprep.mubr.f32.mxu0 0.0
      %1094 = vmatmul.mubr.f32.gmra.mrb[0].mxu0 %v752
      %v1095 = vpop.f32.mrb[0].mxu0
      %v1096 = vadd.f32 %v491, %v1095
      %v1097 = vpop.f32.mrb[0].mxu0
      %1098 = vmatprep.mubr.f32.mxu0 0.0
      %1099 = vmatmul.mubr.f32.gmra.mrb[0].mxu0 %v755
      %v1100 = vpop.f32.mrb[0].mxu0
      %v1101 = vadd.f32 %v491, %v1100
      %v1102 = vpop.f32.mrb[0].mxu0
      %1103 = vmatprep.mubr.f32.mxu0 0.0
      %1104 = vmatmul.mubr.f32.gmra.mrb[0].mxu0 %v758
      %v1105 = vpop.f32.mrb[0].mxu0
      %v1106 = vadd.f32 %v491, %v1105
      %v1107 = vpop.f32.mrb[0].mxu0
      %1108 = vmatprep.mubr.f32.mxu0 0.0
      %1109 = vmatmul.mubr.f32.gmra.mrb[0].mxu0 %v761
      %v1110 = vpop.f32.mrb[0].mxu0
      %v1111 = vadd.f32 %v491, %v1110
      %v1112 = vpop.f32.mrb[0].mxu0
      %1113 = vmatprep.mubr.f32.mxu0 0.0
      %1114 = vmatmul.mubr.f32.gmra.mrb[0].mxu0 %v764
      %v1115 = vpop.f32.mrb[0].mxu0
      %v1116 = vadd.f32 %v491, %v1115
      %v1117 = vpop.f32.mrb[0].mxu0
      %1118 = vmatprep.mubr.f32.mxu0 0.0
      %1119 = vmatmul.mubr.f32.gmra.mrb[0].mxu0 %v767
      %v1120 = vpop.f32.mrb[0].mxu0
      %v1121 = vadd.f32 %v491, %v1120
      %v1122 = vpop.f32.mrb[0].mxu0
      %1123 = vmatprep.mubr.f32.mxu0 0.0
      %1124 = vmatmul.mubr.f32.gmra.mrb[0].mxu0 %v770
      %v1125 = vpop.f32.mrb[0].mxu0
      %v1126 = vadd.f32 %v491, %v1125
      %v1127 = vpop.f32.mrb[0].mxu0
      %1128 = vmatprep.mubr.f32.mxu0 0.0
      %1129 = vmatmul.mubr.f32.gmra.mrb[0].mxu0 %v773
      %v1130 = vpop.f32.mrb[0].mxu0
      %v1131 = vadd.f32 %v491, %v1130
      %v1132 = vpop.f32.mrb[0].mxu0
      %1133 = vmatprep.mubr.f32.mxu0 0.0
      %1134 = vmatmul.mubr.f32.gmra.mrb[0].mxu0 %v776
      %v1135 = vpop.f32.mrb[0].mxu0
      %v1136 = vadd.f32 %v491, %v1135
      %v1137 = vpop.f32.mrb[0].mxu0
      %1138 = vmatprep.mubr.f32.mxu0 0.0
      %1139 = vmatmul.mubr.f32.gmra.mrb[0].mxu0 %v779
      %v1140 = vpop.f32.mrb[0].mxu0
      %v1141 = vadd.f32 %v491, %v1140
      %v1142 = vpop.f32.mrb[0].mxu0
      %1143 = vmatprep.mubr.f32.mxu0 0.0
      %1144 = vmatmul.mubr.f32.gmra.mrb[0].mxu0 %v782
      %v1145 = vpop.f32.mrb[0].mxu0
      %v1146 = vadd.f32 %v491, %v1145
      %v1147 = vpop.f32.mrb[0].mxu0
      %1148 = vmatprep.mubr.f32.mxu0 0.0
      %1149 = vmatmul.mubr.f32.gmra.mrb[0].mxu0 %v785
      %v1150 = vpop.f32.mrb[0].mxu0
      %v1151 = vadd.f32 %v491, %v1150
      %v1152 = vpop.f32.mrb[0].mxu0
      %1153 = vmatprep.mubr.f32.mxu0 0.0
      %1154 = vmatmul.mubr.f32.gmra.mrb[0].mxu0 %v788
      %v1155 = vpop.f32.mrb[0].mxu0
      %v1156 = vadd.f32 %v491, %v1155
      %v1157 = vpop.f32.mrb[0].mxu0
      %1158 = vmatprep.mubr.f32.mxu0 0.0
      %1159 = vmatmul.mubr.f32.gmra.mrb[0].mxu0 %v791
      %v1160 = vpop.f32.mrb[0].mxu0
      %v1161 = vadd.f32 %v491, %v1160
      %v1162 = vpop.f32.mrb[0].mxu0
      %1163 = vmatprep.mubr.f32.mxu0 0.0
      %1164 = vmatmul.mubr.f32.gmra.mrb[0].mxu0 %v794
      %v1165 = vpop.f32.mrb[0].mxu0
      %v1166 = vadd.f32 %v491, %v1165
      %v1167 = vpop.f32.mrb[0].mxu0
      %1168 = vmatprep.mubr.f32.mxu0 0.0
      %1169 = vmatmul.mubr.f32.gmra.mrb[0].mxu0 %v797
      %v1170 = vpop.f32.mrb[0].mxu0
      %v1171 = vadd.f32 %v491, %v1170
      %v1172 = vpop.f32.mrb[0].mxu0
      %1173 = vmatprep.mubr.f32.mxu0 0.0
      %1174 = vmatmul.mubr.f32.gmra.mrb[0].mxu0 %v800
      %v1175 = vpop.f32.mrb[0].mxu0
      %v1176 = vadd.f32 %v491, %v1175
      %v1177 = vpop.f32.mrb[0].mxu0
      %1178 = vmatprep.mubr.f32.mxu0 0.0
      %1179 = vmatmul.mubr.f32.gmra.mrb[0].mxu0 %v803
      %v1180 = vpop.f32.mrb[0].mxu0
      %v1181 = vadd.f32 %v491, %v1180
      %v1182 = vpop.f32.mrb[0].mxu0
      %1183 = vmatprep.mubr.f32.mxu0 0.0
      %1184 = vmatmul.mubr.f32.gmra.mrb[0].mxu0 %v806
      %v1185 = vpop.f32.mrb[0].mxu0
      %v1186 = vadd.f32 %v491, %v1185
      %v1187 = vpop.f32.mrb[0].mxu0
      %1188 = vmatprep.mubr.f32.mxu0 0.0
      %1189 = vmatmul.mubr.f32.gmra.mrb[0].mxu0 %v809
      %v1190 = vpop.f32.mrb[0].mxu0
      %v1191 = vadd.f32 %v491, %v1190
      %v1192 = vpop.f32.mrb[0].mxu0
      %1193 = vmatprep.mubr.f32.mxu0 0.0
      %1194 = vmatmul.mubr.f32.gmra.mrb[0].mxu0 %v812
      %v1195 = vpop.f32.mrb[0].mxu0
      %v1196 = vadd.f32 %v491, %v1195
      %v1197 = vpop.f32.mrb[0].mxu0
      %1198 = vdwg.mxu0
      %v1199 = vld [vmem:[%s7] sm:$0xff]
      %v1200 = vld [vmem:[%s7 + $0x8] sm:$0xff]
      %v1201 = vld [vmem:[%s8] sm:$0x1]
      %v1203 = vlaneseq
      %v1204 = vshrl.u32 %v1203, 7
      %v1205 = vsub.s32 0, %v1204
      %v1206 = vrot.slane %v1201, %v1205
      %1208 = vmatprep.subr.mxu0 0.0
      %1209 = vmatpush1.msra.mxu0 %v1199
      %1210 = vmatprep.subr.mxu0 0.0
      %1211 = vmatpush1.msra.mxu0 %v1200
      %1212 = vmatprep.subr.mxu0 0.0
      %1213 = vmatpush1.msra.mxu0 0.0
      %1214 = vmatprep.subr.mxu0 0.0
      %1215 = vmatpush1.msra.mxu0 0.0
      %1216 = vmatprep.subr.mxu0 0.0
      %1217 = vmatpush1.msra.mxu0 0.0
      %1218 = vmatprep.subr.mxu0 0.0
      %1219 = vmatpush1.msra.mxu0 0.0
      %1220 = vmatprep.subr.mxu0 0.0
      %1221 = vmatpush1.msra.mxu0 0.0
      %1222 = vmatprep.subr.mxu0 0.0
      %1223 = vmatpush1.msra.mxu0 0.0
      %1224 = vmatprep.subr.mxu0 0.0
      %1225 = vmatpush1.msra.mxu0 0.0
      %1226 = vmatprep.subr.mxu0 0.0
      %1227 = vmatpush1.msra.mxu0 0.0
      %1228 = vmatprep.subr.mxu0 0.0
      %1229 = vmatpush1.msra.mxu0 0.0
      %1230 = vmatprep.subr.mxu0 0.0
      %1231 = vmatpush1.msra.mxu0 0.0
      %1232 = vmatprep.subr.mxu0 0.0
      %1233 = vmatpush1.msra.mxu0 0.0
      %1234 = vmatprep.subr.mxu0 0.0
      %1235 = vmatpush1.msra.mxu0 0.0
      %1236 = vmatprep.subr.mxu0 0.0
      %1237 = vmatpush1.msra.mxu0 0.0
      %1238 = vmatprep.subr.mxu0 0.0
      %1239 = vmatpush1.msra.mxu0 0.0
      %1240 = vmatprep.subr.mxu0 0.0
      %1241 = vmatpush1.msra.mxu0 0.0
      %1242 = vmatprep.subr.mxu0 0.0
      %1243 = vmatpush1.msra.mxu0 0.0
      %1244 = vmatprep.subr.mxu0 0.0
      %1245 = vmatpush1.msra.mxu0 0.0
      %1246 = vmatprep.subr.mxu0 0.0
      %1247 = vmatpush1.msra.mxu0 0.0
      %1248 = vmatprep.subr.mxu0 0.0
      %1249 = vmatpush1.msra.mxu0 0.0
      %1250 = vmatprep.subr.mxu0 0.0
      %1251 = vmatpush1.msra.mxu0 0.0
      %1252 = vmatprep.subr.mxu0 0.0
      %1253 = vmatpush1.msra.mxu0 0.0
      %1254 = vmatprep.subr.mxu0 0.0
      %1255 = vmatpush1.msra.mxu0 0.0
      %1256 = vmatprep.subr.mxu0 0.0
      %1257 = vmatpush1.msra.mxu0 0.0
      %1258 = vmatprep.subr.mxu0 0.0
      %1259 = vmatpush1.msra.mxu0 0.0
      %1260 = vmatprep.subr.mxu0 0.0
      %1261 = vmatpush1.msra.mxu0 0.0
      %1262 = vmatprep.subr.mxu0 0.0
      %1263 = vmatpush1.msra.mxu0 0.0
      %1264 = vmatprep.subr.mxu0 0.0
      %1265 = vmatpush1.msra.mxu0 0.0
      %1266 = vmatprep.subr.mxu0 0.0
      %1267 = vmatpush1.msra.mxu0 0.0
      %1268 = vmatprep.subr.mxu0 0.0
      %1269 = vmatpush1.msra.mxu0 0.0
      %1270 = vmatprep.subr.mxu0 0.0
      %1271 = vmatpush1.msra.mxu0 0.0
      %1272 = vmatprep.mubr.f32.mxu0 0.0
      %1273 = vmatmul.mubr.f32.gmra.mrb[0].mxu0 %v623
      %v1274 = vpop.f32.mrb[0].mxu0
      %v1275 = vadd.f32 %v1206, %v1274
      %v1276 = vpop.f32.mrb[0].mxu0
      %1277 = vmatprep.mubr.f32.mxu0 0.0
      %1278 = vmatmul.mubr.f32.gmra.mrb[0].mxu0 %v626
      %v1279 = vpop.f32.mrb[0].mxu0
      %v1280 = vadd.f32 %v1206, %v1279
      %v1281 = vpop.f32.mrb[0].mxu0
      %1282 = vmatprep.mubr.f32.mxu0 0.0
      %1283 = vmatmul.mubr.f32.gmra.mrb[0].mxu0 %v629
      %v1284 = vpop.f32.mrb[0].mxu0
      %v1285 = vadd.f32 %v1206, %v1284
      %v1286 = vpop.f32.mrb[0].mxu0
      %1287 = vmatprep.mubr.f32.mxu0 0.0
      %1288 = vmatmul.mubr.f32.gmra.mrb[0].mxu0 %v632
      %v1289 = vpop.f32.mrb[0].mxu0
      %v1290 = vadd.f32 %v1206, %v1289
      %v1291 = vpop.f32.mrb[0].mxu0
      %1292 = vmatprep.mubr.f32.mxu0 0.0
      %1293 = vmatmul.mubr.f32.gmra.mrb[0].mxu0 %v635
      %v1294 = vpop.f32.mrb[0].mxu0
      %v1295 = vadd.f32 %v1206, %v1294
      %v1296 = vpop.f32.mrb[0].mxu0
      %1297 = vmatprep.mubr.f32.mxu0 0.0
      %1298 = vmatmul.mubr.f32.gmra.mrb[0].mxu0 %v638
      %v1299 = vpop.f32.mrb[0].mxu0
      %v1300 = vadd.f32 %v1206, %v1299
      %v1301 = vpop.f32.mrb[0].mxu0
      %1302 = vmatprep.mubr.f32.mxu0 0.0
      %1303 = vmatmul.mubr.f32.gmra.mrb[0].mxu0 %v641
      %v1304 = vpop.f32.mrb[0].mxu0
      %v1305 = vadd.f32 %v1206, %v1304
      %v1306 = vpop.f32.mrb[0].mxu0
      %1307 = vmatprep.mubr.f32.mxu0 0.0
      %1308 = vmatmul.mubr.f32.gmra.mrb[0].mxu0 %v644
      %v1309 = vpop.f32.mrb[0].mxu0
      %v1310 = vadd.f32 %v1206, %v1309
      %v1311 = vpop.f32.mrb[0].mxu0
      %1312 = vmatprep.mubr.f32.mxu0 0.0
      %1313 = vmatmul.mubr.f32.gmra.mrb[0].mxu0 %v647
      %v1314 = vpop.f32.mrb[0].mxu0
      %v1315 = vadd.f32 %v1206, %v1314
      %v1316 = vpop.f32.mrb[0].mxu0
      %1317 = vmatprep.mubr.f32.mxu0 0.0
      %1318 = vmatmul.mubr.f32.gmra.mrb[0].mxu0 %v650
      %v1319 = vpop.f32.mrb[0].mxu0
      %v1320 = vadd.f32 %v1206, %v1319
      %v1321 = vpop.f32.mrb[0].mxu0
      %1322 = vmatprep.mubr.f32.mxu0 0.0
      %1323 = vmatmul.mubr.f32.gmra.mrb[0].mxu0 %v653
      %v1324 = vpop.f32.mrb[0].mxu0
      %v1325 = vadd.f32 %v1206, %v1324
      %v1326 = vpop.f32.mrb[0].mxu0
      %1327 = vmatprep.mubr.f32.mxu0 0.0
      %1328 = vmatmul.mubr.f32.gmra.mrb[0].mxu0 %v656
      %v1329 = vpop.f32.mrb[0].mxu0
      %v1330 = vadd.f32 %v1206, %v1329
      %v1331 = vpop.f32.mrb[0].mxu0
      %1332 = vmatprep.mubr.f32.mxu0 0.0
      %1333 = vmatmul.mubr.f32.gmra.mrb[0].mxu0 %v659
      %v1334 = vpop.f32.mrb[0].mxu0
      %v1335 = vadd.f32 %v1206, %v1334
      %v1336 = vpop.f32.mrb[0].mxu0
      %1337 = vmatprep.mubr.f32.mxu0 0.0
      %1338 = vmatmul.mubr.f32.gmra.mrb[0].mxu0 %v662
      %v1339 = vpop.f32.mrb[0].mxu0
      %v1340 = vadd.f32 %v1206, %v1339
      %v1341 = vpop.f32.mrb[0].mxu0
      %1342 = vmatprep.mubr.f32.mxu0 0.0
      %1343 = vmatmul.mubr.f32.gmra.mrb[0].mxu0 %v665
      %v1344 = vpop.f32.mrb[0].mxu0
      %v1345 = vadd.f32 %v1206, %v1344
      %v1346 = vpop.f32.mrb[0].mxu0
      %1347 = vmatprep.mubr.f32.mxu0 0.0
      %1348 = vmatmul.mubr.f32.gmra.mrb[0].mxu0 %v668
      %v1349 = vpop.f32.mrb[0].mxu0
      %v1350 = vadd.f32 %v1206, %v1349
      %v1351 = vpop.f32.mrb[0].mxu0
      %1352 = vmatprep.mubr.f32.mxu0 0.0
      %1353 = vmatmul.mubr.f32.gmra.mrb[0].mxu0 %v671
      %v1354 = vpop.f32.mrb[0].mxu0
      %v1355 = vadd.f32 %v1206, %v1354
      %v1356 = vpop.f32.mrb[0].mxu0
      %1357 = vmatprep.mubr.f32.mxu0 0.0
      %1358 = vmatmul.mubr.f32.gmra.mrb[0].mxu0 %v674
      %v1359 = vpop.f32.mrb[0].mxu0
      %v1360 = vadd.f32 %v1206, %v1359
      %v1361 = vpop.f32.mrb[0].mxu0
      %1362 = vmatprep.mubr.f32.mxu0 0.0
      %1363 = vmatmul.mubr.f32.gmra.mrb[0].mxu0 %v677
      %v1364 = vpop.f32.mrb[0].mxu0
      %v1365 = vadd.f32 %v1206, %v1364
      %v1366 = vpop.f32.mrb[0].mxu0
      %1367 = vmatprep.mubr.f32.mxu0 0.0
      %1368 = vmatmul.mubr.f32.gmra.mrb[0].mxu0 %v680
      %v1369 = vpop.f32.mrb[0].mxu0
      %v1370 = vadd.f32 %v1206, %v1369
      %v1371 = vpop.f32.mrb[0].mxu0
      %1372 = vmatprep.mubr.f32.mxu0 0.0
      %1373 = vmatmul.mubr.f32.gmra.mrb[0].mxu0 %v683
      %v1374 = vpop.f32.mrb[0].mxu0
      %v1375 = vadd.f32 %v1206, %v1374
      %v1376 = vpop.f32.mrb[0].mxu0
      %1377 = vmatprep.mubr.f32.mxu0 0.0
      %1378 = vmatmul.mubr.f32.gmra.mrb[0].mxu0 %v686
      %v1379 = vpop.f32.mrb[0].mxu0
      %v1380 = vadd.f32 %v1206, %v1379
      %v1381 = vpop.f32.mrb[0].mxu0
      %1382 = vmatprep.mubr.f32.mxu0 0.0
      %1383 = vmatmul.mubr.f32.gmra.mrb[0].mxu0 %v689
      %v1384 = vpop.f32.mrb[0].mxu0
      %v1385 = vadd.f32 %v1206, %v1384
      %v1386 = vpop.f32.mrb[0].mxu0
      %1387 = vmatprep.mubr.f32.mxu0 0.0
      %1388 = vmatmul.mubr.f32.gmra.mrb[0].mxu0 %v692
      %v1389 = vpop.f32.mrb[0].mxu0
      %v1390 = vadd.f32 %v1206, %v1389
      %v1391 = vpop.f32.mrb[0].mxu0
      %1392 = vmatprep.mubr.f32.mxu0 0.0
      %1393 = vmatmul.mubr.f32.gmra.mrb[0].mxu0 %v695
      %v1394 = vpop.f32.mrb[0].mxu0
      %v1395 = vadd.f32 %v1206, %v1394
      %v1396 = vpop.f32.mrb[0].mxu0
      %1397 = vmatprep.mubr.f32.mxu0 0.0
      %1398 = vmatmul.mubr.f32.gmra.mrb[0].mxu0 %v698
      %v1399 = vpop.f32.mrb[0].mxu0
      %v1400 = vadd.f32 %v1206, %v1399
      %v1401 = vpop.f32.mrb[0].mxu0
      %1402 = vmatprep.mubr.f32.mxu0 0.0
      %1403 = vmatmul.mubr.f32.gmra.mrb[0].mxu0 %v701
      %v1404 = vpop.f32.mrb[0].mxu0
      %v1405 = vadd.f32 %v1206, %v1404
      %v1406 = vpop.f32.mrb[0].mxu0
      %1407 = vmatprep.mubr.f32.mxu0 0.0
      %1408 = vmatmul.mubr.f32.gmra.mrb[0].mxu0 %v704
      %v1409 = vpop.f32.mrb[0].mxu0
      %v1410 = vadd.f32 %v1206, %v1409
      %v1411 = vpop.f32.mrb[0].mxu0
      %1412 = vmatprep.mubr.f32.mxu0 0.0
      %1413 = vmatmul.mubr.f32.gmra.mrb[0].mxu0 %v707
      %v1414 = vpop.f32.mrb[0].mxu0
      %v1415 = vadd.f32 %v1206, %v1414
      %v1416 = vpop.f32.mrb[0].mxu0
      %1417 = vmatprep.mubr.f32.mxu0 0.0
      %1418 = vmatmul.mubr.f32.gmra.mrb[0].mxu0 %v710
      %v1419 = vpop.f32.mrb[0].mxu0
      %v1420 = vadd.f32 %v1206, %v1419
      %v1421 = vpop.f32.mrb[0].mxu0
      %1422 = vmatprep.mubr.f32.mxu0 0.0
      %1423 = vmatmul.mubr.f32.gmra.mrb[0].mxu0 %v713
      %v1424 = vpop.f32.mrb[0].mxu0
      %v1425 = vadd.f32 %v1206, %v1424
      %v1426 = vpop.f32.mrb[0].mxu0
      %1427 = vmatprep.mubr.f32.mxu0 0.0
      %1428 = vmatmul.mubr.f32.gmra.mrb[0].mxu0 %v716
      %v1429 = vpop.f32.mrb[0].mxu0
      %v1430 = vadd.f32 %v1206, %v1429
      %v1431 = vpop.f32.mrb[0].mxu0
      %1432 = vmatprep.mubr.f32.mxu0 0.0
      %1433 = vmatmul.mubr.f32.gmra.mrb[0].mxu0 %v719
      %v1434 = vpop.f32.mrb[0].mxu0
      %v1435 = vadd.f32 %v1206, %v1434
      %v1436 = vpop.f32.mrb[0].mxu0
      %1437 = vmatprep.mubr.f32.mxu0 0.0
      %1438 = vmatmul.mubr.f32.gmra.mrb[0].mxu0 %v722
      %v1439 = vpop.f32.mrb[0].mxu0
      %v1440 = vadd.f32 %v1206, %v1439
      %v1441 = vpop.f32.mrb[0].mxu0
      %1442 = vmatprep.mubr.f32.mxu0 0.0
      %1443 = vmatmul.mubr.f32.gmra.mrb[0].mxu0 %v725
      %v1444 = vpop.f32.mrb[0].mxu0
      %v1445 = vadd.f32 %v1206, %v1444
      %v1446 = vpop.f32.mrb[0].mxu0
      %1447 = vmatprep.mubr.f32.mxu0 0.0
      %1448 = vmatmul.mubr.f32.gmra.mrb[0].mxu0 %v728
      %v1449 = vpop.f32.mrb[0].mxu0
      %v1450 = vadd.f32 %v1206, %v1449
      %v1451 = vpop.f32.mrb[0].mxu0
      %1452 = vmatprep.mubr.f32.mxu0 0.0
      %1453 = vmatmul.mubr.f32.gmra.mrb[0].mxu0 %v731
      %v1454 = vpop.f32.mrb[0].mxu0
      %v1455 = vadd.f32 %v1206, %v1454
      %v1456 = vpop.f32.mrb[0].mxu0
      %1457 = vmatprep.mubr.f32.mxu0 0.0
      %1458 = vmatmul.mubr.f32.gmra.mrb[0].mxu0 %v734
      %v1459 = vpop.f32.mrb[0].mxu0
      %v1460 = vadd.f32 %v1206, %v1459
      %v1461 = vpop.f32.mrb[0].mxu0
      %1462 = vmatprep.mubr.f32.mxu0 0.0
      %1463 = vmatmul.mubr.f32.gmra.mrb[0].mxu0 %v737
      %v1464 = vpop.f32.mrb[0].mxu0
      %v1465 = vadd.f32 %v1206, %v1464
      %v1466 = vpop.f32.mrb[0].mxu0
      %1467 = vmatprep.mubr.f32.mxu0 0.0
      %1468 = vmatmul.mubr.f32.gmra.mrb[0].mxu0 %v740
      %v1469 = vpop.f32.mrb[0].mxu0
      %v1470 = vadd.f32 %v1206, %v1469
      %v1471 = vpop.f32.mrb[0].mxu0
      %1472 = vmatprep.mubr.f32.mxu0 0.0
      %1473 = vmatmul.mubr.f32.gmra.mrb[0].mxu0 %v743
      %v1474 = vpop.f32.mrb[0].mxu0
      %v1475 = vadd.f32 %v1206, %v1474
      %v1476 = vpop.f32.mrb[0].mxu0
      %1477 = vmatprep.mubr.f32.mxu0 0.0
      %1478 = vmatmul.mubr.f32.gmra.mrb[0].mxu0 %v746
      %v1479 = vpop.f32.mrb[0].mxu0
      %v1480 = vadd.f32 %v1206, %v1479
      %v1481 = vpop.f32.mrb[0].mxu0
      %1482 = vmatprep.mubr.f32.mxu0 0.0
      %1483 = vmatmul.mubr.f32.gmra.mrb[0].mxu0 %v749
      %v1484 = vpop.f32.mrb[0].mxu0
      %v1485 = vadd.f32 %v1206, %v1484
      %v1486 = vpop.f32.mrb[0].mxu0
      %1487 = vmatprep.mubr.f32.mxu0 0.0
      %1488 = vmatmul.mubr.f32.gmra.mrb[0].mxu0 %v752
      %v1489 = vpop.f32.mrb[0].mxu0
      %v1490 = vadd.f32 %v1206, %v1489
      %v1491 = vpop.f32.mrb[0].mxu0
      %1492 = vmatprep.mubr.f32.mxu0 0.0
      %1493 = vmatmul.mubr.f32.gmra.mrb[0].mxu0 %v755
      %v1494 = vpop.f32.mrb[0].mxu0
      %v1495 = vadd.f32 %v1206, %v1494
      %v1496 = vpop.f32.mrb[0].mxu0
      %1497 = vmatprep.mubr.f32.mxu0 0.0
      %1498 = vmatmul.mubr.f32.gmra.mrb[0].mxu0 %v758
      %v1499 = vpop.f32.mrb[0].mxu0
      %v1500 = vadd.f32 %v1206, %v1499
      %v1501 = vpop.f32.mrb[0].mxu0
      %1502 = vmatprep.mubr.f32.mxu0 0.0
      %1503 = vmatmul.mubr.f32.gmra.mrb[0].mxu0 %v761
      %v1504 = vpop.f32.mrb[0].mxu0
      %v1505 = vadd.f32 %v1206, %v1504
      %v1506 = vpop.f32.mrb[0].mxu0
      %1507 = vmatprep.mubr.f32.mxu0 0.0
      %1508 = vmatmul.mubr.f32.gmra.mrb[0].mxu0 %v764
      %v1509 = vpop.f32.mrb[0].mxu0
      %v1510 = vadd.f32 %v1206, %v1509
      %v1511 = vpop.f32.mrb[0].mxu0
      %1512 = vmatprep.mubr.f32.mxu0 0.0
      %1513 = vmatmul.mubr.f32.gmra.mrb[0].mxu0 %v767
      %v1514 = vpop.f32.mrb[0].mxu0
      %v1515 = vadd.f32 %v1206, %v1514
      %v1516 = vpop.f32.mrb[0].mxu0
      %1517 = vmatprep.mubr.f32.mxu0 0.0
      %1518 = vmatmul.mubr.f32.gmra.mrb[0].mxu0 %v770
      %v1519 = vpop.f32.mrb[0].mxu0
      %v1520 = vadd.f32 %v1206, %v1519
      %v1521 = vpop.f32.mrb[0].mxu0
      %1522 = vmatprep.mubr.f32.mxu0 0.0
      %1523 = vmatmul.mubr.f32.gmra.mrb[0].mxu0 %v773
      %v1524 = vpop.f32.mrb[0].mxu0
      %v1525 = vadd.f32 %v1206, %v1524
      %v1526 = vpop.f32.mrb[0].mxu0
      %1527 = vmatprep.mubr.f32.mxu0 0.0
      %1528 = vmatmul.mubr.f32.gmra.mrb[0].mxu0 %v776
      %v1529 = vpop.f32.mrb[0].mxu0
      %v1530 = vadd.f32 %v1206, %v1529
      %v1531 = vpop.f32.mrb[0].mxu0
      %1532 = vmatprep.mubr.f32.mxu0 0.0
      %1533 = vmatmul.mubr.f32.gmra.mrb[0].mxu0 %v779
      %v1534 = vpop.f32.mrb[0].mxu0
      %v1535 = vadd.f32 %v1206, %v1534
      %v1536 = vpop.f32.mrb[0].mxu0
      %1537 = vmatprep.mubr.f32.mxu0 0.0
      %1538 = vmatmul.mubr.f32.gmra.mrb[0].mxu0 %v782
      %v1539 = vpop.f32.mrb[0].mxu0
      %v1540 = vadd.f32 %v1206, %v1539
      %v1541 = vpop.f32.mrb[0].mxu0
      %1542 = vmatprep.mubr.f32.mxu0 0.0
      %1543 = vmatmul.mubr.f32.gmra.mrb[0].mxu0 %v785
      %v1544 = vpop.f32.mrb[0].mxu0
      %v1545 = vadd.f32 %v1206, %v1544
      %v1546 = vpop.f32.mrb[0].mxu0
      %1547 = vmatprep.mubr.f32.mxu0 0.0
      %1548 = vmatmul.mubr.f32.gmra.mrb[0].mxu0 %v788
      %v1549 = vpop.f32.mrb[0].mxu0
      %v1550 = vadd.f32 %v1206, %v1549
      %v1551 = vpop.f32.mrb[0].mxu0
      %1552 = vmatprep.mubr.f32.mxu0 0.0
      %1553 = vmatmul.mubr.f32.gmra.mrb[0].mxu0 %v791
      %v1554 = vpop.f32.mrb[0].mxu0
      %v1555 = vadd.f32 %v1206, %v1554
      %v1556 = vpop.f32.mrb[0].mxu0
      %1557 = vmatprep.mubr.f32.mxu0 0.0
      %1558 = vmatmul.mubr.f32.gmra.mrb[0].mxu0 %v794
      %v1559 = vpop.f32.mrb[0].mxu0
      %v1560 = vadd.f32 %v1206, %v1559
      %v1561 = vpop.f32.mrb[0].mxu0
      %1562 = vmatprep.mubr.f32.mxu0 0.0
      %1563 = vmatmul.mubr.f32.gmra.mrb[0].mxu0 %v797
      %v1564 = vpop.f32.mrb[0].mxu0
      %v1565 = vadd.f32 %v1206, %v1564
      %v1566 = vpop.f32.mrb[0].mxu0
      %1567 = vmatprep.mubr.f32.mxu0 0.0
      %1568 = vmatmul.mubr.f32.gmra.mrb[0].mxu0 %v800
      %v1569 = vpop.f32.mrb[0].mxu0
      %v1570 = vadd.f32 %v1206, %v1569
      %v1571 = vpop.f32.mrb[0].mxu0
      %1572 = vmatprep.mubr.f32.mxu0 0.0
      %1573 = vmatmul.mubr.f32.gmra.mrb[0].mxu0 %v803
      %v1574 = vpop.f32.mrb[0].mxu0
      %v1575 = vadd.f32 %v1206, %v1574
      %v1576 = vpop.f32.mrb[0].mxu0
      %1577 = vmatprep.mubr.f32.mxu0 0.0
      %1578 = vmatmul.mubr.f32.gmra.mrb[0].mxu0 %v806
      %v1579 = vpop.f32.mrb[0].mxu0
      %v1580 = vadd.f32 %v1206, %v1579
      %v1581 = vpop.f32.mrb[0].mxu0
      %1582 = vmatprep.mubr.f32.mxu0 0.0
      %1583 = vmatmul.mubr.f32.gmra.mrb[0].mxu0 %v809
      %v1584 = vpop.f32.mrb[0].mxu0
      %v1585 = vadd.f32 %v1206, %v1584
      %v1586 = vpop.f32.mrb[0].mxu0
      %1587 = vmatprep.mubr.f32.mxu0 0.0
      %1588 = vmatmul.mubr.f32.gmra.mrb[0].mxu0 %v812
      %v1589 = vpop.f32.mrb[0].mxu0
      %v1590 = vadd.f32 %v1206, %v1589
      %v1591 = vpop.f32.mrb[0].mxu0
      %1592 = vdwg.mxu0
      %vm1593 = vcmask 785408
      %1594 = vst.msk [vmem:[%s398] sm:$0xff] %vm1593, %v881
      %1595 = vst.msk [vmem:[%s398 + $0x8] sm:$0xff] %vm1593, %v886
      %1596 = vst.msk [vmem:[%s398 + $0x10] sm:$0xff] %vm1593, %v891
      %1597 = vst.msk [vmem:[%s398 + $0x18] sm:$0xff] %vm1593, %v896
      %1598 = vst.msk [vmem:[%s398 + $0x20] sm:$0xff] %vm1593, %v901
      %1599 = vst.msk [vmem:[%s398 + $0x28] sm:$0xff] %vm1593, %v906
      %1600 = vst.msk [vmem:[%s398 + $0x30] sm:$0xff] %vm1593, %v911
      %1601 = vst.msk [vmem:[%s398 + $0x38] sm:$0xff] %vm1593, %v916
      %1602 = vst.msk [vmem:[%s398 + $0x40] sm:$0xff] %vm1593, %v921
      %1603 = vst.msk [vmem:[%s398 + $0x48] sm:$0xff] %vm1593, %v926
      %1604 = vst.msk [vmem:[%s398 + $0x50] sm:$0xff] %vm1593, %v931
      %1605 = vst.msk [vmem:[%s398 + $0x58] sm:$0xff] %vm1593, %v936
      %1606 = vst.msk [vmem:[%s398 + $0x60] sm:$0xff] %vm1593, %v941
      %1607 = vst.msk [vmem:[%s398 + $0x68] sm:$0xff] %vm1593, %v946
      %1608 = vst.msk [vmem:[%s398 + $0x70] sm:$0xff] %vm1593, %v951
      %1609 = vst.msk [vmem:[%s398 + $0x78] sm:$0xff] %vm1593, %v956
      %1610 = vst.msk [vmem:[%s398 + $0x80] sm:$0xff] %vm1593, %v961
      %1611 = vst.msk [vmem:[%s398 + $0x88] sm:$0xff] %vm1593, %v966
      %1612 = vst.msk [vmem:[%s398 + $0x90] sm:$0xff] %vm1593, %v971
      %1613 = vst.msk [vmem:[%s398 + $0x98] sm:$0xff] %vm1593, %v976
      %1614 = vst.msk [vmem:[%s398 + $0xa0] sm:$0xff] %vm1593, %v981
      %1615 = vst.msk [vmem:[%s398 + $0xa8] sm:$0xff] %vm1593, %v986
      %1616 = vst.msk [vmem:[%s398 + $0xb0] sm:$0xff] %vm1593, %v991
      %1617 = vst.msk [vmem:[%s398 + $0xb8] sm:$0xff] %vm1593, %v996
      %1618 = vst.msk [vmem:[%s398 + $0xc0] sm:$0xff] %vm1593, %v1001
      %1619 = vst.msk [vmem:[%s398 + $0xc8] sm:$0xff] %vm1593, %v1006
      %1620 = vst.msk [vmem:[%s398 + $0xd0] sm:$0xff] %vm1593, %v1011
      %1621 = vst.msk [vmem:[%s398 + $0xd8] sm:$0xff] %vm1593, %v1016
      %1622 = vst.msk [vmem:[%s398 + $0xe0] sm:$0xff] %vm1593, %v1021
      %1623 = vst.msk [vmem:[%s398 + $0xe8] sm:$0xff] %vm1593, %v1026
      %1624 = vst.msk [vmem:[%s398 + $0xf0] sm:$0xff] %vm1593, %v1031
      %1625 = vst.msk [vmem:[%s398 + $0xf8] sm:$0xff] %vm1593, %v1036
      %1626 = vst.msk [vmem:[%s398 + $0x100] sm:$0xff] %vm1593, %v1041
      %1627 = vst.msk [vmem:[%s398 + $0x108] sm:$0xff] %vm1593, %v1046
      %1628 = vst.msk [vmem:[%s398 + $0x110] sm:$0xff] %vm1593, %v1051
      %1629 = vst.msk [vmem:[%s398 + $0x118] sm:$0xff] %vm1593, %v1056
      %1630 = vst.msk [vmem:[%s398 + $0x120] sm:$0xff] %vm1593, %v1061
      %1631 = vst.msk [vmem:[%s398 + $0x128] sm:$0xff] %vm1593, %v1066
      %1632 = vst.msk [vmem:[%s398 + $0x130] sm:$0xff] %vm1593, %v1071
      %1633 = vst.msk [vmem:[%s398 + $0x138] sm:$0xff] %vm1593, %v1076
      %1634 = vst.msk [vmem:[%s398 + $0x140] sm:$0xff] %vm1593, %v1081
      %1635 = vst.msk [vmem:[%s398 + $0x148] sm:$0xff] %vm1593, %v1086
      %1636 = vst.msk [vmem:[%s398 + $0x150] sm:$0xff] %vm1593, %v1091
      %1637 = vst.msk [vmem:[%s398 + $0x158] sm:$0xff] %vm1593, %v1096
      %1638 = vst.msk [vmem:[%s398 + $0x160] sm:$0xff] %vm1593, %v1101
      %1639 = vst.msk [vmem:[%s398 + $0x168] sm:$0xff] %vm1593, %v1106
      %1640 = vst.msk [vmem:[%s398 + $0x170] sm:$0xff] %vm1593, %v1111
      %1641 = vst.msk [vmem:[%s398 + $0x178] sm:$0xff] %vm1593, %v1116
      %1642 = vst.msk [vmem:[%s398 + $0x180] sm:$0xff] %vm1593, %v1121
      %1643 = vst.msk [vmem:[%s398 + $0x188] sm:$0xff] %vm1593, %v1126
      %1644 = vst.msk [vmem:[%s398 + $0x190] sm:$0xff] %vm1593, %v1131
      %1645 = vst.msk [vmem:[%s398 + $0x198] sm:$0xff] %vm1593, %v1136
      %1646 = vst.msk [vmem:[%s398 + $0x1a0] sm:$0xff] %vm1593, %v1141
      %1647 = vst.msk [vmem:[%s398 + $0x1a8] sm:$0xff] %vm1593, %v1146
      %1648 = vst.msk [vmem:[%s398 + $0x1b0] sm:$0xff] %vm1593, %v1151
      %1649 = vst.msk [vmem:[%s398 + $0x1b8] sm:$0xff] %vm1593, %v1156
      %1650 = vst.msk [vmem:[%s398 + $0x1c0] sm:$0xff] %vm1593, %v1161
      %1651 = vst.msk [vmem:[%s398 + $0x1c8] sm:$0xff] %vm1593, %v1166
      %1652 = vst.msk [vmem:[%s398 + $0x1d0] sm:$0xff] %vm1593, %v1171
      %1653 = vst.msk [vmem:[%s398 + $0x1d8] sm:$0xff] %vm1593, %v1176
      %1654 = vst.msk [vmem:[%s398 + $0x1e0] sm:$0xff] %vm1593, %v1181
      %1655 = vst.msk [vmem:[%s398 + $0x1e8] sm:$0xff] %vm1593, %v1186
      %1656 = vst.msk [vmem:[%s398 + $0x1f0] sm:$0xff] %vm1593, %v1191
      %1657 = vst.msk [vmem:[%s398 + $0x1f8] sm:$0xff] %vm1593, %v1196
      %s1658 = scalar_lea.vmem %s398, 512
      %1659 = vst.msk [vmem:[%s1658] sm:$0xff] %vm1593, %v1275
      %1660 = vst.msk [vmem:[%s1658 + $0x8] sm:$0xff] %vm1593, %v1280
      %1661 = vst.msk [vmem:[%s1658 + $0x10] sm:$0xff] %vm1593, %v1285
      %1662 = vst.msk [vmem:[%s1658 + $0x18] sm:$0xff] %vm1593, %v1290
      %1663 = vst.msk [vmem:[%s1658 + $0x20] sm:$0xff] %vm1593, %v1295
      %1664 = vst.msk [vmem:[%s1658 + $0x28] sm:$0xff] %vm1593, %v1300
      %1665 = vst.msk [vmem:[%s1658 + $0x30] sm:$0xff] %vm1593, %v1305
      %1666 = vst.msk [vmem:[%s1658 + $0x38] sm:$0xff] %vm1593, %v1310
      %1667 = vst.msk [vmem:[%s1658 + $0x40] sm:$0xff] %vm1593, %v1315
      %1668 = vst.msk [vmem:[%s1658 + $0x48] sm:$0xff] %vm1593, %v1320
      %1669 = vst.msk [vmem:[%s1658 + $0x50] sm:$0xff] %vm1593, %v1325
      %1670 = vst.msk [vmem:[%s1658 + $0x58] sm:$0xff] %vm1593, %v1330
      %1671 = vst.msk [vmem:[%s1658 + $0x60] sm:$0xff] %vm1593, %v1335
      %1672 = vst.msk [vmem:[%s1658 + $0x68] sm:$0xff] %vm1593, %v1340
      %1673 = vst.msk [vmem:[%s1658 + $0x70] sm:$0xff] %vm1593, %v1345
      %1674 = vst.msk [vmem:[%s1658 + $0x78] sm:$0xff] %vm1593, %v1350
      %1675 = vst.msk [vmem:[%s1658 + $0x80] sm:$0xff] %vm1593, %v1355
      %1676 = vst.msk [vmem:[%s1658 + $0x88] sm:$0xff] %vm1593, %v1360
      %1677 = vst.msk [vmem:[%s1658 + $0x90] sm:$0xff] %vm1593, %v1365
      %1678 = vst.msk [vmem:[%s1658 + $0x98] sm:$0xff] %vm1593, %v1370
      %1679 = vst.msk [vmem:[%s1658 + $0xa0] sm:$0xff] %vm1593, %v1375
      %1680 = vst.msk [vmem:[%s1658 + $0xa8] sm:$0xff] %vm1593, %v1380
      %1681 = vst.msk [vmem:[%s1658 + $0xb0] sm:$0xff] %vm1593, %v1385
      %1682 = vst.msk [vmem:[%s1658 + $0xb8] sm:$0xff] %vm1593, %v1390
      %1683 = vst.msk [vmem:[%s1658 + $0xc0] sm:$0xff] %vm1593, %v1395
      %1684 = vst.msk [vmem:[%s1658 + $0xc8] sm:$0xff] %vm1593, %v1400
      %1685 = vst.msk [vmem:[%s1658 + $0xd0] sm:$0xff] %vm1593, %v1405
      %1686 = vst.msk [vmem:[%s1658 + $0xd8] sm:$0xff] %vm1593, %v1410
      %1687 = vst.msk [vmem:[%s1658 + $0xe0] sm:$0xff] %vm1593, %v1415
      %1688 = vst.msk [vmem:[%s1658 + $0xe8] sm:$0xff] %vm1593, %v1420
      %1689 = vst.msk [vmem:[%s1658 + $0xf0] sm:$0xff] %vm1593, %v1425
      %1690 = vst.msk [vmem:[%s1658 + $0xf8] sm:$0xff] %vm1593, %v1430
      %1691 = vst.msk [vmem:[%s1658 + $0x100] sm:$0xff] %vm1593, %v1435
      %1692 = vst.msk [vmem:[%s1658 + $0x108] sm:$0xff] %vm1593, %v1440
      %1693 = vst.msk [vmem:[%s1658 + $0x110] sm:$0xff] %vm1593, %v1445
      %1694 = vst.msk [vmem:[%s1658 + $0x118] sm:$0xff] %vm1593, %v1450
      %1695 = vst.msk [vmem:[%s1658 + $0x120] sm:$0xff] %vm1593, %v1455
      %1696 = vst.msk [vmem:[%s1658 + $0x128] sm:$0xff] %vm1593, %v1460
      %1697 = vst.msk [vmem:[%s1658 + $0x130] sm:$0xff] %vm1593, %v1465
      %1698 = vst.msk [vmem:[%s1658 + $0x138] sm:$0xff] %vm1593, %v1470
      %1699 = vst.msk [vmem:[%s1658 + $0x140] sm:$0xff] %vm1593, %v1475
      %1700 = vst.msk [vmem:[%s1658 + $0x148] sm:$0xff] %vm1593, %v1480
      %1701 = vst.msk [vmem:[%s1658 + $0x150] sm:$0xff] %vm1593, %v1485
      %1702 = vst.msk [vmem:[%s1658 + $0x158] sm:$0xff] %vm1593, %v1490
      %1703 = vst.msk [vmem:[%s1658 + $0x160] sm:$0xff] %vm1593, %v1495
      %1704 = vst.msk [vmem:[%s1658 + $0x168] sm:$0xff] %vm1593, %v1500
      %1705 = vst.msk [vmem:[%s1658 + $0x170] sm:$0xff] %vm1593, %v1505
      %1706 = vst.msk [vmem:[%s1658 + $0x178] sm:$0xff] %vm1593, %v1510
      %1707 = vst.msk [vmem:[%s1658 + $0x180] sm:$0xff] %vm1593, %v1515
      %1708 = vst.msk [vmem:[%s1658 + $0x188] sm:$0xff] %vm1593, %v1520
      %1709 = vst.msk [vmem:[%s1658 + $0x190] sm:$0xff] %vm1593, %v1525
      %1710 = vst.msk [vmem:[%s1658 + $0x198] sm:$0xff] %vm1593, %v1530
      %1711 = vst.msk [vmem:[%s1658 + $0x1a0] sm:$0xff] %vm1593, %v1535
      %1712 = vst.msk [vmem:[%s1658 + $0x1a8] sm:$0xff] %vm1593, %v1540
      %1713 = vst.msk [vmem:[%s1658 + $0x1b0] sm:$0xff] %vm1593, %v1545
      %1714 = vst.msk [vmem:[%s1658 + $0x1b8] sm:$0xff] %vm1593, %v1550
      %1715 = vst.msk [vmem:[%s1658 + $0x1c0] sm:$0xff] %vm1593, %v1555
      %1716 = vst.msk [vmem:[%s1658 + $0x1c8] sm:$0xff] %vm1593, %v1560
      %1717 = vst.msk [vmem:[%s1658 + $0x1d0] sm:$0xff] %vm1593, %v1565
      %1718 = vst.msk [vmem:[%s1658 + $0x1d8] sm:$0xff] %vm1593, %v1570
      %1719 = vst.msk [vmem:[%s1658 + $0x1e0] sm:$0xff] %vm1593, %v1575
      %1720 = vst.msk [vmem:[%s1658 + $0x1e8] sm:$0xff] %vm1593, %v1580
      %1721 = vst.msk [vmem:[%s1658 + $0x1f0] sm:$0xff] %vm1593, %v1585
      %1722 = vst.msk [vmem:[%s1658 + $0x1f8] sm:$0xff] %vm1593, %v1590
      %s1723 = smul.u32 64, %s25
      %p1724 = scmp.lt.s32.totalorder %s24, 1
      %s1725 = scalar_select %p1724, %s24, 1
      %p1726 = scmp.lt.s32.totalorder %s1723, 63
      %s1727 = scalar_select %p1726, %s1723, 63
      %s1728 = smul.addr %s1725, 128
      %s1729 = sadd.s32 %s1727, %s1728
      %s1730 = smul.addr %s1729, 8
      %s1731 = scalar_lea.vmem %s9, %s1730
      // Predicated region
      $region57: #{cluster_block_forward.6} parent=55 // pred_check
        %p1732 = pneg %p258
      $region58: #{cluster_block_forward.6} parent=55 // pred_check_branch
        %1734 = sbr.rel (%p1732) target = $region60
      $region59: #{cluster_block_forward.6} parent=55 // pred_region
        %s1735 = smul.u32 64, %s25
      $region60: #{cluster_block_forward.6} parent=55 // pred_fallthru
        _
    $region56: #{cluster_block_forward.6} parent=5 // pred_fallthru
      _
    %p1736 = scmp.le.s32.totalorder 2, %s15
    // Predicated region
    $region61: #{cluster_block_forward.6} parent=5 // pred_check
      %p1737 = pneg %p1736
    $region62: #{cluster_block_forward.6} parent=5 // pred_check_branch
      %1739 = sbr.rel (%p1737) target = $region64
    $region63: #{cluster_block_forward.6} parent=5 // pred_region
      %s1740 = ssub.s32 %s15, 2
      // Predicated region
      $region65: #{cluster_block_forward.6} parent=63 // pred_check
        %p1741 = pneg %p264
      $region66: #{cluster_block_forward.6} parent=63 // pred_check_branch
        %1743 = sbr.rel (%p1741) target = $region68
      $region67: #{cluster_block_forward.6} parent=63 // pred_region
        %s1744 = smul.u32 64, %s27
        %p1745 = scmp.lt.s32.totalorder %s26, 1
        %s1746 = scalar_select %p1745, %s26, 1
        %p1747 = scmp.lt.s32.totalorder %s1744, 63
        %s1748 = scalar_select %p1747, %s1744, 63
        %s1749 = smul.addr %s1746, 128
        %s1750 = sadd.s32 %s1748, %s1749
        %s1751 = smul.addr %s1750, 8
        %s1752 = scalar_lea.vmem %s9, %s1751
      $region68: #{cluster_block_forward.6} parent=63 // pred_fallthru
        _
    $region64: #{cluster_block_forward.6} parent=5 // pred_fallthru
      _
  $region6: #{cluster_block_forward.6} parent=0 // loop_footer
    %s19 = sadd.s32 1, %s15
  $region7: #{cluster_block_forward.6} parent=0 // loop_footer_branch
    %14 = sbr.rel target = $region3
  $region8: #{cluster_block_forward.6} parent=0 // loop_exit
    _

// kernel: cluster_block_forward.8
$region0: #{cluster_block_forward.8}
  #allocation0 [shape = 'u32[]', space=smem, size = 0x4, offset = 0x4, fixed_abs, tag = 'smem constant byte address 0x4 - core index']
  #allocation1 [shape = 'u32[144,128]{1,0:T(1,128)}', space=vmem, size = 0x12000, scoped, tag = 'internal scratch']
  #allocation2 [shape = 'f32[16,512]{1,0:T(8,128)}', space=vmem, size = 0x8000, scoped, tag = 'scratch operand']
  #allocation3 [shape = 'f32[16,512]{1,0:T(8,128)}', space=vmem, size = 0x8000, scoped, tag = 'scratch operand']
  %s0 = inlined_call_operand.vmem [shape: f32[2,512,96], index: 0, kind: input, shape index: {}]
  %s1 = inlined_call_operand.vmem [shape: f32[2,16,512], index: 1, kind: input, shape index: {}]
  %s2 = inlined_call_operand.vmem [shape: f32[16,96], index: 2, kind: input, shape index: {}]
  %s3 = inlined_call_operand.vmem [shape: f32[16,1], index: 3, kind: input, shape index: {}]
  %s4 = inlined_call_operand.vmem [shape: f32[16,1], index: 4, kind: input, shape index: {}]
  %s5 = inlined_call_operand.vmem [shape: f32[2,16,512], index: 5, kind: output, shape index: {0}]
  %s6 = inlined_call_operand.vmem [shape: f32[2,1,1], index: 6, kind: output, shape index: {1}]
  %s7 = inlined_call_operand.vmem [shape: f32[2,1,1], index: 7, kind: output, shape index: {2}]
  %8 = xla_tuple %s5, %s6, %s7
  %s9 = sld [smem:[#allocation0]]
  $region77: #{cluster_block_forward.8} parent=0
    _
  %s11 = ssub.s32 1, %s9
  %s12 = scalar_select 0, %s11, %s9
  loop: start=0, step=1, limit=4
  $region2: #{cluster_block_forward.8} parent=0 // loop_pre_header
    _
  $region3: #{cluster_block_forward.8} parent=0 // loop_header
    %s14 = sphi 0, %s18
    %p15 = scmp.ge.s32.totalorder %s14, 4
    %s21 = sphi 0, %s33
    %s22 = sphi 0, %s29
    %s23 = sphi 0, %s21
    %s24 = sphi 0, %s22
    %s25 = sphi 0, %s23
    %s26 = sphi 0, %s24
    %s38 = sphi 0, %s40
    %s41 = sphi 0, %s38
    %s42 = sphi 0, %s41
    %s58 = sphi 0, %s42
    %s66 = sphi 0, %s68
    %s69 = sphi 0, %s66
    %s70 = sphi 0, %s69
    %s86 = sphi 0, %s70
    %s90 = sphi 0, %s90
    %s92 = sphi 0, %s90
    %s93 = sphi 0, %s92
    %s107 = sphi 0, %s93
    %s111 = sphi 0, %s111
    %s113 = sphi 0, %s111
    %s114 = sphi 0, %s113
    %s128 = sphi 0, %s114
    %s132 = sphi 0, %s132
    %s134 = sphi 0, %s132
    %s135 = sphi 0, %s134
    %s149 = sphi 0, %s135
    %s157 = sphi 0, %s159
    %s160 = sphi 0, %s157
    %s161 = sphi 0, %s160
    %s177 = sphi 0, %s161
    %s183 = sphi 0, %s185
    %s186 = sphi 0, %s183
    %s187 = sphi 0, %s186
    %s203 = sphi 0, %s187
    %s209 = sphi 0, %s211
    %s212 = sphi 0, %s209
    %s213 = sphi 0, %s212
    %s229 = sphi 0, %s213
  $region4: #{cluster_block_forward.8} parent=0 // loop_header_branch
    %17 = sbr.rel (%p15) target = $region8
  $region5: #{cluster_block_forward.8} parent=0 // loop_body
    %s19 = ssub.s32 %s14, 1
    %s20 = ssub.s32 %s14, 2
    %s27 = sadd.s32 1, %s22
    %p28 = scmp.ge.s32.totalorder %s27, 1
    %s29 = scalar_select %p28, 0, %s27
    %s30 = sadd.s32 1, %s21
    %s31 = scalar_select %p28, %s30, %s21
    %p32 = scmp.ge.s32.totalorder %s31, 2
    %s33 = scalar_select %p32, 0, %s31
    %s34 = ssub.s32 %s21, %s33
    %s35 = ssub.s32 %s22, %s29
    %s36 = sor.u32 %s34, %s35
    %p37 = scmp.eq.s32.totalorder %s36, 0
    %s39 = sadd.s32 %s38, 1
    %s40 = scalar_select %p37, %s38, %s39
    %p43 = pneg %p37
    %p44 = scmp.eq.s32.totalorder %s14, 1
    %p45 = por %p43, %p44
    %p46 = scmp.ne.s32.totalorder %s38, %s41
    %p47 = scmp.eq.s32.totalorder %s14, 0
    %p48 = por %p46, %p47
    %p49 = scmp.ne.s32.totalorder %s38, %s41
    %p50 = scmp.eq.s32.totalorder %s19, 1
    %p51 = por %p49, %p50
    %p52 = scmp.ne.s32.totalorder %s41, %s42
    %p53 = scmp.eq.s32.totalorder %s19, 0
    %p54 = por %p52, %p53
    %p55 = scmp.ne.s32.totalorder %s41, %s42
    %p56 = scmp.eq.s32.totalorder %s20, 1
    %p57 = por %p55, %p56
    %p59 = scmp.ne.s32.totalorder %s42, %s58
    %p60 = scmp.eq.s32.totalorder %s20, 0
    %p61 = por %p59, %p60
    %s62 = ssub.s32 %s21, %s33
    %s63 = ssub.s32 %s22, %s29
    %s64 = sor.u32 %s62, %s63
    %p65 = scmp.eq.s32.totalorder %s64, 0
    %s67 = sadd.s32 %s66, 1
    %s68 = scalar_select %p65, %s66, %s67
    %p71 = pneg %p65
    %p72 = scmp.eq.s32.totalorder %s14, 1
    %p73 = por %p71, %p72
    %p74 = scmp.ne.s32.totalorder %s66, %s69
    %p75 = scmp.eq.s32.totalorder %s14, 0
    %p76 = por %p74, %p75
    %p77 = scmp.ne.s32.totalorder %s66, %s69
    %p78 = scmp.eq.s32.totalorder %s19, 1
    %p79 = por %p77, %p78
    %p80 = scmp.ne.s32.totalorder %s69, %s70
    %p81 = scmp.eq.s32.totalorder %s19, 0
    %p82 = por %p80, %p81
    %p83 = scmp.ne.s32.totalorder %s69, %s70
    %p84 = scmp.eq.s32.totalorder %s20, 1
    %p85 = por %p83, %p84
    %p87 = scmp.ne.s32.totalorder %s70, %s86
    %p88 = scmp.eq.s32.totalorder %s20, 0
    %p89 = por %p87, %p88
    %s91 = sadd.s32 %s90, 1
    %p94 = scmp.eq.s32.totalorder %s14, 1
    %p95 = scmp.ne.s32.totalorder %s90, %s92
    %p96 = scmp.eq.s32.totalorder %s14, 0
    %p97 = por %p95, %p96
    %p98 = scmp.ne.s32.totalorder %s90, %s92
    %p99 = scmp.eq.s32.totalorder %s19, 1
    %p100 = por %p98, %p99
    %p101 = scmp.ne.s32.totalorder %s92, %s93
    %p102 = scmp.eq.s32.totalorder %s19, 0
    %p103 = por %p101, %p102
    %p104 = scmp.ne.s32.totalorder %s92, %s93
    %p105 = scmp.eq.s32.totalorder %s20, 1
    %p106 = por %p104, %p105
    %p108 = scmp.ne.s32.totalorder %s93, %s107
    %p109 = scmp.eq.s32.totalorder %s20, 0
    %p110 = por %p108, %p109
    %s112 = sadd.s32 %s111, 1
    %p115 = scmp.eq.s32.totalorder %s14, 1
    %p116 = scmp.ne.s32.totalorder %s111, %s113
    %p117 = scmp.eq.s32.totalorder %s14, 0
    %p118 = por %p116, %p117
    %p119 = scmp.ne.s32.totalorder %s111, %s113
    %p120 = scmp.eq.s32.totalorder %s19, 1
    %p121 = por %p119, %p120
    %p122 = scmp.ne.s32.totalorder %s113, %s114
    %p123 = scmp.eq.s32.totalorder %s19, 0
    %p124 = por %p122, %p123
    %p125 = scmp.ne.s32.totalorder %s113, %s114
    %p126 = scmp.eq.s32.totalorder %s20, 1
    %p127 = por %p125, %p126
    %p129 = scmp.ne.s32.totalorder %s114, %s128
    %p130 = scmp.eq.s32.totalorder %s20, 0
    %p131 = por %p129, %p130
    %s133 = sadd.s32 %s132, 1
    %p136 = scmp.eq.s32.totalorder %s14, 1
    %p137 = scmp.ne.s32.totalorder %s132, %s134
    %p138 = scmp.eq.s32.totalorder %s14, 0
    %p139 = por %p137, %p138
    %p140 = scmp.ne.s32.totalorder %s132, %s134
    %p141 = scmp.eq.s32.totalorder %s19, 1
    %p142 = por %p140, %p141
    %p143 = scmp.ne.s32.totalorder %s134, %s135
    %p144 = scmp.eq.s32.totalorder %s19, 0
    %p145 = por %p143, %p144
    %p146 = scmp.ne.s32.totalorder %s134, %s135
    %p147 = scmp.eq.s32.totalorder %s20, 1
    %p148 = por %p146, %p147
    %p150 = scmp.ne.s32.totalorder %s135, %s149
    %p151 = scmp.eq.s32.totalorder %s20, 0
    %p152 = por %p150, %p151
    %s153 = ssub.s32 %s21, %s33
    %s154 = ssub.s32 %s22, %s29
    %s155 = sor.u32 %s153, %s154
    %p156 = scmp.eq.s32.totalorder %s155, 0
    %s158 = sadd.s32 %s157, 1
    %s159 = scalar_select %p156, %s157, %s158
    %p162 = pneg %p156
    %p163 = scmp.eq.s32.totalorder %s14, 1
    %p164 = por %p162, %p163
    %p165 = scmp.ne.s32.totalorder %s157, %s160
    %p166 = scmp.eq.s32.totalorder %s14, 0
    %p167 = por %p165, %p166
    %p168 = scmp.ne.s32.totalorder %s157, %s160
    %p169 = scmp.eq.s32.totalorder %s19, 1
    %p170 = por %p168, %p169
    %p171 = scmp.ne.s32.totalorder %s160, %s161
    %p172 = scmp.eq.s32.totalorder %s19, 0
    %p173 = por %p171, %p172
    %p174 = scmp.ne.s32.totalorder %s160, %s161
    %p175 = scmp.eq.s32.totalorder %s20, 1
    %p176 = por %p174, %p175
    %p178 = scmp.ne.s32.totalorder %s161, %s177
    %p179 = scmp.eq.s32.totalorder %s20, 0
    %p180 = por %p178, %p179
    %s181 = ssub.s32 %s21, %s33
    %p182 = scmp.eq.s32.totalorder %s181, 0
    %s184 = sadd.s32 %s183, 1
    %s185 = scalar_select %p182, %s183, %s184
    %p188 = pneg %p182
    %p189 = scmp.eq.s32.totalorder %s14, 1
    %p190 = por %p188, %p189
    %p191 = scmp.ne.s32.totalorder %s183, %s186
    %p192 = scmp.eq.s32.totalorder %s14, 0
    %p193 = por %p191, %p192
    %p194 = scmp.ne.s32.totalorder %s183, %s186
    %p195 = scmp.eq.s32.totalorder %s19, 1
    %p196 = por %p194, %p195
    %p197 = scmp.ne.s32.totalorder %s186, %s187
    %p198 = scmp.eq.s32.totalorder %s19, 0
    %p199 = por %p197, %p198
    %p200 = scmp.ne.s32.totalorder %s186, %s187
    %p201 = scmp.eq.s32.totalorder %s20, 1
    %p202 = por %p200, %p201
    %p204 = scmp.ne.s32.totalorder %s187, %s203
    %p205 = scmp.eq.s32.totalorder %s20, 0
    %p206 = por %p204, %p205
    %s207 = ssub.s32 %s21, %s33
    %p208 = scmp.eq.s32.totalorder %s207, 0
    %s210 = sadd.s32 %s209, 1
    %s211 = scalar_select %p208, %s209, %s210
    %p214 = pneg %p208
    %p215 = scmp.eq.s32.totalorder %s14, 1
    %p216 = por %p214, %p215
    %p217 = scmp.ne.s32.totalorder %s209, %s212
    %p218 = scmp.eq.s32.totalorder %s14, 0
    %p219 = por %p217, %p218
    %p220 = scmp.ne.s32.totalorder %s209, %s212
    %p221 = scmp.eq.s32.totalorder %s19, 1
    %p222 = por %p220, %p221
    %p223 = scmp.ne.s32.totalorder %s212, %s213
    %p224 = scmp.eq.s32.totalorder %s19, 0
    %p225 = por %p223, %p224
    %p226 = scmp.ne.s32.totalorder %s212, %s213
    %p227 = scmp.eq.s32.totalorder %s20, 1
    %p228 = por %p226, %p227
    %p230 = scmp.ne.s32.totalorder %s213, %s229
    %p231 = scmp.eq.s32.totalorder %s20, 0
    %p232 = por %p230, %p231
    %p233 = scmp.le.s32.totalorder 1, %s14
    %p234 = scmp.lt.s32.totalorder %s14, 3
    %p235 = pnand %p233, %p234
    %p236 = pneg %p235
    // Predicated region
    $region9: #{cluster_block_forward.8} parent=5 // pred_check
      _
    $region10: #{cluster_block_forward.8} parent=5 // pred_check_branch
      %238 = sbr.rel (%p235) target = $region12
    $region11: #{cluster_block_forward.8} parent=5 // pred_region
      %s239 = ssub.s32 %s14, 1
      // Predicated region
      $region13: #{cluster_block_forward.8} parent=11 // pred_check
        %p240 = pneg %p103
      $region14: #{cluster_block_forward.8} parent=11 // pred_check_branch
        %242 = sbr.rel (%p240) target = $region16
      $region15: #{cluster_block_forward.8} parent=11 // pred_region
        _
      $region16: #{cluster_block_forward.8} parent=11 // pred_fallthru
        _
      // Predicated region
      $region17: #{cluster_block_forward.8} parent=11 // pred_check
        %p243 = pneg %p124
      $region18: #{cluster_block_forward.8} parent=11 // pred_check_branch
        %245 = sbr.rel (%p243) target = $region20
      $region19: #{cluster_block_forward.8} parent=11 // pred_region
        _
      $region20: #{cluster_block_forward.8} parent=11 // pred_fallthru
        _
      // Predicated region
      $region21: #{cluster_block_forward.8} parent=11 // pred_check
        %p246 = pneg %p145
      $region22: #{cluster_block_forward.8} parent=11 // pred_check_branch
        %248 = sbr.rel (%p246) target = $region24
      $region23: #{cluster_block_forward.8} parent=11 // pred_region
        _
      $region24: #{cluster_block_forward.8} parent=11 // pred_fallthru
        _
    $region12: #{cluster_block_forward.8} parent=5 // pred_fallthru
      _
    %p249 = scmp.lt.s32.totalorder %s14, 2
    // Predicated region
    $region25: #{cluster_block_forward.8} parent=5 // pred_check
      %p250 = pneg %p249
    $region26: #{cluster_block_forward.8} parent=5 // pred_check_branch
      %252 = sbr.rel (%p250) target = $region28
    $region27: #{cluster_block_forward.8} parent=5 // pred_region
      // Predicated region
      $region29: #{cluster_block_forward.8} parent=27 // pred_check
        %p253 = pneg %p48
      $region30: #{cluster_block_forward.8} parent=27 // pred_check_branch
        %255 = sbr.rel (%p253) target = $region32
      $region31: #{cluster_block_forward.8} parent=27 // pred_region
        %s256 = smul.u32 64, %s22
        %p257 = scmp.lt.s32.totalorder %s21, 1
        %s258 = scalar_select %p257, %s21, 1
        %p259 = scmp.lt.s32.totalorder %s256, 63
        %s260 = scalar_select %p259, %s256, 63
        %s261 = smul.addr %s258, 64
        %s262 = sadd.s32 %s260, %s261
        %s263 = smul.addr %s262, 8
        %s264 = scalar_lea.vmem %s0, %s263
        %s265 = smul.u32 64, %s22
      $region32: #{cluster_block_forward.8} parent=27 // pred_fallthru
        _
      // Predicated region
      $region33: #{cluster_block_forward.8} parent=27 // pred_check
        %p266 = pneg %p76
      $region34: #{cluster_block_forward.8} parent=27 // pred_check_branch
        %268 = sbr.rel (%p266) target = $region36
      $region35: #{cluster_block_forward.8} parent=27 // pred_region
        %s269 = smul.u32 4, %s22
        %p270 = scmp.lt.s32.totalorder %s21, 1
        %s271 = scalar_select %p270, %s21, 1
        %p272 = scmp.lt.s32.totalorder %s269, 3
        %s273 = scalar_select %p272, %s269, 3
        %s274 = smul.addr %s271, 8
        %s275 = sadd.s32 %s273, %s274
        %s276 = smul.addr %s275, 8
        %s277 = scalar_lea.vmem %s1, %s276
        %s278 = smul.u32 4, %s22
      $region36: #{cluster_block_forward.8} parent=27 // pred_fallthru
        _
    $region28: #{cluster_block_forward.8} parent=5 // pred_fallthru
      _
    %p279 = scmp.le.s32.totalorder 1, %s14
    %p280 = scmp.lt.s32.totalorder %s14, 3
    %p281 = pnand %p279, %p280
    %p282 = pneg %p281
    // Predicated region
    $region37: #{cluster_block_forward.8} parent=5 // pred_check
      _
    $region38: #{cluster_block_forward.8} parent=5 // pred_check_branch
      %284 = sbr.rel (%p281) target = $region40
    $region39: #{cluster_block_forward.8} parent=5 // pred_region
      %s285 = ssub.s32 %s14, 1
      %s286 = smul.u32 64, %s24
      %p287 = scmp.lt.s32.totalorder %s23, 1
      %s288 = scalar_select %p287, %s23, 1
      %p289 = scmp.lt.s32.totalorder %s286, 63
      %s290 = scalar_select %p289, %s286, 63
      %s291 = smul.addr %s288, 64
      %s292 = sadd.s32 %s290, %s291
      %s293 = smul.addr %s292, 8
      %s294 = scalar_lea.vmem %s0, %s293
      %p295 = pneg %p54
      %p296 = pneg %p51
      %s297 = smul.u32 4, %s24
      %p298 = scmp.lt.s32.totalorder %s23, 1
      %s299 = scalar_select %p298, %s23, 1
      %p300 = scmp.lt.s32.totalorder %s297, 3
      %s301 = scalar_select %p300, %s297, 3
      %s302 = smul.addr %s299, 8
      %s303 = sadd.s32 %s301, %s302
      %s304 = smul.addr %s303, 8
      %s305 = scalar_lea.vmem %s1, %s304
      %p306 = pneg %p82
      %p307 = pneg %p79
      %p308 = pneg %p103
      %p309 = pneg %p100
      %p310 = pneg %p124
      %p311 = pneg %p121
      %p312 = pneg %p145
      %p313 = pneg %p142
      %p314 = pneg %p173
      %p315 = pneg %p170
      %s316 = smul.u32 4, %s24
      %p317 = scmp.lt.s32.totalorder %s23, 1
      %s318 = scalar_select %p317, %s23, 1
      %p319 = scmp.lt.s32.totalorder %s316, 3
      %s320 = scalar_select %p319, %s316, 3
      %s321 = smul.addr %s318, 8
      %s322 = sadd.s32 %s320, %s321
      %s323 = smul.addr %s322, 8
      %s324 = scalar_lea.vmem %s5, %s323
      %p325 = pneg %p199
      %p326 = pneg %p196
      %p327 = scmp.lt.s32.totalorder %s23, 1
      %s328 = scalar_select %p327, %s23, 1
      %s329 = scalar_lea.vmem %s6, %s328
      %p330 = pneg %p225
      %p331 = pneg %p222
      %p332 = scmp.lt.s32.totalorder %s23, 1
      %s333 = scalar_select %p332, %s23, 1
      %s334 = scalar_lea.vmem %s7, %s333
      %s335 = smul.u32 64, %s24
      %p336 = scmp.lt.s32.totalorder %s23, 1
      %s337 = scalar_select %p336, %s23, 1
      %p338 = scmp.lt.s32.totalorder %s335, 63
      %s339 = scalar_select %p338, %s335, 63
      %s340 = smul.addr %s337, 64
      %s341 = sadd.s32 %s339, %s340
      %s342 = smul.addr %s341, 8
      %s343 = scalar_lea.vmem %s0, %s342
      %s344 = smul.u32 64, %s24
      %s345 = smul.u32 4, %s24
      %p346 = scmp.lt.s32.totalorder %s23, 1
      %s347 = scalar_select %p346, %s23, 1
      %p348 = scmp.lt.s32.totalorder %s345, 3
      %s349 = scalar_select %p348, %s345, 3
      %s350 = smul.addr %s347, 8
      %s351 = sadd.s32 %s349, %s350
      %s352 = smul.addr %s351, 8
      %s353 = scalar_lea.vmem %s1, %s352
      %s354 = smul.u32 4, %s24
      %s355 = smul.u32 4, %s24
      %p356 = scmp.lt.s32.totalorder %s23, 1
      %s357 = scalar_select %p356, %s23, 1
      %p358 = scmp.lt.s32.totalorder %s355, 3
      %s359 = scalar_select %p358, %s355, 3
      %s360 = smul.addr %s357, 8
      %s361 = sadd.s32 %s359, %s360
      %s362 = smul.addr %s361, 8
      %s363 = scalar_lea.vmem %s5, %s362
      %s364 = smul.u32 4, %s24
      %p365 = scmp.lt.s32.totalorder %s23, 1
      %s366 = scalar_select %p365, %s23, 1
      %s367 = scalar_lea.vmem %s6, %s366
      %p368 = scmp.lt.s32.totalorder %s23, 1
      %s369 = scalar_select %p368, %s23, 1
      %s370 = scalar_lea.vmem %s7, %s369
      %p371 = scmp.eq.s32.totalorder %s24, 0
      // Predicated region
      $region41: #{cluster_block_forward.8} parent=39 // pred_check
        %p372 = pneg %p371
      $region42: #{cluster_block_forward.8} parent=39 // pred_check_branch
        %374 = sbr.rel (%p372) target = $region44
      $region43: #{cluster_block_forward.8} parent=39 // pred_region
        %375 = vst [vmem:[#allocation2] sm:$0xff] 0.0
        %376 = vst [vmem:[#allocation2 + $0x8] sm:$0xff] 0.0
        %377 = vst [vmem:[#allocation2 + $0x10] sm:$0xff] 0.0
        %378 = vst [vmem:[#allocation2 + $0x18] sm:$0xff] 0.0
        %379 = vst [vmem:[#allocation2 + $0x20] sm:$0xff] 0.0
        %380 = vst [vmem:[#allocation2 + $0x28] sm:$0xff] 0.0
        %381 = vst [vmem:[#allocation2 + $0x30] sm:$0xff] 0.0
        %382 = vst [vmem:[#allocation2 + $0x38] sm:$0xff] 0.0
        %383 = vst [vmem:[#allocation3] sm:$0xff] 0.0
        %384 = vst [vmem:[#allocation3 + $0x8] sm:$0xff] 0.0
        %385 = vst [vmem:[#allocation3 + $0x10] sm:$0xff] 0.0
        %386 = vst [vmem:[#allocation3 + $0x18] sm:$0xff] 0.0
        %387 = vst [vmem:[#allocation3 + $0x20] sm:$0xff] 0.0
        %388 = vst [vmem:[#allocation3 + $0x28] sm:$0xff] 0.0
        %389 = vst [vmem:[#allocation3 + $0x30] sm:$0xff] 0.0
        %390 = vst [vmem:[#allocation3 + $0x38] sm:$0xff] 0.0
      $region44: #{cluster_block_forward.8} parent=39 // pred_fallthru
        _
      %v391 = vld [vmem:[%s343] sm:$0xff]
      %v392 = vld [vmem:[%s343 + $0x8] sm:$0xff]
      %v393 = vld [vmem:[%s343 + $0x10] sm:$0xff]
      %v394 = vld [vmem:[%s343 + $0x18] sm:$0xff]
      %v395 = vld [vmem:[%s343 + $0x20] sm:$0xff]
      %v396 = vld [vmem:[%s343 + $0x28] sm:$0xff]
      %v397 = vld [vmem:[%s343 + $0x30] sm:$0xff]
      %v398 = vld [vmem:[%s343 + $0x38] sm:$0xff]
      %v399 = vld [vmem:[%s343 + $0x40] sm:$0xff]
      %v400 = vld [vmem:[%s343 + $0x48] sm:$0xff]
      %v401 = vld [vmem:[%s343 + $0x50] sm:$0xff]
      %v402 = vld [vmem:[%s343 + $0x58] sm:$0xff]
      %v403 = vld [vmem:[%s343 + $0x60] sm:$0xff]
      %v404 = vld [vmem:[%s343 + $0x68] sm:$0xff]
      %v405 = vld [vmem:[%s343 + $0x70] sm:$0xff]
      %v406 = vld [vmem:[%s343 + $0x78] sm:$0xff]
      %v407 = vld [vmem:[%s343 + $0x80] sm:$0xff]
      %v408 = vld [vmem:[%s343 + $0x88] sm:$0xff]
      %v409 = vld [vmem:[%s343 + $0x90] sm:$0xff]
      %v410 = vld [vmem:[%s343 + $0x98] sm:$0xff]
      %v411 = vld [vmem:[%s343 + $0xa0] sm:$0xff]
      %v412 = vld [vmem:[%s343 + $0xa8] sm:$0xff]
      %v413 = vld [vmem:[%s343 + $0xb0] sm:$0xff]
      %v414 = vld [vmem:[%s343 + $0xb8] sm:$0xff]
      %v415 = vld [vmem:[%s343 + $0xc0] sm:$0xff]
      %v416 = vld [vmem:[%s343 + $0xc8] sm:$0xff]
      %v417 = vld [vmem:[%s343 + $0xd0] sm:$0xff]
      %v418 = vld [vmem:[%s343 + $0xd8] sm:$0xff]
      %v419 = vld [vmem:[%s343 + $0xe0] sm:$0xff]
      %v420 = vld [vmem:[%s343 + $0xe8] sm:$0xff]
      %v421 = vld [vmem:[%s343 + $0xf0] sm:$0xff]
      %v422 = vld [vmem:[%s343 + $0xf8] sm:$0xff]
      %v423 = vld [vmem:[%s343 + $0x100] sm:$0xff]
      %v424 = vld [vmem:[%s343 + $0x108] sm:$0xff]
      %v425 = vld [vmem:[%s343 + $0x110] sm:$0xff]
      %v426 = vld [vmem:[%s343 + $0x118] sm:$0xff]
      %v427 = vld [vmem:[%s343 + $0x120] sm:$0xff]
      %v428 = vld [vmem:[%s343 + $0x128] sm:$0xff]
      %v429 = vld [vmem:[%s343 + $0x130] sm:$0xff]
      %v430 = vld [vmem:[%s343 + $0x138] sm:$0xff]
      %v431 = vld [vmem:[%s343 + $0x140] sm:$0xff]
      %v432 = vld [vmem:[%s343 + $0x148] sm:$0xff]
      %v433 = vld [vmem:[%s343 + $0x150] sm:$0xff]
      %v434 = vld [vmem:[%s343 + $0x158] sm:$0xff]
      %v435 = vld [vmem:[%s343 + $0x160] sm:$0xff]
      %v436 = vld [vmem:[%s343 + $0x168] sm:$0xff]
      %v437 = vld [vmem:[%s343 + $0x170] sm:$0xff]
      %v438 = vld [vmem:[%s343 + $0x178] sm:$0xff]
      %v439 = vld [vmem:[%s343 + $0x180] sm:$0xff]
      %v440 = vld [vmem:[%s343 + $0x188] sm:$0xff]
      %v441 = vld [vmem:[%s343 + $0x190] sm:$0xff]
      %v442 = vld [vmem:[%s343 + $0x198] sm:$0xff]
      %v443 = vld [vmem:[%s343 + $0x1a0] sm:$0xff]
      %v444 = vld [vmem:[%s343 + $0x1a8] sm:$0xff]
      %v445 = vld [vmem:[%s343 + $0x1b0] sm:$0xff]
      %v446 = vld [vmem:[%s343 + $0x1b8] sm:$0xff]
      %v447 = vld [vmem:[%s343 + $0x1c0] sm:$0xff]
      %v448 = vld [vmem:[%s343 + $0x1c8] sm:$0xff]
      %v449 = vld [vmem:[%s343 + $0x1d0] sm:$0xff]
      %v450 = vld [vmem:[%s343 + $0x1d8] sm:$0xff]
      %v451 = vld [vmem:[%s343 + $0x1e0] sm:$0xff]
      %v452 = vld [vmem:[%s343 + $0x1e8] sm:$0xff]
      %v453 = vld [vmem:[%s343 + $0x1f0] sm:$0xff]
      %v454 = vld [vmem:[%s343 + $0x1f8] sm:$0xff]
      %v455 = vld [vmem:[%s353] sm:$0xff]
      %v456 = vld [vmem:[%s353 + $0x8] sm:$0xff]
      %v457 = vld [vmem:[%s353 + $0x10] sm:$0xff]
      %v458 = vld [vmem:[%s353 + $0x18] sm:$0xff]
      %v459 = vld [vmem:[%s353 + $0x20] sm:$0xff]
      %v460 = vld [vmem:[%s353 + $0x28] sm:$0xff]
      %v461 = vld [vmem:[%s353 + $0x30] sm:$0xff]
      %v462 = vld [vmem:[%s353 + $0x38] sm:$0xff]
      %v463 = vld [vmem:[%s2] sm:$0xff]
      %v464 = vld [vmem:[%s2 + $0x8] sm:$0xff]
      %v465 = vld [vmem:[%s4] sm:$0xff]
      %v466 = vld [vmem:[%s4 + $0x8] sm:$0xff]
      %v467 = vld [vmem:[%s3] sm:$0xff]
      %v468 = vld [vmem:[%s3 + $0x8] sm:$0xff]
      %470 = vset.pattern.permute.xlu0 0
      %471 = vperm.xlu0 %470, %v467
      %v472 = vpop.permute.xlu0 %471
      %475 = vset.pattern.permute.xlu0 0
      %476 = vperm.xlu0 %475, %v468
      %v477 = vpop.permute.xlu0 %476
      %vm479 = vcmask 785408
      %v481 = vsel %vm479, %v463, 0
      %v484 = vsel %vm479, %v464, 0
      %v487 = vsel %vm479, %v391, 0
      %v490 = vsel %vm479, %v392, 0
      %v493 = vsel %vm479, %v393, 0
      %v496 = vsel %vm479, %v394, 0
      %v499 = vsel %vm479, %v395, 0
      %v502 = vsel %vm479, %v396, 0
      %v505 = vsel %vm479, %v397, 0
      %v508 = vsel %vm479, %v398, 0
      %v511 = vsel %vm479, %v399, 0
      %v514 = vsel %vm479, %v400, 0
      %v517 = vsel %vm479, %v401, 0
      %v520 = vsel %vm479, %v402, 0
      %v523 = vsel %vm479, %v403, 0
      %v526 = vsel %vm479, %v404, 0
      %v529 = vsel %vm479, %v405, 0
      %v532 = vsel %vm479, %v406, 0
      %v535 = vsel %vm479, %v407, 0
      %v538 = vsel %vm479, %v408, 0
      %v541 = vsel %vm479, %v409, 0
      %v544 = vsel %vm479, %v410, 0
      %v547 = vsel %vm479, %v411, 0
      %v550 = vsel %vm479, %v412, 0
      %v553 = vsel %vm479, %v413, 0
      %v556 = vsel %vm479, %v414, 0
      %v559 = vsel %vm479, %v415, 0
      %v562 = vsel %vm479, %v416, 0
      %v565 = vsel %vm479, %v417, 0
      %v568 = vsel %vm479, %v418, 0
      %v571 = vsel %vm479, %v419, 0
      %v574 = vsel %vm479, %v420, 0
      %v577 = vsel %vm479, %v421, 0
      %v580 = vsel %vm479, %v422, 0
      %v583 = vsel %vm479, %v423, 0
      %v586 = vsel %vm479, %v424, 0
      %v589 = vsel %vm479, %v425, 0
      %v592 = vsel %vm479, %v426, 0
      %v595 = vsel %vm479, %v427, 0
      %v598 = vsel %vm479, %v428, 0
      %v601 = vsel %vm479, %v429, 0
      %v604 = vsel %vm479, %v430, 0
      %v607 = vsel %vm479, %v431, 0
      %v610 = vsel %vm479, %v432, 0
      %v613 = vsel %vm479, %v433, 0
      %v616 = vsel %vm479, %v434, 0
      %v619 = vsel %vm479, %v435, 0
      %v622 = vsel %vm479, %v436, 0
      %v625 = vsel %vm479, %v437, 0
      %v628 = vsel %vm479, %v438, 0
      %v631 = vsel %vm479, %v439, 0
      %v634 = vsel %vm479, %v440, 0
      %v637 = vsel %vm479, %v441, 0
      %v640 = vsel %vm479, %v442, 0
      %v643 = vsel %vm479, %v443, 0
      %v646 = vsel %vm479, %v444, 0
      %v649 = vsel %vm479, %v445, 0
      %v652 = vsel %vm479, %v446, 0
      %v655 = vsel %vm479, %v447, 0
      %v658 = vsel %vm479, %v448, 0
      %v661 = vsel %vm479, %v449, 0
      %v664 = vsel %vm479, %v450, 0
      %v667 = vsel %vm479, %v451, 0
      %v670 = vsel %vm479, %v452, 0
      %v673 = vsel %vm479, %v453, 0
      %v676 = vsel %vm479, %v454, 0
      %678 = vmatprep.subr.mxu0 0.0
      %679 = vmatpush1.xpose.msra.mxu0 %v487
      %680 = vmatprep.subr.mxu0 0.0
      %681 = vmatpush1.xpose.msra.mxu0 %v490
      %682 = vmatprep.subr.mxu0 0.0
      %683 = vmatpush1.xpose.msra.mxu0 %v493
      %684 = vmatprep.subr.mxu0 0.0
      %685 = vmatpush1.xpose.msra.mxu0 %v496
      %686 = vmatprep.subr.mxu0 0.0
      %687 = vmatpush1.xpose.msra.mxu0 %v499
      %688 = vmatprep.subr.mxu0 0.0
      %689 = vmatpush1.xpose.msra.mxu0 %v502
      %690 = vmatprep.subr.mxu0 0.0
      %691 = vmatpush1.xpose.msra.mxu0 %v505
      %692 = vmatprep.subr.mxu0 0.0
      %693 = vmatpush1.xpose.msra.mxu0 %v508
      %694 = vmatprep.subr.mxu0 0.0
      %695 = vmatpush1.xpose.msra.mxu0 %v511
      %696 = vmatprep.subr.mxu0 0.0
      %697 = vmatpush1.xpose.msra.mxu0 %v514
      %698 = vmatprep.subr.mxu0 0.0
      %699 = vmatpush1.xpose.msra.mxu0 %v517
      %700 = vmatprep.subr.mxu0 0.0
      %701 = vmatpush1.xpose.msra.mxu0 %v520
      %702 = vmatprep.subr.mxu0 0.0
      %703 = vmatpush1.xpose.msra.mxu0 %v523
      %704 = vmatprep.subr.mxu0 0.0
      %705 = vmatpush1.xpose.msra.mxu0 %v526
      %706 = vmatprep.subr.mxu0 0.0
      %707 = vmatpush1.xpose.msra.mxu0 %v529
      %708 = vmatprep.subr.mxu0 0.0
      %709 = vmatpush1.xpose.msra.mxu0 %v532
      %710 = vmatprep.subr.mxu0 0.0
      %711 = vmatpush1.xpose.msra.mxu0 %v535
      %712 = vmatprep.subr.mxu0 0.0
      %713 = vmatpush1.xpose.msra.mxu0 %v538
      %714 = vmatprep.subr.mxu0 0.0
      %715 = vmatpush1.xpose.msra.mxu0 %v541
      %716 = vmatprep.subr.mxu0 0.0
      %717 = vmatpush1.xpose.msra.mxu0 %v544
      %718 = vmatprep.subr.mxu0 0.0
      %719 = vmatpush1.xpose.msra.mxu0 %v547
      %720 = vmatprep.subr.mxu0 0.0
      %721 = vmatpush1.xpose.msra.mxu0 %v550
      %722 = vmatprep.subr.mxu0 0.0
      %723 = vmatpush1.xpose.msra.mxu0 %v553
      %724 = vmatprep.subr.mxu0 0.0
      %725 = vmatpush1.xpose.msra.mxu0 %v556
      %726 = vmatprep.subr.mxu0 0.0
      %727 = vmatpush1.xpose.msra.mxu0 %v559
      %728 = vmatprep.subr.mxu0 0.0
      %729 = vmatpush1.xpose.msra.mxu0 %v562
      %730 = vmatprep.subr.mxu0 0.0
      %731 = vmatpush1.xpose.msra.mxu0 %v565
      %732 = vmatprep.subr.mxu0 0.0
      %733 = vmatpush1.xpose.msra.mxu0 %v568
      %734 = vmatprep.subr.mxu0 0.0
      %735 = vmatpush1.xpose.msra.mxu0 %v571
      %736 = vmatprep.subr.mxu0 0.0
      %737 = vmatpush1.xpose.msra.mxu0 %v574
      %738 = vmatprep.subr.mxu0 0.0
      %739 = vmatpush1.xpose.msra.mxu0 %v577
      %740 = vmatprep.subr.mxu0 0.0
      %741 = vmatpush1.xpose.msra.mxu0 %v580
      %742 = vmatprep.mubr.f32.mxu0 0.0
      %743 = vmatmul.mubr.f32.gmra.mrb[0].mxu0 %v481
      %v744 = vpop.f32.mrb[0].mxu0
      %v745 = vadd.f32 %v472, %v744
      %v746 = vpop.f32.mrb[0].mxu0
      %v747 = vadd.f32 %v472, %v746
      %748 = vmatprep.mubr.f32.mxu0 0.0
      %749 = vmatmul.mubr.f32.gmra.mrb[0].mxu0 %v484
      %v750 = vpop.f32.mrb[0].mxu0
      %v751 = vadd.f32 %v477, %v750
      %v752 = vpop.f32.mrb[0].mxu0
      %v753 = vadd.f32 %v477, %v752
      %754 = vdwg.mxu0
      %755 = vmatprep.subr.mxu0 0.0
      %756 = vmatpush1.xpose.msra.mxu0 %v583
      %757 = vmatprep.subr.mxu0 0.0
      %758 = vmatpush1.xpose.msra.mxu0 %v586
      %759 = vmatprep.subr.mxu0 0.0
      %760 = vmatpush1.xpose.msra.mxu0 %v589
      %761 = vmatprep.subr.mxu0 0.0
      %762 = vmatpush1.xpose.msra.mxu0 %v592
      %763 = vmatprep.subr.mxu0 0.0
      %764 = vmatpush1.xpose.msra.mxu0 %v595
      %765 = vmatprep.subr.mxu0 0.0
      %766 = vmatpush1.xpose.msra.mxu0 %v598
      %767 = vmatprep.subr.mxu0 0.0
      %768 = vmatpush1.xpose.msra.mxu0 %v601
      %769 = vmatprep.subr.mxu0 0.0
      %770 = vmatpush1.xpose.msra.mxu0 %v604
      %771 = vmatprep.subr.mxu0 0.0
      %772 = vmatpush1.xpose.msra.mxu0 %v607
      %773 = vmatprep.subr.mxu0 0.0
      %774 = vmatpush1.xpose.msra.mxu0 %v610
      %775 = vmatprep.subr.mxu0 0.0
      %776 = vmatpush1.xpose.msra.mxu0 %v613
      %777 = vmatprep.subr.mxu0 0.0
      %778 = vmatpush1.xpose.msra.mxu0 %v616
      %779 = vmatprep.subr.mxu0 0.0
      %780 = vmatpush1.xpose.msra.mxu0 %v619
      %781 = vmatprep.subr.mxu0 0.0
      %782 = vmatpush1.xpose.msra.mxu0 %v622
      %783 = vmatprep.subr.mxu0 0.0
      %784 = vmatpush1.xpose.msra.mxu0 %v625
      %785 = vmatprep.subr.mxu0 0.0
      %786 = vmatpush1.xpose.msra.mxu0 %v628
      %787 = vmatprep.subr.mxu0 0.0
      %788 = vmatpush1.xpose.msra.mxu0 %v631
      %789 = vmatprep.subr.mxu0 0.0
      %790 = vmatpush1.xpose.msra.mxu0 %v634
      %791 = vmatprep.subr.mxu0 0.0
      %792 = vmatpush1.xpose.msra.mxu0 %v637
      %793 = vmatprep.subr.mxu0 0.0
      %794 = vmatpush1.xpose.msra.mxu0 %v640
      %795 = vmatprep.subr.mxu0 0.0
      %796 = vmatpush1.xpose.msra.mxu0 %v643
      %797 = vmatprep.subr.mxu0 0.0
      %798 = vmatpush1.xpose.msra.mxu0 %v646
      %799 = vmatprep.subr.mxu0 0.0
      %800 = vmatpush1.xpose.msra.mxu0 %v649
      %801 = vmatprep.subr.mxu0 0.0
      %802 = vmatpush1.xpose.msra.mxu0 %v652
      %803 = vmatprep.subr.mxu0 0.0
      %804 = vmatpush1.xpose.msra.mxu0 %v655
      %805 = vmatprep.subr.mxu0 0.0
      %806 = vmatpush1.xpose.msra.mxu0 %v658
      %807 = vmatprep.subr.mxu0 0.0
      %808 = vmatpush1.xpose.msra.mxu0 %v661
      %809 = vmatprep.subr.mxu0 0.0
      %810 = vmatpush1.xpose.msra.mxu0 %v664
      %811 = vmatprep.subr.mxu0 0.0
      %812 = vmatpush1.xpose.msra.mxu0 %v667
      %813 = vmatprep.subr.mxu0 0.0
      %814 = vmatpush1.xpose.msra.mxu0 %v670
      %815 = vmatprep.subr.mxu0 0.0
      %816 = vmatpush1.xpose.msra.mxu0 %v673
      %817 = vmatprep.subr.mxu0 0.0
      %818 = vmatpush1.xpose.msra.mxu0 %v676
      %819 = vmatprep.mubr.f32.mxu0 0.0
      %820 = vmatmul.mubr.f32.gmra.mrb[0].mxu0 %v481
      %v821 = vpop.f32.mrb[0].mxu0
      %v822 = vadd.f32 %v472, %v821
      %v823 = vpop.f32.mrb[0].mxu0
      %v824 = vadd.f32 %v472, %v823
      %825 = vmatprep.mubr.f32.mxu0 0.0
      %826 = vmatmul.mubr.f32.gmra.mrb[0].mxu0 %v484
      %v827 = vpop.f32.mrb[0].mxu0
      %v828 = vadd.f32 %v477, %v827
      %v829 = vpop.f32.mrb[0].mxu0
      %v830 = vadd.f32 %v477, %v829
      %831 = vdwg.mxu0
      %833 = vset.pattern.permute.xlu0 0
      %834 = vperm.xlu0 %833, %v465
      %v835 = vpop.permute.xlu0 %834
      %838 = vset.pattern.permute.xlu0 0
      %839 = vperm.xlu0 %838, %v466
      %v840 = vpop.permute.xlu0 %839
      %v842 = vmul.f32 %v835, %v745
      %v843 = vmul.f32 %v835, %v747
      %v844 = vmul.f32 %v835, %v822
      %v845 = vmul.f32 %v835, %v824
      %v846 = vmul.f32 %v840, %v751
      %v847 = vmul.f32 %v840, %v753
      %v848 = vmul.f32 %v840, %v828
      %v849 = vmul.f32 %v840, %v830
      %v850 = vadd.f32 %v455, %v842
      %v851 = vadd.f32 %v456, %v843
      %v852 = vadd.f32 %v457, %v844
      %v853 = vadd.f32 %v458, %v845
      %v854 = vadd.f32 %v459, %v846
      %v855 = vadd.f32 %v460, %v847
      %v856 = vadd.f32 %v461, %v848
      %v857 = vadd.f32 %v462, %v849
      %858 = vst [vmem:[%s363] sm:$0xff] %v850
      %859 = vst [vmem:[%s363 + $0x8] sm:$0xff] %v851
      %860 = vst [vmem:[%s363 + $0x10] sm:$0xff] %v852
      %861 = vst [vmem:[%s363 + $0x18] sm:$0xff] %v853
      %862 = vst [vmem:[%s363 + $0x20] sm:$0xff] %v854
      %863 = vst [vmem:[%s363 + $0x28] sm:$0xff] %v855
      %864 = vst [vmem:[%s363 + $0x30] sm:$0xff] %v856
      %865 = vst [vmem:[%s363 + $0x38] sm:$0xff] %v857
      %v866 = vld [vmem:[#allocation2] sm:$0xff]
      %v867 = vld [vmem:[#allocation2 + $0x8] sm:$0xff]
      %v868 = vld [vmem:[#allocation2 + $0x10] sm:$0xff]
      %v869 = vld [vmem:[#allocation2 + $0x18] sm:$0xff]
      %v870 = vld [vmem:[#allocation2 + $0x20] sm:$0xff]
      %v871 = vld [vmem:[#allocation2 + $0x28] sm:$0xff]
      %v872 = vld [vmem:[#allocation2 + $0x30] sm:$0xff]
      %v873 = vld [vmem:[#allocation2 + $0x38] sm:$0xff]
      %v874 = vadd.f32 %v866, %v850
      %v875 = vadd.f32 %v867, %v851
      %v876 = vadd.f32 %v868, %v852
      %v877 = vadd.f32 %v869, %v853
      %v878 = vadd.f32 %v870, %v854
      %v879 = vadd.f32 %v871, %v855
      %v880 = vadd.f32 %v872, %v856
      %v881 = vadd.f32 %v873, %v857
      %882 = vst [vmem:[#allocation2] sm:$0xff] %v874
      %883 = vst [vmem:[#allocation2 + $0x8] sm:$0xff] %v875
      %884 = vst [vmem:[#allocation2 + $0x10] sm:$0xff] %v876
      %885 = vst [vmem:[#allocation2 + $0x18] sm:$0xff] %v877
      %886 = vst [vmem:[#allocation2 + $0x20] sm:$0xff] %v878
      %887 = vst [vmem:[#allocation2 + $0x28] sm:$0xff] %v879
      %888 = vst [vmem:[#allocation2 + $0x30] sm:$0xff] %v880
      %889 = vst [vmem:[#allocation2 + $0x38] sm:$0xff] %v881
      %v890 = vld [vmem:[#allocation3] sm:$0xff]
      %v891 = vld [vmem:[#allocation3 + $0x8] sm:$0xff]
      %v892 = vld [vmem:[#allocation3 + $0x10] sm:$0xff]
      %v893 = vld [vmem:[#allocation3 + $0x18] sm:$0xff]
      %v894 = vld [vmem:[#allocation3 + $0x20] sm:$0xff]
      %v895 = vld [vmem:[#allocation3 + $0x28] sm:$0xff]
      %v896 = vld [vmem:[#allocation3 + $0x30] sm:$0xff]
      %v897 = vld [vmem:[#allocation3 + $0x38] sm:$0xff]
      %v898 = vmul.f32 %v850, %v850
      %v899 = vmul.f32 %v851, %v851
      %v900 = vmul.f32 %v852, %v852
      %v901 = vmul.f32 %v853, %v853
      %v902 = vmul.f32 %v854, %v854
      %v903 = vmul.f32 %v855, %v855
      %v904 = vmul.f32 %v856, %v856
      %v905 = vmul.f32 %v857, %v857
      %v906 = vadd.f32 %v890, %v898
      %v907 = vadd.f32 %v891, %v899
      %v908 = vadd.f32 %v892, %v900
      %v909 = vadd.f32 %v893, %v901
      %v910 = vadd.f32 %v894, %v902
      %v911 = vadd.f32 %v895, %v903
      %v912 = vadd.f32 %v896, %v904
      %v913 = vadd.f32 %v897, %v905
      %914 = vst [vmem:[#allocation3] sm:$0xff] %v906
      %915 = vst [vmem:[#allocation3 + $0x8] sm:$0xff] %v907
      %916 = vst [vmem:[#allocation3 + $0x10] sm:$0xff] %v908
      %917 = vst [vmem:[#allocation3 + $0x18] sm:$0xff] %v909
      %918 = vst [vmem:[#allocation3 + $0x20] sm:$0xff] %v910
      %919 = vst [vmem:[#allocation3 + $0x28] sm:$0xff] %v911
      %920 = vst [vmem:[#allocation3 + $0x30] sm:$0xff] %v912
      %921 = vst [vmem:[#allocation3 + $0x38] sm:$0xff] %v913
      // Predicated region
      $region45: #{cluster_block_forward.8} parent=39 // pred_check
        %p922 = pneg %p371
      $region46: #{cluster_block_forward.8} parent=39 // pred_check_branch
        %924 = sbr.rel (%p922) target = $region48
      $region47: #{cluster_block_forward.8} parent=39 // pred_region
        %v925 = vld [vmem:[#allocation2] sm:$0xff]
        %v926 = vld [vmem:[#allocation2 + $0x8] sm:$0xff]
        %v927 = vld [vmem:[#allocation2 + $0x10] sm:$0xff]
        %v928 = vld [vmem:[#allocation2 + $0x18] sm:$0xff]
        %v929 = vld [vmem:[#allocation2 + $0x20] sm:$0xff]
        %v930 = vld [vmem:[#allocation2 + $0x28] sm:$0xff]
        %v931 = vld [vmem:[#allocation2 + $0x30] sm:$0xff]
        %v932 = vld [vmem:[#allocation2 + $0x38] sm:$0xff]
        %v933 = vadd.f32 %v925, %v926
        %v934 = vadd.f32 %v933, %v927
        %v935 = vadd.f32 %v934, %v928
        %936 = vadd.xlane.f32.xlu0 %v935
        %v937 = vpop.xlane.xlu0 %936
        %v938 = vadd.f32 %v929, %v930
        %v939 = vadd.f32 %v938, %v931
        %v940 = vadd.f32 %v939, %v932
        %941 = vadd.xlane.f32.xlu0 %v940
        %v942 = vpop.xlane.xlu0 %941
        %v943 = vadd.f32 %v937, %v942
        %v944 = vrot.slane %v943, 4
        %v945 = vadd.f32 %v943, %v944
        %v946 = vrot.slane %v945, 2
        %v947 = vadd.f32 %v945, %v946
        %v948 = vrot.slane %v947, 1
        %v949 = vadd.f32 %v947, %v948
        %v950 = vld [vmem:[#allocation3] sm:$0xff]
        %v951 = vld [vmem:[#allocation3 + $0x8] sm:$0xff]
        %v952 = vld [vmem:[#allocation3 + $0x10] sm:$0xff]
        %v953 = vld [vmem:[#allocation3 + $0x18] sm:$0xff]
        %v954 = vld [vmem:[#allocation3 + $0x20] sm:$0xff]
        %v955 = vld [vmem:[#allocation3 + $0x28] sm:$0xff]
        %v956 = vld [vmem:[#allocation3 + $0x30] sm:$0xff]
        %v957 = vld [vmem:[#allocation3 + $0x38] sm:$0xff]
        %v958 = vadd.f32 %v950, %v951
        %v959 = vadd.f32 %v958, %v952
        %v960 = vadd.f32 %v959, %v953
        %961 = vadd.xlane.f32.xlu0 %v960
        %v962 = vpop.xlane.xlu0 %961
        %v963 = vadd.f32 %v954, %v955
        %v964 = vadd.f32 %v963, %v956
        %v965 = vadd.f32 %v964, %v957
        %966 = vadd.xlane.f32.xlu0 %v965
        %v967 = vpop.xlane.xlu0 %966
        %v968 = vadd.f32 %v962, %v967
        %v969 = vrot.slane %v968, 4
        %v970 = vadd.f32 %v968, %v969
        %v971 = vrot.slane %v970, 2
        %v972 = vadd.f32 %v970, %v971
        %v973 = vrot.slane %v972, 1
        %v974 = vadd.f32 %v972, %v973
        %v975 = vmul.f32 %v949, 0.00012207031
        %v976 = vmul.f32 %v974, 0.00012207031
        %v977 = vmul.f32 %v975, %v975
        %v978 = vsub.f32 %v976, %v977
        %vm979 = vcmask 0
        %980 = vst.msk [vmem:[%s367] sm:$0x1] %vm979, %v975
        %v981 = vadd.f32 %v978, 1e-05
        %v982 = vrsqrt.pop %v981
        %983 = vst.msk [vmem:[%s370] sm:$0x1] %vm979, %v982
      $region48: #{cluster_block_forward.8} parent=39 // pred_fallthru
        _
      %s984 = smul.u32 4, %s24
      %p985 = scmp.lt.s32.totalorder %s23, 1
      %s986 = scalar_select %p985, %s23, 1
      %p987 = scmp.lt.s32.totalorder %s984, 3
      %s988 = scalar_select %p987, %s984, 3
      %s989 = smul.addr %s986, 8
      %s990 = sadd.s32 %s988, %s989
      %s991 = smul.addr %s990, 8
      %s992 = scalar_lea.vmem %s5, %s991
      %p993 = scmp.lt.s32.totalorder %s23, 1
      %s994 = scalar_select %p993, %s23, 1
      %s995 = scalar_lea.vmem %s6, %s994
      %p996 = scmp.lt.s32.totalorder %s23, 1
      %s997 = scalar_select %p996, %s23, 1
      %s998 = scalar_lea.vmem %s7, %s997
      // Predicated region
      $region49: #{cluster_block_forward.8} parent=39 // pred_check
        %p999 = pneg %p170
      $region50: #{cluster_block_forward.8} parent=39 // pred_check_branch
        %1001 = sbr.rel (%p999) target = $region52
      $region51: #{cluster_block_forward.8} parent=39 // pred_region
        %s1002 = smul.u32 4, %s24
      $region52: #{cluster_block_forward.8} parent=39 // pred_fallthru
        _
      // Predicated region
      $region53: #{cluster_block_forward.8} parent=39 // pred_check
        %p1003 = pneg %p196
      $region54: #{cluster_block_forward.8} parent=39 // pred_check_branch
        %1005 = sbr.rel (%p1003) target = $region56
      $region55: #{cluster_block_forward.8} parent=39 // pred_region
        _
      $region56: #{cluster_block_forward.8} parent=39 // pred_fallthru
        _
      // Predicated region
      $region57: #{cluster_block_forward.8} parent=39 // pred_check
        %p1006 = pneg %p222
      $region58: #{cluster_block_forward.8} parent=39 // pred_check_branch
        %1008 = sbr.rel (%p1006) target = $region60
      $region59: #{cluster_block_forward.8} parent=39 // pred_region
        _
      $region60: #{cluster_block_forward.8} parent=39 // pred_fallthru
        _
    $region40: #{cluster_block_forward.8} parent=5 // pred_fallthru
      _
    %p1009 = scmp.le.s32.totalorder 2, %s14
    // Predicated region
    $region61: #{cluster_block_forward.8} parent=5 // pred_check
      %p1010 = pneg %p1009
    $region62: #{cluster_block_forward.8} parent=5 // pred_check_branch
      %1012 = sbr.rel (%p1010) target = $region64
    $region63: #{cluster_block_forward.8} parent=5 // pred_region
      %s1013 = ssub.s32 %s14, 2
      // Predicated region
      $region65: #{cluster_block_forward.8} parent=63 // pred_check
        %p1014 = pneg %p176
      $region66: #{cluster_block_forward.8} parent=63 // pred_check_branch
        %1016 = sbr.rel (%p1014) target = $region68
      $region67: #{cluster_block_forward.8} parent=63 // pred_region
        %s1017 = smul.u32 4, %s26
        %p1018 = scmp.lt.s32.totalorder %s25, 1
        %s1019 = scalar_select %p1018, %s25, 1
        %p1020 = scmp.lt.s32.totalorder %s1017, 3
        %s1021 = scalar_select %p1020, %s1017, 3
        %s1022 = smul.addr %s1019, 8
        %s1023 = sadd.s32 %s1021, %s1022
        %s1024 = smul.addr %s1023, 8
        %s1025 = scalar_lea.vmem %s5, %s1024
      $region68: #{cluster_block_forward.8} parent=63 // pred_fallthru
        _
      // Predicated region
      $region69: #{cluster_block_forward.8} parent=63 // pred_check
        %p1026 = pneg %p202
      $region70: #{cluster_block_forward.8} parent=63 // pred_check_branch
        %1028 = sbr.rel (%p1026) target = $region72
      $region71: #{cluster_block_forward.8} parent=63 // pred_region
        %p1029 = scmp.lt.s32.totalorder %s25, 1
        %s1030 = scalar_select %p1029, %s25, 1
        %s1031 = scalar_lea.vmem %s6, %s1030
      $region72: #{cluster_block_forward.8} parent=63 // pred_fallthru
        _
      // Predicated region
      $region73: #{cluster_block_forward.8} parent=63 // pred_check
        %p1032 = pneg %p228
      $region74: #{cluster_block_forward.8} parent=63 // pred_check_branch
        %1034 = sbr.rel (%p1032) target = $region76
      $region75: #{cluster_block_forward.8} parent=63 // pred_region
        %p1035 = scmp.lt.s32.totalorder %s25, 1
        %s1036 = scalar_select %p1035, %s25, 1
        %s1037 = scalar_lea.vmem %s7, %s1036
      $region76: #{cluster_block_forward.8} parent=63 // pred_fallthru
        _
    $region64: #{cluster_block_forward.8} parent=5 // pred_fallthru
      _
  $region6: #{cluster_block_forward.8} parent=0 // loop_footer
    %s18 = sadd.s32 1, %s14
  $region7: #{cluster_block_forward.8} parent=0 // loop_footer_branch
    %13 = sbr.rel target = $region3
  $region8: #{cluster_block_forward.8} parent=0 // loop_exit
    _

// kernel: cluster_block_forward.9
$region0: #{cluster_block_forward.9}
  #allocation0 [shape = 'u32[]', space=smem, size = 0x4, offset = 0x4, fixed_abs, tag = 'smem constant byte address 0x4 - core index']
  #allocation1 [shape = 'u32[144,128]{1,0:T(1,128)}', space=vmem, size = 0x12000, scoped, tag = 'internal scratch']
  %s0 = inlined_call_operand.vmem [shape: f32[2,16,512], index: 0, kind: input, shape index: {}]
  %s1 = inlined_call_operand.vmem [shape: f32[2,1,1], index: 1, kind: input, shape index: {}]
  %s2 = inlined_call_operand.vmem [shape: f32[2,1,1], index: 2, kind: input, shape index: {}]
  %s3 = inlined_call_operand.vmem [shape: f32[16,1], index: 3, kind: input, shape index: {}]
  %s4 = inlined_call_operand.vmem [shape: f32[16,1], index: 4, kind: input, shape index: {}]
  %s5 = inlined_call_operand.vmem [shape: f32[64,16], index: 5, kind: input, shape index: {}]
  %s6 = inlined_call_operand.vmem [shape: f32[64,1], index: 6, kind: input, shape index: {}]
  %s7 = inlined_call_operand.vmem [shape: f32[16,64], index: 7, kind: input, shape index: {}]
  %s8 = inlined_call_operand.vmem [shape: f32[16,1], index: 8, kind: input, shape index: {}]
  %s9 = inlined_call_operand.vmem [shape: f32[16,1], index: 9, kind: input, shape index: {}]
  %s10 = inlined_call_operand.vmem [shape: f32[2,16,512], index: 10, kind: output, shape index: {}]
  %s11 = sld [smem:[#allocation0]]
  $region73: #{cluster_block_forward.9} parent=0
    _
  %s13 = ssub.s32 1, %s11
  %s14 = scalar_select 0, %s13, %s11
  loop: start=0, step=1, limit=4
  $region2: #{cluster_block_forward.9} parent=0 // loop_pre_header
    _
  $region3: #{cluster_block_forward.9} parent=0 // loop_header
    %s16 = sphi 0, %s20
    %p17 = scmp.ge.s32.totalorder %s16, 4
    %s23 = sphi 0, %s35
    %s24 = sphi 0, %s31
    %s25 = sphi 0, %s23
    %s26 = sphi 0, %s24
    %s27 = sphi 0, %s25
    %s28 = sphi 0, %s26
    %s40 = sphi 0, %s42
    %s43 = sphi 0, %s40
    %s44 = sphi 0, %s43
    %s60 = sphi 0, %s44
    %s66 = sphi 0, %s68
    %s69 = sphi 0, %s66
    %s70 = sphi 0, %s69
    %s86 = sphi 0, %s70
    %s92 = sphi 0, %s94
    %s95 = sphi 0, %s92
    %s96 = sphi 0, %s95
    %s112 = sphi 0, %s96
    %s116 = sphi 0, %s116
    %s118 = sphi 0, %s116
    %s119 = sphi 0, %s118
    %s133 = sphi 0, %s119
    %s137 = sphi 0, %s137
    %s139 = sphi 0, %s137
    %s140 = sphi 0, %s139
    %s154 = sphi 0, %s140
    %s158 = sphi 0, %s158
    %s160 = sphi 0, %s158
    %s161 = sphi 0, %s160
    %s175 = sphi 0, %s161
    %s179 = sphi 0, %s179
    %s181 = sphi 0, %s179
    %s182 = sphi 0, %s181
    %s196 = sphi 0, %s182
    %s200 = sphi 0, %s200
    %s202 = sphi 0, %s200
    %s203 = sphi 0, %s202
    %s217 = sphi 0, %s203
    %s221 = sphi 0, %s221
    %s223 = sphi 0, %s221
    %s224 = sphi 0, %s223
    %s238 = sphi 0, %s224
    %s242 = sphi 0, %s242
    %s244 = sphi 0, %s242
    %s245 = sphi 0, %s244
    %s259 = sphi 0, %s245
    %s267 = sphi 0, %s269
    %s270 = sphi 0, %s267
    %s271 = sphi 0, %s270
    %s287 = sphi 0, %s271
  $region4: #{cluster_block_forward.9} parent=0 // loop_header_branch
    %19 = sbr.rel (%p17) target = $region8
  $region5: #{cluster_block_forward.9} parent=0 // loop_body
    %s21 = ssub.s32 %s16, 1
    %s22 = ssub.s32 %s16, 2
    %s29 = sadd.s32 1, %s24
    %p30 = scmp.ge.s32.totalorder %s29, 1
    %s31 = scalar_select %p30, 0, %s29
    %s32 = sadd.s32 1, %s23
    %s33 = scalar_select %p30, %s32, %s23
    %p34 = scmp.ge.s32.totalorder %s33, 2
    %s35 = scalar_select %p34, 0, %s33
    %s36 = ssub.s32 %s23, %s35
    %s37 = ssub.s32 %s24, %s31
    %s38 = sor.u32 %s36, %s37
    %p39 = scmp.eq.s32.totalorder %s38, 0
    %s41 = sadd.s32 %s40, 1
    %s42 = scalar_select %p39, %s40, %s41
    %p45 = pneg %p39
    %p46 = scmp.eq.s32.totalorder %s16, 1
    %p47 = por %p45, %p46
    %p48 = scmp.ne.s32.totalorder %s40, %s43
    %p49 = scmp.eq.s32.totalorder %s16, 0
    %p50 = por %p48, %p49
    %p51 = scmp.ne.s32.totalorder %s40, %s43
    %p52 = scmp.eq.s32.totalorder %s21, 1
    %p53 = por %p51, %p52
    %p54 = scmp.ne.s32.totalorder %s43, %s44
    %p55 = scmp.eq.s32.totalorder %s21, 0
    %p56 = por %p54, %p55
    %p57 = scmp.ne.s32.totalorder %s43, %s44
    %p58 = scmp.eq.s32.totalorder %s22, 1
    %p59 = por %p57, %p58
    %p61 = scmp.ne.s32.totalorder %s44, %s60
    %p62 = scmp.eq.s32.totalorder %s22, 0
    %p63 = por %p61, %p62
    %s64 = ssub.s32 %s23, %s35
    %p65 = scmp.eq.s32.totalorder %s64, 0
    %s67 = sadd.s32 %s66, 1
    %s68 = scalar_select %p65, %s66, %s67
    %p71 = pneg %p65
    %p72 = scmp.eq.s32.totalorder %s16, 1
    %p73 = por %p71, %p72
    %p74 = scmp.ne.s32.totalorder %s66, %s69
    %p75 = scmp.eq.s32.totalorder %s16, 0
    %p76 = por %p74, %p75
    %p77 = scmp.ne.s32.totalorder %s66, %s69
    %p78 = scmp.eq.s32.totalorder %s21, 1
    %p79 = por %p77, %p78
    %p80 = scmp.ne.s32.totalorder %s69, %s70
    %p81 = scmp.eq.s32.totalorder %s21, 0
    %p82 = por %p80, %p81
    %p83 = scmp.ne.s32.totalorder %s69, %s70
    %p84 = scmp.eq.s32.totalorder %s22, 1
    %p85 = por %p83, %p84
    %p87 = scmp.ne.s32.totalorder %s70, %s86
    %p88 = scmp.eq.s32.totalorder %s22, 0
    %p89 = por %p87, %p88
    %s90 = ssub.s32 %s23, %s35
    %p91 = scmp.eq.s32.totalorder %s90, 0
    %s93 = sadd.s32 %s92, 1
    %s94 = scalar_select %p91, %s92, %s93
    %p97 = pneg %p91
    %p98 = scmp.eq.s32.totalorder %s16, 1
    %p99 = por %p97, %p98
    %p100 = scmp.ne.s32.totalorder %s92, %s95
    %p101 = scmp.eq.s32.totalorder %s16, 0
    %p102 = por %p100, %p101
    %p103 = scmp.ne.s32.totalorder %s92, %s95
    %p104 = scmp.eq.s32.totalorder %s21, 1
    %p105 = por %p103, %p104
    %p106 = scmp.ne.s32.totalorder %s95, %s96
    %p107 = scmp.eq.s32.totalorder %s21, 0
    %p108 = por %p106, %p107
    %p109 = scmp.ne.s32.totalorder %s95, %s96
    %p110 = scmp.eq.s32.totalorder %s22, 1
    %p111 = por %p109, %p110
    %p113 = scmp.ne.s32.totalorder %s96, %s112
    %p114 = scmp.eq.s32.totalorder %s22, 0
    %p115 = por %p113, %p114
    %s117 = sadd.s32 %s116, 1
    %p120 = scmp.eq.s32.totalorder %s16, 1
    %p121 = scmp.ne.s32.totalorder %s116, %s118
    %p122 = scmp.eq.s32.totalorder %s16, 0
    %p123 = por %p121, %p122
    %p124 = scmp.ne.s32.totalorder %s116, %s118
    %p125 = scmp.eq.s32.totalorder %s21, 1
    %p126 = por %p124, %p125
    %p127 = scmp.ne.s32.totalorder %s118, %s119
    %p128 = scmp.eq.s32.totalorder %s21, 0
    %p129 = por %p127, %p128
    %p130 = scmp.ne.s32.totalorder %s118, %s119
    %p131 = scmp.eq.s32.totalorder %s22, 1
    %p132 = por %p130, %p131
    %p134 = scmp.ne.s32.totalorder %s119, %s133
    %p135 = scmp.eq.s32.totalorder %s22, 0
    %p136 = por %p134, %p135
    %s138 = sadd.s32 %s137, 1
    %p141 = scmp.eq.s32.totalorder %s16, 1
    %p142 = scmp.ne.s32.totalorder %s137, %s139
    %p143 = scmp.eq.s32.totalorder %s16, 0
    %p144 = por %p142, %p143
    %p145 = scmp.ne.s32.totalorder %s137, %s139
    %p146 = scmp.eq.s32.totalorder %s21, 1
    %p147 = por %p145, %p146
    %p148 = scmp.ne.s32.totalorder %s139, %s140
    %p149 = scmp.eq.s32.totalorder %s21, 0
    %p150 = por %p148, %p149
    %p151 = scmp.ne.s32.totalorder %s139, %s140
    %p152 = scmp.eq.s32.totalorder %s22, 1
    %p153 = por %p151, %p152
    %p155 = scmp.ne.s32.totalorder %s140, %s154
    %p156 = scmp.eq.s32.totalorder %s22, 0
    %p157 = por %p155, %p156
    %s159 = sadd.s32 %s158, 1
    %p162 = scmp.eq.s32.totalorder %s16, 1
    %p163 = scmp.ne.s32.totalorder %s158, %s160
    %p164 = scmp.eq.s32.totalorder %s16, 0
    %p165 = por %p163, %p164
    %p166 = scmp.ne.s32.totalorder %s158, %s160
    %p167 = scmp.eq.s32.totalorder %s21, 1
    %p168 = por %p166, %p167
    %p169 = scmp.ne.s32.totalorder %s160, %s161
    %p170 = scmp.eq.s32.totalorder %s21, 0
    %p171 = por %p169, %p170
    %p172 = scmp.ne.s32.totalorder %s160, %s161
    %p173 = scmp.eq.s32.totalorder %s22, 1
    %p174 = por %p172, %p173
    %p176 = scmp.ne.s32.totalorder %s161, %s175
    %p177 = scmp.eq.s32.totalorder %s22, 0
    %p178 = por %p176, %p177
    %s180 = sadd.s32 %s179, 1
    %p183 = scmp.eq.s32.totalorder %s16, 1
    %p184 = scmp.ne.s32.totalorder %s179, %s181
    %p185 = scmp.eq.s32.totalorder %s16, 0
    %p186 = por %p184, %p185
    %p187 = scmp.ne.s32.totalorder %s179, %s181
    %p188 = scmp.eq.s32.totalorder %s21, 1
    %p189 = por %p187, %p188
    %p190 = scmp.ne.s32.totalorder %s181, %s182
    %p191 = scmp.eq.s32.totalorder %s21, 0
    %p192 = por %p190, %p191
    %p193 = scmp.ne.s32.totalorder %s181, %s182
    %p194 = scmp.eq.s32.totalorder %s22, 1
    %p195 = por %p193, %p194
    %p197 = scmp.ne.s32.totalorder %s182, %s196
    %p198 = scmp.eq.s32.totalorder %s22, 0
    %p199 = por %p197, %p198
    %s201 = sadd.s32 %s200, 1
    %p204 = scmp.eq.s32.totalorder %s16, 1
    %p205 = scmp.ne.s32.totalorder %s200, %s202
    %p206 = scmp.eq.s32.totalorder %s16, 0
    %p207 = por %p205, %p206
    %p208 = scmp.ne.s32.totalorder %s200, %s202
    %p209 = scmp.eq.s32.totalorder %s21, 1
    %p210 = por %p208, %p209
    %p211 = scmp.ne.s32.totalorder %s202, %s203
    %p212 = scmp.eq.s32.totalorder %s21, 0
    %p213 = por %p211, %p212
    %p214 = scmp.ne.s32.totalorder %s202, %s203
    %p215 = scmp.eq.s32.totalorder %s22, 1
    %p216 = por %p214, %p215
    %p218 = scmp.ne.s32.totalorder %s203, %s217
    %p219 = scmp.eq.s32.totalorder %s22, 0
    %p220 = por %p218, %p219
    %s222 = sadd.s32 %s221, 1
    %p225 = scmp.eq.s32.totalorder %s16, 1
    %p226 = scmp.ne.s32.totalorder %s221, %s223
    %p227 = scmp.eq.s32.totalorder %s16, 0
    %p228 = por %p226, %p227
    %p229 = scmp.ne.s32.totalorder %s221, %s223
    %p230 = scmp.eq.s32.totalorder %s21, 1
    %p231 = por %p229, %p230
    %p232 = scmp.ne.s32.totalorder %s223, %s224
    %p233 = scmp.eq.s32.totalorder %s21, 0
    %p234 = por %p232, %p233
    %p235 = scmp.ne.s32.totalorder %s223, %s224
    %p236 = scmp.eq.s32.totalorder %s22, 1
    %p237 = por %p235, %p236
    %p239 = scmp.ne.s32.totalorder %s224, %s238
    %p240 = scmp.eq.s32.totalorder %s22, 0
    %p241 = por %p239, %p240
    %s243 = sadd.s32 %s242, 1
    %p246 = scmp.eq.s32.totalorder %s16, 1
    %p247 = scmp.ne.s32.totalorder %s242, %s244
    %p248 = scmp.eq.s32.totalorder %s16, 0
    %p249 = por %p247, %p248
    %p250 = scmp.ne.s32.totalorder %s242, %s244
    %p251 = scmp.eq.s32.totalorder %s21, 1
    %p252 = por %p250, %p251
    %p253 = scmp.ne.s32.totalorder %s244, %s245
    %p254 = scmp.eq.s32.totalorder %s21, 0
    %p255 = por %p253, %p254
    %p256 = scmp.ne.s32.totalorder %s244, %s245
    %p257 = scmp.eq.s32.totalorder %s22, 1
    %p258 = por %p256, %p257
    %p260 = scmp.ne.s32.totalorder %s245, %s259
    %p261 = scmp.eq.s32.totalorder %s22, 0
    %p262 = por %p260, %p261
    %s263 = ssub.s32 %s23, %s35
    %s264 = ssub.s32 %s24, %s31
    %s265 = sor.u32 %s263, %s264
    %p266 = scmp.eq.s32.totalorder %s265, 0
    %s268 = sadd.s32 %s267, 1
    %s269 = scalar_select %p266, %s267, %s268
    %p272 = pneg %p266
    %p273 = scmp.eq.s32.totalorder %s16, 1
    %p274 = por %p272, %p273
    %p275 = scmp.ne.s32.totalorder %s267, %s270
    %p276 = scmp.eq.s32.totalorder %s16, 0
    %p277 = por %p275, %p276
    %p278 = scmp.ne.s32.totalorder %s267, %s270
    %p279 = scmp.eq.s32.totalorder %s21, 1
    %p280 = por %p278, %p279
    %p281 = scmp.ne.s32.totalorder %s270, %s271
    %p282 = scmp.eq.s32.totalorder %s21, 0
    %p283 = por %p281, %p282
    %p284 = scmp.ne.s32.totalorder %s270, %s271
    %p285 = scmp.eq.s32.totalorder %s22, 1
    %p286 = por %p284, %p285
    %p288 = scmp.ne.s32.totalorder %s271, %s287
    %p289 = scmp.eq.s32.totalorder %s22, 0
    %p290 = por %p288, %p289
    %p291 = scmp.le.s32.totalorder 1, %s16
    %p292 = scmp.lt.s32.totalorder %s16, 3
    %p293 = pnand %p291, %p292
    %p294 = pneg %p293
    // Predicated region
    $region9: #{cluster_block_forward.9} parent=5 // pred_check
      _
    $region10: #{cluster_block_forward.9} parent=5 // pred_check_branch
      %296 = sbr.rel (%p293) target = $region12
    $region11: #{cluster_block_forward.9} parent=5 // pred_region
      %s297 = ssub.s32 %s16, 1
      // Predicated region
      $region13: #{cluster_block_forward.9} parent=11 // pred_check
        %p298 = pneg %p129
      $region14: #{cluster_block_forward.9} parent=11 // pred_check_branch
        %300 = sbr.rel (%p298) target = $region16
      $region15: #{cluster_block_forward.9} parent=11 // pred_region
        _
      $region16: #{cluster_block_forward.9} parent=11 // pred_fallthru
        _
      // Predicated region
      $region17: #{cluster_block_forward.9} parent=11 // pred_check
        %p301 = pneg %p150
      $region18: #{cluster_block_forward.9} parent=11 // pred_check_branch
        %303 = sbr.rel (%p301) target = $region20
      $region19: #{cluster_block_forward.9} parent=11 // pred_region
        _
      $region20: #{cluster_block_forward.9} parent=11 // pred_fallthru
        _
      // Predicated region
      $region21: #{cluster_block_forward.9} parent=11 // pred_check
        %p304 = pneg %p171
      $region22: #{cluster_block_forward.9} parent=11 // pred_check_branch
        %306 = sbr.rel (%p304) target = $region24
      $region23: #{cluster_block_forward.9} parent=11 // pred_region
        _
      $region24: #{cluster_block_forward.9} parent=11 // pred_fallthru
        _
      // Predicated region
      $region25: #{cluster_block_forward.9} parent=11 // pred_check
        %p307 = pneg %p192
      $region26: #{cluster_block_forward.9} parent=11 // pred_check_branch
        %309 = sbr.rel (%p307) target = $region28
      $region27: #{cluster_block_forward.9} parent=11 // pred_region
        _
      $region28: #{cluster_block_forward.9} parent=11 // pred_fallthru
        _
      // Predicated region
      $region29: #{cluster_block_forward.9} parent=11 // pred_check
        %p310 = pneg %p213
      $region30: #{cluster_block_forward.9} parent=11 // pred_check_branch
        %312 = sbr.rel (%p310) target = $region32
      $region31: #{cluster_block_forward.9} parent=11 // pred_region
        _
      $region32: #{cluster_block_forward.9} parent=11 // pred_fallthru
        _
      // Predicated region
      $region33: #{cluster_block_forward.9} parent=11 // pred_check
        %p313 = pneg %p234
      $region34: #{cluster_block_forward.9} parent=11 // pred_check_branch
        %315 = sbr.rel (%p313) target = $region36
      $region35: #{cluster_block_forward.9} parent=11 // pred_region
        _
      $region36: #{cluster_block_forward.9} parent=11 // pred_fallthru
        _
      // Predicated region
      $region37: #{cluster_block_forward.9} parent=11 // pred_check
        %p316 = pneg %p255
      $region38: #{cluster_block_forward.9} parent=11 // pred_check_branch
        %318 = sbr.rel (%p316) target = $region40
      $region39: #{cluster_block_forward.9} parent=11 // pred_region
        _
      $region40: #{cluster_block_forward.9} parent=11 // pred_fallthru
        _
    $region12: #{cluster_block_forward.9} parent=5 // pred_fallthru
      _
    %p319 = scmp.lt.s32.totalorder %s16, 2
    // Predicated region
    $region41: #{cluster_block_forward.9} parent=5 // pred_check
      %p320 = pneg %p319
    $region42: #{cluster_block_forward.9} parent=5 // pred_check_branch
      %322 = sbr.rel (%p320) target = $region44
    $region43: #{cluster_block_forward.9} parent=5 // pred_region
      // Predicated region
      $region45: #{cluster_block_forward.9} parent=43 // pred_check
        %p323 = pneg %p50
      $region46: #{cluster_block_forward.9} parent=43 // pred_check_branch
        %325 = sbr.rel (%p323) target = $region48
      $region47: #{cluster_block_forward.9} parent=43 // pred_region
        %s326 = smul.u32 4, %s24
        %p327 = scmp.lt.s32.totalorder %s23, 1
        %s328 = scalar_select %p327, %s23, 1
        %p329 = scmp.lt.s32.totalorder %s326, 3
        %s330 = scalar_select %p329, %s326, 3
        %s331 = smul.addr %s328, 8
        %s332 = sadd.s32 %s330, %s331
        %s333 = smul.addr %s332, 8
        %s334 = scalar_lea.vmem %s0, %s333
        %s335 = smul.u32 4, %s24
      $region48: #{cluster_block_forward.9} parent=43 // pred_fallthru
        _
      // Predicated region
      $region49: #{cluster_block_forward.9} parent=43 // pred_check
        %p336 = pneg %p76
      $region50: #{cluster_block_forward.9} parent=43 // pred_check_branch
        %338 = sbr.rel (%p336) target = $region52
      $region51: #{cluster_block_forward.9} parent=43 // pred_region
        %p339 = scmp.lt.s32.totalorder %s23, 1
        %s340 = scalar_select %p339, %s23, 1
        %s341 = scalar_lea.vmem %s1, %s340
      $region52: #{cluster_block_forward.9} parent=43 // pred_fallthru
        _
      // Predicated region
      $region53: #{cluster_block_forward.9} parent=43 // pred_check
        %p342 = pneg %p102
      $region54: #{cluster_block_forward.9} parent=43 // pred_check_branch
        %344 = sbr.rel (%p342) target = $region56
      $region55: #{cluster_block_forward.9} parent=43 // pred_region
        %p345 = scmp.lt.s32.totalorder %s23, 1
        %s346 = scalar_select %p345, %s23, 1
        %s347 = scalar_lea.vmem %s2, %s346
      $region56: #{cluster_block_forward.9} parent=43 // pred_fallthru
        _
    $region44: #{cluster_block_forward.9} parent=5 // pred_fallthru
      _
    %p348 = scmp.le.s32.totalorder 1, %s16
    %p349 = scmp.lt.s32.totalorder %s16, 3
    %p350 = pnand %p348, %p349
    %p351 = pneg %p350
    // Predicated region
    $region57: #{cluster_block_forward.9} parent=5 // pred_check
      _
    $region58: #{cluster_block_forward.9} parent=5 // pred_check_branch
      %353 = sbr.rel (%p350) target = $region60
    $region59: #{cluster_block_forward.9} parent=5 // pred_region
      %s354 = ssub.s32 %s16, 1
      %s355 = smul.u32 4, %s26
      %p356 = scmp.lt.s32.totalorder %s25, 1
      %s357 = scalar_select %p356, %s25, 1
      %p358 = scmp.lt.s32.totalorder %s355, 3
      %s359 = scalar_select %p358, %s355, 3
      %s360 = smul.addr %s357, 8
      %s361 = sadd.s32 %s359, %s360
      %s362 = smul.addr %s361, 8
      %s363 = scalar_lea.vmem %s0, %s362
      %p364 = pneg %p56
      %p365 = pneg %p53
      %p366 = scmp.lt.s32.totalorder %s25, 1
      %s367 = scalar_select %p366, %s25, 1
      %s368 = scalar_lea.vmem %s1, %s367
      %p369 = pneg %p82
      %p370 = pneg %p79
      %p371 = scmp.lt.s32.totalorder %s25, 1
      %s372 = scalar_select %p371, %s25, 1
      %s373 = scalar_lea.vmem %s2, %s372
      %p374 = pneg %p108
      %p375 = pneg %p105
      %p376 = pneg %p129
      %p377 = pneg %p126
      %p378 = pneg %p150
      %p379 = pneg %p147
      %p380 = pneg %p171
      %p381 = pneg %p168
      %p382 = pneg %p192
      %p383 = pneg %p189
      %p384 = pneg %p213
      %p385 = pneg %p210
      %p386 = pneg %p234
      %p387 = pneg %p231
      %p388 = pneg %p255
      %p389 = pneg %p252
      %p390 = pneg %p283
      %p391 = pneg %p280
      %s392 = smul.u32 4, %s26
      %p393 = scmp.lt.s32.totalorder %s25, 1
      %s394 = scalar_select %p393, %s25, 1
      %p395 = scmp.lt.s32.totalorder %s392, 3
      %s396 = scalar_select %p395, %s392, 3
      %s397 = smul.addr %s394, 8
      %s398 = sadd.s32 %s396, %s397
      %s399 = smul.addr %s398, 8
      %s400 = scalar_lea.vmem %s10, %s399
      %s401 = smul.u32 4, %s26
      %p402 = scmp.lt.s32.totalorder %s25, 1
      %s403 = scalar_select %p402, %s25, 1
      %p404 = scmp.lt.s32.totalorder %s401, 3
      %s405 = scalar_select %p404, %s401, 3
      %s406 = smul.addr %s403, 8
      %s407 = sadd.s32 %s405, %s406
      %s408 = smul.addr %s407, 8
      %s409 = scalar_lea.vmem %s0, %s408
      %s410 = smul.u32 4, %s26
      %p411 = scmp.lt.s32.totalorder %s25, 1
      %s412 = scalar_select %p411, %s25, 1
      %s413 = scalar_lea.vmem %s1, %s412
      %p414 = scmp.lt.s32.totalorder %s25, 1
      %s415 = scalar_select %p414, %s25, 1
      %s416 = scalar_lea.vmem %s2, %s415
      %s417 = smul.u32 4, %s26
      %p418 = scmp.lt.s32.totalorder %s25, 1
      %s419 = scalar_select %p418, %s25, 1
      %p420 = scmp.lt.s32.totalorder %s417, 3
      %s421 = scalar_select %p420, %s417, 3
      %s422 = smul.addr %s419, 8
      %s423 = sadd.s32 %s421, %s422
      %s424 = smul.addr %s423, 8
      %s425 = scalar_lea.vmem %s10, %s424
      %s426 = smul.u32 4, %s26
      %v427 = vld [vmem:[%s409] sm:$0xff]
      %v428 = vld [vmem:[%s409 + $0x8] sm:$0xff]
      %v429 = vld [vmem:[%s409 + $0x10] sm:$0xff]
      %v430 = vld [vmem:[%s409 + $0x18] sm:$0xff]
      %v431 = vld [vmem:[%s409 + $0x20] sm:$0xff]
      %v432 = vld [vmem:[%s409 + $0x28] sm:$0xff]
      %v433 = vld [vmem:[%s409 + $0x30] sm:$0xff]
      %v434 = vld [vmem:[%s409 + $0x38] sm:$0xff]
      %v435 = vld [vmem:[%s413] sm:$0x1]
      %v437 = vlaneseq
      %v438 = vshrl.u32 %v437, 7
      %v439 = vsub.s32 0, %v438
      %v440 = vrot.slane %v435, %v439
      %441 = vset.pattern.permute.xlu0 0
      %442 = vperm.xlu0 %441, %v440
      %v443 = vpop.permute.xlu0 %442
      %v445 = vsub.f32 %v427, %v443
      %v446 = vsub.f32 %v428, %v443
      %v447 = vsub.f32 %v429, %v443
      %v448 = vsub.f32 %v430, %v443
      %v449 = vsub.f32 %v431, %v443
      %v450 = vsub.f32 %v432, %v443
      %v451 = vsub.f32 %v433, %v443
      %v452 = vsub.f32 %v434, %v443
      %v453 = vld [vmem:[%s416] sm:$0x1]
      %v455 = vlaneseq
      %v456 = vshrl.u32 %v455, 7
      %v457 = vsub.s32 0, %v456
      %v458 = vrot.slane %v453, %v457
      %459 = vset.pattern.permute.xlu0 0
      %460 = vperm.xlu0 %459, %v458
      %v461 = vpop.permute.xlu0 %460
      %v463 = vmul.f32 %v445, %v461
      %v464 = vmul.f32 %v446, %v461
      %v465 = vmul.f32 %v447, %v461
      %v466 = vmul.f32 %v448, %v461
      %v467 = vmul.f32 %v449, %v461
      %v468 = vmul.f32 %v450, %v461
      %v469 = vmul.f32 %v451, %v461
      %v470 = vmul.f32 %v452, %v461
      %v471 = vld [vmem:[%s3] sm:$0xff]
      %v472 = vld [vmem:[%s3 + $0x8] sm:$0xff]
      %474 = vset.pattern.permute.xlu0 0
      %475 = vperm.xlu0 %474, %v471
      %v476 = vpop.permute.xlu0 %475
      %479 = vset.pattern.permute.xlu0 0
      %480 = vperm.xlu0 %479, %v472
      %v481 = vpop.permute.xlu0 %480
      %v483 = vmul.f32 %v463, %v476
      %v484 = vmul.f32 %v464, %v476
      %v485 = vmul.f32 %v465, %v476
      %v486 = vmul.f32 %v466, %v476
      %v487 = vmul.f32 %v467, %v481
      %v488 = vmul.f32 %v468, %v481
      %v489 = vmul.f32 %v469, %v481
      %v490 = vmul.f32 %v470, %v481
      %v491 = vld [vmem:[%s4] sm:$0xff]
      %v492 = vld [vmem:[%s4 + $0x8] sm:$0xff]
      %494 = vset.pattern.permute.xlu0 0
      %495 = vperm.xlu0 %494, %v491
      %v496 = vpop.permute.xlu0 %495
      %499 = vset.pattern.permute.xlu0 0
      %500 = vperm.xlu0 %499, %v492
      %v501 = vpop.permute.xlu0 %500
      %v503 = vadd.f32 %v483, %v496
      %v504 = vadd.f32 %v484, %v496
      %v505 = vadd.f32 %v485, %v496
      %v506 = vadd.f32 %v486, %v496
      %v507 = vadd.f32 %v487, %v501
      %v508 = vadd.f32 %v488, %v501
      %v509 = vadd.f32 %v489, %v501
      %v510 = vadd.f32 %v490, %v501
      %v511 = vld [vmem:[%s5] sm:$0xff]
      %v512 = vld [vmem:[%s5 + $0x8] sm:$0xff]
      %v513 = vld [vmem:[%s5 + $0x10] sm:$0xff]
      %v514 = vld [vmem:[%s5 + $0x18] sm:$0xff]
      %v515 = vld [vmem:[%s5 + $0x20] sm:$0xff]
      %v516 = vld [vmem:[%s5 + $0x28] sm:$0xff]
      %v517 = vld [vmem:[%s5 + $0x30] sm:$0xff]
      %v518 = vld [vmem:[%s5 + $0x38] sm:$0xff]
      %v519 = vld [vmem:[%s6] sm:$0xff]
      %v520 = vld [vmem:[%s6 + $0x8] sm:$0xff]
      %v521 = vld [vmem:[%s6 + $0x10] sm:$0xff]
      %v522 = vld [vmem:[%s6 + $0x18] sm:$0xff]
      %v523 = vld [vmem:[%s6 + $0x20] sm:$0xff]
      %v524 = vld [vmem:[%s6 + $0x28] sm:$0xff]
      %v525 = vld [vmem:[%s6 + $0x30] sm:$0xff]
      %v526 = vld [vmem:[%s6 + $0x38] sm:$0xff]
      %528 = vset.pattern.permute.xlu0 0
      %529 = vperm.xlu0 %528, %v519
      %v530 = vpop.permute.xlu0 %529
      %533 = vset.pattern.permute.xlu0 0
      %534 = vperm.xlu0 %533, %v520
      %v535 = vpop.permute.xlu0 %534
      %538 = vset.pattern.permute.xlu0 0
      %539 = vperm.xlu0 %538, %v521
      %v540 = vpop.permute.xlu0 %539
      %543 = vset.pattern.permute.xlu0 0
      %544 = vperm.xlu0 %543, %v522
      %v545 = vpop.permute.xlu0 %544
      %548 = vset.pattern.permute.xlu0 0
      %549 = vperm.xlu0 %548, %v523
      %v550 = vpop.permute.xlu0 %549
      %553 = vset.pattern.permute.xlu0 0
      %554 = vperm.xlu0 %553, %v524
      %v555 = vpop.permute.xlu0 %554
      %558 = vset.pattern.permute.xlu0 0
      %559 = vperm.xlu0 %558, %v525
      %v560 = vpop.permute.xlu0 %559
      %563 = vset.pattern.permute.xlu0 0
      %564 = vperm.xlu0 %563, %v526
      %v565 = vpop.permute.xlu0 %564
      %vm567 = vcmask 130048
      %v569 = vsel %vm567, %v511, 0
      %v572 = vsel %vm567, %v512, 0
      %v575 = vsel %vm567, %v513, 0
      %v578 = vsel %vm567, %v514, 0
      %v581 = vsel %vm567, %v515, 0
      %v584 = vsel %vm567, %v516, 0
      %v587 = vsel %vm567, %v517, 0
      %v590 = vsel %vm567, %v518, 0
      %592 = vmatprep.subr.mxu0 %v504
      %593 = vmatpush1.msra.mxu0 %v503
      %594 = vmatprep.subr.mxu0 %v508
      %595 = vmatpush1.msra.mxu0 %v507
      %596 = vmatprep.subr.mxu0 0.0
      %597 = vmatpush1.msra.mxu0 0.0
      %598 = vmatprep.subr.mxu0 0.0
      %599 = vmatpush1.msra.mxu0 0.0
      %600 = vmatprep.subr.mxu0 0.0
      %601 = vmatpush1.msra.mxu0 0.0
      %602 = vmatprep.subr.mxu0 0.0
      %603 = vmatpush1.msra.mxu0 0.0
      %604 = vmatprep.subr.mxu0 0.0
      %605 = vmatpush1.msra.mxu0 0.0
      %606 = vmatprep.subr.mxu0 0.0
      %607 = vmatpush1.msra.mxu0 0.0
      %608 = vmatprep.subr.mxu0 0.0
      %609 = vmatpush1.msra.mxu0 0.0
      %610 = vmatprep.subr.mxu0 0.0
      %611 = vmatpush1.msra.mxu0 0.0
      %612 = vmatprep.subr.mxu0 0.0
      %613 = vmatpush1.msra.mxu0 0.0
      %614 = vmatprep.subr.mxu0 0.0
      %615 = vmatpush1.msra.mxu0 0.0
      %616 = vmatprep.subr.mxu0 0.0
      %617 = vmatpush1.msra.mxu0 0.0
      %618 = vmatprep.subr.mxu0 0.0
      %619 = vmatpush1.msra.mxu0 0.0
      %620 = vmatprep.subr.mxu0 0.0
      %621 = vmatpush1.msra.mxu0 0.0
      %622 = vmatprep.subr.mxu0 0.0
      %623 = vmatpush1.msra.mxu0 0.0
      %624 = vmatprep.subr.mxu0 0.0
      %625 = vmatpush1.msra.mxu0 0.0
      %626 = vmatprep.subr.mxu0 0.0
      %627 = vmatpush1.msra.mxu0 0.0
      %628 = vmatprep.subr.mxu0 0.0
      %629 = vmatpush1.msra.mxu0 0.0
      %630 = vmatprep.subr.mxu0 0.0
      %631 = vmatpush1.msra.mxu0 0.0
      %632 = vmatprep.subr.mxu0 0.0
      %633 = vmatpush1.msra.mxu0 0.0
      %634 = vmatprep.subr.mxu0 0.0
      %635 = vmatpush1.msra.mxu0 0.0
      %636 = vmatprep.subr.mxu0 0.0
      %637 = vmatpush1.msra.mxu0 0.0
      %638 = vmatprep.subr.mxu0 0.0
      %639 = vmatpush1.msra.mxu0 0.0
      %640 = vmatprep.subr.mxu0 0.0
      %641 = vmatpush1.msra.mxu0 0.0
      %642 = vmatprep.subr.mxu0 0.0
      %643 = vmatpush1.msra.mxu0 0.0
      %644 = vmatprep.subr.mxu0 0.0
      %645 = vmatpush1.msra.mxu0 0.0
      %646 = vmatprep.subr.mxu0 0.0
      %647 = vmatpush1.msra.mxu0 0.0
      %648 = vmatprep.subr.mxu0 0.0
      %649 = vmatpush1.msra.mxu0 0.0
      %650 = vmatprep.subr.mxu0 0.0
      %651 = vmatpush1.msra.mxu0 0.0
      %652 = vmatprep.subr.mxu0 0.0
      %653 = vmatpush1.msra.mxu0 0.0
      %654 = vmatprep.subr.mxu0 0.0
      %655 = vmatpush1.msra.mxu0 0.0
      %656 = vmatprep.mubr.f32.mxu0 0.0
      %657 = vmatmul.mubr.f32.gmra.mrb[0].mxu0 %v569
      %v658 = vpop.f32.mrb[0].mxu0
      %v659 = vadd.f32 %v530, %v658
      %v660 = vpop.f32.mrb[0].mxu0
      %v661 = vadd.f32 %v530, %v660
      %662 = vmatprep.mubr.f32.mxu0 0.0
      %663 = vmatmul.mubr.f32.gmra.mrb[0].mxu0 %v572
      %v664 = vpop.f32.mrb[0].mxu0
      %v665 = vadd.f32 %v535, %v664
      %v666 = vpop.f32.mrb[0].mxu0
      %v667 = vadd.f32 %v535, %v666
      %668 = vmatprep.mubr.f32.mxu0 0.0
      %669 = vmatmul.mubr.f32.gmra.mrb[0].mxu0 %v575
      %v670 = vpop.f32.mrb[0].mxu0
      %v671 = vadd.f32 %v540, %v670
      %v672 = vpop.f32.mrb[0].mxu0
      %v673 = vadd.f32 %v540, %v672
      %674 = vmatprep.mubr.f32.mxu0 0.0
      %675 = vmatmul.mubr.f32.gmra.mrb[0].mxu0 %v578
      %v676 = vpop.f32.mrb[0].mxu0
      %v677 = vadd.f32 %v545, %v676
      %v678 = vpop.f32.mrb[0].mxu0
      %v679 = vadd.f32 %v545, %v678
      %680 = vmatprep.mubr.f32.mxu0 0.0
      %681 = vmatmul.mubr.f32.gmra.mrb[0].mxu0 %v581
      %v682 = vpop.f32.mrb[0].mxu0
      %v683 = vadd.f32 %v550, %v682
      %v684 = vpop.f32.mrb[0].mxu0
      %v685 = vadd.f32 %v550, %v684
      %686 = vmatprep.mubr.f32.mxu0 0.0
      %687 = vmatmul.mubr.f32.gmra.mrb[0].mxu0 %v584
      %v688 = vpop.f32.mrb[0].mxu0
      %v689 = vadd.f32 %v555, %v688
      %v690 = vpop.f32.mrb[0].mxu0
      %v691 = vadd.f32 %v555, %v690
      %692 = vmatprep.mubr.f32.mxu0 0.0
      %693 = vmatmul.mubr.f32.gmra.mrb[0].mxu0 %v587
      %v694 = vpop.f32.mrb[0].mxu0
      %v695 = vadd.f32 %v560, %v694
      %v696 = vpop.f32.mrb[0].mxu0
      %v697 = vadd.f32 %v560, %v696
      %698 = vmatprep.mubr.f32.mxu0 0.0
      %699 = vmatmul.mubr.f32.gmra.mrb[0].mxu0 %v590
      %v700 = vpop.f32.mrb[0].mxu0
      %v701 = vadd.f32 %v565, %v700
      %v702 = vpop.f32.mrb[0].mxu0
      %v703 = vadd.f32 %v565, %v702
      %704 = vdwg.mxu0
      %705 = vmatprep.subr.mxu0 %v506
      %706 = vmatpush1.msra.mxu0 %v505
      %707 = vmatprep.subr.mxu0 %v510
      %708 = vmatpush1.msra.mxu0 %v509
      %709 = vmatprep.subr.mxu0 0.0
      %710 = vmatpush1.msra.mxu0 0.0
      %711 = vmatprep.subr.mxu0 0.0
      %712 = vmatpush1.msra.mxu0 0.0
      %713 = vmatprep.subr.mxu0 0.0
      %714 = vmatpush1.msra.mxu0 0.0
      %715 = vmatprep.subr.mxu0 0.0
      %716 = vmatpush1.msra.mxu0 0.0
      %717 = vmatprep.subr.mxu0 0.0
      %718 = vmatpush1.msra.mxu0 0.0
      %719 = vmatprep.subr.mxu0 0.0
      %720 = vmatpush1.msra.mxu0 0.0
      %721 = vmatprep.subr.mxu0 0.0
      %722 = vmatpush1.msra.mxu0 0.0
      %723 = vmatprep.subr.mxu0 0.0
      %724 = vmatpush1.msra.mxu0 0.0
      %725 = vmatprep.subr.mxu0 0.0
      %726 = vmatpush1.msra.mxu0 0.0
      %727 = vmatprep.subr.mxu0 0.0
      %728 = vmatpush1.msra.mxu0 0.0
      %729 = vmatprep.subr.mxu0 0.0
      %730 = vmatpush1.msra.mxu0 0.0
      %731 = vmatprep.subr.mxu0 0.0
      %732 = vmatpush1.msra.mxu0 0.0
      %733 = vmatprep.subr.mxu0 0.0
      %734 = vmatpush1.msra.mxu0 0.0
      %735 = vmatprep.subr.mxu0 0.0
      %736 = vmatpush1.msra.mxu0 0.0
      %737 = vmatprep.subr.mxu0 0.0
      %738 = vmatpush1.msra.mxu0 0.0
      %739 = vmatprep.subr.mxu0 0.0
      %740 = vmatpush1.msra.mxu0 0.0
      %741 = vmatprep.subr.mxu0 0.0
      %742 = vmatpush1.msra.mxu0 0.0
      %743 = vmatprep.subr.mxu0 0.0
      %744 = vmatpush1.msra.mxu0 0.0
      %745 = vmatprep.subr.mxu0 0.0
      %746 = vmatpush1.msra.mxu0 0.0
      %747 = vmatprep.subr.mxu0 0.0
      %748 = vmatpush1.msra.mxu0 0.0
      %749 = vmatprep.subr.mxu0 0.0
      %750 = vmatpush1.msra.mxu0 0.0
      %751 = vmatprep.subr.mxu0 0.0
      %752 = vmatpush1.msra.mxu0 0.0
      %753 = vmatprep.subr.mxu0 0.0
      %754 = vmatpush1.msra.mxu0 0.0
      %755 = vmatprep.subr.mxu0 0.0
      %756 = vmatpush1.msra.mxu0 0.0
      %757 = vmatprep.subr.mxu0 0.0
      %758 = vmatpush1.msra.mxu0 0.0
      %759 = vmatprep.subr.mxu0 0.0
      %760 = vmatpush1.msra.mxu0 0.0
      %761 = vmatprep.subr.mxu0 0.0
      %762 = vmatpush1.msra.mxu0 0.0
      %763 = vmatprep.subr.mxu0 0.0
      %764 = vmatpush1.msra.mxu0 0.0
      %765 = vmatprep.subr.mxu0 0.0
      %766 = vmatpush1.msra.mxu0 0.0
      %767 = vmatprep.subr.mxu0 0.0
      %768 = vmatpush1.msra.mxu0 0.0
      %769 = vmatprep.mubr.f32.mxu0 0.0
      %770 = vmatmul.mubr.f32.gmra.mrb[0].mxu0 %v569
      %v771 = vpop.f32.mrb[0].mxu0
      %v772 = vadd.f32 %v530, %v771
      %v773 = vpop.f32.mrb[0].mxu0
      %v774 = vadd.f32 %v530, %v773
      %775 = vmatprep.mubr.f32.mxu0 0.0
      %776 = vmatmul.mubr.f32.gmra.mrb[0].mxu0 %v572
      %v777 = vpop.f32.mrb[0].mxu0
      %v778 = vadd.f32 %v535, %v777
      %v779 = vpop.f32.mrb[0].mxu0
      %v780 = vadd.f32 %v535, %v779
      %781 = vmatprep.mubr.f32.mxu0 0.0
      %782 = vmatmul.mubr.f32.gmra.mrb[0].mxu0 %v575
      %v783 = vpop.f32.mrb[0].mxu0
      %v784 = vadd.f32 %v540, %v783
      %v785 = vpop.f32.mrb[0].mxu0
      %v786 = vadd.f32 %v540, %v785
      %787 = vmatprep.mubr.f32.mxu0 0.0
      %788 = vmatmul.mubr.f32.gmra.mrb[0].mxu0 %v578
      %v789 = vpop.f32.mrb[0].mxu0
      %v790 = vadd.f32 %v545, %v789
      %v791 = vpop.f32.mrb[0].mxu0
      %v792 = vadd.f32 %v545, %v791
      %793 = vmatprep.mubr.f32.mxu0 0.0
      %794 = vmatmul.mubr.f32.gmra.mrb[0].mxu0 %v581
      %v795 = vpop.f32.mrb[0].mxu0
      %v796 = vadd.f32 %v550, %v795
      %v797 = vpop.f32.mrb[0].mxu0
      %v798 = vadd.f32 %v550, %v797
      %799 = vmatprep.mubr.f32.mxu0 0.0
      %800 = vmatmul.mubr.f32.gmra.mrb[0].mxu0 %v584
      %v801 = vpop.f32.mrb[0].mxu0
      %v802 = vadd.f32 %v555, %v801
      %v803 = vpop.f32.mrb[0].mxu0
      %v804 = vadd.f32 %v555, %v803
      %805 = vmatprep.mubr.f32.mxu0 0.0
      %806 = vmatmul.mubr.f32.gmra.mrb[0].mxu0 %v587
      %v807 = vpop.f32.mrb[0].mxu0
      %v808 = vadd.f32 %v560, %v807
      %v809 = vpop.f32.mrb[0].mxu0
      %v810 = vadd.f32 %v560, %v809
      %811 = vmatprep.mubr.f32.mxu0 0.0
      %812 = vmatmul.mubr.f32.gmra.mrb[0].mxu0 %v590
      %v813 = vpop.f32.mrb[0].mxu0
      %v814 = vadd.f32 %v565, %v813
      %v815 = vpop.f32.mrb[0].mxu0
      %v816 = vadd.f32 %v565, %v815
      %817 = vdwg.mxu0
      %v818 = vmul.f32 %v659, 0.5
      %v819 = vmul.f32 %v661, 0.5
      %v820 = vmul.f32 %v772, 0.5
      %v821 = vmul.f32 %v774, 0.5
      %v822 = vmul.f32 %v665, 0.5
      %v823 = vmul.f32 %v667, 0.5
      %v824 = vmul.f32 %v778, 0.5
      %v825 = vmul.f32 %v780, 0.5
      %v826 = vmul.f32 %v671, 0.5
      %v827 = vmul.f32 %v673, 0.5
      %v828 = vmul.f32 %v784, 0.5
      %v829 = vmul.f32 %v786, 0.5
      %v830 = vmul.f32 %v677, 0.5
      %v831 = vmul.f32 %v679, 0.5
      %v832 = vmul.f32 %v790, 0.5
      %v833 = vmul.f32 %v792, 0.5
      %v834 = vmul.f32 %v683, 0.5
      %v835 = vmul.f32 %v685, 0.5
      %v836 = vmul.f32 %v796, 0.5
      %v837 = vmul.f32 %v798, 0.5
      %v838 = vmul.f32 %v689, 0.5
      %v839 = vmul.f32 %v691, 0.5
      %v840 = vmul.f32 %v802, 0.5
      %v841 = vmul.f32 %v804, 0.5
      %v842 = vmul.f32 %v695, 0.5
      %v843 = vmul.f32 %v697, 0.5
      %v844 = vmul.f32 %v808, 0.5
      %v845 = vmul.f32 %v810, 0.5
      %v846 = vmul.f32 %v701, 0.5
      %v847 = vmul.f32 %v703, 0.5
      %v848 = vmul.f32 %v814, 0.5
      %v849 = vmul.f32 %v816, 0.5
      %v850 = vmul.f32 %v659, 0.70710677
      %v851 = vmul.f32 %v661, 0.70710677
      %v852 = vmul.f32 %v772, 0.70710677
      %v853 = vmul.f32 %v774, 0.70710677
      %v854 = vmul.f32 %v665, 0.70710677
      %v855 = vmul.f32 %v667, 0.70710677
      %v856 = vmul.f32 %v778, 0.70710677
      %v857 = vmul.f32 %v780, 0.70710677
      %v858 = vmul.f32 %v671, 0.70710677
      %v859 = vmul.f32 %v673, 0.70710677
      %v860 = vmul.f32 %v784, 0.70710677
      %v861 = vmul.f32 %v786, 0.70710677
      %v862 = vmul.f32 %v677, 0.70710677
      %v863 = vmul.f32 %v679, 0.70710677
      %v864 = vmul.f32 %v790, 0.70710677
      %v865 = vmul.f32 %v792, 0.70710677
      %v866 = vmul.f32 %v683, 0.70710677
      %v867 = vmul.f32 %v685, 0.70710677
      %v868 = vmul.f32 %v796, 0.70710677
      %v869 = vmul.f32 %v798, 0.70710677
      %v870 = vmul.f32 %v689, 0.70710677
      %v871 = vmul.f32 %v691, 0.70710677
      %v872 = vmul.f32 %v802, 0.70710677
      %v873 = vmul.f32 %v804, 0.70710677
      %v874 = vmul.f32 %v695, 0.70710677
      %v875 = vmul.f32 %v697, 0.70710677
      %v876 = vmul.f32 %v808, 0.70710677
      %v877 = vmul.f32 %v810, 0.70710677
      %v878 = vmul.f32 %v701, 0.70710677
      %v879 = vmul.f32 %v703, 0.70710677
      %v880 = vmul.f32 %v814, 0.70710677
      %v881 = vmul.f32 %v816, 0.70710677
      %v882 = verf.f32.pop %v850
      %v883 = verf.f32.pop %v851
      %v884 = verf.f32.pop %v852
      %v885 = verf.f32.pop %v853
      %v886 = verf.f32.pop %v854
      %v887 = verf.f32.pop %v855
      %v888 = verf.f32.pop %v856
      %v889 = verf.f32.pop %v857
      %v890 = verf.f32.pop %v858
      %v891 = verf.f32.pop %v859
      %v892 = verf.f32.pop %v860
      %v893 = verf.f32.pop %v861
      %v894 = verf.f32.pop %v862
      %v895 = verf.f32.pop %v863
      %v896 = verf.f32.pop %v864
      %v897 = verf.f32.pop %v865
      %v898 = verf.f32.pop %v866
      %v899 = verf.f32.pop %v867
      %v900 = verf.f32.pop %v868
      %v901 = verf.f32.pop %v869
      %v902 = verf.f32.pop %v870
      %v903 = verf.f32.pop %v871
      %v904 = verf.f32.pop %v872
      %v905 = verf.f32.pop %v873
      %v906 = verf.f32.pop %v874
      %v907 = verf.f32.pop %v875
      %v908 = verf.f32.pop %v876
      %v909 = verf.f32.pop %v877
      %v910 = verf.f32.pop %v878
      %v911 = verf.f32.pop %v879
      %v912 = verf.f32.pop %v880
      %v913 = verf.f32.pop %v881
      %v914 = vadd.f32 %v882, 1.0
      %v915 = vadd.f32 %v883, 1.0
      %v916 = vadd.f32 %v884, 1.0
      %v917 = vadd.f32 %v885, 1.0
      %v918 = vadd.f32 %v886, 1.0
      %v919 = vadd.f32 %v887, 1.0
      %v920 = vadd.f32 %v888, 1.0
      %v921 = vadd.f32 %v889, 1.0
      %v922 = vadd.f32 %v890, 1.0
      %v923 = vadd.f32 %v891, 1.0
      %v924 = vadd.f32 %v892, 1.0
      %v925 = vadd.f32 %v893, 1.0
      %v926 = vadd.f32 %v894, 1.0
      %v927 = vadd.f32 %v895, 1.0
      %v928 = vadd.f32 %v896, 1.0
      %v929 = vadd.f32 %v897, 1.0
      %v930 = vadd.f32 %v898, 1.0
      %v931 = vadd.f32 %v899, 1.0
      %v932 = vadd.f32 %v900, 1.0
      %v933 = vadd.f32 %v901, 1.0
      %v934 = vadd.f32 %v902, 1.0
      %v935 = vadd.f32 %v903, 1.0
      %v936 = vadd.f32 %v904, 1.0
      %v937 = vadd.f32 %v905, 1.0
      %v938 = vadd.f32 %v906, 1.0
      %v939 = vadd.f32 %v907, 1.0
      %v940 = vadd.f32 %v908, 1.0
      %v941 = vadd.f32 %v909, 1.0
      %v942 = vadd.f32 %v910, 1.0
      %v943 = vadd.f32 %v911, 1.0
      %v944 = vadd.f32 %v912, 1.0
      %v945 = vadd.f32 %v913, 1.0
      %v946 = vmul.f32 %v818, %v914
      %v947 = vmul.f32 %v819, %v915
      %v948 = vmul.f32 %v820, %v916
      %v949 = vmul.f32 %v821, %v917
      %v950 = vmul.f32 %v822, %v918
      %v951 = vmul.f32 %v823, %v919
      %v952 = vmul.f32 %v824, %v920
      %v953 = vmul.f32 %v825, %v921
      %v954 = vmul.f32 %v826, %v922
      %v955 = vmul.f32 %v827, %v923
      %v956 = vmul.f32 %v828, %v924
      %v957 = vmul.f32 %v829, %v925
      %v958 = vmul.f32 %v830, %v926
      %v959 = vmul.f32 %v831, %v927
      %v960 = vmul.f32 %v832, %v928
      %v961 = vmul.f32 %v833, %v929
      %v962 = vmul.f32 %v834, %v930
      %v963 = vmul.f32 %v835, %v931
      %v964 = vmul.f32 %v836, %v932
      %v965 = vmul.f32 %v837, %v933
      %v966 = vmul.f32 %v838, %v934
      %v967 = vmul.f32 %v839, %v935
      %v968 = vmul.f32 %v840, %v936
      %v969 = vmul.f32 %v841, %v937
      %v970 = vmul.f32 %v842, %v938
      %v971 = vmul.f32 %v843, %v939
      %v972 = vmul.f32 %v844, %v940
      %v973 = vmul.f32 %v845, %v941
      %v974 = vmul.f32 %v846, %v942
      %v975 = vmul.f32 %v847, %v943
      %v976 = vmul.f32 %v848, %v944
      %v977 = vmul.f32 %v849, %v945
      %v978 = vld [vmem:[%s7] sm:$0xff]
      %v979 = vld [vmem:[%s7 + $0x8] sm:$0xff]
      %v980 = vld [vmem:[%s8] sm:$0xff]
      %v981 = vld [vmem:[%s8 + $0x8] sm:$0xff]
      %983 = vset.pattern.permute.xlu0 0
      %984 = vperm.xlu0 %983, %v980
      %v985 = vpop.permute.xlu0 %984
      %988 = vset.pattern.permute.xlu0 0
      %989 = vperm.xlu0 %988, %v981
      %v990 = vpop.permute.xlu0 %989
      %vm992 = vcmask 523264
      %v994 = vsel %vm992, %v978, 0
      %v997 = vsel %vm992, %v979, 0
      %999 = vmatprep.subr.mxu0 %v947
      %1000 = vmatpush1.msra.mxu0 %v946
      %1001 = vmatprep.subr.mxu0 %v951
      %1002 = vmatpush1.msra.mxu0 %v950
      %1003 = vmatprep.subr.mxu0 %v955
      %1004 = vmatpush1.msra.mxu0 %v954
      %1005 = vmatprep.subr.mxu0 %v959
      %1006 = vmatpush1.msra.mxu0 %v958
      %1007 = vmatprep.subr.mxu0 %v963
      %1008 = vmatpush1.msra.mxu0 %v962
      %1009 = vmatprep.subr.mxu0 %v967
      %1010 = vmatpush1.msra.mxu0 %v966
      %1011 = vmatprep.subr.mxu0 %v971
      %1012 = vmatpush1.msra.mxu0 %v970
      %1013 = vmatprep.subr.mxu0 %v975
      %1014 = vmatpush1.msra.mxu0 %v974
      %1015 = vmatprep.subr.mxu0 0.0
      %1016 = vmatpush1.msra.mxu0 0.0
      %1017 = vmatprep.subr.mxu0 0.0
      %1018 = vmatpush1.msra.mxu0 0.0
      %1019 = vmatprep.subr.mxu0 0.0
      %1020 = vmatpush1.msra.mxu0 0.0
      %1021 = vmatprep.subr.mxu0 0.0
      %1022 = vmatpush1.msra.mxu0 0.0
      %1023 = vmatprep.subr.mxu0 0.0
      %1024 = vmatpush1.msra.mxu0 0.0
      %1025 = vmatprep.subr.mxu0 0.0
      %1026 = vmatpush1.msra.mxu0 0.0
      %1027 = vmatprep.subr.mxu0 0.0
      %1028 = vmatpush1.msra.mxu0 0.0
      %1029 = vmatprep.subr.mxu0 0.0
      %1030 = vmatpush1.msra.mxu0 0.0
      %1031 = vmatprep.subr.mxu0 0.0
      %1032 = vmatpush1.msra.mxu0 0.0
      %1033 = vmatprep.subr.mxu0 0.0
      %1034 = vmatpush1.msra.mxu0 0.0
      %1035 = vmatprep.subr.mxu0 0.0
      %1036 = vmatpush1.msra.mxu0 0.0
      %1037 = vmatprep.subr.mxu0 0.0
      %1038 = vmatpush1.msra.mxu0 0.0
      %1039 = vmatprep.subr.mxu0 0.0
      %1040 = vmatpush1.msra.mxu0 0.0
      %1041 = vmatprep.subr.mxu0 0.0
      %1042 = vmatpush1.msra.mxu0 0.0
      %1043 = vmatprep.subr.mxu0 0.0
      %1044 = vmatpush1.msra.mxu0 0.0
      %1045 = vmatprep.subr.mxu0 0.0
      %1046 = vmatpush1.msra.mxu0 0.0
      %1047 = vmatprep.subr.mxu0 0.0
      %1048 = vmatpush1.msra.mxu0 0.0
      %1049 = vmatprep.subr.mxu0 0.0
      %1050 = vmatpush1.msra.mxu0 0.0
      %1051 = vmatprep.subr.mxu0 0.0
      %1052 = vmatpush1.msra.mxu0 0.0
      %1053 = vmatprep.subr.mxu0 0.0
      %1054 = vmatpush1.msra.mxu0 0.0
      %1055 = vmatprep.subr.mxu0 0.0
      %1056 = vmatpush1.msra.mxu0 0.0
      %1057 = vmatprep.subr.mxu0 0.0
      %1058 = vmatpush1.msra.mxu0 0.0
      %1059 = vmatprep.subr.mxu0 0.0
      %1060 = vmatpush1.msra.mxu0 0.0
      %1061 = vmatprep.subr.mxu0 0.0
      %1062 = vmatpush1.msra.mxu0 0.0
      %1063 = vmatprep.mubr.f32.mxu0 0.0
      %1064 = vmatmul.mubr.f32.gmra.mrb[0].mxu0 %v994
      %v1065 = vpop.f32.mrb[0].mxu0
      %v1066 = vadd.f32 %v985, %v1065
      %v1067 = vpop.f32.mrb[0].mxu0
      %v1068 = vadd.f32 %v985, %v1067
      %1069 = vmatprep.mubr.f32.mxu0 0.0
      %1070 = vmatmul.mubr.f32.gmra.mrb[0].mxu0 %v997
      %v1071 = vpop.f32.mrb[0].mxu0
      %v1072 = vadd.f32 %v990, %v1071
      %v1073 = vpop.f32.mrb[0].mxu0
      %v1074 = vadd.f32 %v990, %v1073
      %1075 = vdwg.mxu0
      %1076 = vmatprep.subr.mxu0 %v949
      %1077 = vmatpush1.msra.mxu0 %v948
      %1078 = vmatprep.subr.mxu0 %v953
      %1079 = vmatpush1.msra.mxu0 %v952
      %1080 = vmatprep.subr.mxu0 %v957
      %1081 = vmatpush1.msra.mxu0 %v956
      %1082 = vmatprep.subr.mxu0 %v961
      %1083 = vmatpush1.msra.mxu0 %v960
      %1084 = vmatprep.subr.mxu0 %v965
      %1085 = vmatpush1.msra.mxu0 %v964
      %1086 = vmatprep.subr.mxu0 %v969
      %1087 = vmatpush1.msra.mxu0 %v968
      %1088 = vmatprep.subr.mxu0 %v973
      %1089 = vmatpush1.msra.mxu0 %v972
      %1090 = vmatprep.subr.mxu0 %v977
      %1091 = vmatpush1.msra.mxu0 %v976
      %1092 = vmatprep.subr.mxu0 0.0
      %1093 = vmatpush1.msra.mxu0 0.0
      %1094 = vmatprep.subr.mxu0 0.0
      %1095 = vmatpush1.msra.mxu0 0.0
      %1096 = vmatprep.subr.mxu0 0.0
      %1097 = vmatpush1.msra.mxu0 0.0
      %1098 = vmatprep.subr.mxu0 0.0
      %1099 = vmatpush1.msra.mxu0 0.0
      %1100 = vmatprep.subr.mxu0 0.0
      %1101 = vmatpush1.msra.mxu0 0.0
      %1102 = vmatprep.subr.mxu0 0.0
      %1103 = vmatpush1.msra.mxu0 0.0
      %1104 = vmatprep.subr.mxu0 0.0
      %1105 = vmatpush1.msra.mxu0 0.0
      %1106 = vmatprep.subr.mxu0 0.0
      %1107 = vmatpush1.msra.mxu0 0.0
      %1108 = vmatprep.subr.mxu0 0.0
      %1109 = vmatpush1.msra.mxu0 0.0
      %1110 = vmatprep.subr.mxu0 0.0
      %1111 = vmatpush1.msra.mxu0 0.0
      %1112 = vmatprep.subr.mxu0 0.0
      %1113 = vmatpush1.msra.mxu0 0.0
      %1114 = vmatprep.subr.mxu0 0.0
      %1115 = vmatpush1.msra.mxu0 0.0
      %1116 = vmatprep.subr.mxu0 0.0
      %1117 = vmatpush1.msra.mxu0 0.0
      %1118 = vmatprep.subr.mxu0 0.0
      %1119 = vmatpush1.msra.mxu0 0.0
      %1120 = vmatprep.subr.mxu0 0.0
      %1121 = vmatpush1.msra.mxu0 0.0
      %1122 = vmatprep.subr.mxu0 0.0
      %1123 = vmatpush1.msra.mxu0 0.0
      %1124 = vmatprep.subr.mxu0 0.0
      %1125 = vmatpush1.msra.mxu0 0.0
      %1126 = vmatprep.subr.mxu0 0.0
      %1127 = vmatpush1.msra.mxu0 0.0
      %1128 = vmatprep.subr.mxu0 0.0
      %1129 = vmatpush1.msra.mxu0 0.0
      %1130 = vmatprep.subr.mxu0 0.0
      %1131 = vmatpush1.msra.mxu0 0.0
      %1132 = vmatprep.subr.mxu0 0.0
      %1133 = vmatpush1.msra.mxu0 0.0
      %1134 = vmatprep.subr.mxu0 0.0
      %1135 = vmatpush1.msra.mxu0 0.0
      %1136 = vmatprep.subr.mxu0 0.0
      %1137 = vmatpush1.msra.mxu0 0.0
      %1138 = vmatprep.subr.mxu0 0.0
      %1139 = vmatpush1.msra.mxu0 0.0
      %1140 = vmatprep.mubr.f32.mxu0 0.0
      %1141 = vmatmul.mubr.f32.gmra.mrb[0].mxu0 %v994
      %v1142 = vpop.f32.mrb[0].mxu0
      %v1143 = vadd.f32 %v985, %v1142
      %v1144 = vpop.f32.mrb[0].mxu0
      %v1145 = vadd.f32 %v985, %v1144
      %1146 = vmatprep.mubr.f32.mxu0 0.0
      %1147 = vmatmul.mubr.f32.gmra.mrb[0].mxu0 %v997
      %v1148 = vpop.f32.mrb[0].mxu0
      %v1149 = vadd.f32 %v990, %v1148
      %v1150 = vpop.f32.mrb[0].mxu0
      %v1151 = vadd.f32 %v990, %v1150
      %1152 = vdwg.mxu0
      %v1153 = vld [vmem:[%s9] sm:$0xff]
      %v1154 = vld [vmem:[%s9 + $0x8] sm:$0xff]
      %1156 = vset.pattern.permute.xlu0 0
      %1157 = vperm.xlu0 %1156, %v1153
      %v1158 = vpop.permute.xlu0 %1157
      %1161 = vset.pattern.permute.xlu0 0
      %1162 = vperm.xlu0 %1161, %v1154
      %v1163 = vpop.permute.xlu0 %1162
      %v1165 = vmul.f32 %v1158, %v1066
      %v1166 = vmul.f32 %v1158, %v1068
      %v1167 = vmul.f32 %v1158, %v1143
      %v1168 = vmul.f32 %v1158, %v1145
      %v1169 = vmul.f32 %v1163, %v1072
      %v1170 = vmul.f32 %v1163, %v1074
      %v1171 = vmul.f32 %v1163, %v1149
      %v1172 = vmul.f32 %v1163, %v1151
      %v1173 = vadd.f32 %v427, %v1165
      %v1174 = vadd.f32 %v428, %v1166
      %v1175 = vadd.f32 %v429, %v1167
      %v1176 = vadd.f32 %v430, %v1168
      %v1177 = vadd.f32 %v431, %v1169
      %v1178 = vadd.f32 %v432, %v1170
      %v1179 = vadd.f32 %v433, %v1171
      %v1180 = vadd.f32 %v434, %v1172
      %1181 = vst [vmem:[%s425] sm:$0xff] %v1173
      %1182 = vst [vmem:[%s425 + $0x8] sm:$0xff] %v1174
      %1183 = vst [vmem:[%s425 + $0x10] sm:$0xff] %v1175
      %1184 = vst [vmem:[%s425 + $0x18] sm:$0xff] %v1176
      %1185 = vst [vmem:[%s425 + $0x20] sm:$0xff] %v1177
      %1186 = vst [vmem:[%s425 + $0x28] sm:$0xff] %v1178
      %1187 = vst [vmem:[%s425 + $0x30] sm:$0xff] %v1179
      %1188 = vst [vmem:[%s425 + $0x38] sm:$0xff] %v1180
      %s1189 = smul.u32 4, %s26
      %p1190 = scmp.lt.s32.totalorder %s25, 1
      %s1191 = scalar_select %p1190, %s25, 1
      %p1192 = scmp.lt.s32.totalorder %s1189, 3
      %s1193 = scalar_select %p1192, %s1189, 3
      %s1194 = smul.addr %s1191, 8
      %s1195 = sadd.s32 %s1193, %s1194
      %s1196 = smul.addr %s1195, 8
      %s1197 = scalar_lea.vmem %s10, %s1196
      // Predicated region
      $region61: #{cluster_block_forward.9} parent=59 // pred_check
        %p1198 = pneg %p280
      $region62: #{cluster_block_forward.9} parent=59 // pred_check_branch
        %1200 = sbr.rel (%p1198) target = $region64
      $region63: #{cluster_block_forward.9} parent=59 // pred_region
        %s1201 = smul.u32 4, %s26
      $region64: #{cluster_block_forward.9} parent=59 // pred_fallthru
        _
    $region60: #{cluster_block_forward.9} parent=5 // pred_fallthru
      _
    %p1202 = scmp.le.s32.totalorder 2, %s16
    // Predicated region
    $region65: #{cluster_block_forward.9} parent=5 // pred_check
      %p1203 = pneg %p1202
    $region66: #{cluster_block_forward.9} parent=5 // pred_check_branch
      %1205 = sbr.rel (%p1203) target = $region68
    $region67: #{cluster_block_forward.9} parent=5 // pred_region
      %s1206 = ssub.s32 %s16, 2
      // Predicated region
      $region69: #{cluster_block_forward.9} parent=67 // pred_check
        %p1207 = pneg %p286
      $region70: #{cluster_block_forward.9} parent=67 // pred_check_branch
        %1209 = sbr.rel (%p1207) target = $region72
      $region71: #{cluster_block_forward.9} parent=67 // pred_region
        %s1210 = smul.u32 4, %s28
        %p1211 = scmp.lt.s32.totalorder %s27, 1
        %s1212 = scalar_select %p1211, %s27, 1
        %p1213 = scmp.lt.s32.totalorder %s1210, 3
        %s1214 = scalar_select %p1213, %s1210, 3
        %s1215 = smul.addr %s1212, 8
        %s1216 = sadd.s32 %s1214, %s1215
        %s1217 = smul.addr %s1216, 8
        %s1218 = scalar_lea.vmem %s10, %s1217
      $region72: #{cluster_block_forward.9} parent=67 // pred_fallthru
        _
    $region68: #{cluster_block_forward.9} parent=5 // pred_fallthru
      _
  $region6: #{cluster_block_forward.9} parent=0 // loop_footer
    %s20 = sadd.s32 1, %s16
  $region7: #{cluster_block_forward.9} parent=0 // loop_footer_branch
    %15 = sbr.rel target = $region3
  $region8: #{cluster_block_forward.9} parent=0 // loop_exit
    _

// kernel: cluster_block_forward.7
$region0: #{cluster_block_forward.7}
  #allocation0 [shape = 'u32[]', space=smem, size = 0x4, offset = 0x4, fixed_abs, tag = 'smem constant byte address 0x4 - core index']
  #allocation1 [shape = 'u32[144,128]{1,0:T(1,128)}', space=vmem, size = 0x12000, scoped, tag = 'internal scratch']
  #allocation2 [shape = 'f32[1]{0:T(128)S(6)}', space=smem, size = 0x200, scoped, tag = 'scoped memory for cluster_block_forward.7']
  #allocation3 [shape = 'f32[1]{0:T(128)S(6)}', space=smem, size = 0x200, scoped, tag = 'scoped memory for cluster_block_forward.7']
  %s0 = inlined_call_operand.<no memory space> [shape: f32[1], index: 0, kind: input, shape index: {}]
  %s1 = inlined_call_operand.<no memory space> [shape: f32[1], index: 1, kind: input, shape index: {}]
  %s2 = inlined_call_operand.vmem [shape: f32[2,2,8,8,8,96], index: 2, kind: input, shape index: {}]
  %s3 = inlined_call_operand.vmem [shape: f32[16,128], index: 3, kind: input, shape index: {}]
  %s4 = inlined_call_operand.vmem [shape: f32[16,128], index: 4, kind: input, shape index: {}]
  %s5 = inlined_call_operand.vmem [shape: f32[4,96], index: 5, kind: input, shape index: {}]
  %s6 = inlined_call_operand.vmem [shape: f32[2,8,8,8,96], index: 6, kind: output, shape index: {}]
  %s7 = sld [smem:[#allocation0]]
  $region129: #{cluster_block_forward.7} parent=0
    _
  %s9 = ssub.s32 1, %s7
  %s10 = scalar_select 0, %s9, %s7
  %11 = sst [smem:[#allocation2]] %s0
  %12 = sst [smem:[#allocation3]] %s1
  $region1: #{cluster_block_forward.7} parent=0
    #allocation4 [shape = 'u8[262144]{0}', space=vmem, size = 0x40000, scoped, tag = 'input window, operand 2']
    #allocation5 [shape = 'u8[131072]{0}', space=vmem, size = 0x20000, scoped, tag = 'output window, operand 0']
    loop: start=0, step=1, limit=10
    $region2: #{cluster_block_forward.7} parent=1 // loop_pre_header
      _
    $region3: #{cluster_block_forward.7} parent=1 // loop_header
      %s14 = sphi 0, %s18
      %p15 = scmp.ge.s32.totalorder %s14, 10
      %s21 = sphi 0, %s40
      %s22 = sphi 0, %s36
      %s23 = sphi 0, %s32
      %s24 = sphi 0, %s21
      %s25 = sphi 0, %s22
      %s26 = sphi 0, %s23
      %s27 = sphi 0, %s24
      %s28 = sphi 0, %s25
      %s29 = sphi 0, %s26
      %s41 = sphi 0, %s41
      %s43 = sphi 0, %s41
      %s44 = sphi 0, %s43
      %s58 = sphi 0, %s44
      %s62 = sphi 0, %s62
      %s64 = sphi 0, %s62
      %s65 = sphi 0, %s64
      %s79 = sphi 0, %s65
      %s89 = sphi 0, %s91
      %s92 = sphi 0, %s89
      %s93 = sphi 0, %s92
      %s109 = sphi 0, %s93
      %s113 = sphi 0, %s113
      %s115 = sphi 0, %s113
      %s116 = sphi 0, %s115
      %s130 = sphi 0, %s116
      %s134 = sphi 0, %s134
      %s136 = sphi 0, %s134
      %s137 = sphi 0, %s136
      %s151 = sphi 0, %s137
      %s155 = sphi 0, %s155
      %s157 = sphi 0, %s155
      %s158 = sphi 0, %s157
      %s172 = sphi 0, %s158
      %s182 = sphi 0, %s184
      %s185 = sphi 0, %s182
      %s186 = sphi 0, %s185
      %s202 = sphi 0, %s186
    $region4: #{cluster_block_forward.7} parent=1 // loop_header_branch
      %17 = sbr.rel (%p15) target = $region8
    $region5: #{cluster_block_forward.7} parent=1 // loop_body
      %s19 = ssub.s32 %s14, 1
      %s20 = ssub.s32 %s14, 2
      %s30 = sadd.s32 1, %s23
      %p31 = scmp.ge.s32.totalorder %s30, 2
      %s32 = scalar_select %p31, 0, %s30
      %s33 = sadd.s32 1, %s22
      %s34 = scalar_select %p31, %s33, %s22
      %p35 = scmp.ge.s32.totalorder %s34, 2
      %s36 = scalar_select %p35, 0, %s34
      %s37 = sadd.s32 1, %s21
      %s38 = scalar_select %p35, %s37, %s21
      %p39 = scmp.ge.s32.totalorder %s38, 2
      %s40 = scalar_select %p39, 0, %s38
      %s42 = sadd.s32 %s41, 1
      %p45 = scmp.eq.s32.totalorder %s14, 7
      %p46 = scmp.ne.s32.totalorder %s41, %s43
      %p47 = scmp.eq.s32.totalorder %s14, 0
      %p48 = por %p46, %p47
      %p49 = scmp.ne.s32.totalorder %s41, %s43
      %p50 = scmp.eq.s32.totalorder %s19, 7
      %p51 = por %p49, %p50
      %p52 = scmp.ne.s32.totalorder %s43, %s44
      %p53 = scmp.eq.s32.totalorder %s19, 0
      %p54 = por %p52, %p53
      %p55 = scmp.ne.s32.totalorder %s43, %s44
      %p56 = scmp.eq.s32.totalorder %s20, 7
      %p57 = por %p55, %p56
      %p59 = scmp.ne.s32.totalorder %s44, %s58
      %p60 = scmp.eq.s32.totalorder %s20, 0
      %p61 = por %p59, %p60
      %s63 = sadd.s32 %s62, 1
      %p66 = scmp.eq.s32.totalorder %s14, 7
      %p67 = scmp.ne.s32.totalorder %s62, %s64
      %p68 = scmp.eq.s32.totalorder %s14, 0
      %p69 = por %p67, %p68
      %p70 = scmp.ne.s32.totalorder %s62, %s64
      %p71 = scmp.eq.s32.totalorder %s19, 7
      %p72 = por %p70, %p71
      %p73 = scmp.ne.s32.totalorder %s64, %s65
      %p74 = scmp.eq.s32.totalorder %s19, 0
      %p75 = por %p73, %p74
      %p76 = scmp.ne.s32.totalorder %s64, %s65
      %p77 = scmp.eq.s32.totalorder %s20, 7
      %p78 = por %p76, %p77
      %p80 = scmp.ne.s32.totalorder %s65, %s79
      %p81 = scmp.eq.s32.totalorder %s20, 0
      %p82 = por %p80, %p81
      %s83 = ssub.s32 %s21, %s40
      %s84 = ssub.s32 %s22, %s36
      %s85 = sor.u32 %s83, %s84
      %s86 = ssub.s32 %s23, %s32
      %s87 = sor.u32 %s85, %s86
      %p88 = scmp.eq.s32.totalorder %s87, 0
      %s90 = sadd.s32 %s89, 1
      %s91 = scalar_select %p88, %s89, %s90
      %p94 = pneg %p88
      %p95 = scmp.eq.s32.totalorder %s14, 7
      %p96 = por %p94, %p95
      %p97 = scmp.ne.s32.totalorder %s89, %s92
      %p98 = scmp.eq.s32.totalorder %s14, 0
      %p99 = por %p97, %p98
      %p100 = scmp.ne.s32.totalorder %s89, %s92
      %p101 = scmp.eq.s32.totalorder %s19, 7
      %p102 = por %p100, %p101
      %p103 = scmp.ne.s32.totalorder %s92, %s93
      %p104 = scmp.eq.s32.totalorder %s19, 0
      %p105 = por %p103, %p104
      %p106 = scmp.ne.s32.totalorder %s92, %s93
      %p107 = scmp.eq.s32.totalorder %s20, 7
      %p108 = por %p106, %p107
      %p110 = scmp.ne.s32.totalorder %s93, %s109
      %p111 = scmp.eq.s32.totalorder %s20, 0
      %p112 = por %p110, %p111
      %s114 = sadd.s32 %s113, 1
      %p117 = scmp.eq.s32.totalorder %s14, 7
      %p118 = scmp.ne.s32.totalorder %s113, %s115
      %p119 = scmp.eq.s32.totalorder %s14, 0
      %p120 = por %p118, %p119
      %p121 = scmp.ne.s32.totalorder %s113, %s115
      %p122 = scmp.eq.s32.totalorder %s19, 7
      %p123 = por %p121, %p122
      %p124 = scmp.ne.s32.totalorder %s115, %s116
      %p125 = scmp.eq.s32.totalorder %s19, 0
      %p126 = por %p124, %p125
      %p127 = scmp.ne.s32.totalorder %s115, %s116
      %p128 = scmp.eq.s32.totalorder %s20, 7
      %p129 = por %p127, %p128
      %p131 = scmp.ne.s32.totalorder %s116, %s130
      %p132 = scmp.eq.s32.totalorder %s20, 0
      %p133 = por %p131, %p132
      %s135 = sadd.s32 %s134, 1
      %p138 = scmp.eq.s32.totalorder %s14, 7
      %p139 = scmp.ne.s32.totalorder %s134, %s136
      %p140 = scmp.eq.s32.totalorder %s14, 0
      %p141 = por %p139, %p140
      %p142 = scmp.ne.s32.totalorder %s134, %s136
      %p143 = scmp.eq.s32.totalorder %s19, 7
      %p144 = por %p142, %p143
      %p145 = scmp.ne.s32.totalorder %s136, %s137
      %p146 = scmp.eq.s32.totalorder %s19, 0
      %p147 = por %p145, %p146
      %p148 = scmp.ne.s32.totalorder %s136, %s137
      %p149 = scmp.eq.s32.totalorder %s20, 7
      %p150 = por %p148, %p149
      %p152 = scmp.ne.s32.totalorder %s137, %s151
      %p153 = scmp.eq.s32.totalorder %s20, 0
      %p154 = por %p152, %p153
      %s156 = sadd.s32 %s155, 1
      %p159 = scmp.eq.s32.totalorder %s14, 7
      %p160 = scmp.ne.s32.totalorder %s155, %s157
      %p161 = scmp.eq.s32.totalorder %s14, 0
      %p162 = por %p160, %p161
      %p163 = scmp.ne.s32.totalorder %s155, %s157
      %p164 = scmp.eq.s32.totalorder %s19, 7
      %p165 = por %p163, %p164
      %p166 = scmp.ne.s32.totalorder %s157, %s158
      %p167 = scmp.eq.s32.totalorder %s19, 0
      %p168 = por %p166, %p167
      %p169 = scmp.ne.s32.totalorder %s157, %s158
      %p170 = scmp.eq.s32.totalorder %s20, 7
      %p171 = por %p169, %p170
      %p173 = scmp.ne.s32.totalorder %s158, %s172
      %p174 = scmp.eq.s32.totalorder %s20, 0
      %p175 = por %p173, %p174
      %s176 = ssub.s32 %s21, %s40
      %s177 = ssub.s32 %s22, %s36
      %s178 = sor.u32 %s176, %s177
      %s179 = ssub.s32 %s23, %s32
      %s180 = sor.u32 %s178, %s179
      %p181 = scmp.eq.s32.totalorder %s180, 0
      %s183 = sadd.s32 %s182, 1
      %s184 = scalar_select %p181, %s182, %s183
      %p187 = pneg %p181
      %p188 = scmp.eq.s32.totalorder %s14, 7
      %p189 = por %p187, %p188
      %p190 = scmp.ne.s32.totalorder %s182, %s185
      %p191 = scmp.eq.s32.totalorder %s14, 0
      %p192 = por %p190, %p191
      %p193 = scmp.ne.s32.totalorder %s182, %s185
      %p194 = scmp.eq.s32.totalorder %s19, 7
      %p195 = por %p193, %p194
      %p196 = scmp.ne.s32.totalorder %s185, %s186
      %p197 = scmp.eq.s32.totalorder %s19, 0
      %p198 = por %p196, %p197
      %p199 = scmp.ne.s32.totalorder %s185, %s186
      %p200 = scmp.eq.s32.totalorder %s20, 7
      %p201 = por %p199, %p200
      %p203 = scmp.ne.s32.totalorder %s186, %s202
      %p204 = scmp.eq.s32.totalorder %s20, 0
      %p205 = por %p203, %p204
      %p206 = scmp.le.s32.totalorder 1, %s14
      %p207 = scmp.lt.s32.totalorder %s14, 9
      %p208 = pnand %p206, %p207
      %p209 = pneg %p208
      // Predicated region
      $region9: #{cluster_block_forward.7} parent=5 // pred_check
        _
      $region10: #{cluster_block_forward.7} parent=5 // pred_check_branch
        %211 = sbr.rel (%p208) target = $region12
      $region11: #{cluster_block_forward.7} parent=5 // pred_region
        %s212 = ssub.s32 %s14, 1
        // Predicated region
        $region13: #{cluster_block_forward.7} parent=11 // pred_check
          %p213 = pneg %p54
        $region14: #{cluster_block_forward.7} parent=11 // pred_check_branch
          %215 = sbr.rel (%p213) target = $region16
        $region15: #{cluster_block_forward.7} parent=11 // pred_region
          _
        $region16: #{cluster_block_forward.7} parent=11 // pred_fallthru
          _
        // Predicated region
        $region17: #{cluster_block_forward.7} parent=11 // pred_check
          %p216 = pneg %p75
        $region18: #{cluster_block_forward.7} parent=11 // pred_check_branch
          %218 = sbr.rel (%p216) target = $region20
        $region19: #{cluster_block_forward.7} parent=11 // pred_region
          _
        $region20: #{cluster_block_forward.7} parent=11 // pred_fallthru
          _
        // Predicated region
        $region21: #{cluster_block_forward.7} parent=11 // pred_check
          %p219 = pneg %p126
        $region22: #{cluster_block_forward.7} parent=11 // pred_check_branch
          %221 = sbr.rel (%p219) target = $region24
        $region23: #{cluster_block_forward.7} parent=11 // pred_region
          _
        $region24: #{cluster_block_forward.7} parent=11 // pred_fallthru
          _
        // Predicated region
        $region25: #{cluster_block_forward.7} parent=11 // pred_check
          %p222 = pneg %p147
        $region26: #{cluster_block_forward.7} parent=11 // pred_check_branch
          %224 = sbr.rel (%p222) target = $region28
        $region27: #{cluster_block_forward.7} parent=11 // pred_region
          _
        $region28: #{cluster_block_forward.7} parent=11 // pred_fallthru
          _
        // Predicated region
        $region29: #{cluster_block_forward.7} parent=11 // pred_check
          %p225 = pneg %p168
        $region30: #{cluster_block_forward.7} parent=11 // pred_check_branch
          %227 = sbr.rel (%p225) target = $region32
        $region31: #{cluster_block_forward.7} parent=11 // pred_region
          _
        $region32: #{cluster_block_forward.7} parent=11 // pred_fallthru
          _
      $region12: #{cluster_block_forward.7} parent=5 // pred_fallthru
        _
      %p228 = scmp.lt.s32.totalorder %s14, 8
      // Predicated region
      $region33: #{cluster_block_forward.7} parent=5 // pred_check
        %p229 = pneg %p228
      $region34: #{cluster_block_forward.7} parent=5 // pred_check_branch
        %231 = sbr.rel (%p229) target = $region36
      $region35: #{cluster_block_forward.7} parent=5 // pred_region
        // Predicated region
        $region37: #{cluster_block_forward.7} parent=35 // pred_check
          %p232 = pneg %p99
        $region38: #{cluster_block_forward.7} parent=35 // pred_check_branch
          %234 = sbr.rel (%p232) target = $region40
        $region39: #{cluster_block_forward.7} parent=35 // pred_region
          %s235 = sand.u32 %s89, 1
          %s236 = sand.u32 %s89, 1
          %s237 = smul.addr %s236, 256
          %s238 = scalar_lea.vmem [#allocation4], %s237
          %s239 = smul.u32 4, %s22
          %s240 = smul.u32 4, %s23
          %s241 = smul.addr %s239, 8
          %s242 = sadd.s32 %s240, %s241
          %s243 = smul.addr %s21, 128
          %s244 = sadd.s32 %s242, %s243
          %s245 = smul.addr %s244, 8
          %s246 = scalar_lea.vmem %s2, %s245
          // Predicated region
          $region41: #{cluster_block_forward.7} parent=39 // pred_check
            _
          $region42: #{cluster_block_forward.7} parent=39 // pred_check_branch
            %248 = sbr.rel (0) target = $region44
          $region43: #{cluster_block_forward.7} parent=39 // pred_region
            // Predicated region
            $region45: #{cluster_block_forward.7} parent=43 // pred_check
              _
            $region46: #{cluster_block_forward.7} parent=43 // pred_check_branch
              %250 = sbr.rel (0) target = $region48
            $region47: #{cluster_block_forward.7} parent=43 // pred_region
              // Predicated region
              $region60: #{cluster_block_forward.7} parent=47 // pred_check
                _
              $region61: #{cluster_block_forward.7} parent=47 // pred_check_branch
                %327 = sbr.rel (0) target = $region63
              $region62: #{cluster_block_forward.7} parent=47 // pred_region
                loop: start=0, step=1, limit=1
                $region64: #{cluster_block_forward.7} parent=62 // loop_pre_header
                  _
                $region65: #{cluster_block_forward.7} parent=62 // loop_header
                  %s329 = sphi 0, %s333
                  %p330 = scmp.ge.s32.totalorder %s329, 1
                  %s334 = sphi %s246, %s246
                  %s335 = sphi %s238, %s238
                $region66: #{cluster_block_forward.7} parent=62 // loop_header_branch
                  %332 = sbr.rel (%p330) target = $region70
                $region67: #{cluster_block_forward.7} parent=62 // loop_body
                  %v336 = vld [vmem:[%s334] sm:$0xff]
                  %337 = vst [vmem:[%s335] sm:$0xff] %v336
                  %v338 = vld [vmem:[%s334 + $0x8] sm:$0xff]
                  %339 = vst [vmem:[%s335 + $0x8] sm:$0xff] %v338
                  %v340 = vld [vmem:[%s334 + $0x10] sm:$0xff]
                  %341 = vst [vmem:[%s335 + $0x10] sm:$0xff] %v340
                  %v342 = vld [vmem:[%s334 + $0x18] sm:$0xff]
                  %343 = vst [vmem:[%s335 + $0x18] sm:$0xff] %v342
                  %v344 = vld [vmem:[%s334 + $0x40] sm:$0xff]
                  %345 = vst [vmem:[%s335 + $0x20] sm:$0xff] %v344
                  %v346 = vld [vmem:[%s334 + $0x48] sm:$0xff]
                  %347 = vst [vmem:[%s335 + $0x28] sm:$0xff] %v346
                  %v348 = vld [vmem:[%s334 + $0x50] sm:$0xff]
                  %349 = vst [vmem:[%s335 + $0x30] sm:$0xff] %v348
                  %v350 = vld [vmem:[%s334 + $0x58] sm:$0xff]
                  %351 = vst [vmem:[%s335 + $0x38] sm:$0xff] %v350
                  %v352 = vld [vmem:[%s334 + $0x80] sm:$0xff]
                  %353 = vst [vmem:[%s335 + $0x40] sm:$0xff] %v352
                  %v354 = vld [vmem:[%s334 + $0x88] sm:$0xff]
                  %355 = vst [vmem:[%s335 + $0x48] sm:$0xff] %v354
                  %v356 = vld [vmem:[%s334 + $0x90] sm:$0xff]
                  %357 = vst [vmem:[%s335 + $0x50] sm:$0xff] %v356
                  %v358 = vld [vmem:[%s334 + $0x98] sm:$0xff]
                  %359 = vst [vmem:[%s335 + $0x58] sm:$0xff] %v358
                  %v360 = vld [vmem:[%s334 + $0xc0] sm:$0xff]
                  %361 = vst [vmem:[%s335 + $0x60] sm:$0xff] %v360
                  %v362 = vld [vmem:[%s334 + $0xc8] sm:$0xff]
                  %363 = vst [vmem:[%s335 + $0x68] sm:$0xff] %v362
                  %v364 = vld [vmem:[%s334 + $0xd0] sm:$0xff]
                  %365 = vst [vmem:[%s335 + $0x70] sm:$0xff] %v364
                  %v366 = vld [vmem:[%s334 + $0xd8] sm:$0xff]
                  %367 = vst [vmem:[%s335 + $0x78] sm:$0xff] %v366
                  %v368 = vld [vmem:[%s334 + $0x200] sm:$0xff]
                  %369 = vst [vmem:[%s335 + $0x80] sm:$0xff] %v368
                  %v370 = vld [vmem:[%s334 + $0x208] sm:$0xff]
                  %371 = vst [vmem:[%s335 + $0x88] sm:$0xff] %v370
                  %v372 = vld [vmem:[%s334 + $0x210] sm:$0xff]
                  %373 = vst [vmem:[%s335 + $0x90] sm:$0xff] %v372
                  %v374 = vld [vmem:[%s334 + $0x218] sm:$0xff]
                  %375 = vst [vmem:[%s335 + $0x98] sm:$0xff] %v374
                  %v376 = vld [vmem:[%s334 + $0x240] sm:$0xff]
                  %377 = vst [vmem:[%s335 + $0xa0] sm:$0xff] %v376
                  %v378 = vld [vmem:[%s334 + $0x248] sm:$0xff]
                  %379 = vst [vmem:[%s335 + $0xa8] sm:$0xff] %v378
                  %v380 = vld [vmem:[%s334 + $0x250] sm:$0xff]
                  %381 = vst [vmem:[%s335 + $0xb0] sm:$0xff] %v380
                  %v382 = vld [vmem:[%s334 + $0x258] sm:$0xff]
                  %383 = vst [vmem:[%s335 + $0xb8] sm:$0xff] %v382
                  %v384 = vld [vmem:[%s334 + $0x280] sm:$0xff]
                  %385 = vst [vmem:[%s335 + $0xc0] sm:$0xff] %v384
                  %v386 = vld [vmem:[%s334 + $0x288] sm:$0xff]
                  %387 = vst [vmem:[%s335 + $0xc8] sm:$0xff] %v386
                  %v388 = vld [vmem:[%s334 + $0x290] sm:$0xff]
                  %389 = vst [vmem:[%s335 + $0xd0] sm:$0xff] %v388
                  %v390 = vld [vmem:[%s334 + $0x298] sm:$0xff]
                  %391 = vst [vmem:[%s335 + $0xd8] sm:$0xff] %v390
                  %v392 = vld [vmem:[%s334 + $0x2c0] sm:$0xff]
                  %393 = vst [vmem:[%s335 + $0xe0] sm:$0xff] %v392
                  %v394 = vld [vmem:[%s334 + $0x2c8] sm:$0xff]
                  %395 = vst [vmem:[%s335 + $0xe8] sm:$0xff] %v394
                  %v396 = vld [vmem:[%s334 + $0x2d0] sm:$0xff]
                  %397 = vst [vmem:[%s335 + $0xf0] sm:$0xff] %v396
                  %v398 = vld [vmem:[%s334 + $0x2d8] sm:$0xff]
                  %399 = vst [vmem:[%s335 + $0xf8] sm:$0xff] %v398
                $region68: #{cluster_block_forward.7} parent=62 // loop_footer
                  %s333 = sadd.s32 1, %s329
                $region69: #{cluster_block_forward.7} parent=62 // loop_footer_branch
                  %328 = sbr.rel target = $region65
                $region70: #{cluster_block_forward.7} parent=62 // loop_exit
                  _
              $region63: #{cluster_block_forward.7} parent=47 // pred_fallthru
                _
              // Predicated region
              $region71: #{cluster_block_forward.7} parent=47 // pred_check
                _
              $region72: #{cluster_block_forward.7} parent=47 // pred_check_branch
                %401 = sbr.rel target = $region74
              $region73: #{cluster_block_forward.7} parent=47 // pred_region
                _
              $region74: #{cluster_block_forward.7} parent=47 // pred_fallthru
                _
            $region48: #{cluster_block_forward.7} parent=43 // pred_fallthru
              _
            // Predicated region
            $region49: #{cluster_block_forward.7} parent=43 // pred_check
              _
            $region50: #{cluster_block_forward.7} parent=43 // pred_check_branch
              %252 = sbr.rel target = $region52
            $region51: #{cluster_block_forward.7} parent=43 // pred_region
              loop: start=0, step=1, limit=1
              $region53: #{cluster_block_forward.7} parent=51 // loop_pre_header
                _
              $region54: #{cluster_block_forward.7} parent=51 // loop_header
                %s255 = sphi 0, %s259
                %p256 = scmp.ge.s32.totalorder %s255, 1
                %s260 = sphi %s246, %s246
                %s261 = sphi %s238, %s238
              $region55: #{cluster_block_forward.7} parent=51 // loop_header_branch
                %258 = sbr.rel (%p256) target = $region59
              $region56: #{cluster_block_forward.7} parent=51 // loop_body
                %v262 = vld [vmem:[%s260] sm:$0xff]
                %263 = vst [vmem:[%s261] sm:$0xff] %v262
                %v264 = vld [vmem:[%s260 + $0x8] sm:$0xff]
                %265 = vst [vmem:[%s261 + $0x8] sm:$0xff] %v264
                %v266 = vld [vmem:[%s260 + $0x10] sm:$0xff]
                %267 = vst [vmem:[%s261 + $0x10] sm:$0xff] %v266
                %v268 = vld [vmem:[%s260 + $0x18] sm:$0xff]
                %269 = vst [vmem:[%s261 + $0x18] sm:$0xff] %v268
                %v270 = vld [vmem:[%s260 + $0x40] sm:$0xff]
                %271 = vst [vmem:[%s261 + $0x20] sm:$0xff] %v270
                %v272 = vld [vmem:[%s260 + $0x48] sm:$0xff]
                %273 = vst [vmem:[%s261 + $0x28] sm:$0xff] %v272
                %v274 = vld [vmem:[%s260 + $0x50] sm:$0xff]
                %275 = vst [vmem:[%s261 + $0x30] sm:$0xff] %v274
                %v276 = vld [vmem:[%s260 + $0x58] sm:$0xff]
                %277 = vst [vmem:[%s261 + $0x38] sm:$0xff] %v276
                %v278 = vld [vmem:[%s260 + $0x80] sm:$0xff]
                %279 = vst [vmem:[%s261 + $0x40] sm:$0xff] %v278
                %v280 = vld [vmem:[%s260 + $0x88] sm:$0xff]
                %281 = vst [vmem:[%s261 + $0x48] sm:$0xff] %v280
                %v282 = vld [vmem:[%s260 + $0x90] sm:$0xff]
                %283 = vst [vmem:[%s261 + $0x50] sm:$0xff] %v282
                %v284 = vld [vmem:[%s260 + $0x98] sm:$0xff]
                %285 = vst [vmem:[%s261 + $0x58] sm:$0xff] %v284
                %v286 = vld [vmem:[%s260 + $0xc0] sm:$0xff]
                %287 = vst [vmem:[%s261 + $0x60] sm:$0xff] %v286
                %v288 = vld [vmem:[%s260 + $0xc8] sm:$0xff]
                %289 = vst [vmem:[%s261 + $0x68] sm:$0xff] %v288
                %v290 = vld [vmem:[%s260 + $0xd0] sm:$0xff]
                %291 = vst [vmem:[%s261 + $0x70] sm:$0xff] %v290
                %v292 = vld [vmem:[%s260 + $0xd8] sm:$0xff]
                %293 = vst [vmem:[%s261 + $0x78] sm:$0xff] %v292
                %v294 = vld [vmem:[%s260 + $0x200] sm:$0xff]
                %295 = vst [vmem:[%s261 + $0x80] sm:$0xff] %v294
                %v296 = vld [vmem:[%s260 + $0x208] sm:$0xff]
                %297 = vst [vmem:[%s261 + $0x88] sm:$0xff] %v296
                %v298 = vld [vmem:[%s260 + $0x210] sm:$0xff]
                %299 = vst [vmem:[%s261 + $0x90] sm:$0xff] %v298
                %v300 = vld [vmem:[%s260 + $0x218] sm:$0xff]
                %301 = vst [vmem:[%s261 + $0x98] sm:$0xff] %v300
                %v302 = vld [vmem:[%s260 + $0x240] sm:$0xff]
                %303 = vst [vmem:[%s261 + $0xa0] sm:$0xff] %v302
                %v304 = vld [vmem:[%s260 + $0x248] sm:$0xff]
                %305 = vst [vmem:[%s261 + $0xa8] sm:$0xff] %v304
                %v306 = vld [vmem:[%s260 + $0x250] sm:$0xff]
                %307 = vst [vmem:[%s261 + $0xb0] sm:$0xff] %v306
                %v308 = vld [vmem:[%s260 + $0x258] sm:$0xff]
                %309 = vst [vmem:[%s261 + $0xb8] sm:$0xff] %v308
                %v310 = vld [vmem:[%s260 + $0x280] sm:$0xff]
                %311 = vst [vmem:[%s261 + $0xc0] sm:$0xff] %v310
                %v312 = vld [vmem:[%s260 + $0x288] sm:$0xff]
                %313 = vst [vmem:[%s261 + $0xc8] sm:$0xff] %v312
                %v314 = vld [vmem:[%s260 + $0x290] sm:$0xff]
                %315 = vst [vmem:[%s261 + $0xd0] sm:$0xff] %v314
                %v316 = vld [vmem:[%s260 + $0x298] sm:$0xff]
                %317 = vst [vmem:[%s261 + $0xd8] sm:$0xff] %v316
                %v318 = vld [vmem:[%s260 + $0x2c0] sm:$0xff]
                %319 = vst [vmem:[%s261 + $0xe0] sm:$0xff] %v318
                %v320 = vld [vmem:[%s260 + $0x2c8] sm:$0xff]
                %321 = vst [vmem:[%s261 + $0xe8] sm:$0xff] %v320
                %v322 = vld [vmem:[%s260 + $0x2d0] sm:$0xff]
                %323 = vst [vmem:[%s261 + $0xf0] sm:$0xff] %v322
                %v324 = vld [vmem:[%s260 + $0x2d8] sm:$0xff]
                %325 = vst [vmem:[%s261 + $0xf8] sm:$0xff] %v324
              $region57: #{cluster_block_forward.7} parent=51 // loop_footer
                %s259 = sadd.s32 1, %s255
              $region58: #{cluster_block_forward.7} parent=51 // loop_footer_branch
                %254 = sbr.rel target = $region54
              $region59: #{cluster_block_forward.7} parent=51 // loop_exit
                _
            $region52: #{cluster_block_forward.7} parent=43 // pred_fallthru
              _
          $region44: #{cluster_block_forward.7} parent=39 // pred_fallthru
            _
          %402 = vnop
        $region40: #{cluster_block_forward.7} parent=35 // pred_fallthru
          _
      $region36: #{cluster_block_forward.7} parent=5 // pred_fallthru
        _
      %p403 = scmp.le.s32.totalorder 1, %s14
      %p404 = scmp.lt.s32.totalorder %s14, 9
      %p405 = pnand %p403, %p404
      %p406 = pneg %p405
      // Predicated region
      $region75: #{cluster_block_forward.7} parent=5 // pred_check
        _
      $region76: #{cluster_block_forward.7} parent=5 // pred_check_branch
        %408 = sbr.rel (%p405) target = $region78
      $region77: #{cluster_block_forward.7} parent=5 // pred_region
        %s409 = ssub.s32 %s14, 1
        %s410 = sand.u32 %s92, 1
        %s411 = sand.u32 %s92, 1
        %s412 = smul.addr %s411, 256
        %s413 = scalar_lea.vmem [#allocation4], %s412
        // Predicated region
        $region79: #{cluster_block_forward.7} parent=77 // pred_check
          %p414 = pneg %p105
        $region80: #{cluster_block_forward.7} parent=77 // pred_check_branch
          %416 = sbr.rel (%p414) target = $region82
        $region81: #{cluster_block_forward.7} parent=77 // pred_region
          _
        $region82: #{cluster_block_forward.7} parent=77 // pred_fallthru
          _
        %p417 = pneg %p54
        %p418 = pneg %p51
        %p419 = pneg %p75
        %p420 = pneg %p72
        %s421 = sand.u32 %s92, 1
        %s422 = sand.u32 %s92, 1
        %s423 = smul.addr %s422, 256
        %s424 = scalar_lea.vmem [#allocation4], %s423
        %p425 = pneg %p105
        %p426 = pneg %p102
        %p427 = pneg %p126
        %p428 = pneg %p123
        %p429 = pneg %p147
        %p430 = pneg %p144
        %p431 = pneg %p168
        %p432 = pneg %p165
        %p433 = pneg %p198
        %p434 = pneg %p195
        %s435 = sand.u32 %s185, 1
        %s436 = sand.u32 %s185, 1
        %s437 = smul.addr %s436, 128
        %s438 = scalar_lea.vmem [#allocation5], %s437
        %s439 = smul.u32 4, %s25
        %s440 = smul.u32 4, %s26
        %s441 = smul.u32 4, %s25
        %s442 = smul.u32 4, %s26
        %v443 = vld [vmem:[%s413] sm:$0xff]
        %v444 = vld [vmem:[%s413 + $0x8] sm:$0xff]
        %v445 = vld [vmem:[%s413 + $0x10] sm:$0xff]
        %v446 = vld [vmem:[%s413 + $0x18] sm:$0xff]
        %v447 = vld [vmem:[%s413 + $0x20] sm:$0xff]
        %v448 = vld [vmem:[%s413 + $0x28] sm:$0xff]
        %v449 = vld [vmem:[%s413 + $0x30] sm:$0xff]
        %v450 = vld [vmem:[%s413 + $0x38] sm:$0xff]
        %v451 = vld [vmem:[%s413 + $0x40] sm:$0xff]
        %v452 = vld [vmem:[%s413 + $0x48] sm:$0xff]
        %v453 = vld [vmem:[%s413 + $0x50] sm:$0xff]
        %v454 = vld [vmem:[%s413 + $0x58] sm:$0xff]
        %v455 = vld [vmem:[%s413 + $0x60] sm:$0xff]
        %v456 = vld [vmem:[%s413 + $0x68] sm:$0xff]
        %v457 = vld [vmem:[%s413 + $0x70] sm:$0xff]
        %v458 = vld [vmem:[%s413 + $0x78] sm:$0xff]
        %s459 = scalar_lea.vmem %s413, 128 [#allocation4]
        %v460 = vld [vmem:[%s459] sm:$0xff]
        %v461 = vld [vmem:[%s459 + $0x8] sm:$0xff]
        %v462 = vld [vmem:[%s459 + $0x10] sm:$0xff]
        %v463 = vld [vmem:[%s459 + $0x18] sm:$0xff]
        %v464 = vld [vmem:[%s459 + $0x20] sm:$0xff]
        %v465 = vld [vmem:[%s459 + $0x28] sm:$0xff]
        %v466 = vld [vmem:[%s459 + $0x30] sm:$0xff]
        %v467 = vld [vmem:[%s459 + $0x38] sm:$0xff]
        %v468 = vld [vmem:[%s459 + $0x40] sm:$0xff]
        %v469 = vld [vmem:[%s459 + $0x48] sm:$0xff]
        %v470 = vld [vmem:[%s459 + $0x50] sm:$0xff]
        %v471 = vld [vmem:[%s459 + $0x58] sm:$0xff]
        %v472 = vld [vmem:[%s459 + $0x60] sm:$0xff]
        %v473 = vld [vmem:[%s459 + $0x68] sm:$0xff]
        %v474 = vld [vmem:[%s459 + $0x70] sm:$0xff]
        %v475 = vld [vmem:[%s459 + $0x78] sm:$0xff]
        %v476 = vld [vmem:[%s3] sm:$0xff]
        %v477 = vld [vmem:[%s3 + $0x8] sm:$0xff]
        %v478 = vld [vmem:[%s4] sm:$0xff]
        %v479 = vld [vmem:[%s4 + $0x8] sm:$0xff]
        %v480 = vld [vmem:[%s5] sm:$0xf]
        %s481 = sld [smem:[#allocation2]]
        %s482 = sld [smem:[#allocation3]]
        %483 = vmatprep.subr.mxu0 0.0
        %484 = vmatpush1.msra.mxu0 %v443
        %485 = vmatprep.subr.mxu0 0.0
        %486 = vmatpush1.msra.mxu0 %v444
        %487 = vmatprep.subr.mxu0 0.0
        %488 = vmatpush1.msra.mxu0 %v445
        %489 = vmatprep.subr.mxu0 0.0
        %490 = vmatpush1.msra.mxu0 %v446
        %491 = vmatprep.subr.mxu0 0.0
        %492 = vmatpush1.msra.mxu0 %v447
        %493 = vmatprep.subr.mxu0 0.0
        %494 = vmatpush1.msra.mxu0 %v448
        %495 = vmatprep.subr.mxu0 0.0
        %496 = vmatpush1.msra.mxu0 %v449
        %497 = vmatprep.subr.mxu0 0.0
        %498 = vmatpush1.msra.mxu0 %v450
        %499 = vmatprep.subr.mxu0 0.0
        %500 = vmatpush1.msra.mxu0 %v451
        %501 = vmatprep.subr.mxu0 0.0
        %502 = vmatpush1.msra.mxu0 %v452
        %503 = vmatprep.subr.mxu0 0.0
        %504 = vmatpush1.msra.mxu0 %v453
        %505 = vmatprep.subr.mxu0 0.0
        %506 = vmatpush1.msra.mxu0 %v454
        %507 = vmatprep.subr.mxu0 0.0
        %508 = vmatpush1.msra.mxu0 %v455
        %509 = vmatprep.subr.mxu0 0.0
        %510 = vmatpush1.msra.mxu0 %v456
        %511 = vmatprep.subr.mxu0 0.0
        %512 = vmatpush1.msra.mxu0 %v457
        %513 = vmatprep.subr.mxu0 0.0
        %514 = vmatpush1.msra.mxu0 %v458
        %515 = vmatprep.subr.mxu0 0.0
        %516 = vmatpush1.msra.mxu0 0.0
        %517 = vmatprep.subr.mxu0 0.0
        %518 = vmatpush1.msra.mxu0 0.0
        %519 = vmatprep.subr.mxu0 0.0
        %520 = vmatpush1.msra.mxu0 0.0
        %521 = vmatprep.subr.mxu0 0.0
        %522 = vmatpush1.msra.mxu0 0.0
        %523 = vmatprep.subr.mxu0 0.0
        %524 = vmatpush1.msra.mxu0 0.0
        %525 = vmatprep.subr.mxu0 0.0
        %526 = vmatpush1.msra.mxu0 0.0
        %527 = vmatprep.subr.mxu0 0.0
        %528 = vmatpush1.msra.mxu0 0.0
        %529 = vmatprep.subr.mxu0 0.0
        %530 = vmatpush1.msra.mxu0 0.0
        %531 = vmatprep.subr.mxu0 0.0
        %532 = vmatpush1.msra.mxu0 0.0
        %533 = vmatprep.subr.mxu0 0.0
        %534 = vmatpush1.msra.mxu0 0.0
        %535 = vmatprep.subr.mxu0 0.0
        %536 = vmatpush1.msra.mxu0 0.0
        %537 = vmatprep.subr.mxu0 0.0
        %538 = vmatpush1.msra.mxu0 0.0
        %539 = vmatprep.subr.mxu0 0.0
        %540 = vmatpush1.msra.mxu0 0.0
        %541 = vmatprep.subr.mxu0 0.0
        %542 = vmatpush1.msra.mxu0 0.0
        %543 = vmatprep.subr.mxu0 0.0
        %544 = vmatpush1.msra.mxu0 0.0
        %545 = vmatprep.subr.mxu0 0.0
        %546 = vmatpush1.msra.mxu0 0.0
        %547 = vmatprep.mubr.f32.mxu0 0.0
        %548 = vmatmul.mubr.f32.gmra.mrb[0].mxu0 %v476
        %v549 = vpop.f32.mrb[0].mxu0
        %v550 = vadd.f32 0.0, %v549
        %v551 = vpop.f32.mrb[0].mxu0
        %552 = vmatprep.mubr.f32.mxu0 0.0
        %553 = vmatmul.mubr.f32.gmra.mrb[0].mxu0 %v477
        %v554 = vpop.f32.mrb[0].mxu0
        %v555 = vadd.f32 0.0, %v554
        %v556 = vpop.f32.mrb[0].mxu0
        %557 = vdwg.mxu0
        %558 = vmatprep.subr.mxu0 0.0
        %559 = vmatpush1.msra.mxu0 %v460
        %560 = vmatprep.subr.mxu0 0.0
        %561 = vmatpush1.msra.mxu0 %v461
        %562 = vmatprep.subr.mxu0 0.0
        %563 = vmatpush1.msra.mxu0 %v462
        %564 = vmatprep.subr.mxu0 0.0
        %565 = vmatpush1.msra.mxu0 %v463
        %566 = vmatprep.subr.mxu0 0.0
        %567 = vmatpush1.msra.mxu0 %v464
        %568 = vmatprep.subr.mxu0 0.0
        %569 = vmatpush1.msra.mxu0 %v465
        %570 = vmatprep.subr.mxu0 0.0
        %571 = vmatpush1.msra.mxu0 %v466
        %572 = vmatprep.subr.mxu0 0.0
        %573 = vmatpush1.msra.mxu0 %v467
        %574 = vmatprep.subr.mxu0 0.0
        %575 = vmatpush1.msra.mxu0 %v468
        %576 = vmatprep.subr.mxu0 0.0
        %577 = vmatpush1.msra.mxu0 %v469
        %578 = vmatprep.subr.mxu0 0.0
        %579 = vmatpush1.msra.mxu0 %v470
        %580 = vmatprep.subr.mxu0 0.0
        %581 = vmatpush1.msra.mxu0 %v471
        %582 = vmatprep.subr.mxu0 0.0
        %583 = vmatpush1.msra.mxu0 %v472
        %584 = vmatprep.subr.mxu0 0.0
        %585 = vmatpush1.msra.mxu0 %v473
        %586 = vmatprep.subr.mxu0 0.0
        %587 = vmatpush1.msra.mxu0 %v474
        %588 = vmatprep.subr.mxu0 0.0
        %589 = vmatpush1.msra.mxu0 %v475
        %590 = vmatprep.subr.mxu0 0.0
        %591 = vmatpush1.msra.mxu0 0.0
        %592 = vmatprep.subr.mxu0 0.0
        %593 = vmatpush1.msra.mxu0 0.0
        %594 = vmatprep.subr.mxu0 0.0
        %595 = vmatpush1.msra.mxu0 0.0
        %596 = vmatprep.subr.mxu0 0.0
        %597 = vmatpush1.msra.mxu0 0.0
        %598 = vmatprep.subr.mxu0 0.0
        %599 = vmatpush1.msra.mxu0 0.0
        %600 = vmatprep.subr.mxu0 0.0
        %601 = vmatpush1.msra.mxu0 0.0
        %602 = vmatprep.subr.mxu0 0.0
        %603 = vmatpush1.msra.mxu0 0.0
        %604 = vmatprep.subr.mxu0 0.0
        %605 = vmatpush1.msra.mxu0 0.0
        %606 = vmatprep.subr.mxu0 0.0
        %607 = vmatpush1.msra.mxu0 0.0
        %608 = vmatprep.subr.mxu0 0.0
        %609 = vmatpush1.msra.mxu0 0.0
        %610 = vmatprep.subr.mxu0 0.0
        %611 = vmatpush1.msra.mxu0 0.0
        %612 = vmatprep.subr.mxu0 0.0
        %613 = vmatpush1.msra.mxu0 0.0
        %614 = vmatprep.subr.mxu0 0.0
        %615 = vmatpush1.msra.mxu0 0.0
        %616 = vmatprep.subr.mxu0 0.0
        %617 = vmatpush1.msra.mxu0 0.0
        %618 = vmatprep.subr.mxu0 0.0
        %619 = vmatpush1.msra.mxu0 0.0
        %620 = vmatprep.subr.mxu0 0.0
        %621 = vmatpush1.msra.mxu0 0.0
        %622 = vmatprep.mubr.f32.mxu0 0.0
        %623 = vmatmul.mubr.f32.gmra.mrb[0].mxu0 %v476
        %v624 = vpop.f32.mrb[0].mxu0
        %v625 = vadd.f32 0.0, %v624
        %v626 = vpop.f32.mrb[0].mxu0
        %627 = vmatprep.mubr.f32.mxu0 0.0
        %628 = vmatmul.mubr.f32.gmra.mrb[0].mxu0 %v477
        %v629 = vpop.f32.mrb[0].mxu0
        %v630 = vadd.f32 0.0, %v629
        %v631 = vpop.f32.mrb[0].mxu0
        %632 = vdwg.mxu0
        %v633 = vmul.f32 %v550, %v550
        %v634 = vmul.f32 %v555, %v555
        %vm635 = vcmask 785408
        %v637 = vsel %vm635, %v633, 0
        %v640 = vsel %vm635, %v634, 0
        %v643 = vsel %vm635, %v480, 0
        %645 = vmatprep.subr.mxu0 0.0
        %646 = vmatpush1.xpose.msra.mxu0 %v643
        %647 = vmatprep.subr.mxu0 0.0
        %648 = vmatpush1.xpose.msra.mxu0 0.0
        %649 = vmatprep.subr.mxu0 0.0
        %650 = vmatpush1.xpose.msra.mxu0 0.0
        %651 = vmatprep.subr.mxu0 0.0
        %652 = vmatpush1.xpose.msra.mxu0 0.0
        %653 = vmatprep.subr.mxu0 0.0
        %654 = vmatpush1.xpose.msra.mxu0 0.0
        %655 = vmatprep.subr.mxu0 0.0
        %656 = vmatpush1.xpose.msra.mxu0 0.0
        %657 = vmatprep.subr.mxu0 0.0
        %658 = vmatpush1.xpose.msra.mxu0 0.0
        %659 = vmatprep.subr.mxu0 0.0
        %660 = vmatpush1.xpose.msra.mxu0 0.0
        %661 = vmatprep.subr.mxu0 0.0
        %662 = vmatpush1.xpose.msra.mxu0 0.0
        %663 = vmatprep.subr.mxu0 0.0
        %664 = vmatpush1.xpose.msra.mxu0 0.0
        %665 = vmatprep.subr.mxu0 0.0
        %666 = vmatpush1.xpose.msra.mxu0 0.0
        %667 = vmatprep.subr.mxu0 0.0
        %668 = vmatpush1.xpose.msra.mxu0 0.0
        %669 = vmatprep.subr.mxu0 0.0
        %670 = vmatpush1.xpose.msra.mxu0 0.0
        %671 = vmatprep.subr.mxu0 0.0
        %672 = vmatpush1.xpose.msra.mxu0 0.0
        %673 = vmatprep.subr.mxu0 0.0
        %674 = vmatpush1.xpose.msra.mxu0 0.0
        %675 = vmatprep.subr.mxu0 0.0
        %676 = vmatpush1.xpose.msra.mxu0 0.0
        %677 = vmatprep.subr.mxu0 0.0
        %678 = vmatpush1.xpose.msra.mxu0 0.0
        %679 = vmatprep.subr.mxu0 0.0
        %680 = vmatpush1.xpose.msra.mxu0 0.0
        %681 = vmatprep.subr.mxu0 0.0
        %682 = vmatpush1.xpose.msra.mxu0 0.0
        %683 = vmatprep.subr.mxu0 0.0
        %684 = vmatpush1.xpose.msra.mxu0 0.0
        %685 = vmatprep.subr.mxu0 0.0
        %686 = vmatpush1.xpose.msra.mxu0 0.0
        %687 = vmatprep.subr.mxu0 0.0
        %688 = vmatpush1.xpose.msra.mxu0 0.0
        %689 = vmatprep.subr.mxu0 0.0
        %690 = vmatpush1.xpose.msra.mxu0 0.0
        %691 = vmatprep.subr.mxu0 0.0
        %692 = vmatpush1.xpose.msra.mxu0 0.0
        %693 = vmatprep.subr.mxu0 0.0
        %694 = vmatpush1.xpose.msra.mxu0 0.0
        %695 = vmatprep.subr.mxu0 0.0
        %696 = vmatpush1.xpose.msra.mxu0 0.0
        %697 = vmatprep.subr.mxu0 0.0
        %698 = vmatpush1.xpose.msra.mxu0 0.0
        %699 = vmatprep.subr.mxu0 0.0
        %700 = vmatpush1.xpose.msra.mxu0 0.0
        %701 = vmatprep.subr.mxu0 0.0
        %702 = vmatpush1.xpose.msra.mxu0 0.0
        %703 = vmatprep.subr.mxu0 0.0
        %704 = vmatpush1.xpose.msra.mxu0 0.0
        %705 = vmatprep.subr.mxu0 0.0
        %706 = vmatpush1.xpose.msra.mxu0 0.0
        %707 = vmatprep.subr.mxu0 0.0
        %708 = vmatpush1.xpose.msra.mxu0 0.0
        %709 = vmatprep.mubr.f32.mxu0 0.0
        %710 = vmatmul.mubr.f32.gmra.mrb[0].mxu0 %v637
        %v711 = vpop.f32.mrb[0].mxu0
        %v712 = vadd.f32 0.0, %v711
        %v713 = vpop.f32.mrb[0].mxu0
        %714 = vmatprep.mubr.f32.mxu0 0.0
        %715 = vmatmul.mubr.f32.gmra.mrb[0].mxu0 %v640
        %v716 = vpop.f32.mrb[0].mxu0
        %v717 = vadd.f32 0.0, %v716
        %v718 = vpop.f32.mrb[0].mxu0
        %719 = vdwg.mxu0
        %v720 = vmax.f32 %v712, 1e-24
        %v721 = vmax.f32 %v717, 1e-24
        %v722 = vrsqrt.pop %v720
        %v723 = vrsqrt.pop %v721
        %vm724 = vcmask 31744
        %v726 = vsel %vm724, %v722, 0
        %v729 = vsel %vm724, %v723, 0
        %vm731 = vcmask 1043456
        %v732 = vsel %vm731, %v480, 0
        %734 = vmatprep.subr.mxu0 0.0
        %735 = vmatpush1.msra.mxu0 %v732
        %736 = vmatprep.subr.mxu0 0.0
        %737 = vmatpush1.msra.mxu0 0.0
        %738 = vmatprep.subr.mxu0 0.0
        %739 = vmatpush1.msra.mxu0 0.0
        %740 = vmatprep.subr.mxu0 0.0
        %741 = vmatpush1.msra.mxu0 0.0
        %742 = vmatprep.subr.mxu0 0.0
        %743 = vmatpush1.msra.mxu0 0.0
        %744 = vmatprep.subr.mxu0 0.0
        %745 = vmatpush1.msra.mxu0 0.0
        %746 = vmatprep.subr.mxu0 0.0
        %747 = vmatpush1.msra.mxu0 0.0
        %748 = vmatprep.subr.mxu0 0.0
        %749 = vmatpush1.msra.mxu0 0.0
        %750 = vmatprep.subr.mxu0 0.0
        %751 = vmatpush1.msra.mxu0 0.0
        %752 = vmatprep.subr.mxu0 0.0
        %753 = vmatpush1.msra.mxu0 0.0
        %754 = vmatprep.subr.mxu0 0.0
        %755 = vmatpush1.msra.mxu0 0.0
        %756 = vmatprep.subr.mxu0 0.0
        %757 = vmatpush1.msra.mxu0 0.0
        %758 = vmatprep.subr.mxu0 0.0
        %759 = vmatpush1.msra.mxu0 0.0
        %760 = vmatprep.subr.mxu0 0.0
        %761 = vmatpush1.msra.mxu0 0.0
        %762 = vmatprep.subr.mxu0 0.0
        %763 = vmatpush1.msra.mxu0 0.0
        %764 = vmatprep.subr.mxu0 0.0
        %765 = vmatpush1.msra.mxu0 0.0
        %766 = vmatprep.subr.mxu0 0.0
        %767 = vmatpush1.msra.mxu0 0.0
        %768 = vmatprep.subr.mxu0 0.0
        %769 = vmatpush1.msra.mxu0 0.0
        %770 = vmatprep.subr.mxu0 0.0
        %771 = vmatpush1.msra.mxu0 0.0
        %772 = vmatprep.subr.mxu0 0.0
        %773 = vmatpush1.msra.mxu0 0.0
        %774 = vmatprep.subr.mxu0 0.0
        %775 = vmatpush1.msra.mxu0 0.0
        %776 = vmatprep.subr.mxu0 0.0
        %777 = vmatpush1.msra.mxu0 0.0
        %778 = vmatprep.subr.mxu0 0.0
        %779 = vmatpush1.msra.mxu0 0.0
        %780 = vmatprep.subr.mxu0 0.0
        %781 = vmatpush1.msra.mxu0 0.0
        %782 = vmatprep.subr.mxu0 0.0
        %783 = vmatpush1.msra.mxu0 0.0
        %784 = vmatprep.subr.mxu0 0.0
        %785 = vmatpush1.msra.mxu0 0.0
        %786 = vmatprep.subr.mxu0 0.0
        %787 = vmatpush1.msra.mxu0 0.0
        %788 = vmatprep.subr.mxu0 0.0
        %789 = vmatpush1.msra.mxu0 0.0
        %790 = vmatprep.subr.mxu0 0.0
        %791 = vmatpush1.msra.mxu0 0.0
        %792 = vmatprep.subr.mxu0 0.0
        %793 = vmatpush1.msra.mxu0 0.0
        %794 = vmatprep.subr.mxu0 0.0
        %795 = vmatpush1.msra.mxu0 0.0
        %796 = vmatprep.subr.mxu0 0.0
        %797 = vmatpush1.msra.mxu0 0.0
        %798 = vmatprep.mubr.f32.mxu0 0.0
        %799 = vmatmul.mubr.f32.gmra.mrb[0].mxu0 %v726
        %v800 = vpop.f32.mrb[0].mxu0
        %v801 = vadd.f32 0.0, %v800
        %v802 = vpop.f32.mrb[0].mxu0
        %803 = vmatprep.mubr.f32.mxu0 0.0
        %804 = vmatmul.mubr.f32.gmra.mrb[0].mxu0 %v729
        %v805 = vpop.f32.mrb[0].mxu0
        %v806 = vadd.f32 0.0, %v805
        %v807 = vpop.f32.mrb[0].mxu0
        %808 = vdwg.mxu0
        %v809 = vmul.f32 %v550, %v801
        %v810 = vmul.f32 %v555, %v806
        %v811 = vmul.f32 %v443, %v443
        %v812 = vmul.f32 %v444, %v444
        %v813 = vmul.f32 %v445, %v445
        %v814 = vmul.f32 %v446, %v446
        %v815 = vmul.f32 %v447, %v447
        %v816 = vmul.f32 %v448, %v448
        %v817 = vmul.f32 %v449, %v449
        %v818 = vmul.f32 %v450, %v450
        %v819 = vmul.f32 %v451, %v451
        %v820 = vmul.f32 %v452, %v452
        %v821 = vmul.f32 %v453, %v453
        %v822 = vmul.f32 %v454, %v454
        %v823 = vmul.f32 %v455, %v455
        %v824 = vmul.f32 %v456, %v456
        %v825 = vmul.f32 %v457, %v457
        %v826 = vmul.f32 %v458, %v458
        %v828 = vsel %vm635, %v811, 0
        %v831 = vsel %vm635, %v812, 0
        %v834 = vsel %vm635, %v813, 0
        %v837 = vsel %vm635, %v814, 0
        %v840 = vsel %vm635, %v815, 0
        %v843 = vsel %vm635, %v816, 0
        %v846 = vsel %vm635, %v817, 0
        %v849 = vsel %vm635, %v818, 0
        %v852 = vsel %vm635, %v819, 0
        %v855 = vsel %vm635, %v820, 0
        %v858 = vsel %vm635, %v821, 0
        %v861 = vsel %vm635, %v822, 0
        %v864 = vsel %vm635, %v823, 0
        %v867 = vsel %vm635, %v824, 0
        %v870 = vsel %vm635, %v825, 0
        %v873 = vsel %vm635, %v826, 0
        %875 = vmatprep.subr.mxu0 0.0
        %876 = vmatpush1.xpose.msra.mxu0 %v643
        %877 = vmatprep.subr.mxu0 0.0
        %878 = vmatpush1.xpose.msra.mxu0 0.0
        %879 = vmatprep.subr.mxu0 0.0
        %880 = vmatpush1.xpose.msra.mxu0 0.0
        %881 = vmatprep.subr.mxu0 0.0
        %882 = vmatpush1.xpose.msra.mxu0 0.0
        %883 = vmatprep.subr.mxu0 0.0
        %884 = vmatpush1.xpose.msra.mxu0 0.0
        %885 = vmatprep.subr.mxu0 0.0
        %886 = vmatpush1.xpose.msra.mxu0 0.0
        %887 = vmatprep.subr.mxu0 0.0
        %888 = vmatpush1.xpose.msra.mxu0 0.0
        %889 = vmatprep.subr.mxu0 0.0
        %890 = vmatpush1.xpose.msra.mxu0 0.0
        %891 = vmatprep.subr.mxu0 0.0
        %892 = vmatpush1.xpose.msra.mxu0 0.0
        %893 = vmatprep.subr.mxu0 0.0
        %894 = vmatpush1.xpose.msra.mxu0 0.0
        %895 = vmatprep.subr.mxu0 0.0
        %896 = vmatpush1.xpose.msra.mxu0 0.0
        %897 = vmatprep.subr.mxu0 0.0
        %898 = vmatpush1.xpose.msra.mxu0 0.0
        %899 = vmatprep.subr.mxu0 0.0
        %900 = vmatpush1.xpose.msra.mxu0 0.0
        %901 = vmatprep.subr.mxu0 0.0
        %902 = vmatpush1.xpose.msra.mxu0 0.0
        %903 = vmatprep.subr.mxu0 0.0
        %904 = vmatpush1.xpose.msra.mxu0 0.0
        %905 = vmatprep.subr.mxu0 0.0
        %906 = vmatpush1.xpose.msra.mxu0 0.0
        %907 = vmatprep.subr.mxu0 0.0
        %908 = vmatpush1.xpose.msra.mxu0 0.0
        %909 = vmatprep.subr.mxu0 0.0
        %910 = vmatpush1.xpose.msra.mxu0 0.0
        %911 = vmatprep.subr.mxu0 0.0
        %912 = vmatpush1.xpose.msra.mxu0 0.0
        %913 = vmatprep.subr.mxu0 0.0
        %914 = vmatpush1.xpose.msra.mxu0 0.0
        %915 = vmatprep.subr.mxu0 0.0
        %916 = vmatpush1.xpose.msra.mxu0 0.0
        %917 = vmatprep.subr.mxu0 0.0
        %918 = vmatpush1.xpose.msra.mxu0 0.0
        %919 = vmatprep.subr.mxu0 0.0
        %920 = vmatpush1.xpose.msra.mxu0 0.0
        %921 = vmatprep.subr.mxu0 0.0
        %922 = vmatpush1.xpose.msra.mxu0 0.0
        %923 = vmatprep.subr.mxu0 0.0
        %924 = vmatpush1.xpose.msra.mxu0 0.0
        %925 = vmatprep.subr.mxu0 0.0
        %926 = vmatpush1.xpose.msra.mxu0 0.0
        %927 = vmatprep.subr.mxu0 0.0
        %928 = vmatpush1.xpose.msra.mxu0 0.0
        %929 = vmatprep.subr.mxu0 0.0
        %930 = vmatpush1.xpose.msra.mxu0 0.0
        %931 = vmatprep.subr.mxu0 0.0
        %932 = vmatpush1.xpose.msra.mxu0 0.0
        %933 = vmatprep.subr.mxu0 0.0
        %934 = vmatpush1.xpose.msra.mxu0 0.0
        %935 = vmatprep.subr.mxu0 0.0
        %936 = vmatpush1.xpose.msra.mxu0 0.0
        %937 = vmatprep.subr.mxu0 0.0
        %938 = vmatpush1.xpose.msra.mxu0 0.0
        %939 = vmatprep.mubr.f32.mxu0 0.0
        %940 = vmatmul.mubr.f32.gmra.mrb[0].mxu0 %v828
        %v941 = vpop.f32.mrb[0].mxu0
        %v942 = vadd.f32 0.0, %v941
        %v943 = vpop.f32.mrb[0].mxu0
        %944 = vmatprep.mubr.f32.mxu0 0.0
        %945 = vmatmul.mubr.f32.gmra.mrb[0].mxu0 %v831
        %v946 = vpop.f32.mrb[0].mxu0
        %v947 = vadd.f32 0.0, %v946
        %v948 = vpop.f32.mrb[0].mxu0
        %949 = vmatprep.mubr.f32.mxu0 0.0
        %950 = vmatmul.mubr.f32.gmra.mrb[0].mxu0 %v834
        %v951 = vpop.f32.mrb[0].mxu0
        %v952 = vadd.f32 0.0, %v951
        %v953 = vpop.f32.mrb[0].mxu0
        %954 = vmatprep.mubr.f32.mxu0 0.0
        %955 = vmatmul.mubr.f32.gmra.mrb[0].mxu0 %v837
        %v956 = vpop.f32.mrb[0].mxu0
        %v957 = vadd.f32 0.0, %v956
        %v958 = vpop.f32.mrb[0].mxu0
        %959 = vmatprep.mubr.f32.mxu0 0.0
        %960 = vmatmul.mubr.f32.gmra.mrb[0].mxu0 %v840
        %v961 = vpop.f32.mrb[0].mxu0
        %v962 = vadd.f32 0.0, %v961
        %v963 = vpop.f32.mrb[0].mxu0
        %964 = vmatprep.mubr.f32.mxu0 0.0
        %965 = vmatmul.mubr.f32.gmra.mrb[0].mxu0 %v843
        %v966 = vpop.f32.mrb[0].mxu0
        %v967 = vadd.f32 0.0, %v966
        %v968 = vpop.f32.mrb[0].mxu0
        %969 = vmatprep.mubr.f32.mxu0 0.0
        %970 = vmatmul.mubr.f32.gmra.mrb[0].mxu0 %v846
        %v971 = vpop.f32.mrb[0].mxu0
        %v972 = vadd.f32 0.0, %v971
        %v973 = vpop.f32.mrb[0].mxu0
        %974 = vmatprep.mubr.f32.mxu0 0.0
        %975 = vmatmul.mubr.f32.gmra.mrb[0].mxu0 %v849
        %v976 = vpop.f32.mrb[0].mxu0
        %v977 = vadd.f32 0.0, %v976
        %v978 = vpop.f32.mrb[0].mxu0
        %979 = vmatprep.mubr.f32.mxu0 0.0
        %980 = vmatmul.mubr.f32.gmra.mrb[0].mxu0 %v852
        %v981 = vpop.f32.mrb[0].mxu0
        %v982 = vadd.f32 0.0, %v981
        %v983 = vpop.f32.mrb[0].mxu0
        %984 = vmatprep.mubr.f32.mxu0 0.0
        %985 = vmatmul.mubr.f32.gmra.mrb[0].mxu0 %v855
        %v986 = vpop.f32.mrb[0].mxu0
        %v987 = vadd.f32 0.0, %v986
        %v988 = vpop.f32.mrb[0].mxu0
        %989 = vmatprep.mubr.f32.mxu0 0.0
        %990 = vmatmul.mubr.f32.gmra.mrb[0].mxu0 %v858
        %v991 = vpop.f32.mrb[0].mxu0
        %v992 = vadd.f32 0.0, %v991
        %v993 = vpop.f32.mrb[0].mxu0
        %994 = vmatprep.mubr.f32.mxu0 0.0
        %995 = vmatmul.mubr.f32.gmra.mrb[0].mxu0 %v861
        %v996 = vpop.f32.mrb[0].mxu0
        %v997 = vadd.f32 0.0, %v996
        %v998 = vpop.f32.mrb[0].mxu0
        %999 = vmatprep.mubr.f32.mxu0 0.0
        %1000 = vmatmul.mubr.f32.gmra.mrb[0].mxu0 %v864
        %v1001 = vpop.f32.mrb[0].mxu0
        %v1002 = vadd.f32 0.0, %v1001
        %v1003 = vpop.f32.mrb[0].mxu0
        %1004 = vmatprep.mubr.f32.mxu0 0.0
        %1005 = vmatmul.mubr.f32.gmra.mrb[0].mxu0 %v867
        %v1006 = vpop.f32.mrb[0].mxu0
        %v1007 = vadd.f32 0.0, %v1006
        %v1008 = vpop.f32.mrb[0].mxu0
        %1009 = vmatprep.mubr.f32.mxu0 0.0
        %1010 = vmatmul.mubr.f32.gmra.mrb[0].mxu0 %v870
        %v1011 = vpop.f32.mrb[0].mxu0
        %v1012 = vadd.f32 0.0, %v1011
        %v1013 = vpop.f32.mrb[0].mxu0
        %1014 = vmatprep.mubr.f32.mxu0 0.0
        %1015 = vmatmul.mubr.f32.gmra.mrb[0].mxu0 %v873
        %v1016 = vpop.f32.mrb[0].mxu0
        %v1017 = vadd.f32 0.0, %v1016
        %v1018 = vpop.f32.mrb[0].mxu0
        %1019 = vdwg.mxu0
        %v1020 = vmax.f32 %v942, 1e-24
        %v1021 = vmax.f32 %v947, 1e-24
        %v1022 = vmax.f32 %v952, 1e-24
        %v1023 = vmax.f32 %v957, 1e-24
        %v1024 = vmax.f32 %v962, 1e-24
        %v1025 = vmax.f32 %v967, 1e-24
        %v1026 = vmax.f32 %v972, 1e-24
        %v1027 = vmax.f32 %v977, 1e-24
        %v1028 = vmax.f32 %v982, 1e-24
        %v1029 = vmax.f32 %v987, 1e-24
        %v1030 = vmax.f32 %v992, 1e-24
        %v1031 = vmax.f32 %v997, 1e-24
        %v1032 = vmax.f32 %v1002, 1e-24
        %v1033 = vmax.f32 %v1007, 1e-24
        %v1034 = vmax.f32 %v1012, 1e-24
        %v1035 = vmax.f32 %v1017, 1e-24
        %v1036 = vrsqrt.pop %v1020
        %v1037 = vrsqrt.pop %v1021
        %v1038 = vrsqrt.pop %v1022
        %v1039 = vrsqrt.pop %v1023
        %v1040 = vrsqrt.pop %v1024
        %v1041 = vrsqrt.pop %v1025
        %v1042 = vrsqrt.pop %v1026
        %v1043 = vrsqrt.pop %v1027
        %v1044 = vrsqrt.pop %v1028
        %v1045 = vrsqrt.pop %v1029
        %v1046 = vrsqrt.pop %v1030
        %v1047 = vrsqrt.pop %v1031
        %v1048 = vrsqrt.pop %v1032
        %v1049 = vrsqrt.pop %v1033
        %v1050 = vrsqrt.pop %v1034
        %v1051 = vrsqrt.pop %v1035
        %v1053 = vsel %vm724, %v1036, 0
        %v1056 = vsel %vm724, %v1037, 0
        %v1059 = vsel %vm724, %v1038, 0
        %v1062 = vsel %vm724, %v1039, 0
        %v1065 = vsel %vm724, %v1040, 0
        %v1068 = vsel %vm724, %v1041, 0
        %v1071 = vsel %vm724, %v1042, 0
        %v1074 = vsel %vm724, %v1043, 0
        %v1077 = vsel %vm724, %v1044, 0
        %v1080 = vsel %vm724, %v1045, 0
        %v1083 = vsel %vm724, %v1046, 0
        %v1086 = vsel %vm724, %v1047, 0
        %v1089 = vsel %vm724, %v1048, 0
        %v1092 = vsel %vm724, %v1049, 0
        %v1095 = vsel %vm724, %v1050, 0
        %v1098 = vsel %vm724, %v1051, 0
        %1100 = vmatprep.subr.mxu0 0.0
        %1101 = vmatpush1.msra.mxu0 %v732
        %1102 = vmatprep.subr.mxu0 0.0
        %1103 = vmatpush1.msra.mxu0 0.0
        %1104 = vmatprep.subr.mxu0 0.0
        %1105 = vmatpush1.msra.mxu0 0.0
        %1106 = vmatprep.subr.mxu0 0.0
        %1107 = vmatpush1.msra.mxu0 0.0
        %1108 = vmatprep.subr.mxu0 0.0
        %1109 = vmatpush1.msra.mxu0 0.0
        %1110 = vmatprep.subr.mxu0 0.0
        %1111 = vmatpush1.msra.mxu0 0.0
        %1112 = vmatprep.subr.mxu0 0.0
        %1113 = vmatpush1.msra.mxu0 0.0
        %1114 = vmatprep.subr.mxu0 0.0
        %1115 = vmatpush1.msra.mxu0 0.0
        %1116 = vmatprep.subr.mxu0 0.0
        %1117 = vmatpush1.msra.mxu0 0.0
        %1118 = vmatprep.subr.mxu0 0.0
        %1119 = vmatpush1.msra.mxu0 0.0
        %1120 = vmatprep.subr.mxu0 0.0
        %1121 = vmatpush1.msra.mxu0 0.0
        %1122 = vmatprep.subr.mxu0 0.0
        %1123 = vmatpush1.msra.mxu0 0.0
        %1124 = vmatprep.subr.mxu0 0.0
        %1125 = vmatpush1.msra.mxu0 0.0
        %1126 = vmatprep.subr.mxu0 0.0
        %1127 = vmatpush1.msra.mxu0 0.0
        %1128 = vmatprep.subr.mxu0 0.0
        %1129 = vmatpush1.msra.mxu0 0.0
        %1130 = vmatprep.subr.mxu0 0.0
        %1131 = vmatpush1.msra.mxu0 0.0
        %1132 = vmatprep.subr.mxu0 0.0
        %1133 = vmatpush1.msra.mxu0 0.0
        %1134 = vmatprep.subr.mxu0 0.0
        %1135 = vmatpush1.msra.mxu0 0.0
        %1136 = vmatprep.subr.mxu0 0.0
        %1137 = vmatpush1.msra.mxu0 0.0
        %1138 = vmatprep.subr.mxu0 0.0
        %1139 = vmatpush1.msra.mxu0 0.0
        %1140 = vmatprep.subr.mxu0 0.0
        %1141 = vmatpush1.msra.mxu0 0.0
        %1142 = vmatprep.subr.mxu0 0.0
        %1143 = vmatpush1.msra.mxu0 0.0
        %1144 = vmatprep.subr.mxu0 0.0
        %1145 = vmatpush1.msra.mxu0 0.0
        %1146 = vmatprep.subr.mxu0 0.0
        %1147 = vmatpush1.msra.mxu0 0.0
        %1148 = vmatprep.subr.mxu0 0.0
        %1149 = vmatpush1.msra.mxu0 0.0
        %1150 = vmatprep.subr.mxu0 0.0
        %1151 = vmatpush1.msra.mxu0 0.0
        %1152 = vmatprep.subr.mxu0 0.0
        %1153 = vmatpush1.msra.mxu0 0.0
        %1154 = vmatprep.subr.mxu0 0.0
        %1155 = vmatpush1.msra.mxu0 0.0
        %1156 = vmatprep.subr.mxu0 0.0
        %1157 = vmatpush1.msra.mxu0 0.0
        %1158 = vmatprep.subr.mxu0 0.0
        %1159 = vmatpush1.msra.mxu0 0.0
        %1160 = vmatprep.subr.mxu0 0.0
        %1161 = vmatpush1.msra.mxu0 0.0
        %1162 = vmatprep.subr.mxu0 0.0
        %1163 = vmatpush1.msra.mxu0 0.0
        %1164 = vmatprep.mubr.f32.mxu0 0.0
        %1165 = vmatmul.mubr.f32.gmra.mrb[0].mxu0 %v1053
        %v1166 = vpop.f32.mrb[0].mxu0
        %v1167 = vadd.f32 0.0, %v1166
        %v1168 = vpop.f32.mrb[0].mxu0
        %1169 = vmatprep.mubr.f32.mxu0 0.0
        %1170 = vmatmul.mubr.f32.gmra.mrb[0].mxu0 %v1056
        %v1171 = vpop.f32.mrb[0].mxu0
        %v1172 = vadd.f32 0.0, %v1171
        %v1173 = vpop.f32.mrb[0].mxu0
        %1174 = vmatprep.mubr.f32.mxu0 0.0
        %1175 = vmatmul.mubr.f32.gmra.mrb[0].mxu0 %v1059
        %v1176 = vpop.f32.mrb[0].mxu0
        %v1177 = vadd.f32 0.0, %v1176
        %v1178 = vpop.f32.mrb[0].mxu0
        %1179 = vmatprep.mubr.f32.mxu0 0.0
        %1180 = vmatmul.mubr.f32.gmra.mrb[0].mxu0 %v1062
        %v1181 = vpop.f32.mrb[0].mxu0
        %v1182 = vadd.f32 0.0, %v1181
        %v1183 = vpop.f32.mrb[0].mxu0
        %1184 = vmatprep.mubr.f32.mxu0 0.0
        %1185 = vmatmul.mubr.f32.gmra.mrb[0].mxu0 %v1065
        %v1186 = vpop.f32.mrb[0].mxu0
        %v1187 = vadd.f32 0.0, %v1186
        %v1188 = vpop.f32.mrb[0].mxu0
        %1189 = vmatprep.mubr.f32.mxu0 0.0
        %1190 = vmatmul.mubr.f32.gmra.mrb[0].mxu0 %v1068
        %v1191 = vpop.f32.mrb[0].mxu0
        %v1192 = vadd.f32 0.0, %v1191
        %v1193 = vpop.f32.mrb[0].mxu0
        %1194 = vmatprep.mubr.f32.mxu0 0.0
        %1195 = vmatmul.mubr.f32.gmra.mrb[0].mxu0 %v1071
        %v1196 = vpop.f32.mrb[0].mxu0
        %v1197 = vadd.f32 0.0, %v1196
        %v1198 = vpop.f32.mrb[0].mxu0
        %1199 = vmatprep.mubr.f32.mxu0 0.0
        %1200 = vmatmul.mubr.f32.gmra.mrb[0].mxu0 %v1074
        %v1201 = vpop.f32.mrb[0].mxu0
        %v1202 = vadd.f32 0.0, %v1201
        %v1203 = vpop.f32.mrb[0].mxu0
        %1204 = vmatprep.mubr.f32.mxu0 0.0
        %1205 = vmatmul.mubr.f32.gmra.mrb[0].mxu0 %v1077
        %v1206 = vpop.f32.mrb[0].mxu0
        %v1207 = vadd.f32 0.0, %v1206
        %v1208 = vpop.f32.mrb[0].mxu0
        %1209 = vmatprep.mubr.f32.mxu0 0.0
        %1210 = vmatmul.mubr.f32.gmra.mrb[0].mxu0 %v1080
        %v1211 = vpop.f32.mrb[0].mxu0
        %v1212 = vadd.f32 0.0, %v1211
        %v1213 = vpop.f32.mrb[0].mxu0
        %1214 = vmatprep.mubr.f32.mxu0 0.0
        %1215 = vmatmul.mubr.f32.gmra.mrb[0].mxu0 %v1083
        %v1216 = vpop.f32.mrb[0].mxu0
        %v1217 = vadd.f32 0.0, %v1216
        %v1218 = vpop.f32.mrb[0].mxu0
        %1219 = vmatprep.mubr.f32.mxu0 0.0
        %1220 = vmatmul.mubr.f32.gmra.mrb[0].mxu0 %v1086
        %v1221 = vpop.f32.mrb[0].mxu0
        %v1222 = vadd.f32 0.0, %v1221
        %v1223 = vpop.f32.mrb[0].mxu0
        %1224 = vmatprep.mubr.f32.mxu0 0.0
        %1225 = vmatmul.mubr.f32.gmra.mrb[0].mxu0 %v1089
        %v1226 = vpop.f32.mrb[0].mxu0
        %v1227 = vadd.f32 0.0, %v1226
        %v1228 = vpop.f32.mrb[0].mxu0
        %1229 = vmatprep.mubr.f32.mxu0 0.0
        %1230 = vmatmul.mubr.f32.gmra.mrb[0].mxu0 %v1092
        %v1231 = vpop.f32.mrb[0].mxu0
        %v1232 = vadd.f32 0.0, %v1231
        %v1233 = vpop.f32.mrb[0].mxu0
        %1234 = vmatprep.mubr.f32.mxu0 0.0
        %1235 = vmatmul.mubr.f32.gmra.mrb[0].mxu0 %v1095
        %v1236 = vpop.f32.mrb[0].mxu0
        %v1237 = vadd.f32 0.0, %v1236
        %v1238 = vpop.f32.mrb[0].mxu0
        %1239 = vmatprep.mubr.f32.mxu0 0.0
        %1240 = vmatmul.mubr.f32.gmra.mrb[0].mxu0 %v1098
        %v1241 = vpop.f32.mrb[0].mxu0
        %v1242 = vadd.f32 0.0, %v1241
        %v1243 = vpop.f32.mrb[0].mxu0
        %1244 = vdwg.mxu0
        %v1245 = vmul.f32 %v443, %v1167
        %v1246 = vmul.f32 %v444, %v1172
        %v1247 = vmul.f32 %v445, %v1177
        %v1248 = vmul.f32 %v446, %v1182
        %v1249 = vmul.f32 %v447, %v1187
        %v1250 = vmul.f32 %v448, %v1192
        %v1251 = vmul.f32 %v449, %v1197
        %v1252 = vmul.f32 %v450, %v1202
        %v1253 = vmul.f32 %v451, %v1207
        %v1254 = vmul.f32 %v452, %v1212
        %v1255 = vmul.f32 %v453, %v1217
        %v1256 = vmul.f32 %v454, %v1222
        %v1257 = vmul.f32 %v455, %v1227
        %v1258 = vmul.f32 %v456, %v1232
        %v1259 = vmul.f32 %v457, %v1237
        %v1260 = vmul.f32 %v458, %v1242
        %v1261 = vlaneseq
        %v1262 = vshrl.u32 %v1261, 7
        %v1263 = vadd.s32 %v1262, 8
        %v1264 = vlaneseq
        %v1265 = vshrl.u32 %v1264, 7
        %v1266 = vsub.s32 0, %v1265
        %v1267 = vrot.slane %v480, %v1266
        %v1268 = vmul.f32 %v809, %v1267
        %v1269 = vmul.f32 %v810, %v1267
        %v1271 = vsel %vm635, %v1268, 0
        %v1274 = vsel %vm635, %v1269, 0
        %v1277 = vsel %vm635, %v1245, 0
        %v1280 = vsel %vm635, %v1246, 0
        %v1283 = vsel %vm635, %v1247, 0
        %v1286 = vsel %vm635, %v1248, 0
        %v1289 = vsel %vm635, %v1249, 0
        %v1292 = vsel %vm635, %v1250, 0
        %v1295 = vsel %vm635, %v1251, 0
        %v1298 = vsel %vm635, %v1252, 0
        %v1301 = vsel %vm635, %v1253, 0
        %v1304 = vsel %vm635, %v1254, 0
        %v1307 = vsel %vm635, %v1255, 0
        %v1310 = vsel %vm635, %v1256, 0
        %v1313 = vsel %vm635, %v1257, 0
        %v1316 = vsel %vm635, %v1258, 0
        %v1319 = vsel %vm635, %v1259, 0
        %v1322 = vsel %vm635, %v1260, 0
        %1324 = vmatprep.subr.mxu0 0.0
        %1325 = vmatpush1.xpose.msra.mxu0 %v1277
        %1326 = vmatprep.subr.mxu0 0.0
        %1327 = vmatpush1.xpose.msra.mxu0 %v1280
        %1328 = vmatprep.subr.mxu0 0.0
        %1329 = vmatpush1.xpose.msra.mxu0 %v1283
        %1330 = vmatprep.subr.mxu0 0.0
        %1331 = vmatpush1.xpose.msra.mxu0 %v1286
        %1332 = vmatprep.subr.mxu0 0.0
        %1333 = vmatpush1.xpose.msra.mxu0 %v1289
        %1334 = vmatprep.subr.mxu0 0.0
        %1335 = vmatpush1.xpose.msra.mxu0 %v1292
        %1336 = vmatprep.subr.mxu0 0.0
        %1337 = vmatpush1.xpose.msra.mxu0 %v1295
        %1338 = vmatprep.subr.mxu0 0.0
        %1339 = vmatpush1.xpose.msra.mxu0 %v1298
        %1340 = vmatprep.subr.mxu0 0.0
        %1341 = vmatpush1.xpose.msra.mxu0 %v1301
        %1342 = vmatprep.subr.mxu0 0.0
        %1343 = vmatpush1.xpose.msra.mxu0 %v1304
        %1344 = vmatprep.subr.mxu0 0.0
        %1345 = vmatpush1.xpose.msra.mxu0 %v1307
        %1346 = vmatprep.subr.mxu0 0.0
        %1347 = vmatpush1.xpose.msra.mxu0 %v1310
        %1348 = vmatprep.subr.mxu0 0.0
        %1349 = vmatpush1.xpose.msra.mxu0 %v1313
        %1350 = vmatprep.subr.mxu0 0.0
        %1351 = vmatpush1.xpose.msra.mxu0 %v1316
        %1352 = vmatprep.subr.mxu0 0.0
        %1353 = vmatpush1.xpose.msra.mxu0 %v1319
        %1354 = vmatprep.subr.mxu0 0.0
        %1355 = vmatpush1.xpose.msra.mxu0 %v1322
        %1356 = vmatprep.subr.mxu0 0.0
        %1357 = vmatpush1.xpose.msra.mxu0 0.0
        %1358 = vmatprep.subr.mxu0 0.0
        %1359 = vmatpush1.xpose.msra.mxu0 0.0
        %1360 = vmatprep.subr.mxu0 0.0
        %1361 = vmatpush1.xpose.msra.mxu0 0.0
        %1362 = vmatprep.subr.mxu0 0.0
        %1363 = vmatpush1.xpose.msra.mxu0 0.0
        %1364 = vmatprep.subr.mxu0 0.0
        %1365 = vmatpush1.xpose.msra.mxu0 0.0
        %1366 = vmatprep.subr.mxu0 0.0
        %1367 = vmatpush1.xpose.msra.mxu0 0.0
        %1368 = vmatprep.subr.mxu0 0.0
        %1369 = vmatpush1.xpose.msra.mxu0 0.0
        %1370 = vmatprep.subr.mxu0 0.0
        %1371 = vmatpush1.xpose.msra.mxu0 0.0
        %1372 = vmatprep.subr.mxu0 0.0
        %1373 = vmatpush1.xpose.msra.mxu0 0.0
        %1374 = vmatprep.subr.mxu0 0.0
        %1375 = vmatpush1.xpose.msra.mxu0 0.0
        %1376 = vmatprep.subr.mxu0 0.0
        %1377 = vmatpush1.xpose.msra.mxu0 0.0
        %1378 = vmatprep.subr.mxu0 0.0
        %1379 = vmatpush1.xpose.msra.mxu0 0.0
        %1380 = vmatprep.subr.mxu0 0.0
        %1381 = vmatpush1.xpose.msra.mxu0 0.0
        %1382 = vmatprep.subr.mxu0 0.0
        %1383 = vmatpush1.xpose.msra.mxu0 0.0
        %1384 = vmatprep.subr.mxu0 0.0
        %1385 = vmatpush1.xpose.msra.mxu0 0.0
        %1386 = vmatprep.subr.mxu0 0.0
        %1387 = vmatpush1.xpose.msra.mxu0 0.0
        %1388 = vmatprep.mubr.f32.mxu0 0.0
        %1389 = vmatmul.mubr.f32.gmra.mrb[0].mxu0 %v1271
        %v1390 = vpop.f32.mrb[0].mxu0
        %v1391 = vadd.f32 0.0, %v1390
        %v1392 = vpop.f32.mrb[0].mxu0
        %1393 = vmatprep.mubr.f32.mxu0 0.0
        %1394 = vmatmul.mubr.f32.gmra.mrb[0].mxu0 %v1274
        %v1395 = vpop.f32.mrb[0].mxu0
        %v1396 = vadd.f32 0.0, %v1395
        %v1397 = vpop.f32.mrb[0].mxu0
        %1398 = vdwg.mxu0
        %v1399 = vstv %s481
        %v1400 = vmul.f32 %v1399, %v1391
        %v1401 = vmul.f32 %v1399, %v1396
        %v1402 = vstv %s482
        %v1403 = vadd.f32 %v1402, %v1400
        %v1404 = vadd.f32 %v1402, %v1401
        %v1405 = vxor.u32 %v1403, 2147483648
        %v1406 = vxor.u32 %v1404, 2147483648
        %v1407 = vmul.f32 %v1405, 1.442695
        %v1408 = vpow.pop %v1407
        %v1409 = vmul.f32 %v1406, 1.442695
        %v1410 = vpow.pop %v1409
        %v1411 = vadd.f32 %v1408, 1.0
        %v1412 = vadd.f32 %v1410, 1.0
        %v1413 = vrcp.pop %v1411
        %v1414 = vmul.f32 1.0, %v1413
        %v1415 = vrcp.pop %v1412
        %v1416 = vmul.f32 1.0, %v1415
        %v1417 = vmul.f32 %v1414, %v478
        %v1418 = vmul.f32 %v1416, %v479
        %v1419 = vmax.f32 %v1417, %v1418
        %v1420 = vrot.slane %v1419, 4
        %v1421 = vmax.f32 %v1419, %v1420
        %v1422 = vrot.slane %v1421, 2
        %v1423 = vmax.f32 %v1421, %v1422
        %v1424 = vrot.slane %v1423, 1
        %v1425 = vmax.f32 %v1423, %v1424
        %vm1426 = vcmp.eq.f32.partialorder %v1417, %v1425
        %vm1427 = vcmp.eq.f32.partialorder %v1418, %v1425
        %v1428 = vsel %vm1426, %v1262, 16
        %v1429 = vsel %vm1427, %v1263, 16
        %vm1430 = vcmp.lt.s32.totalorder %v1428, %v1429
        %v1431 = vsel %vm1430, %v1428, %v1429
        %v1432 = vrot.slane %v1431, 4
        %vm1433 = vcmp.lt.s32.totalorder %v1431, %v1432
        %v1434 = vsel %vm1433, %v1431, %v1432
        %v1435 = vrot.slane %v1434, 2
        %vm1436 = vcmp.lt.s32.totalorder %v1434, %v1435
        %v1437 = vsel %vm1436, %v1434, %v1435
        %v1438 = vrot.slane %v1437, 1
        %vm1439 = vcmp.lt.s32.totalorder %v1437, %v1438
        %v1440 = vsel %vm1439, %v1437, %v1438
        %vm1441 = vcmp.eq.s32.totalorder %v1262, %v1440
        %vm1442 = vcmp.eq.s32.totalorder %v1263, %v1440
        %v1443 = vsel %vm1441, %v1417, 0.0
        %v1444 = vsel %vm1442, %v1418, 0.0
        %1445 = vadd.xlane.f32.xlu0 %v1443
        %v1446 = vpop.xlane.xlu0 %1445
        %1447 = vadd.xlane.f32.xlu0 %v1444
        %v1448 = vpop.xlane.xlu0 %1447
        %v1449 = vadd.f32 %v1446, 1.0
        %v1450 = vadd.f32 %v1448, 1.0
        %1451 = vmatprep.subr.mxu0 0.0
        %1452 = vmatpush1.msra.mxu0 %v460
        %1453 = vmatprep.subr.mxu0 0.0
        %1454 = vmatpush1.msra.mxu0 %v461
        %1455 = vmatprep.subr.mxu0 0.0
        %1456 = vmatpush1.msra.mxu0 %v462
        %1457 = vmatprep.subr.mxu0 0.0
        %1458 = vmatpush1.msra.mxu0 %v463
        %1459 = vmatprep.subr.mxu0 0.0
        %1460 = vmatpush1.msra.mxu0 %v464
        %1461 = vmatprep.subr.mxu0 0.0
        %1462 = vmatpush1.msra.mxu0 %v465
        %1463 = vmatprep.subr.mxu0 0.0
        %1464 = vmatpush1.msra.mxu0 %v466
        %1465 = vmatprep.subr.mxu0 0.0
        %1466 = vmatpush1.msra.mxu0 %v467
        %1467 = vmatprep.subr.mxu0 0.0
        %1468 = vmatpush1.msra.mxu0 %v468
        %1469 = vmatprep.subr.mxu0 0.0
        %1470 = vmatpush1.msra.mxu0 %v469
        %1471 = vmatprep.subr.mxu0 0.0
        %1472 = vmatpush1.msra.mxu0 %v470
        %1473 = vmatprep.subr.mxu0 0.0
        %1474 = vmatpush1.msra.mxu0 %v471
        %1475 = vmatprep.subr.mxu0 0.0
        %1476 = vmatpush1.msra.mxu0 %v472
        %1477 = vmatprep.subr.mxu0 0.0
        %1478 = vmatpush1.msra.mxu0 %v473
        %1479 = vmatprep.subr.mxu0 0.0
        %1480 = vmatpush1.msra.mxu0 %v474
        %1481 = vmatprep.subr.mxu0 0.0
        %1482 = vmatpush1.msra.mxu0 %v475
        %1483 = vmatprep.subr.mxu0 0.0
        %1484 = vmatpush1.msra.mxu0 0.0
        %1485 = vmatprep.subr.mxu0 0.0
        %1486 = vmatpush1.msra.mxu0 0.0
        %1487 = vmatprep.subr.mxu0 0.0
        %1488 = vmatpush1.msra.mxu0 0.0
        %1489 = vmatprep.subr.mxu0 0.0
        %1490 = vmatpush1.msra.mxu0 0.0
        %1491 = vmatprep.subr.mxu0 0.0
        %1492 = vmatpush1.msra.mxu0 0.0
        %1493 = vmatprep.subr.mxu0 0.0
        %1494 = vmatpush1.msra.mxu0 0.0
        %1495 = vmatprep.subr.mxu0 0.0
        %1496 = vmatpush1.msra.mxu0 0.0
        %1497 = vmatprep.subr.mxu0 0.0
        %1498 = vmatpush1.msra.mxu0 0.0
        %1499 = vmatprep.subr.mxu0 0.0
        %1500 = vmatpush1.msra.mxu0 0.0
        %1501 = vmatprep.subr.mxu0 0.0
        %1502 = vmatpush1.msra.mxu0 0.0
        %1503 = vmatprep.subr.mxu0 0.0
        %1504 = vmatpush1.msra.mxu0 0.0
        %1505 = vmatprep.subr.mxu0 0.0
        %1506 = vmatpush1.msra.mxu0 0.0
        %1507 = vmatprep.subr.mxu0 0.0
        %1508 = vmatpush1.msra.mxu0 0.0
        %1509 = vmatprep.subr.mxu0 0.0
        %1510 = vmatpush1.msra.mxu0 0.0
        %1511 = vmatprep.subr.mxu0 0.0
        %1512 = vmatpush1.msra.mxu0 0.0
        %1513 = vmatprep.subr.mxu0 0.0
        %1514 = vmatpush1.msra.mxu0 0.0
        %1515 = vmatprep.mubr.f32.mxu0 0.0
        %1516 = vmatmul.mubr.f32.gmra.mrb[0].mxu0 %v1443
        %v1517 = vpop.f32.mrb[0].mxu0
        %v1518 = vadd.f32 %v625, %v1517
        %v1519 = vpop.f32.mrb[0].mxu0
        %1520 = vmatprep.mubr.f32.mxu0 0.0
        %1521 = vmatmul.mubr.f32.gmra.mrb[0].mxu0 %v1444
        %v1522 = vpop.f32.mrb[0].mxu0
        %v1523 = vadd.f32 %v630, %v1522
        %v1524 = vpop.f32.mrb[0].mxu0
        %1525 = vdwg.mxu0
        %v1526 = vrcp.pop %v1449
        %v1527 = vmul.f32 %v1518, %v1526
        %v1528 = vrcp.pop %v1450
        %v1529 = vmul.f32 %v1523, %v1528
        %v1530 = vmul.f32 %v1527, %v1267
        %v1531 = vmul.f32 %v1529, %v1267
        %v1532 = vlaneseq
        %v1533 = vshrl.u32 %v1532, 7
        %v1534 = vsub.s32 1, %v1533
        %v1535 = vrot.slane %v480, %v1534
        %v1536 = vmul.f32 %v809, %v1535
        %v1537 = vmul.f32 %v810, %v1535
        %v1539 = vsel %vm635, %v1536, 0
        %v1542 = vsel %vm635, %v1537, 0
        %1544 = vmatprep.subr.mxu0 0.0
        %1545 = vmatpush1.xpose.msra.mxu0 %v1277
        %1546 = vmatprep.subr.mxu0 0.0
        %1547 = vmatpush1.xpose.msra.mxu0 %v1280
        %1548 = vmatprep.subr.mxu0 0.0
        %1549 = vmatpush1.xpose.msra.mxu0 %v1283
        %1550 = vmatprep.subr.mxu0 0.0
        %1551 = vmatpush1.xpose.msra.mxu0 %v1286
        %1552 = vmatprep.subr.mxu0 0.0
        %1553 = vmatpush1.xpose.msra.mxu0 %v1289
        %1554 = vmatprep.subr.mxu0 0.0
        %1555 = vmatpush1.xpose.msra.mxu0 %v1292
        %1556 = vmatprep.subr.mxu0 0.0
        %1557 = vmatpush1.xpose.msra.mxu0 %v1295
        %1558 = vmatprep.subr.mxu0 0.0
        %1559 = vmatpush1.xpose.msra.mxu0 %v1298
        %1560 = vmatprep.subr.mxu0 0.0
        %1561 = vmatpush1.xpose.msra.mxu0 %v1301
        %1562 = vmatprep.subr.mxu0 0.0
        %1563 = vmatpush1.xpose.msra.mxu0 %v1304
        %1564 = vmatprep.subr.mxu0 0.0
        %1565 = vmatpush1.xpose.msra.mxu0 %v1307
        %1566 = vmatprep.subr.mxu0 0.0
        %1567 = vmatpush1.xpose.msra.mxu0 %v1310
        %1568 = vmatprep.subr.mxu0 0.0
        %1569 = vmatpush1.xpose.msra.mxu0 %v1313
        %1570 = vmatprep.subr.mxu0 0.0
        %1571 = vmatpush1.xpose.msra.mxu0 %v1316
        %1572 = vmatprep.subr.mxu0 0.0
        %1573 = vmatpush1.xpose.msra.mxu0 %v1319
        %1574 = vmatprep.subr.mxu0 0.0
        %1575 = vmatpush1.xpose.msra.mxu0 %v1322
        %1576 = vmatprep.subr.mxu0 0.0
        %1577 = vmatpush1.xpose.msra.mxu0 0.0
        %1578 = vmatprep.subr.mxu0 0.0
        %1579 = vmatpush1.xpose.msra.mxu0 0.0
        %1580 = vmatprep.subr.mxu0 0.0
        %1581 = vmatpush1.xpose.msra.mxu0 0.0
        %1582 = vmatprep.subr.mxu0 0.0
        %1583 = vmatpush1.xpose.msra.mxu0 0.0
        %1584 = vmatprep.subr.mxu0 0.0
        %1585 = vmatpush1.xpose.msra.mxu0 0.0
        %1586 = vmatprep.subr.mxu0 0.0
        %1587 = vmatpush1.xpose.msra.mxu0 0.0
        %1588 = vmatprep.subr.mxu0 0.0
        %1589 = vmatpush1.xpose.msra.mxu0 0.0
        %1590 = vmatprep.subr.mxu0 0.0
        %1591 = vmatpush1.xpose.msra.mxu0 0.0
        %1592 = vmatprep.subr.mxu0 0.0
        %1593 = vmatpush1.xpose.msra.mxu0 0.0
        %1594 = vmatprep.subr.mxu0 0.0
        %1595 = vmatpush1.xpose.msra.mxu0 0.0
        %1596 = vmatprep.subr.mxu0 0.0
        %1597 = vmatpush1.xpose.msra.mxu0 0.0
        %1598 = vmatprep.subr.mxu0 0.0
        %1599 = vmatpush1.xpose.msra.mxu0 0.0
        %1600 = vmatprep.subr.mxu0 0.0
        %1601 = vmatpush1.xpose.msra.mxu0 0.0
        %1602 = vmatprep.subr.mxu0 0.0
        %1603 = vmatpush1.xpose.msra.mxu0 0.0
        %1604 = vmatprep.subr.mxu0 0.0
        %1605 = vmatpush1.xpose.msra.mxu0 0.0
        %1606 = vmatprep.subr.mxu0 0.0
        %1607 = vmatpush1.xpose.msra.mxu0 0.0
        %1608 = vmatprep.mubr.f32.mxu0 0.0
        %1609 = vmatmul.mubr.f32.gmra.mrb[0].mxu0 %v1539
        %v1610 = vpop.f32.mrb[0].mxu0
        %v1611 = vadd.f32 0.0, %v1610
        %v1612 = vpop.f32.mrb[0].mxu0
        %1613 = vmatprep.mubr.f32.mxu0 0.0
        %1614 = vmatmul.mubr.f32.gmra.mrb[0].mxu0 %v1542
        %v1615 = vpop.f32.mrb[0].mxu0
        %v1616 = vadd.f32 0.0, %v1615
        %v1617 = vpop.f32.mrb[0].mxu0
        %1618 = vdwg.mxu0
        %v1619 = vmul.f32 %v1399, %v1611
        %v1620 = vmul.f32 %v1399, %v1616
        %v1621 = vadd.f32 %v1402, %v1619
        %v1622 = vadd.f32 %v1402, %v1620
        %v1623 = vxor.u32 %v1621, 2147483648
        %v1624 = vxor.u32 %v1622, 2147483648
        %v1625 = vmul.f32 %v1623, 1.442695
        %v1626 = vpow.pop %v1625
        %v1627 = vmul.f32 %v1624, 1.442695
        %v1628 = vpow.pop %v1627
        %v1629 = vadd.f32 %v1626, 1.0
        %v1630 = vadd.f32 %v1628, 1.0
        %v1631 = vrcp.pop %v1629
        %v1632 = vmul.f32 1.0, %v1631
        %v1633 = vrcp.pop %v1630
        %v1634 = vmul.f32 1.0, %v1633
        %v1635 = vmul.f32 %v1632, %v478
        %v1636 = vmul.f32 %v1634, %v479
        %v1637 = vmax.f32 %v1635, %v1636
        %v1638 = vrot.slane %v1637, 4
        %v1639 = vmax.f32 %v1637, %v1638
        %v1640 = vrot.slane %v1639, 2
        %v1641 = vmax.f32 %v1639, %v1640
        %v1642 = vrot.slane %v1641, 1
        %v1643 = vmax.f32 %v1641, %v1642
        %vm1644 = vcmp.eq.f32.partialorder %v1635, %v1643
        %vm1645 = vcmp.eq.f32.partialorder %v1636, %v1643
        %v1646 = vsel %vm1644, %v1262, 16
        %v1647 = vsel %vm1645, %v1263, 16
        %vm1648 = vcmp.lt.s32.totalorder %v1646, %v1647
        %v1649 = vsel %vm1648, %v1646, %v1647
        %v1650 = vrot.slane %v1649, 4
        %vm1651 = vcmp.lt.s32.totalorder %v1649, %v1650
        %v1652 = vsel %vm1651, %v1649, %v1650
        %v1653 = vrot.slane %v1652, 2
        %vm1654 = vcmp.lt.s32.totalorder %v1652, %v1653
        %v1655 = vsel %vm1654, %v1652, %v1653
        %v1656 = vrot.slane %v1655, 1
        %vm1657 = vcmp.lt.s32.totalorder %v1655, %v1656
        %v1658 = vsel %vm1657, %v1655, %v1656
        %vm1659 = vcmp.eq.s32.totalorder %v1262, %v1658
        %vm1660 = vcmp.eq.s32.totalorder %v1263, %v1658
        %v1661 = vsel %vm1659, %v1635, 0.0
        %v1662 = vsel %vm1660, %v1636, 0.0
        %1663 = vadd.xlane.f32.xlu0 %v1661
        %v1664 = vpop.xlane.xlu0 %1663
        %1665 = vadd.xlane.f32.xlu0 %v1662
        %v1666 = vpop.xlane.xlu0 %1665
        %v1667 = vadd.f32 %v1664, 1.0
        %v1668 = vadd.f32 %v1666, 1.0
        %1669 = vmatprep.subr.mxu0 0.0
        %1670 = vmatpush1.msra.mxu0 %v460
        %1671 = vmatprep.subr.mxu0 0.0
        %1672 = vmatpush1.msra.mxu0 %v461
        %1673 = vmatprep.subr.mxu0 0.0
        %1674 = vmatpush1.msra.mxu0 %v462
        %1675 = vmatprep.subr.mxu0 0.0
        %1676 = vmatpush1.msra.mxu0 %v463
        %1677 = vmatprep.subr.mxu0 0.0
        %1678 = vmatpush1.msra.mxu0 %v464
        %1679 = vmatprep.subr.mxu0 0.0
        %1680 = vmatpush1.msra.mxu0 %v465
        %1681 = vmatprep.subr.mxu0 0.0
        %1682 = vmatpush1.msra.mxu0 %v466
        %1683 = vmatprep.subr.mxu0 0.0
        %1684 = vmatpush1.msra.mxu0 %v467
        %1685 = vmatprep.subr.mxu0 0.0
        %1686 = vmatpush1.msra.mxu0 %v468
        %1687 = vmatprep.subr.mxu0 0.0
        %1688 = vmatpush1.msra.mxu0 %v469
        %1689 = vmatprep.subr.mxu0 0.0
        %1690 = vmatpush1.msra.mxu0 %v470
        %1691 = vmatprep.subr.mxu0 0.0
        %1692 = vmatpush1.msra.mxu0 %v471
        %1693 = vmatprep.subr.mxu0 0.0
        %1694 = vmatpush1.msra.mxu0 %v472
        %1695 = vmatprep.subr.mxu0 0.0
        %1696 = vmatpush1.msra.mxu0 %v473
        %1697 = vmatprep.subr.mxu0 0.0
        %1698 = vmatpush1.msra.mxu0 %v474
        %1699 = vmatprep.subr.mxu0 0.0
        %1700 = vmatpush1.msra.mxu0 %v475
        %1701 = vmatprep.subr.mxu0 0.0
        %1702 = vmatpush1.msra.mxu0 0.0
        %1703 = vmatprep.subr.mxu0 0.0
        %1704 = vmatpush1.msra.mxu0 0.0
        %1705 = vmatprep.subr.mxu0 0.0
        %1706 = vmatpush1.msra.mxu0 0.0
        %1707 = vmatprep.subr.mxu0 0.0
        %1708 = vmatpush1.msra.mxu0 0.0
        %1709 = vmatprep.subr.mxu0 0.0
        %1710 = vmatpush1.msra.mxu0 0.0
        %1711 = vmatprep.subr.mxu0 0.0
        %1712 = vmatpush1.msra.mxu0 0.0
        %1713 = vmatprep.subr.mxu0 0.0
        %1714 = vmatpush1.msra.mxu0 0.0
        %1715 = vmatprep.subr.mxu0 0.0
        %1716 = vmatpush1.msra.mxu0 0.0
        %1717 = vmatprep.subr.mxu0 0.0
        %1718 = vmatpush1.msra.mxu0 0.0
        %1719 = vmatprep.subr.mxu0 0.0
        %1720 = vmatpush1.msra.mxu0 0.0
        %1721 = vmatprep.subr.mxu0 0.0
        %1722 = vmatpush1.msra.mxu0 0.0
        %1723 = vmatprep.subr.mxu0 0.0
        %1724 = vmatpush1.msra.mxu0 0.0
        %1725 = vmatprep.subr.mxu0 0.0
        %1726 = vmatpush1.msra.mxu0 0.0
        %1727 = vmatprep.subr.mxu0 0.0
        %1728 = vmatpush1.msra.mxu0 0.0
        %1729 = vmatprep.subr.mxu0 0.0
        %1730 = vmatpush1.msra.mxu0 0.0
        %1731 = vmatprep.subr.mxu0 0.0
        %1732 = vmatpush1.msra.mxu0 0.0
        %1733 = vmatprep.mubr.f32.mxu0 0.0
        %1734 = vmatmul.mubr.f32.gmra.mrb[0].mxu0 %v1661
        %v1735 = vpop.f32.mrb[0].mxu0
        %v1736 = vadd.f32 %v625, %v1735
        %v1737 = vpop.f32.mrb[0].mxu0
        %1738 = vmatprep.mubr.f32.mxu0 0.0
        %1739 = vmatmul.mubr.f32.gmra.mrb[0].mxu0 %v1662
        %v1740 = vpop.f32.mrb[0].mxu0
        %v1741 = vadd.f32 %v630, %v1740
        %v1742 = vpop.f32.mrb[0].mxu0
        %1743 = vdwg.mxu0
        %v1744 = vrcp.pop %v1667
        %v1745 = vmul.f32 %v1736, %v1744
        %v1746 = vrcp.pop %v1668
        %v1747 = vmul.f32 %v1741, %v1746
        %v1748 = vmul.f32 %v1745, %v1535
        %v1749 = vmul.f32 %v1747, %v1535
        %1750 = vxpose.xlu0.b32.start [1/16] %v1661, 128
        %1751 = vxpose.xlu0.b32.cont [2/16] %v1662, 128
        %1752 = vxpose.xlu0.b32.cont [3/16] 0.0, 128
        %1753 = vxpose.xlu0.b32.cont [4/16] 0.0, 128
        %1754 = vxpose.xlu0.b32.cont [5/16] 0.0, 128
        %1755 = vxpose.xlu0.b32.cont [6/16] 0.0, 128
        %1756 = vxpose.xlu0.b32.cont [7/16] 0.0, 128
        %1757 = vxpose.xlu0.b32.cont [8/16] 0.0, 128
        %1758 = vxpose.xlu0.b32.cont [9/16] 0.0, 128
        %1759 = vxpose.xlu0.b32.cont [10/16] 0.0, 128
        %1760 = vxpose.xlu0.b32.cont [11/16] 0.0, 128
        %1761 = vxpose.xlu0.b32.cont [12/16] 0.0, 128
        %1762 = vxpose.xlu0.b32.cont [13/16] 0.0, 128
        %1763 = vxpose.xlu0.b32.cont [14/16] 0.0, 128
        %1764 = vxpose.xlu0.b32.cont [15/16] 0.0, 128
        %1765 = vxpose.xlu0.b32.end [16/16] 0.0, 128
        %v1766 = vpop.trf.xlu0
        %v1767 = vpop.trf.xlu0
        %v1768 = vpop.trf.xlu0
        %v1769 = vpop.trf.xlu0
        %v1770 = vpop.trf.xlu0
        %v1771 = vpop.trf.xlu0
        %v1772 = vpop.trf.xlu0
        %v1773 = vpop.trf.xlu0
        %v1774 = vpop.trf.xlu0
        %v1775 = vpop.trf.xlu0
        %v1776 = vpop.trf.xlu0
        %v1777 = vpop.trf.xlu0
        %v1778 = vpop.trf.xlu0
        %v1779 = vpop.trf.xlu0
        %v1780 = vpop.trf.xlu0
        %v1781 = vpop.trf.xlu0
        %vm1782 = vcmask 130048
        %v1784 = vsel %vm1782, %v1766, 0
        %v1787 = vsel %vm1782, %v1767, 0
        %v1790 = vsel %vm1782, %v1768, 0
        %v1793 = vsel %vm1782, %v1769, 0
        %v1796 = vsel %vm1782, %v1770, 0
        %v1799 = vsel %vm1782, %v1771, 0
        %v1802 = vsel %vm1782, %v1772, 0
        %v1805 = vsel %vm1782, %v1773, 0
        %v1808 = vsel %vm1782, %v1774, 0
        %v1811 = vsel %vm1782, %v1775, 0
        %v1814 = vsel %vm1782, %v1776, 0
        %v1817 = vsel %vm1782, %v1777, 0
        %v1820 = vsel %vm1782, %v1778, 0
        %v1823 = vsel %vm1782, %v1779, 0
        %v1826 = vsel %vm1782, %v1780, 0
        %v1829 = vsel %vm1782, %v1781, 0
        %1831 = vmatprep.subr.mxu0 0.0
        %1832 = vmatpush1.msra.mxu0 %v1748
        %1833 = vmatprep.subr.mxu0 0.0
        %1834 = vmatpush1.msra.mxu0 %v1749
        %1835 = vmatprep.subr.mxu0 0.0
        %1836 = vmatpush1.msra.mxu0 0.0
        %1837 = vmatprep.subr.mxu0 0.0
        %1838 = vmatpush1.msra.mxu0 0.0
        %1839 = vmatprep.subr.mxu0 0.0
        %1840 = vmatpush1.msra.mxu0 0.0
        %1841 = vmatprep.subr.mxu0 0.0
        %1842 = vmatpush1.msra.mxu0 0.0
        %1843 = vmatprep.subr.mxu0 0.0
        %1844 = vmatpush1.msra.mxu0 0.0
        %1845 = vmatprep.subr.mxu0 0.0
        %1846 = vmatpush1.msra.mxu0 0.0
        %1847 = vmatprep.subr.mxu0 0.0
        %1848 = vmatpush1.msra.mxu0 0.0
        %1849 = vmatprep.subr.mxu0 0.0
        %1850 = vmatpush1.msra.mxu0 0.0
        %1851 = vmatprep.subr.mxu0 0.0
        %1852 = vmatpush1.msra.mxu0 0.0
        %1853 = vmatprep.subr.mxu0 0.0
        %1854 = vmatpush1.msra.mxu0 0.0
        %1855 = vmatprep.subr.mxu0 0.0
        %1856 = vmatpush1.msra.mxu0 0.0
        %1857 = vmatprep.subr.mxu0 0.0
        %1858 = vmatpush1.msra.mxu0 0.0
        %1859 = vmatprep.subr.mxu0 0.0
        %1860 = vmatpush1.msra.mxu0 0.0
        %1861 = vmatprep.subr.mxu0 0.0
        %1862 = vmatpush1.msra.mxu0 0.0
        %1863 = vmatprep.subr.mxu0 0.0
        %1864 = vmatpush1.msra.mxu0 0.0
        %1865 = vmatprep.subr.mxu0 0.0
        %1866 = vmatpush1.msra.mxu0 0.0
        %1867 = vmatprep.subr.mxu0 0.0
        %1868 = vmatpush1.msra.mxu0 0.0
        %1869 = vmatprep.subr.mxu0 0.0
        %1870 = vmatpush1.msra.mxu0 0.0
        %1871 = vmatprep.subr.mxu0 0.0
        %1872 = vmatpush1.msra.mxu0 0.0
        %1873 = vmatprep.subr.mxu0 0.0
        %1874 = vmatpush1.msra.mxu0 0.0
        %1875 = vmatprep.subr.mxu0 0.0
        %1876 = vmatpush1.msra.mxu0 0.0
        %1877 = vmatprep.subr.mxu0 0.0
        %1878 = vmatpush1.msra.mxu0 0.0
        %1879 = vmatprep.subr.mxu0 0.0
        %1880 = vmatpush1.msra.mxu0 0.0
        %1881 = vmatprep.subr.mxu0 0.0
        %1882 = vmatpush1.msra.mxu0 0.0
        %1883 = vmatprep.subr.mxu0 0.0
        %1884 = vmatpush1.msra.mxu0 0.0
        %1885 = vmatprep.subr.mxu0 0.0
        %1886 = vmatpush1.msra.mxu0 0.0
        %1887 = vmatprep.subr.mxu0 0.0
        %1888 = vmatpush1.msra.mxu0 0.0
        %1889 = vmatprep.subr.mxu0 0.0
        %1890 = vmatpush1.msra.mxu0 0.0
        %1891 = vmatprep.subr.mxu0 0.0
        %1892 = vmatpush1.msra.mxu0 0.0
        %1893 = vmatprep.subr.mxu0 0.0
        %1894 = vmatpush1.msra.mxu0 0.0
        %1895 = vmatprep.mubr.f32.mxu0 0.0
        %1896 = vmatmul.mubr.f32.gmra.mrb[0].mxu0 %v1784
        %v1897 = vpop.f32.mrb[0].mxu0
        %v1898 = vadd.f32 0.0, %v1897
        %v1899 = vpop.f32.mrb[0].mxu0
        %1900 = vmatprep.mubr.f32.mxu0 0.0
        %1901 = vmatmul.mubr.f32.gmra.mrb[0].mxu0 %v1787
        %v1902 = vpop.f32.mrb[0].mxu0
        %v1903 = vadd.f32 0.0, %v1902
        %v1904 = vpop.f32.mrb[0].mxu0
        %1905 = vmatprep.mubr.f32.mxu0 0.0
        %1906 = vmatmul.mubr.f32.gmra.mrb[0].mxu0 %v1790
        %v1907 = vpop.f32.mrb[0].mxu0
        %v1908 = vadd.f32 0.0, %v1907
        %v1909 = vpop.f32.mrb[0].mxu0
        %1910 = vmatprep.mubr.f32.mxu0 0.0
        %1911 = vmatmul.mubr.f32.gmra.mrb[0].mxu0 %v1793
        %v1912 = vpop.f32.mrb[0].mxu0
        %v1913 = vadd.f32 0.0, %v1912
        %v1914 = vpop.f32.mrb[0].mxu0
        %1915 = vmatprep.mubr.f32.mxu0 0.0
        %1916 = vmatmul.mubr.f32.gmra.mrb[0].mxu0 %v1796
        %v1917 = vpop.f32.mrb[0].mxu0
        %v1918 = vadd.f32 0.0, %v1917
        %v1919 = vpop.f32.mrb[0].mxu0
        %1920 = vmatprep.mubr.f32.mxu0 0.0
        %1921 = vmatmul.mubr.f32.gmra.mrb[0].mxu0 %v1799
        %v1922 = vpop.f32.mrb[0].mxu0
        %v1923 = vadd.f32 0.0, %v1922
        %v1924 = vpop.f32.mrb[0].mxu0
        %1925 = vmatprep.mubr.f32.mxu0 0.0
        %1926 = vmatmul.mubr.f32.gmra.mrb[0].mxu0 %v1802
        %v1927 = vpop.f32.mrb[0].mxu0
        %v1928 = vadd.f32 0.0, %v1927
        %v1929 = vpop.f32.mrb[0].mxu0
        %1930 = vmatprep.mubr.f32.mxu0 0.0
        %1931 = vmatmul.mubr.f32.gmra.mrb[0].mxu0 %v1805
        %v1932 = vpop.f32.mrb[0].mxu0
        %v1933 = vadd.f32 0.0, %v1932
        %v1934 = vpop.f32.mrb[0].mxu0
        %1935 = vmatprep.mubr.f32.mxu0 0.0
        %1936 = vmatmul.mubr.f32.gmra.mrb[0].mxu0 %v1808
        %v1937 = vpop.f32.mrb[0].mxu0
        %v1938 = vadd.f32 0.0, %v1937
        %v1939 = vpop.f32.mrb[0].mxu0
        %1940 = vmatprep.mubr.f32.mxu0 0.0
        %1941 = vmatmul.mubr.f32.gmra.mrb[0].mxu0 %v1811
        %v1942 = vpop.f32.mrb[0].mxu0
        %v1943 = vadd.f32 0.0, %v1942
        %v1944 = vpop.f32.mrb[0].mxu0
        %1945 = vmatprep.mubr.f32.mxu0 0.0
        %1946 = vmatmul.mubr.f32.gmra.mrb[0].mxu0 %v1814
        %v1947 = vpop.f32.mrb[0].mxu0
        %v1948 = vadd.f32 0.0, %v1947
        %v1949 = vpop.f32.mrb[0].mxu0
        %1950 = vmatprep.mubr.f32.mxu0 0.0
        %1951 = vmatmul.mubr.f32.gmra.mrb[0].mxu0 %v1817
        %v1952 = vpop.f32.mrb[0].mxu0
        %v1953 = vadd.f32 0.0, %v1952
        %v1954 = vpop.f32.mrb[0].mxu0
        %1955 = vmatprep.mubr.f32.mxu0 0.0
        %1956 = vmatmul.mubr.f32.gmra.mrb[0].mxu0 %v1820
        %v1957 = vpop.f32.mrb[0].mxu0
        %v1958 = vadd.f32 0.0, %v1957
        %v1959 = vpop.f32.mrb[0].mxu0
        %1960 = vmatprep.mubr.f32.mxu0 0.0
        %1961 = vmatmul.mubr.f32.gmra.mrb[0].mxu0 %v1823
        %v1962 = vpop.f32.mrb[0].mxu0
        %v1963 = vadd.f32 0.0, %v1962
        %v1964 = vpop.f32.mrb[0].mxu0
        %1965 = vmatprep.mubr.f32.mxu0 0.0
        %1966 = vmatmul.mubr.f32.gmra.mrb[0].mxu0 %v1826
        %v1967 = vpop.f32.mrb[0].mxu0
        %v1968 = vadd.f32 0.0, %v1967
        %v1969 = vpop.f32.mrb[0].mxu0
        %1970 = vmatprep.mubr.f32.mxu0 0.0
        %1971 = vmatmul.mubr.f32.gmra.mrb[0].mxu0 %v1829
        %v1972 = vpop.f32.mrb[0].mxu0
        %v1973 = vadd.f32 0.0, %v1972
        %v1974 = vpop.f32.mrb[0].mxu0
        %1975 = vdwg.mxu0
        %1976 = vxpose.xlu0.b32.start [1/16] %v1443, 128
        %1977 = vxpose.xlu0.b32.cont [2/16] %v1444, 128
        %1978 = vxpose.xlu0.b32.cont [3/16] 0.0, 128
        %1979 = vxpose.xlu0.b32.cont [4/16] 0.0, 128
        %1980 = vxpose.xlu0.b32.cont [5/16] 0.0, 128
        %1981 = vxpose.xlu0.b32.cont [6/16] 0.0, 128
        %1982 = vxpose.xlu0.b32.cont [7/16] 0.0, 128
        %1983 = vxpose.xlu0.b32.cont [8/16] 0.0, 128
        %1984 = vxpose.xlu0.b32.cont [9/16] 0.0, 128
        %1985 = vxpose.xlu0.b32.cont [10/16] 0.0, 128
        %1986 = vxpose.xlu0.b32.cont [11/16] 0.0, 128
        %1987 = vxpose.xlu0.b32.cont [12/16] 0.0, 128
        %1988 = vxpose.xlu0.b32.cont [13/16] 0.0, 128
        %1989 = vxpose.xlu0.b32.cont [14/16] 0.0, 128
        %1990 = vxpose.xlu0.b32.cont [15/16] 0.0, 128
        %1991 = vxpose.xlu0.b32.end [16/16] 0.0, 128
        %v1992 = vpop.trf.xlu0
        %v1993 = vpop.trf.xlu0
        %v1994 = vpop.trf.xlu0
        %v1995 = vpop.trf.xlu0
        %v1996 = vpop.trf.xlu0
        %v1997 = vpop.trf.xlu0
        %v1998 = vpop.trf.xlu0
        %v1999 = vpop.trf.xlu0
        %v2000 = vpop.trf.xlu0
        %v2001 = vpop.trf.xlu0
        %v2002 = vpop.trf.xlu0
        %v2003 = vpop.trf.xlu0
        %v2004 = vpop.trf.xlu0
        %v2005 = vpop.trf.xlu0
        %v2006 = vpop.trf.xlu0
        %v2007 = vpop.trf.xlu0
        %v2009 = vsel %vm1782, %v1992, 0
        %v2012 = vsel %vm1782, %v1993, 0
        %v2015 = vsel %vm1782, %v1994, 0
        %v2018 = vsel %vm1782, %v1995, 0
        %v2021 = vsel %vm1782, %v1996, 0
        %v2024 = vsel %vm1782, %v1997, 0
        %v2027 = vsel %vm1782, %v1998, 0
        %v2030 = vsel %vm1782, %v1999, 0
        %v2033 = vsel %vm1782, %v2000, 0
        %v2036 = vsel %vm1782, %v2001, 0
        %v2039 = vsel %vm1782, %v2002, 0
        %v2042 = vsel %vm1782, %v2003, 0
        %v2045 = vsel %vm1782, %v2004, 0
        %v2048 = vsel %vm1782, %v2005, 0
        %v2051 = vsel %vm1782, %v2006, 0
        %v2054 = vsel %vm1782, %v2007, 0
        %2056 = vmatprep.subr.mxu0 0.0
        %2057 = vmatpush1.msra.mxu0 %v1530
        %2058 = vmatprep.subr.mxu0 0.0
        %2059 = vmatpush1.msra.mxu0 %v1531
        %2060 = vmatprep.subr.mxu0 0.0
        %2061 = vmatpush1.msra.mxu0 0.0
        %2062 = vmatprep.subr.mxu0 0.0
        %2063 = vmatpush1.msra.mxu0 0.0
        %2064 = vmatprep.subr.mxu0 0.0
        %2065 = vmatpush1.msra.mxu0 0.0
        %2066 = vmatprep.subr.mxu0 0.0
        %2067 = vmatpush1.msra.mxu0 0.0
        %2068 = vmatprep.subr.mxu0 0.0
        %2069 = vmatpush1.msra.mxu0 0.0
        %2070 = vmatprep.subr.mxu0 0.0
        %2071 = vmatpush1.msra.mxu0 0.0
        %2072 = vmatprep.subr.mxu0 0.0
        %2073 = vmatpush1.msra.mxu0 0.0
        %2074 = vmatprep.subr.mxu0 0.0
        %2075 = vmatpush1.msra.mxu0 0.0
        %2076 = vmatprep.subr.mxu0 0.0
        %2077 = vmatpush1.msra.mxu0 0.0
        %2078 = vmatprep.subr.mxu0 0.0
        %2079 = vmatpush1.msra.mxu0 0.0
        %2080 = vmatprep.subr.mxu0 0.0
        %2081 = vmatpush1.msra.mxu0 0.0
        %2082 = vmatprep.subr.mxu0 0.0
        %2083 = vmatpush1.msra.mxu0 0.0
        %2084 = vmatprep.subr.mxu0 0.0
        %2085 = vmatpush1.msra.mxu0 0.0
        %2086 = vmatprep.subr.mxu0 0.0
        %2087 = vmatpush1.msra.mxu0 0.0
        %2088 = vmatprep.subr.mxu0 0.0
        %2089 = vmatpush1.msra.mxu0 0.0
        %2090 = vmatprep.subr.mxu0 0.0
        %2091 = vmatpush1.msra.mxu0 0.0
        %2092 = vmatprep.subr.mxu0 0.0
        %2093 = vmatpush1.msra.mxu0 0.0
        %2094 = vmatprep.subr.mxu0 0.0
        %2095 = vmatpush1.msra.mxu0 0.0
        %2096 = vmatprep.subr.mxu0 0.0
        %2097 = vmatpush1.msra.mxu0 0.0
        %2098 = vmatprep.subr.mxu0 0.0
        %2099 = vmatpush1.msra.mxu0 0.0
        %2100 = vmatprep.subr.mxu0 0.0
        %2101 = vmatpush1.msra.mxu0 0.0
        %2102 = vmatprep.subr.mxu0 0.0
        %2103 = vmatpush1.msra.mxu0 0.0
        %2104 = vmatprep.subr.mxu0 0.0
        %2105 = vmatpush1.msra.mxu0 0.0
        %2106 = vmatprep.subr.mxu0 0.0
        %2107 = vmatpush1.msra.mxu0 0.0
        %2108 = vmatprep.subr.mxu0 0.0
        %2109 = vmatpush1.msra.mxu0 0.0
        %2110 = vmatprep.subr.mxu0 0.0
        %2111 = vmatpush1.msra.mxu0 0.0
        %2112 = vmatprep.subr.mxu0 0.0
        %2113 = vmatpush1.msra.mxu0 0.0
        %2114 = vmatprep.subr.mxu0 0.0
        %2115 = vmatpush1.msra.mxu0 0.0
        %2116 = vmatprep.subr.mxu0 0.0
        %2117 = vmatpush1.msra.mxu0 0.0
        %2118 = vmatprep.subr.mxu0 0.0
        %2119 = vmatpush1.msra.mxu0 0.0
        %2120 = vmatprep.mubr.f32.mxu0 0.0
        %2121 = vmatmul.mubr.f32.gmra.mrb[0].mxu0 %v2009
        %v2122 = vpop.f32.mrb[0].mxu0
        %v2123 = vadd.f32 %v1898, %v2122
        %v2124 = vpop.f32.mrb[0].mxu0
        %2125 = vmatprep.mubr.f32.mxu0 0.0
        %2126 = vmatmul.mubr.f32.gmra.mrb[0].mxu0 %v2012
        %v2127 = vpop.f32.mrb[0].mxu0
        %v2128 = vadd.f32 %v1903, %v2127
        %v2129 = vpop.f32.mrb[0].mxu0
        %2130 = vmatprep.mubr.f32.mxu0 0.0
        %2131 = vmatmul.mubr.f32.gmra.mrb[0].mxu0 %v2015
        %v2132 = vpop.f32.mrb[0].mxu0
        %v2133 = vadd.f32 %v1908, %v2132
        %v2134 = vpop.f32.mrb[0].mxu0
        %2135 = vmatprep.mubr.f32.mxu0 0.0
        %2136 = vmatmul.mubr.f32.gmra.mrb[0].mxu0 %v2018
        %v2137 = vpop.f32.mrb[0].mxu0
        %v2138 = vadd.f32 %v1913, %v2137
        %v2139 = vpop.f32.mrb[0].mxu0
        %2140 = vmatprep.mubr.f32.mxu0 0.0
        %2141 = vmatmul.mubr.f32.gmra.mrb[0].mxu0 %v2021
        %v2142 = vpop.f32.mrb[0].mxu0
        %v2143 = vadd.f32 %v1918, %v2142
        %v2144 = vpop.f32.mrb[0].mxu0
        %2145 = vmatprep.mubr.f32.mxu0 0.0
        %2146 = vmatmul.mubr.f32.gmra.mrb[0].mxu0 %v2024
        %v2147 = vpop.f32.mrb[0].mxu0
        %v2148 = vadd.f32 %v1923, %v2147
        %v2149 = vpop.f32.mrb[0].mxu0
        %2150 = vmatprep.mubr.f32.mxu0 0.0
        %2151 = vmatmul.mubr.f32.gmra.mrb[0].mxu0 %v2027
        %v2152 = vpop.f32.mrb[0].mxu0
        %v2153 = vadd.f32 %v1928, %v2152
        %v2154 = vpop.f32.mrb[0].mxu0
        %2155 = vmatprep.mubr.f32.mxu0 0.0
        %2156 = vmatmul.mubr.f32.gmra.mrb[0].mxu0 %v2030
        %v2157 = vpop.f32.mrb[0].mxu0
        %v2158 = vadd.f32 %v1933, %v2157
        %v2159 = vpop.f32.mrb[0].mxu0
        %2160 = vmatprep.mubr.f32.mxu0 0.0
        %2161 = vmatmul.mubr.f32.gmra.mrb[0].mxu0 %v2033
        %v2162 = vpop.f32.mrb[0].mxu0
        %v2163 = vadd.f32 %v1938, %v2162
        %v2164 = vpop.f32.mrb[0].mxu0
        %2165 = vmatprep.mubr.f32.mxu0 0.0
        %2166 = vmatmul.mubr.f32.gmra.mrb[0].mxu0 %v2036
        %v2167 = vpop.f32.mrb[0].mxu0
        %v2168 = vadd.f32 %v1943, %v2167
        %v2169 = vpop.f32.mrb[0].mxu0
        %2170 = vmatprep.mubr.f32.mxu0 0.0
        %2171 = vmatmul.mubr.f32.gmra.mrb[0].mxu0 %v2039
        %v2172 = vpop.f32.mrb[0].mxu0
        %v2173 = vadd.f32 %v1948, %v2172
        %v2174 = vpop.f32.mrb[0].mxu0
        %2175 = vmatprep.mubr.f32.mxu0 0.0
        %2176 = vmatmul.mubr.f32.gmra.mrb[0].mxu0 %v2042
        %v2177 = vpop.f32.mrb[0].mxu0
        %v2178 = vadd.f32 %v1953, %v2177
        %v2179 = vpop.f32.mrb[0].mxu0
        %2180 = vmatprep.mubr.f32.mxu0 0.0
        %2181 = vmatmul.mubr.f32.gmra.mrb[0].mxu0 %v2045
        %v2182 = vpop.f32.mrb[0].mxu0
        %v2183 = vadd.f32 %v1958, %v2182
        %v2184 = vpop.f32.mrb[0].mxu0
        %2185 = vmatprep.mubr.f32.mxu0 0.0
        %2186 = vmatmul.mubr.f32.gmra.mrb[0].mxu0 %v2048
        %v2187 = vpop.f32.mrb[0].mxu0
        %v2188 = vadd.f32 %v1963, %v2187
        %v2189 = vpop.f32.mrb[0].mxu0
        %2190 = vmatprep.mubr.f32.mxu0 0.0
        %2191 = vmatmul.mubr.f32.gmra.mrb[0].mxu0 %v2051
        %v2192 = vpop.f32.mrb[0].mxu0
        %v2193 = vadd.f32 %v1968, %v2192
        %v2194 = vpop.f32.mrb[0].mxu0
        %2195 = vmatprep.mubr.f32.mxu0 0.0
        %2196 = vmatmul.mubr.f32.gmra.mrb[0].mxu0 %v2054
        %v2197 = vpop.f32.mrb[0].mxu0
        %v2198 = vadd.f32 %v1973, %v2197
        %v2199 = vpop.f32.mrb[0].mxu0
        %2200 = vdwg.mxu0
        %v2201 = vlaneseq
        %v2202 = vshrl.u32 %v2201, 7
        %v2203 = vsub.s32 2, %v2202
        %v2204 = vrot.slane %v480, %v2203
        %v2205 = vmul.f32 %v809, %v2204
        %v2206 = vmul.f32 %v810, %v2204
        %v2208 = vsel %vm635, %v2205, 0
        %v2211 = vsel %vm635, %v2206, 0
        %2213 = vmatprep.subr.mxu0 0.0
        %2214 = vmatpush1.xpose.msra.mxu0 %v1277
        %2215 = vmatprep.subr.mxu0 0.0
        %2216 = vmatpush1.xpose.msra.mxu0 %v1280
        %2217 = vmatprep.subr.mxu0 0.0
        %2218 = vmatpush1.xpose.msra.mxu0 %v1283
        %2219 = vmatprep.subr.mxu0 0.0
        %2220 = vmatpush1.xpose.msra.mxu0 %v1286
        %2221 = vmatprep.subr.mxu0 0.0
        %2222 = vmatpush1.xpose.msra.mxu0 %v1289
        %2223 = vmatprep.subr.mxu0 0.0
        %2224 = vmatpush1.xpose.msra.mxu0 %v1292
        %2225 = vmatprep.subr.mxu0 0.0
        %2226 = vmatpush1.xpose.msra.mxu0 %v1295
        %2227 = vmatprep.subr.mxu0 0.0
        %2228 = vmatpush1.xpose.msra.mxu0 %v1298
        %2229 = vmatprep.subr.mxu0 0.0
        %2230 = vmatpush1.xpose.msra.mxu0 %v1301
        %2231 = vmatprep.subr.mxu0 0.0
        %2232 = vmatpush1.xpose.msra.mxu0 %v1304
        %2233 = vmatprep.subr.mxu0 0.0
        %2234 = vmatpush1.xpose.msra.mxu0 %v1307
        %2235 = vmatprep.subr.mxu0 0.0
        %2236 = vmatpush1.xpose.msra.mxu0 %v1310
        %2237 = vmatprep.subr.mxu0 0.0
        %2238 = vmatpush1.xpose.msra.mxu0 %v1313
        %2239 = vmatprep.subr.mxu0 0.0
        %2240 = vmatpush1.xpose.msra.mxu0 %v1316
        %2241 = vmatprep.subr.mxu0 0.0
        %2242 = vmatpush1.xpose.msra.mxu0 %v1319
        %2243 = vmatprep.subr.mxu0 0.0
        %2244 = vmatpush1.xpose.msra.mxu0 %v1322
        %2245 = vmatprep.subr.mxu0 0.0
        %2246 = vmatpush1.xpose.msra.mxu0 0.0
        %2247 = vmatprep.subr.mxu0 0.0
        %2248 = vmatpush1.xpose.msra.mxu0 0.0
        %2249 = vmatprep.subr.mxu0 0.0
        %2250 = vmatpush1.xpose.msra.mxu0 0.0
        %2251 = vmatprep.subr.mxu0 0.0
        %2252 = vmatpush1.xpose.msra.mxu0 0.0
        %2253 = vmatprep.subr.mxu0 0.0
        %2254 = vmatpush1.xpose.msra.mxu0 0.0
        %2255 = vmatprep.subr.mxu0 0.0
        %2256 = vmatpush1.xpose.msra.mxu0 0.0
        %2257 = vmatprep.subr.mxu0 0.0
        %2258 = vmatpush1.xpose.msra.mxu0 0.0
        %2259 = vmatprep.subr.mxu0 0.0
        %2260 = vmatpush1.xpose.msra.mxu0 0.0
        %2261 = vmatprep.subr.mxu0 0.0
        %2262 = vmatpush1.xpose.msra.mxu0 0.0
        %2263 = vmatprep.subr.mxu0 0.0
        %2264 = vmatpush1.xpose.msra.mxu0 0.0
        %2265 = vmatprep.subr.mxu0 0.0
        %2266 = vmatpush1.xpose.msra.mxu0 0.0
        %2267 = vmatprep.subr.mxu0 0.0
        %2268 = vmatpush1.xpose.msra.mxu0 0.0
        %2269 = vmatprep.subr.mxu0 0.0
        %2270 = vmatpush1.xpose.msra.mxu0 0.0
        %2271 = vmatprep.subr.mxu0 0.0
        %2272 = vmatpush1.xpose.msra.mxu0 0.0
        %2273 = vmatprep.subr.mxu0 0.0
        %2274 = vmatpush1.xpose.msra.mxu0 0.0
        %2275 = vmatprep.subr.mxu0 0.0
        %2276 = vmatpush1.xpose.msra.mxu0 0.0
        %2277 = vmatprep.mubr.f32.mxu0 0.0
        %2278 = vmatmul.mubr.f32.gmra.mrb[0].mxu0 %v2208
        %v2279 = vpop.f32.mrb[0].mxu0
        %v2280 = vadd.f32 0.0, %v2279
        %v2281 = vpop.f32.mrb[0].mxu0
        %2282 = vmatprep.mubr.f32.mxu0 0.0
        %2283 = vmatmul.mubr.f32.gmra.mrb[0].mxu0 %v2211
        %v2284 = vpop.f32.mrb[0].mxu0
        %v2285 = vadd.f32 0.0, %v2284
        %v2286 = vpop.f32.mrb[0].mxu0
        %2287 = vdwg.mxu0
        %v2288 = vmul.f32 %v1399, %v2280
        %v2289 = vmul.f32 %v1399, %v2285
        %v2290 = vadd.f32 %v1402, %v2288
        %v2291 = vadd.f32 %v1402, %v2289
        %v2292 = vxor.u32 %v2290, 2147483648
        %v2293 = vxor.u32 %v2291, 2147483648
        %v2294 = vmul.f32 %v2292, 1.442695
        %v2295 = vpow.pop %v2294
        %v2296 = vmul.f32 %v2293, 1.442695
        %v2297 = vpow.pop %v2296
        %v2298 = vadd.f32 %v2295, 1.0
        %v2299 = vadd.f32 %v2297, 1.0
        %v2300 = vrcp.pop %v2298
        %v2301 = vmul.f32 1.0, %v2300
        %v2302 = vrcp.pop %v2299
        %v2303 = vmul.f32 1.0, %v2302
        %v2304 = vmul.f32 %v2301, %v478
        %v2305 = vmul.f32 %v2303, %v479
        %v2306 = vmax.f32 %v2304, %v2305
        %v2307 = vrot.slane %v2306, 4
        %v2308 = vmax.f32 %v2306, %v2307
        %v2309 = vrot.slane %v2308, 2
        %v2310 = vmax.f32 %v2308, %v2309
        %v2311 = vrot.slane %v2310, 1
        %v2312 = vmax.f32 %v2310, %v2311
        %vm2313 = vcmp.eq.f32.partialorder %v2304, %v2312
        %vm2314 = vcmp.eq.f32.partialorder %v2305, %v2312
        %v2315 = vsel %vm2313, %v1262, 16
        %v2316 = vsel %vm2314, %v1263, 16
        %vm2317 = vcmp.lt.s32.totalorder %v2315, %v2316
        %v2318 = vsel %vm2317, %v2315, %v2316
        %v2319 = vrot.slane %v2318, 4
        %vm2320 = vcmp.lt.s32.totalorder %v2318, %v2319
        %v2321 = vsel %vm2320, %v2318, %v2319
        %v2322 = vrot.slane %v2321, 2
        %vm2323 = vcmp.lt.s32.totalorder %v2321, %v2322
        %v2324 = vsel %vm2323, %v2321, %v2322
        %v2325 = vrot.slane %v2324, 1
        %vm2326 = vcmp.lt.s32.totalorder %v2324, %v2325
        %v2327 = vsel %vm2326, %v2324, %v2325
        %vm2328 = vcmp.eq.s32.totalorder %v1262, %v2327
        %vm2329 = vcmp.eq.s32.totalorder %v1263, %v2327
        %v2330 = vsel %vm2328, %v2304, 0.0
        %v2331 = vsel %vm2329, %v2305, 0.0
        %2332 = vadd.xlane.f32.xlu0 %v2330
        %v2333 = vpop.xlane.xlu0 %2332
        %2334 = vadd.xlane.f32.xlu0 %v2331
        %v2335 = vpop.xlane.xlu0 %2334
        %v2336 = vadd.f32 %v2333, 1.0
        %v2337 = vadd.f32 %v2335, 1.0
        %2338 = vmatprep.subr.mxu0 0.0
        %2339 = vmatpush1.msra.mxu0 %v460
        %2340 = vmatprep.subr.mxu0 0.0
        %2341 = vmatpush1.msra.mxu0 %v461
        %2342 = vmatprep.subr.mxu0 0.0
        %2343 = vmatpush1.msra.mxu0 %v462
        %2344 = vmatprep.subr.mxu0 0.0
        %2345 = vmatpush1.msra.mxu0 %v463
        %2346 = vmatprep.subr.mxu0 0.0
        %2347 = vmatpush1.msra.mxu0 %v464
        %2348 = vmatprep.subr.mxu0 0.0
        %2349 = vmatpush1.msra.mxu0 %v465
        %2350 = vmatprep.subr.mxu0 0.0
        %2351 = vmatpush1.msra.mxu0 %v466
        %2352 = vmatprep.subr.mxu0 0.0
        %2353 = vmatpush1.msra.mxu0 %v467
        %2354 = vmatprep.subr.mxu0 0.0
        %2355 = vmatpush1.msra.mxu0 %v468
        %2356 = vmatprep.subr.mxu0 0.0
        %2357 = vmatpush1.msra.mxu0 %v469
        %2358 = vmatprep.subr.mxu0 0.0
        %2359 = vmatpush1.msra.mxu0 %v470
        %2360 = vmatprep.subr.mxu0 0.0
        %2361 = vmatpush1.msra.mxu0 %v471
        %2362 = vmatprep.subr.mxu0 0.0
        %2363 = vmatpush1.msra.mxu0 %v472
        %2364 = vmatprep.subr.mxu0 0.0
        %2365 = vmatpush1.msra.mxu0 %v473
        %2366 = vmatprep.subr.mxu0 0.0
        %2367 = vmatpush1.msra.mxu0 %v474
        %2368 = vmatprep.subr.mxu0 0.0
        %2369 = vmatpush1.msra.mxu0 %v475
        %2370 = vmatprep.subr.mxu0 0.0
        %2371 = vmatpush1.msra.mxu0 0.0
        %2372 = vmatprep.subr.mxu0 0.0
        %2373 = vmatpush1.msra.mxu0 0.0
        %2374 = vmatprep.subr.mxu0 0.0
        %2375 = vmatpush1.msra.mxu0 0.0
        %2376 = vmatprep.subr.mxu0 0.0
        %2377 = vmatpush1.msra.mxu0 0.0
        %2378 = vmatprep.subr.mxu0 0.0
        %2379 = vmatpush1.msra.mxu0 0.0
        %2380 = vmatprep.subr.mxu0 0.0
        %2381 = vmatpush1.msra.mxu0 0.0
        %2382 = vmatprep.subr.mxu0 0.0
        %2383 = vmatpush1.msra.mxu0 0.0
        %2384 = vmatprep.subr.mxu0 0.0
        %2385 = vmatpush1.msra.mxu0 0.0
        %2386 = vmatprep.subr.mxu0 0.0
        %2387 = vmatpush1.msra.mxu0 0.0
        %2388 = vmatprep.subr.mxu0 0.0
        %2389 = vmatpush1.msra.mxu0 0.0
        %2390 = vmatprep.subr.mxu0 0.0
        %2391 = vmatpush1.msra.mxu0 0.0
        %2392 = vmatprep.subr.mxu0 0.0
        %2393 = vmatpush1.msra.mxu0 0.0
        %2394 = vmatprep.subr.mxu0 0.0
        %2395 = vmatpush1.msra.mxu0 0.0
        %2396 = vmatprep.subr.mxu0 0.0
        %2397 = vmatpush1.msra.mxu0 0.0
        %2398 = vmatprep.subr.mxu0 0.0
        %2399 = vmatpush1.msra.mxu0 0.0
        %2400 = vmatprep.subr.mxu0 0.0
        %2401 = vmatpush1.msra.mxu0 0.0
        %2402 = vmatprep.mubr.f32.mxu0 0.0
        %2403 = vmatmul.mubr.f32.gmra.mrb[0].mxu0 %v2330
        %v2404 = vpop.f32.mrb[0].mxu0
        %v2405 = vadd.f32 %v625, %v2404
        %v2406 = vpop.f32.mrb[0].mxu0
        %2407 = vmatprep.mubr.f32.mxu0 0.0
        %2408 = vmatmul.mubr.f32.gmra.mrb[0].mxu0 %v2331
        %v2409 = vpop.f32.mrb[0].mxu0
        %v2410 = vadd.f32 %v630, %v2409
        %v2411 = vpop.f32.mrb[0].mxu0
        %2412 = vdwg.mxu0
        %v2413 = vrcp.pop %v2336
        %v2414 = vmul.f32 %v2405, %v2413
        %v2415 = vrcp.pop %v2337
        %v2416 = vmul.f32 %v2410, %v2415
        %v2417 = vmul.f32 %v2414, %v2204
        %v2418 = vmul.f32 %v2416, %v2204
        %2419 = vxpose.xlu0.b32.start [1/16] %v2330, 128
        %2420 = vxpose.xlu0.b32.cont [2/16] %v2331, 128
        %2421 = vxpose.xlu0.b32.cont [3/16] 0.0, 128
        %2422 = vxpose.xlu0.b32.cont [4/16] 0.0, 128
        %2423 = vxpose.xlu0.b32.cont [5/16] 0.0, 128
        %2424 = vxpose.xlu0.b32.cont [6/16] 0.0, 128
        %2425 = vxpose.xlu0.b32.cont [7/16] 0.0, 128
        %2426 = vxpose.xlu0.b32.cont [8/16] 0.0, 128
        %2427 = vxpose.xlu0.b32.cont [9/16] 0.0, 128
        %2428 = vxpose.xlu0.b32.cont [10/16] 0.0, 128
        %2429 = vxpose.xlu0.b32.cont [11/16] 0.0, 128
        %2430 = vxpose.xlu0.b32.cont [12/16] 0.0, 128
        %2431 = vxpose.xlu0.b32.cont [13/16] 0.0, 128
        %2432 = vxpose.xlu0.b32.cont [14/16] 0.0, 128
        %2433 = vxpose.xlu0.b32.cont [15/16] 0.0, 128
        %2434 = vxpose.xlu0.b32.end [16/16] 0.0, 128
        %v2435 = vpop.trf.xlu0
        %v2436 = vpop.trf.xlu0
        %v2437 = vpop.trf.xlu0
        %v2438 = vpop.trf.xlu0
        %v2439 = vpop.trf.xlu0
        %v2440 = vpop.trf.xlu0
        %v2441 = vpop.trf.xlu0
        %v2442 = vpop.trf.xlu0
        %v2443 = vpop.trf.xlu0
        %v2444 = vpop.trf.xlu0
        %v2445 = vpop.trf.xlu0
        %v2446 = vpop.trf.xlu0
        %v2447 = vpop.trf.xlu0
        %v2448 = vpop.trf.xlu0
        %v2449 = vpop.trf.xlu0
        %v2450 = vpop.trf.xlu0
        %v2452 = vsel %vm1782, %v2435, 0
        %v2455 = vsel %vm1782, %v2436, 0
        %v2458 = vsel %vm1782, %v2437, 0
        %v2461 = vsel %vm1782, %v2438, 0
        %v2464 = vsel %vm1782, %v2439, 0
        %v2467 = vsel %vm1782, %v2440, 0
        %v2470 = vsel %vm1782, %v2441, 0
        %v2473 = vsel %vm1782, %v2442, 0
        %v2476 = vsel %vm1782, %v2443, 0
        %v2479 = vsel %vm1782, %v2444, 0
        %v2482 = vsel %vm1782, %v2445, 0
        %v2485 = vsel %vm1782, %v2446, 0
        %v2488 = vsel %vm1782, %v2447, 0
        %v2491 = vsel %vm1782, %v2448, 0
        %v2494 = vsel %vm1782, %v2449, 0
        %v2497 = vsel %vm1782, %v2450, 0
        %2499 = vmatprep.subr.mxu0 0.0
        %2500 = vmatpush1.msra.mxu0 %v2417
        %2501 = vmatprep.subr.mxu0 0.0
        %2502 = vmatpush1.msra.mxu0 %v2418
        %2503 = vmatprep.subr.mxu0 0.0
        %2504 = vmatpush1.msra.mxu0 0.0
        %2505 = vmatprep.subr.mxu0 0.0
        %2506 = vmatpush1.msra.mxu0 0.0
        %2507 = vmatprep.subr.mxu0 0.0
        %2508 = vmatpush1.msra.mxu0 0.0
        %2509 = vmatprep.subr.mxu0 0.0
        %2510 = vmatpush1.msra.mxu0 0.0
        %2511 = vmatprep.subr.mxu0 0.0
        %2512 = vmatpush1.msra.mxu0 0.0
        %2513 = vmatprep.subr.mxu0 0.0
        %2514 = vmatpush1.msra.mxu0 0.0
        %2515 = vmatprep.subr.mxu0 0.0
        %2516 = vmatpush1.msra.mxu0 0.0
        %2517 = vmatprep.subr.mxu0 0.0
        %2518 = vmatpush1.msra.mxu0 0.0
        %2519 = vmatprep.subr.mxu0 0.0
        %2520 = vmatpush1.msra.mxu0 0.0
        %2521 = vmatprep.subr.mxu0 0.0
        %2522 = vmatpush1.msra.mxu0 0.0
        %2523 = vmatprep.subr.mxu0 0.0
        %2524 = vmatpush1.msra.mxu0 0.0
        %2525 = vmatprep.subr.mxu0 0.0
        %2526 = vmatpush1.msra.mxu0 0.0
        %2527 = vmatprep.subr.mxu0 0.0
        %2528 = vmatpush1.msra.mxu0 0.0
        %2529 = vmatprep.subr.mxu0 0.0
        %2530 = vmatpush1.msra.mxu0 0.0
        %2531 = vmatprep.subr.mxu0 0.0
        %2532 = vmatpush1.msra.mxu0 0.0
        %2533 = vmatprep.subr.mxu0 0.0
        %2534 = vmatpush1.msra.mxu0 0.0
        %2535 = vmatprep.subr.mxu0 0.0
        %2536 = vmatpush1.msra.mxu0 0.0
        %2537 = vmatprep.subr.mxu0 0.0
        %2538 = vmatpush1.msra.mxu0 0.0
        %2539 = vmatprep.subr.mxu0 0.0
        %2540 = vmatpush1.msra.mxu0 0.0
        %2541 = vmatprep.subr.mxu0 0.0
        %2542 = vmatpush1.msra.mxu0 0.0
        %2543 = vmatprep.subr.mxu0 0.0
        %2544 = vmatpush1.msra.mxu0 0.0
        %2545 = vmatprep.subr.mxu0 0.0
        %2546 = vmatpush1.msra.mxu0 0.0
        %2547 = vmatprep.subr.mxu0 0.0
        %2548 = vmatpush1.msra.mxu0 0.0
        %2549 = vmatprep.subr.mxu0 0.0
        %2550 = vmatpush1.msra.mxu0 0.0
        %2551 = vmatprep.subr.mxu0 0.0
        %2552 = vmatpush1.msra.mxu0 0.0
        %2553 = vmatprep.subr.mxu0 0.0
        %2554 = vmatpush1.msra.mxu0 0.0
        %2555 = vmatprep.subr.mxu0 0.0
        %2556 = vmatpush1.msra.mxu0 0.0
        %2557 = vmatprep.subr.mxu0 0.0
        %2558 = vmatpush1.msra.mxu0 0.0
        %2559 = vmatprep.subr.mxu0 0.0
        %2560 = vmatpush1.msra.mxu0 0.0
        %2561 = vmatprep.subr.mxu0 0.0
        %2562 = vmatpush1.msra.mxu0 0.0
        %2563 = vmatprep.mubr.f32.mxu0 0.0
        %2564 = vmatmul.mubr.f32.gmra.mrb[0].mxu0 %v2452
        %v2565 = vpop.f32.mrb[0].mxu0
        %v2566 = vadd.f32 0.0, %v2565
        %v2567 = vpop.f32.mrb[0].mxu0
        %2568 = vmatprep.mubr.f32.mxu0 0.0
        %2569 = vmatmul.mubr.f32.gmra.mrb[0].mxu0 %v2455
        %v2570 = vpop.f32.mrb[0].mxu0
        %v2571 = vadd.f32 0.0, %v2570
        %v2572 = vpop.f32.mrb[0].mxu0
        %2573 = vmatprep.mubr.f32.mxu0 0.0
        %2574 = vmatmul.mubr.f32.gmra.mrb[0].mxu0 %v2458
        %v2575 = vpop.f32.mrb[0].mxu0
        %v2576 = vadd.f32 0.0, %v2575
        %v2577 = vpop.f32.mrb[0].mxu0
        %2578 = vmatprep.mubr.f32.mxu0 0.0
        %2579 = vmatmul.mubr.f32.gmra.mrb[0].mxu0 %v2461
        %v2580 = vpop.f32.mrb[0].mxu0
        %v2581 = vadd.f32 0.0, %v2580
        %v2582 = vpop.f32.mrb[0].mxu0
        %2583 = vmatprep.mubr.f32.mxu0 0.0
        %2584 = vmatmul.mubr.f32.gmra.mrb[0].mxu0 %v2464
        %v2585 = vpop.f32.mrb[0].mxu0
        %v2586 = vadd.f32 0.0, %v2585
        %v2587 = vpop.f32.mrb[0].mxu0
        %2588 = vmatprep.mubr.f32.mxu0 0.0
        %2589 = vmatmul.mubr.f32.gmra.mrb[0].mxu0 %v2467
        %v2590 = vpop.f32.mrb[0].mxu0
        %v2591 = vadd.f32 0.0, %v2590
        %v2592 = vpop.f32.mrb[0].mxu0
        %2593 = vmatprep.mubr.f32.mxu0 0.0
        %2594 = vmatmul.mubr.f32.gmra.mrb[0].mxu0 %v2470
        %v2595 = vpop.f32.mrb[0].mxu0
        %v2596 = vadd.f32 0.0, %v2595
        %v2597 = vpop.f32.mrb[0].mxu0
        %2598 = vmatprep.mubr.f32.mxu0 0.0
        %2599 = vmatmul.mubr.f32.gmra.mrb[0].mxu0 %v2473
        %v2600 = vpop.f32.mrb[0].mxu0
        %v2601 = vadd.f32 0.0, %v2600
        %v2602 = vpop.f32.mrb[0].mxu0
        %2603 = vmatprep.mubr.f32.mxu0 0.0
        %2604 = vmatmul.mubr.f32.gmra.mrb[0].mxu0 %v2476
        %v2605 = vpop.f32.mrb[0].mxu0
        %v2606 = vadd.f32 0.0, %v2605
        %v2607 = vpop.f32.mrb[0].mxu0
        %2608 = vmatprep.mubr.f32.mxu0 0.0
        %2609 = vmatmul.mubr.f32.gmra.mrb[0].mxu0 %v2479
        %v2610 = vpop.f32.mrb[0].mxu0
        %v2611 = vadd.f32 0.0, %v2610
        %v2612 = vpop.f32.mrb[0].mxu0
        %2613 = vmatprep.mubr.f32.mxu0 0.0
        %2614 = vmatmul.mubr.f32.gmra.mrb[0].mxu0 %v2482
        %v2615 = vpop.f32.mrb[0].mxu0
        %v2616 = vadd.f32 0.0, %v2615
        %v2617 = vpop.f32.mrb[0].mxu0
        %2618 = vmatprep.mubr.f32.mxu0 0.0
        %2619 = vmatmul.mubr.f32.gmra.mrb[0].mxu0 %v2485
        %v2620 = vpop.f32.mrb[0].mxu0
        %v2621 = vadd.f32 0.0, %v2620
        %v2622 = vpop.f32.mrb[0].mxu0
        %2623 = vmatprep.mubr.f32.mxu0 0.0
        %2624 = vmatmul.mubr.f32.gmra.mrb[0].mxu0 %v2488
        %v2625 = vpop.f32.mrb[0].mxu0
        %v2626 = vadd.f32 0.0, %v2625
        %v2627 = vpop.f32.mrb[0].mxu0
        %2628 = vmatprep.mubr.f32.mxu0 0.0
        %2629 = vmatmul.mubr.f32.gmra.mrb[0].mxu0 %v2491
        %v2630 = vpop.f32.mrb[0].mxu0
        %v2631 = vadd.f32 0.0, %v2630
        %v2632 = vpop.f32.mrb[0].mxu0
        %2633 = vmatprep.mubr.f32.mxu0 0.0
        %2634 = vmatmul.mubr.f32.gmra.mrb[0].mxu0 %v2494
        %v2635 = vpop.f32.mrb[0].mxu0
        %v2636 = vadd.f32 0.0, %v2635
        %v2637 = vpop.f32.mrb[0].mxu0
        %2638 = vmatprep.mubr.f32.mxu0 0.0
        %2639 = vmatmul.mubr.f32.gmra.mrb[0].mxu0 %v2497
        %v2640 = vpop.f32.mrb[0].mxu0
        %v2641 = vadd.f32 0.0, %v2640
        %v2642 = vpop.f32.mrb[0].mxu0
        %2643 = vdwg.mxu0
        %v2644 = vadd.f32 %v2123, %v2566
        %v2645 = vadd.f32 %v2128, %v2571
        %v2646 = vadd.f32 %v2133, %v2576
        %v2647 = vadd.f32 %v2138, %v2581
        %v2648 = vadd.f32 %v2143, %v2586
        %v2649 = vadd.f32 %v2148, %v2591
        %v2650 = vadd.f32 %v2153, %v2596
        %v2651 = vadd.f32 %v2158, %v2601
        %v2652 = vadd.f32 %v2163, %v2606
        %v2653 = vadd.f32 %v2168, %v2611
        %v2654 = vadd.f32 %v2173, %v2616
        %v2655 = vadd.f32 %v2178, %v2621
        %v2656 = vadd.f32 %v2183, %v2626
        %v2657 = vadd.f32 %v2188, %v2631
        %v2658 = vadd.f32 %v2193, %v2636
        %v2659 = vadd.f32 %v2198, %v2641
        %v2660 = vlaneseq
        %v2661 = vshrl.u32 %v2660, 7
        %v2662 = vsub.s32 3, %v2661
        %v2663 = vrot.slane %v480, %v2662
        %v2664 = vmul.f32 %v809, %v2663
        %v2665 = vmul.f32 %v810, %v2663
        %v2667 = vsel %vm635, %v2664, 0
        %v2670 = vsel %vm635, %v2665, 0
        %2672 = vmatprep.subr.mxu0 0.0
        %2673 = vmatpush1.xpose.msra.mxu0 %v1277
        %2674 = vmatprep.subr.mxu0 0.0
        %2675 = vmatpush1.xpose.msra.mxu0 %v1280
        %2676 = vmatprep.subr.mxu0 0.0
        %2677 = vmatpush1.xpose.msra.mxu0 %v1283
        %2678 = vmatprep.subr.mxu0 0.0
        %2679 = vmatpush1.xpose.msra.mxu0 %v1286
        %2680 = vmatprep.subr.mxu0 0.0
        %2681 = vmatpush1.xpose.msra.mxu0 %v1289
        %2682 = vmatprep.subr.mxu0 0.0
        %2683 = vmatpush1.xpose.msra.mxu0 %v1292
        %2684 = vmatprep.subr.mxu0 0.0
        %2685 = vmatpush1.xpose.msra.mxu0 %v1295
        %2686 = vmatprep.subr.mxu0 0.0
        %2687 = vmatpush1.xpose.msra.mxu0 %v1298
        %2688 = vmatprep.subr.mxu0 0.0
        %2689 = vmatpush1.xpose.msra.mxu0 %v1301
        %2690 = vmatprep.subr.mxu0 0.0
        %2691 = vmatpush1.xpose.msra.mxu0 %v1304
        %2692 = vmatprep.subr.mxu0 0.0
        %2693 = vmatpush1.xpose.msra.mxu0 %v1307
        %2694 = vmatprep.subr.mxu0 0.0
        %2695 = vmatpush1.xpose.msra.mxu0 %v1310
        %2696 = vmatprep.subr.mxu0 0.0
        %2697 = vmatpush1.xpose.msra.mxu0 %v1313
        %2698 = vmatprep.subr.mxu0 0.0
        %2699 = vmatpush1.xpose.msra.mxu0 %v1316
        %2700 = vmatprep.subr.mxu0 0.0
        %2701 = vmatpush1.xpose.msra.mxu0 %v1319
        %2702 = vmatprep.subr.mxu0 0.0
        %2703 = vmatpush1.xpose.msra.mxu0 %v1322
        %2704 = vmatprep.subr.mxu0 0.0
        %2705 = vmatpush1.xpose.msra.mxu0 0.0
        %2706 = vmatprep.subr.mxu0 0.0
        %2707 = vmatpush1.xpose.msra.mxu0 0.0
        %2708 = vmatprep.subr.mxu0 0.0
        %2709 = vmatpush1.xpose.msra.mxu0 0.0
        %2710 = vmatprep.subr.mxu0 0.0
        %2711 = vmatpush1.xpose.msra.mxu0 0.0
        %2712 = vmatprep.subr.mxu0 0.0
        %2713 = vmatpush1.xpose.msra.mxu0 0.0
        %2714 = vmatprep.subr.mxu0 0.0
        %2715 = vmatpush1.xpose.msra.mxu0 0.0
        %2716 = vmatprep.subr.mxu0 0.0
        %2717 = vmatpush1.xpose.msra.mxu0 0.0
        %2718 = vmatprep.subr.mxu0 0.0
        %2719 = vmatpush1.xpose.msra.mxu0 0.0
        %2720 = vmatprep.subr.mxu0 0.0
        %2721 = vmatpush1.xpose.msra.mxu0 0.0
        %2722 = vmatprep.subr.mxu0 0.0
        %2723 = vmatpush1.xpose.msra.mxu0 0.0
        %2724 = vmatprep.subr.mxu0 0.0
        %2725 = vmatpush1.xpose.msra.mxu0 0.0
        %2726 = vmatprep.subr.mxu0 0.0
        %2727 = vmatpush1.xpose.msra.mxu0 0.0
        %2728 = vmatprep.subr.mxu0 0.0
        %2729 = vmatpush1.xpose.msra.mxu0 0.0
        %2730 = vmatprep.subr.mxu0 0.0
        %2731 = vmatpush1.xpose.msra.mxu0 0.0
        %2732 = vmatprep.subr.mxu0 0.0
        %2733 = vmatpush1.xpose.msra.mxu0 0.0
        %2734 = vmatprep.subr.mxu0 0.0
        %2735 = vmatpush1.xpose.msra.mxu0 0.0
        %2736 = vmatprep.mubr.f32.mxu0 0.0
        %2737 = vmatmul.mubr.f32.gmra.mrb[0].mxu0 %v2667
        %v2738 = vpop.f32.mrb[0].mxu0
        %v2739 = vadd.f32 0.0, %v2738
        %v2740 = vpop.f32.mrb[0].mxu0
        %2741 = vmatprep.mubr.f32.mxu0 0.0
        %2742 = vmatmul.mubr.f32.gmra.mrb[0].mxu0 %v2670
        %v2743 = vpop.f32.mrb[0].mxu0
        %v2744 = vadd.f32 0.0, %v2743
        %v2745 = vpop.f32.mrb[0].mxu0
        %2746 = vdwg.mxu0
        %v2747 = vmul.f32 %v1399, %v2739
        %v2748 = vmul.f32 %v1399, %v2744
        %v2749 = vadd.f32 %v1402, %v2747
        %v2750 = vadd.f32 %v1402, %v2748
        %v2751 = vxor.u32 %v2749, 2147483648
        %v2752 = vxor.u32 %v2750, 2147483648
        %v2753 = vmul.f32 %v2751, 1.442695
        %v2754 = vpow.pop %v2753
        %v2755 = vmul.f32 %v2752, 1.442695
        %v2756 = vpow.pop %v2755
        %v2757 = vadd.f32 %v2754, 1.0
        %v2758 = vadd.f32 %v2756, 1.0
        %v2759 = vrcp.pop %v2757
        %v2760 = vmul.f32 1.0, %v2759
        %v2761 = vrcp.pop %v2758
        %v2762 = vmul.f32 1.0, %v2761
        %v2763 = vmul.f32 %v2760, %v478
        %v2764 = vmul.f32 %v2762, %v479
        %v2765 = vmax.f32 %v2763, %v2764
        %v2766 = vrot.slane %v2765, 4
        %v2767 = vmax.f32 %v2765, %v2766
        %v2768 = vrot.slane %v2767, 2
        %v2769 = vmax.f32 %v2767, %v2768
        %v2770 = vrot.slane %v2769, 1
        %v2771 = vmax.f32 %v2769, %v2770
        %vm2772 = vcmp.eq.f32.partialorder %v2763, %v2771
        %vm2773 = vcmp.eq.f32.partialorder %v2764, %v2771
        %v2774 = vsel %vm2772, %v1262, 16
        %v2775 = vsel %vm2773, %v1263, 16
        %vm2776 = vcmp.lt.s32.totalorder %v2774, %v2775
        %v2777 = vsel %vm2776, %v2774, %v2775
        %v2778 = vrot.slane %v2777, 4
        %vm2779 = vcmp.lt.s32.totalorder %v2777, %v2778
        %v2780 = vsel %vm2779, %v2777, %v2778
        %v2781 = vrot.slane %v2780, 2
        %vm2782 = vcmp.lt.s32.totalorder %v2780, %v2781
        %v2783 = vsel %vm2782, %v2780, %v2781
        %v2784 = vrot.slane %v2783, 1
        %vm2785 = vcmp.lt.s32.totalorder %v2783, %v2784
        %v2786 = vsel %vm2785, %v2783, %v2784
        %vm2787 = vcmp.eq.s32.totalorder %v1262, %v2786
        %vm2788 = vcmp.eq.s32.totalorder %v1263, %v2786
        %v2789 = vsel %vm2787, %v2763, 0.0
        %v2790 = vsel %vm2788, %v2764, 0.0
        %2791 = vadd.xlane.f32.xlu0 %v2789
        %v2792 = vpop.xlane.xlu0 %2791
        %2793 = vadd.xlane.f32.xlu0 %v2790
        %v2794 = vpop.xlane.xlu0 %2793
        %v2795 = vadd.f32 %v2792, 1.0
        %v2796 = vadd.f32 %v2794, 1.0
        %2797 = vmatprep.subr.mxu0 0.0
        %2798 = vmatpush1.msra.mxu0 %v460
        %2799 = vmatprep.subr.mxu0 0.0
        %2800 = vmatpush1.msra.mxu0 %v461
        %2801 = vmatprep.subr.mxu0 0.0
        %2802 = vmatpush1.msra.mxu0 %v462
        %2803 = vmatprep.subr.mxu0 0.0
        %2804 = vmatpush1.msra.mxu0 %v463
        %2805 = vmatprep.subr.mxu0 0.0
        %2806 = vmatpush1.msra.mxu0 %v464
        %2807 = vmatprep.subr.mxu0 0.0
        %2808 = vmatpush1.msra.mxu0 %v465
        %2809 = vmatprep.subr.mxu0 0.0
        %2810 = vmatpush1.msra.mxu0 %v466
        %2811 = vmatprep.subr.mxu0 0.0
        %2812 = vmatpush1.msra.mxu0 %v467
        %2813 = vmatprep.subr.mxu0 0.0
        %2814 = vmatpush1.msra.mxu0 %v468
        %2815 = vmatprep.subr.mxu0 0.0
        %2816 = vmatpush1.msra.mxu0 %v469
        %2817 = vmatprep.subr.mxu0 0.0
        %2818 = vmatpush1.msra.mxu0 %v470
        %2819 = vmatprep.subr.mxu0 0.0
        %2820 = vmatpush1.msra.mxu0 %v471
        %2821 = vmatprep.subr.mxu0 0.0
        %2822 = vmatpush1.msra.mxu0 %v472
        %2823 = vmatprep.subr.mxu0 0.0
        %2824 = vmatpush1.msra.mxu0 %v473
        %2825 = vmatprep.subr.mxu0 0.0
        %2826 = vmatpush1.msra.mxu0 %v474
        %2827 = vmatprep.subr.mxu0 0.0
        %2828 = vmatpush1.msra.mxu0 %v475
        %2829 = vmatprep.subr.mxu0 0.0
        %2830 = vmatpush1.msra.mxu0 0.0
        %2831 = vmatprep.subr.mxu0 0.0
        %2832 = vmatpush1.msra.mxu0 0.0
        %2833 = vmatprep.subr.mxu0 0.0
        %2834 = vmatpush1.msra.mxu0 0.0
        %2835 = vmatprep.subr.mxu0 0.0
        %2836 = vmatpush1.msra.mxu0 0.0
        %2837 = vmatprep.subr.mxu0 0.0
        %2838 = vmatpush1.msra.mxu0 0.0
        %2839 = vmatprep.subr.mxu0 0.0
        %2840 = vmatpush1.msra.mxu0 0.0
        %2841 = vmatprep.subr.mxu0 0.0
        %2842 = vmatpush1.msra.mxu0 0.0
        %2843 = vmatprep.subr.mxu0 0.0
        %2844 = vmatpush1.msra.mxu0 0.0
        %2845 = vmatprep.subr.mxu0 0.0
        %2846 = vmatpush1.msra.mxu0 0.0
        %2847 = vmatprep.subr.mxu0 0.0
        %2848 = vmatpush1.msra.mxu0 0.0
        %2849 = vmatprep.subr.mxu0 0.0
        %2850 = vmatpush1.msra.mxu0 0.0
        %2851 = vmatprep.subr.mxu0 0.0
        %2852 = vmatpush1.msra.mxu0 0.0
        %2853 = vmatprep.subr.mxu0 0.0
        %2854 = vmatpush1.msra.mxu0 0.0
        %2855 = vmatprep.subr.mxu0 0.0
        %2856 = vmatpush1.msra.mxu0 0.0
        %2857 = vmatprep.subr.mxu0 0.0
        %2858 = vmatpush1.msra.mxu0 0.0
        %2859 = vmatprep.subr.mxu0 0.0
        %2860 = vmatpush1.msra.mxu0 0.0
        %2861 = vmatprep.mubr.f32.mxu0 0.0
        %2862 = vmatmul.mubr.f32.gmra.mrb[0].mxu0 %v2789
        %v2863 = vpop.f32.mrb[0].mxu0
        %v2864 = vadd.f32 %v625, %v2863
        %v2865 = vpop.f32.mrb[0].mxu0
        %2866 = vmatprep.mubr.f32.mxu0 0.0
        %2867 = vmatmul.mubr.f32.gmra.mrb[0].mxu0 %v2790
        %v2868 = vpop.f32.mrb[0].mxu0
        %v2869 = vadd.f32 %v630, %v2868
        %v2870 = vpop.f32.mrb[0].mxu0
        %2871 = vdwg.mxu0
        %v2872 = vrcp.pop %v2795
        %v2873 = vmul.f32 %v2864, %v2872
        %v2874 = vrcp.pop %v2796
        %v2875 = vmul.f32 %v2869, %v2874
        %v2876 = vmul.f32 %v2873, %v2663
        %v2877 = vmul.f32 %v2875, %v2663
        %2878 = vxpose.xlu0.b32.start [1/16] %v2789, 128
        %2879 = vxpose.xlu0.b32.cont [2/16] %v2790, 128
        %2880 = vxpose.xlu0.b32.cont [3/16] 0.0, 128
        %2881 = vxpose.xlu0.b32.cont [4/16] 0.0, 128
        %2882 = vxpose.xlu0.b32.cont [5/16] 0.0, 128
        %2883 = vxpose.xlu0.b32.cont [6/16] 0.0, 128
        %2884 = vxpose.xlu0.b32.cont [7/16] 0.0, 128
        %2885 = vxpose.xlu0.b32.cont [8/16] 0.0, 128
        %2886 = vxpose.xlu0.b32.cont [9/16] 0.0, 128
        %2887 = vxpose.xlu0.b32.cont [10/16] 0.0, 128
        %2888 = vxpose.xlu0.b32.cont [11/16] 0.0, 128
        %2889 = vxpose.xlu0.b32.cont [12/16] 0.0, 128
        %2890 = vxpose.xlu0.b32.cont [13/16] 0.0, 128
        %2891 = vxpose.xlu0.b32.cont [14/16] 0.0, 128
        %2892 = vxpose.xlu0.b32.cont [15/16] 0.0, 128
        %2893 = vxpose.xlu0.b32.end [16/16] 0.0, 128
        %v2894 = vpop.trf.xlu0
        %v2895 = vpop.trf.xlu0
        %v2896 = vpop.trf.xlu0
        %v2897 = vpop.trf.xlu0
        %v2898 = vpop.trf.xlu0
        %v2899 = vpop.trf.xlu0
        %v2900 = vpop.trf.xlu0
        %v2901 = vpop.trf.xlu0
        %v2902 = vpop.trf.xlu0
        %v2903 = vpop.trf.xlu0
        %v2904 = vpop.trf.xlu0
        %v2905 = vpop.trf.xlu0
        %v2906 = vpop.trf.xlu0
        %v2907 = vpop.trf.xlu0
        %v2908 = vpop.trf.xlu0
        %v2909 = vpop.trf.xlu0
        %v2911 = vsel %vm1782, %v2894, 0
        %v2914 = vsel %vm1782, %v2895, 0
        %v2917 = vsel %vm1782, %v2896, 0
        %v2920 = vsel %vm1782, %v2897, 0
        %v2923 = vsel %vm1782, %v2898, 0
        %v2926 = vsel %vm1782, %v2899, 0
        %v2929 = vsel %vm1782, %v2900, 0
        %v2932 = vsel %vm1782, %v2901, 0
        %v2935 = vsel %vm1782, %v2902, 0
        %v2938 = vsel %vm1782, %v2903, 0
        %v2941 = vsel %vm1782, %v2904, 0
        %v2944 = vsel %vm1782, %v2905, 0
        %v2947 = vsel %vm1782, %v2906, 0
        %v2950 = vsel %vm1782, %v2907, 0
        %v2953 = vsel %vm1782, %v2908, 0
        %v2956 = vsel %vm1782, %v2909, 0
        %2958 = vmatprep.subr.mxu0 0.0
        %2959 = vmatpush1.msra.mxu0 %v2876
        %2960 = vmatprep.subr.mxu0 0.0
        %2961 = vmatpush1.msra.mxu0 %v2877
        %2962 = vmatprep.subr.mxu0 0.0
        %2963 = vmatpush1.msra.mxu0 0.0
        %2964 = vmatprep.subr.mxu0 0.0
        %2965 = vmatpush1.msra.mxu0 0.0
        %2966 = vmatprep.subr.mxu0 0.0
        %2967 = vmatpush1.msra.mxu0 0.0
        %2968 = vmatprep.subr.mxu0 0.0
        %2969 = vmatpush1.msra.mxu0 0.0
        %2970 = vmatprep.subr.mxu0 0.0
        %2971 = vmatpush1.msra.mxu0 0.0
        %2972 = vmatprep.subr.mxu0 0.0
        %2973 = vmatpush1.msra.mxu0 0.0
        %2974 = vmatprep.subr.mxu0 0.0
        %2975 = vmatpush1.msra.mxu0 0.0
        %2976 = vmatprep.subr.mxu0 0.0
        %2977 = vmatpush1.msra.mxu0 0.0
        %2978 = vmatprep.subr.mxu0 0.0
        %2979 = vmatpush1.msra.mxu0 0.0
        %2980 = vmatprep.subr.mxu0 0.0
        %2981 = vmatpush1.msra.mxu0 0.0
        %2982 = vmatprep.subr.mxu0 0.0
        %2983 = vmatpush1.msra.mxu0 0.0
        %2984 = vmatprep.subr.mxu0 0.0
        %2985 = vmatpush1.msra.mxu0 0.0
        %2986 = vmatprep.subr.mxu0 0.0
        %2987 = vmatpush1.msra.mxu0 0.0
        %2988 = vmatprep.subr.mxu0 0.0
        %2989 = vmatpush1.msra.mxu0 0.0
        %2990 = vmatprep.subr.mxu0 0.0
        %2991 = vmatpush1.msra.mxu0 0.0
        %2992 = vmatprep.subr.mxu0 0.0
        %2993 = vmatpush1.msra.mxu0 0.0
        %2994 = vmatprep.subr.mxu0 0.0
        %2995 = vmatpush1.msra.mxu0 0.0
        %2996 = vmatprep.subr.mxu0 0.0
        %2997 = vmatpush1.msra.mxu0 0.0
        %2998 = vmatprep.subr.mxu0 0.0
        %2999 = vmatpush1.msra.mxu0 0.0
        %3000 = vmatprep.subr.mxu0 0.0
        %3001 = vmatpush1.msra.mxu0 0.0
        %3002 = vmatprep.subr.mxu0 0.0
        %3003 = vmatpush1.msra.mxu0 0.0
        %3004 = vmatprep.subr.mxu0 0.0
        %3005 = vmatpush1.msra.mxu0 0.0
        %3006 = vmatprep.subr.mxu0 0.0
        %3007 = vmatpush1.msra.mxu0 0.0
        %3008 = vmatprep.subr.mxu0 0.0
        %3009 = vmatpush1.msra.mxu0 0.0
        %3010 = vmatprep.subr.mxu0 0.0
        %3011 = vmatpush1.msra.mxu0 0.0
        %3012 = vmatprep.subr.mxu0 0.0
        %3013 = vmatpush1.msra.mxu0 0.0
        %3014 = vmatprep.subr.mxu0 0.0
        %3015 = vmatpush1.msra.mxu0 0.0
        %3016 = vmatprep.subr.mxu0 0.0
        %3017 = vmatpush1.msra.mxu0 0.0
        %3018 = vmatprep.subr.mxu0 0.0
        %3019 = vmatpush1.msra.mxu0 0.0
        %3020 = vmatprep.subr.mxu0 0.0
        %3021 = vmatpush1.msra.mxu0 0.0
        %3022 = vmatprep.mubr.f32.mxu0 0.0
        %3023 = vmatmul.mubr.f32.gmra.mrb[0].mxu0 %v2911
        %v3024 = vpop.f32.mrb[0].mxu0
        %v3025 = vadd.f32 0.0, %v3024
        %v3026 = vpop.f32.mrb[0].mxu0
        %3027 = vmatprep.mubr.f32.mxu0 0.0
        %3028 = vmatmul.mubr.f32.gmra.mrb[0].mxu0 %v2914
        %v3029 = vpop.f32.mrb[0].mxu0
        %v3030 = vadd.f32 0.0, %v3029
        %v3031 = vpop.f32.mrb[0].mxu0
        %3032 = vmatprep.mubr.f32.mxu0 0.0
        %3033 = vmatmul.mubr.f32.gmra.mrb[0].mxu0 %v2917
        %v3034 = vpop.f32.mrb[0].mxu0
        %v3035 = vadd.f32 0.0, %v3034
        %v3036 = vpop.f32.mrb[0].mxu0
        %3037 = vmatprep.mubr.f32.mxu0 0.0
        %3038 = vmatmul.mubr.f32.gmra.mrb[0].mxu0 %v2920
        %v3039 = vpop.f32.mrb[0].mxu0
        %v3040 = vadd.f32 0.0, %v3039
        %v3041 = vpop.f32.mrb[0].mxu0
        %3042 = vmatprep.mubr.f32.mxu0 0.0
        %3043 = vmatmul.mubr.f32.gmra.mrb[0].mxu0 %v2923
        %v3044 = vpop.f32.mrb[0].mxu0
        %v3045 = vadd.f32 0.0, %v3044
        %v3046 = vpop.f32.mrb[0].mxu0
        %3047 = vmatprep.mubr.f32.mxu0 0.0
        %3048 = vmatmul.mubr.f32.gmra.mrb[0].mxu0 %v2926
        %v3049 = vpop.f32.mrb[0].mxu0
        %v3050 = vadd.f32 0.0, %v3049
        %v3051 = vpop.f32.mrb[0].mxu0
        %3052 = vmatprep.mubr.f32.mxu0 0.0
        %3053 = vmatmul.mubr.f32.gmra.mrb[0].mxu0 %v2929
        %v3054 = vpop.f32.mrb[0].mxu0
        %v3055 = vadd.f32 0.0, %v3054
        %v3056 = vpop.f32.mrb[0].mxu0
        %3057 = vmatprep.mubr.f32.mxu0 0.0
        %3058 = vmatmul.mubr.f32.gmra.mrb[0].mxu0 %v2932
        %v3059 = vpop.f32.mrb[0].mxu0
        %v3060 = vadd.f32 0.0, %v3059
        %v3061 = vpop.f32.mrb[0].mxu0
        %3062 = vmatprep.mubr.f32.mxu0 0.0
        %3063 = vmatmul.mubr.f32.gmra.mrb[0].mxu0 %v2935
        %v3064 = vpop.f32.mrb[0].mxu0
        %v3065 = vadd.f32 0.0, %v3064
        %v3066 = vpop.f32.mrb[0].mxu0
        %3067 = vmatprep.mubr.f32.mxu0 0.0
        %3068 = vmatmul.mubr.f32.gmra.mrb[0].mxu0 %v2938
        %v3069 = vpop.f32.mrb[0].mxu0
        %v3070 = vadd.f32 0.0, %v3069
        %v3071 = vpop.f32.mrb[0].mxu0
        %3072 = vmatprep.mubr.f32.mxu0 0.0
        %3073 = vmatmul.mubr.f32.gmra.mrb[0].mxu0 %v2941
        %v3074 = vpop.f32.mrb[0].mxu0
        %v3075 = vadd.f32 0.0, %v3074
        %v3076 = vpop.f32.mrb[0].mxu0
        %3077 = vmatprep.mubr.f32.mxu0 0.0
        %3078 = vmatmul.mubr.f32.gmra.mrb[0].mxu0 %v2944
        %v3079 = vpop.f32.mrb[0].mxu0
        %v3080 = vadd.f32 0.0, %v3079
        %v3081 = vpop.f32.mrb[0].mxu0
        %3082 = vmatprep.mubr.f32.mxu0 0.0
        %3083 = vmatmul.mubr.f32.gmra.mrb[0].mxu0 %v2947
        %v3084 = vpop.f32.mrb[0].mxu0
        %v3085 = vadd.f32 0.0, %v3084
        %v3086 = vpop.f32.mrb[0].mxu0
        %3087 = vmatprep.mubr.f32.mxu0 0.0
        %3088 = vmatmul.mubr.f32.gmra.mrb[0].mxu0 %v2950
        %v3089 = vpop.f32.mrb[0].mxu0
        %v3090 = vadd.f32 0.0, %v3089
        %v3091 = vpop.f32.mrb[0].mxu0
        %3092 = vmatprep.mubr.f32.mxu0 0.0
        %3093 = vmatmul.mubr.f32.gmra.mrb[0].mxu0 %v2953
        %v3094 = vpop.f32.mrb[0].mxu0
        %v3095 = vadd.f32 0.0, %v3094
        %v3096 = vpop.f32.mrb[0].mxu0
        %3097 = vmatprep.mubr.f32.mxu0 0.0
        %3098 = vmatmul.mubr.f32.gmra.mrb[0].mxu0 %v2956
        %v3099 = vpop.f32.mrb[0].mxu0
        %v3100 = vadd.f32 0.0, %v3099
        %v3101 = vpop.f32.mrb[0].mxu0
        %3102 = vdwg.mxu0
        %v3103 = vadd.f32 %v2644, %v3025
        %v3104 = vadd.f32 %v2645, %v3030
        %v3105 = vadd.f32 %v2646, %v3035
        %v3106 = vadd.f32 %v2647, %v3040
        %v3107 = vadd.f32 %v2648, %v3045
        %v3108 = vadd.f32 %v2649, %v3050
        %v3109 = vadd.f32 %v2650, %v3055
        %v3110 = vadd.f32 %v2651, %v3060
        %v3111 = vadd.f32 %v2652, %v3065
        %v3112 = vadd.f32 %v2653, %v3070
        %v3113 = vadd.f32 %v2654, %v3075
        %v3114 = vadd.f32 %v2655, %v3080
        %v3115 = vadd.f32 %v2656, %v3085
        %v3116 = vadd.f32 %v2657, %v3090
        %v3117 = vadd.f32 %v2658, %v3095
        %v3118 = vadd.f32 %v2659, %v3100
        %3119 = vst.msk [vmem:[%s438] sm:$0xff] %vm635, %v3103
        %3120 = vst.msk [vmem:[%s438 + $0x8] sm:$0xff] %vm635, %v3104
        %3121 = vst.msk [vmem:[%s438 + $0x10] sm:$0xff] %vm635, %v3105
        %3122 = vst.msk [vmem:[%s438 + $0x18] sm:$0xff] %vm635, %v3106
        %3123 = vst.msk [vmem:[%s438 + $0x20] sm:$0xff] %vm635, %v3107
        %3124 = vst.msk [vmem:[%s438 + $0x28] sm:$0xff] %vm635, %v3108
        %3125 = vst.msk [vmem:[%s438 + $0x30] sm:$0xff] %vm635, %v3109
        %3126 = vst.msk [vmem:[%s438 + $0x38] sm:$0xff] %vm635, %v3110
        %3127 = vst.msk [vmem:[%s438 + $0x40] sm:$0xff] %vm635, %v3111
        %3128 = vst.msk [vmem:[%s438 + $0x48] sm:$0xff] %vm635, %v3112
        %3129 = vst.msk [vmem:[%s438 + $0x50] sm:$0xff] %vm635, %v3113
        %3130 = vst.msk [vmem:[%s438 + $0x58] sm:$0xff] %vm635, %v3114
        %3131 = vst.msk [vmem:[%s438 + $0x60] sm:$0xff] %vm635, %v3115
        %3132 = vst.msk [vmem:[%s438 + $0x68] sm:$0xff] %vm635, %v3116
        %3133 = vst.msk [vmem:[%s438 + $0x70] sm:$0xff] %vm635, %v3117
        %3134 = vst.msk [vmem:[%s438 + $0x78] sm:$0xff] %vm635, %v3118
        %s3135 = sand.u32 %s185, 1
        %s3136 = sand.u32 %s185, 1
        %s3137 = smul.addr %s3136, 128
        %s3138 = scalar_lea.vmem [#allocation5], %s3137
        // Predicated region
        $region83: #{cluster_block_forward.7} parent=77 // pred_check
          %p3139 = pneg %p195
        $region84: #{cluster_block_forward.7} parent=77 // pred_check_branch
          %3141 = sbr.rel (%p3139) target = $region86
        $region85: #{cluster_block_forward.7} parent=77 // pred_region
          %s3142 = smul.u32 4, %s25
          %s3143 = smul.u32 4, %s26
          %s3144 = smul.addr %s3142, 8
          %s3145 = sadd.s32 %s3143, %s3144
          %s3146 = smul.addr %s24, 64
          %s3147 = sadd.s32 %s3145, %s3146
          %s3148 = smul.addr %s3147, 8
          %s3149 = scalar_lea.vmem %s6, %s3148
          // Predicated region
          $region87: #{cluster_block_forward.7} parent=85 // pred_check
            _
          $region88: #{cluster_block_forward.7} parent=85 // pred_check_branch
            %3151 = sbr.rel (0) target = $region90
          $region89: #{cluster_block_forward.7} parent=85 // pred_region
            // Predicated region
            $region91: #{cluster_block_forward.7} parent=89 // pred_check
              _
            $region92: #{cluster_block_forward.7} parent=89 // pred_check_branch
              %3153 = sbr.rel (0) target = $region94
            $region93: #{cluster_block_forward.7} parent=89 // pred_region
              // Predicated region
              $region106: #{cluster_block_forward.7} parent=93 // pred_check
                _
              $region107: #{cluster_block_forward.7} parent=93 // pred_check_branch
                %3198 = sbr.rel (0) target = $region109
              $region108: #{cluster_block_forward.7} parent=93 // pred_region
                loop: start=0, step=1, limit=1
                $region110: #{cluster_block_forward.7} parent=108 // loop_pre_header
                  _
                $region111: #{cluster_block_forward.7} parent=108 // loop_header
                  %s3200 = sphi 0, %s3204
                  %p3201 = scmp.ge.s32.totalorder %s3200, 1
                  %s3205 = sphi %s3138, %s3138
                  %s3206 = sphi %s3149, %s3149
                $region112: #{cluster_block_forward.7} parent=108 // loop_header_branch
                  %3203 = sbr.rel (%p3201) target = $region116
                $region113: #{cluster_block_forward.7} parent=108 // loop_body
                  %v3207 = vld [vmem:[%s3205] sm:$0xff]
                  %3208 = vst [vmem:[%s3206] sm:$0xff] %v3207
                  %v3209 = vld [vmem:[%s3205 + $0x8] sm:$0xff]
                  %3210 = vst [vmem:[%s3206 + $0x8] sm:$0xff] %v3209
                  %v3211 = vld [vmem:[%s3205 + $0x10] sm:$0xff]
                  %3212 = vst [vmem:[%s3206 + $0x10] sm:$0xff] %v3211
                  %v3213 = vld [vmem:[%s3205 + $0x18] sm:$0xff]
                  %3214 = vst [vmem:[%s3206 + $0x18] sm:$0xff] %v3213
                  %v3215 = vld [vmem:[%s3205 + $0x20] sm:$0xff]
                  %3216 = vst [vmem:[%s3206 + $0x40] sm:$0xff] %v3215
                  %v3217 = vld [vmem:[%s3205 + $0x28] sm:$0xff]
                  %3218 = vst [vmem:[%s3206 + $0x48] sm:$0xff] %v3217
                  %v3219 = vld [vmem:[%s3205 + $0x30] sm:$0xff]
                  %3220 = vst [vmem:[%s3206 + $0x50] sm:$0xff] %v3219
                  %v3221 = vld [vmem:[%s3205 + $0x38] sm:$0xff]
                  %3222 = vst [vmem:[%s3206 + $0x58] sm:$0xff] %v3221
                  %v3223 = vld [vmem:[%s3205 + $0x40] sm:$0xff]
                  %3224 = vst [vmem:[%s3206 + $0x80] sm:$0xff] %v3223
                  %v3225 = vld [vmem:[%s3205 + $0x48] sm:$0xff]
                  %3226 = vst [vmem:[%s3206 + $0x88] sm:$0xff] %v3225
                  %v3227 = vld [vmem:[%s3205 + $0x50] sm:$0xff]
                  %3228 = vst [vmem:[%s3206 + $0x90] sm:$0xff] %v3227
                  %v3229 = vld [vmem:[%s3205 + $0x58] sm:$0xff]
                  %3230 = vst [vmem:[%s3206 + $0x98] sm:$0xff] %v3229
                  %v3231 = vld [vmem:[%s3205 + $0x60] sm:$0xff]
                  %3232 = vst [vmem:[%s3206 + $0xc0] sm:$0xff] %v3231
                  %v3233 = vld [vmem:[%s3205 + $0x68] sm:$0xff]
                  %3234 = vst [vmem:[%s3206 + $0xc8] sm:$0xff] %v3233
                  %v3235 = vld [vmem:[%s3205 + $0x70] sm:$0xff]
                  %3236 = vst [vmem:[%s3206 + $0xd0] sm:$0xff] %v3235
                  %v3237 = vld [vmem:[%s3205 + $0x78] sm:$0xff]
                  %3238 = vst [vmem:[%s3206 + $0xd8] sm:$0xff] %v3237
                $region114: #{cluster_block_forward.7} parent=108 // loop_footer
                  %s3204 = sadd.s32 1, %s3200
                $region115: #{cluster_block_forward.7} parent=108 // loop_footer_branch
                  %3199 = sbr.rel target = $region111
                $region116: #{cluster_block_forward.7} parent=108 // loop_exit
                  _
              $region109: #{cluster_block_forward.7} parent=93 // pred_fallthru
                _
              // Predicated region
              $region117: #{cluster_block_forward.7} parent=93 // pred_check
                _
              $region118: #{cluster_block_forward.7} parent=93 // pred_check_branch
                %3240 = sbr.rel target = $region120
              $region119: #{cluster_block_forward.7} parent=93 // pred_region
                _
              $region120: #{cluster_block_forward.7} parent=93 // pred_fallthru
                _
            $region94: #{cluster_block_forward.7} parent=89 // pred_fallthru
              _
            // Predicated region
            $region95: #{cluster_block_forward.7} parent=89 // pred_check
              _
            $region96: #{cluster_block_forward.7} parent=89 // pred_check_branch
              %3155 = sbr.rel target = $region98
            $region97: #{cluster_block_forward.7} parent=89 // pred_region
              loop: start=0, step=1, limit=1
              $region99: #{cluster_block_forward.7} parent=97 // loop_pre_header
                _
              $region100: #{cluster_block_forward.7} parent=97 // loop_header
                %s3158 = sphi 0, %s3162
                %p3159 = scmp.ge.s32.totalorder %s3158, 1
                %s3163 = sphi %s3138, %s3138
                %s3164 = sphi %s3149, %s3149
              $region101: #{cluster_block_forward.7} parent=97 // loop_header_branch
                %3161 = sbr.rel (%p3159) target = $region105
              $region102: #{cluster_block_forward.7} parent=97 // loop_body
                %v3165 = vld [vmem:[%s3163] sm:$0xff]
                %3166 = vst [vmem:[%s3164] sm:$0xff] %v3165
                %v3167 = vld [vmem:[%s3163 + $0x8] sm:$0xff]
                %3168 = vst [vmem:[%s3164 + $0x8] sm:$0xff] %v3167
                %v3169 = vld [vmem:[%s3163 + $0x10] sm:$0xff]
                %3170 = vst [vmem:[%s3164 + $0x10] sm:$0xff] %v3169
                %v3171 = vld [vmem:[%s3163 + $0x18] sm:$0xff]
                %3172 = vst [vmem:[%s3164 + $0x18] sm:$0xff] %v3171
                %v3173 = vld [vmem:[%s3163 + $0x20] sm:$0xff]
                %3174 = vst [vmem:[%s3164 + $0x40] sm:$0xff] %v3173
                %v3175 = vld [vmem:[%s3163 + $0x28] sm:$0xff]
                %3176 = vst [vmem:[%s3164 + $0x48] sm:$0xff] %v3175
                %v3177 = vld [vmem:[%s3163 + $0x30] sm:$0xff]
                %3178 = vst [vmem:[%s3164 + $0x50] sm:$0xff] %v3177
                %v3179 = vld [vmem:[%s3163 + $0x38] sm:$0xff]
                %3180 = vst [vmem:[%s3164 + $0x58] sm:$0xff] %v3179
                %v3181 = vld [vmem:[%s3163 + $0x40] sm:$0xff]
                %3182 = vst [vmem:[%s3164 + $0x80] sm:$0xff] %v3181
                %v3183 = vld [vmem:[%s3163 + $0x48] sm:$0xff]
                %3184 = vst [vmem:[%s3164 + $0x88] sm:$0xff] %v3183
                %v3185 = vld [vmem:[%s3163 + $0x50] sm:$0xff]
                %3186 = vst [vmem:[%s3164 + $0x90] sm:$0xff] %v3185
                %v3187 = vld [vmem:[%s3163 + $0x58] sm:$0xff]
                %3188 = vst [vmem:[%s3164 + $0x98] sm:$0xff] %v3187
                %v3189 = vld [vmem:[%s3163 + $0x60] sm:$0xff]
                %3190 = vst [vmem:[%s3164 + $0xc0] sm:$0xff] %v3189
                %v3191 = vld [vmem:[%s3163 + $0x68] sm:$0xff]
                %3192 = vst [vmem:[%s3164 + $0xc8] sm:$0xff] %v3191
                %v3193 = vld [vmem:[%s3163 + $0x70] sm:$0xff]
                %3194 = vst [vmem:[%s3164 + $0xd0] sm:$0xff] %v3193
                %v3195 = vld [vmem:[%s3163 + $0x78] sm:$0xff]
                %3196 = vst [vmem:[%s3164 + $0xd8] sm:$0xff] %v3195
              $region103: #{cluster_block_forward.7} parent=97 // loop_footer
                %s3162 = sadd.s32 1, %s3158
              $region104: #{cluster_block_forward.7} parent=97 // loop_footer_branch
                %3157 = sbr.rel target = $region100
              $region105: #{cluster_block_forward.7} parent=97 // loop_exit
                _
            $region98: #{cluster_block_forward.7} parent=89 // pred_fallthru
              _
          $region90: #{cluster_block_forward.7} parent=85 // pred_fallthru
            _
          %3241 = vnop
        $region86: #{cluster_block_forward.7} parent=77 // pred_fallthru
          _
      $region78: #{cluster_block_forward.7} parent=5 // pred_fallthru
        _
      %p3242 = scmp.le.s32.totalorder 2, %s14
      // Predicated region
      $region121: #{cluster_block_forward.7} parent=5 // pred_check
        %p3243 = pneg %p3242
      $region122: #{cluster_block_forward.7} parent=5 // pred_check_branch
        %3245 = sbr.rel (%p3243) target = $region124
      $region123: #{cluster_block_forward.7} parent=5 // pred_region
        %s3246 = ssub.s32 %s14, 2
        // Predicated region
        $region125: #{cluster_block_forward.7} parent=123 // pred_check
          %p3247 = pneg %p201
        $region126: #{cluster_block_forward.7} parent=123 // pred_check_branch
          %3249 = sbr.rel (%p3247) target = $region128
        $region127: #{cluster_block_forward.7} parent=123 // pred_region
          %s3250 = sand.u32 %s186, 1
          %s3251 = sand.u32 %s186, 1
          %s3252 = smul.addr %s3251, 128
          %s3253 = scalar_lea.vmem [#allocation5], %s3252
        $region128: #{cluster_block_forward.7} parent=123 // pred_fallthru
          _
      $region124: #{cluster_block_forward.7} parent=5 // pred_fallthru
        _
    $region6: #{cluster_block_forward.7} parent=1 // loop_footer
      %s18 = sadd.s32 1, %s14
    $region7: #{cluster_block_forward.7} parent=1 // loop_footer_branch
      %13 = sbr.rel target = $region3
    $region8: #{cluster_block_forward.7} parent=1 // loop_exit
      _

</llo_original>
